<compile_context>
chip_gen: v7x
topology: tpu7x:2x2x1
jax: 0.10.0
libtpu: 0.0.40
codegen_flags: <defaults>
</compile_context>

<pallas_src>
import functools
import math

import jax
import jax.numpy as jnp
from jax.experimental import pallas as pl
from jax.experimental.pallas import tpu as pltpu

# --- small "bert-base-cased"-shaped config (scaled down; HIDDEN stands in for BERT_LAST_LAYER=768) ---
VOCAB = 512
MAX_POS = 128
HIDDEN = 128
NUM_HEADS = 2
HEAD_DIM = HIDDEN // NUM_HEADS      # 64
HEAD_PAD = 128                      # per-head Q/K/V width padded to a full vreg lane group
QKV_W = NUM_HEADS * 3 * HEAD_PAD    # fused lane-aligned QKV projection width (768)
INTERMEDIATE = 512
NUM_LAYERS = 2
NUM_VALUES = 8                      # attribute.num_values
CLS_PAD = 128                       # lane-dense classifier output width (real cols sliced in wrapper)
LN_EPS = 1e-12
BATCH = 2
SEQ = 128


def _transcendental_dtype():
    """bf16 exp/tanh on v6e/v7x EUP (~2x); f32 everywhere else (v5e has no bf16 EUP path)."""
    try:
        kind = jax.devices()[0].device_kind.lower()
    except Exception:
        return jnp.float32
    if ("v6" in kind) or ("v7" in kind) or ("7x" in kind):
        return jnp.bfloat16
    return jnp.float32


_ACT_DTYPE = _transcendental_dtype()


# ----------------------------- in-kernel helpers -----------------------------

def _layer_norm(x, gamma, beta):
    mu = jnp.mean(x, axis=-1, keepdims=True)
    var = jnp.mean(jnp.square(x - mu), axis=-1, keepdims=True)
    return (x - mu) * jax.lax.rsqrt(var + LN_EPS) * gamma + beta


# ----------------------------- fully fused forward kernel -----------------------------

def _fused_forward_kernel(ids_ref, mask_ref, wemb_ref, pemb_ref, temb_ref,
                          eg_ref, eb_ref,
                          wqkv_ref, bqkv_ref, wo_ref, bo_ref, g1_ref, be1_ref,
                          w1_ref, b1_ref, w2_ref, b2_ref, g2_ref, be2_ref,
                          cw_ref, cb_ref, out_ref, *, scale, act_dtype):
    S = SEQ

    # ---- embeddings: in-kernel one-hot gather (MXU) + pos/type add + LayerNorm ----
    ids = ids_ref[...]                                              # [S, 1] int32
    vocab_iota = jax.lax.broadcasted_iota(jnp.int32, (S, VOCAB), 1)
    onehot = jnp.where(ids == vocab_iota, 1.0, 0.0).astype(jnp.bfloat16)   # [S, VOCAB]
    we = jnp.dot(onehot, wemb_ref[...], preferred_element_type=jnp.float32)
    x = we + pemb_ref[...] + temb_ref[...]
    h = _layer_norm(x, eg_ref[...], eb_ref[...])                    # [S, H] f32

    # ---- HF-style additive attention mask; broadcast hoisted once for all layers/heads ----
    bias = jnp.broadcast_to((1.0 - mask_ref[...]) * -10000.0, (S, S))   # [S, S] f32

    for l in range(NUM_LAYERS):                                     # static unroll (NUM_LAYERS=2)
        # ---------------- attention sub-block ----------------
        hb = h.astype(jnp.bfloat16)
        qkv = jnp.dot(hb, wqkv_ref[l], preferred_element_type=jnp.float32) + bqkv_ref[l]
        wo_l = wo_ref[l]                                            # [NUM_HEADS*HEAD_PAD, H] bf16

        attn_out = None
        for hd in range(NUM_HEADS):                                 # static unroll; 128-lane slices
            base = hd * 3 * HEAD_PAD
            q = qkv[:, base:base + HEAD_PAD]                        # lane-aligned free views
            k = qkv[:, base + HEAD_PAD:base + 2 * HEAD_PAD]
            v = qkv[:, base + 2 * HEAD_PAD:base + 3 * HEAD_PAD]

            # scores: contract last dims of q and k directly (no k.T materialization)
            s = jax.lax.dot_general(q.astype(jnp.bfloat16), k.astype(jnp.bfloat16),
                                    (((1,), (1,)), ((), ())),
                                    preferred_element_type=jnp.float32) * scale + bias
            m = jnp.max(s, axis=-1, keepdims=True)
            p = jnp.exp((s - m).astype(act_dtype))                  # bf16 EUP on v6e/v7x, f32 on v5e
            denom = jnp.sum(p.astype(jnp.float32), axis=-1, keepdims=True)

            ctx = jnp.dot(p.astype(jnp.bfloat16), v.astype(jnp.bfloat16),
                          preferred_element_type=jnp.float32)       # [S, HEAD_PAD]
            ctx = ctx * pl.reciprocal(denom)                        # exact; normalize after matmul

            # per-head output projection against row-padded Wo block (128-sublane aligned slice)
            part = jnp.dot(ctx.astype(jnp.bfloat16),
                           wo_l[hd * HEAD_PAD:(hd + 1) * HEAD_PAD, :],
                           preferred_element_type=jnp.float32)      # [S, H]
            attn_out = part if attn_out is None else attn_out + part

        attn_out = attn_out + bo_ref[l]
        h = _layer_norm(attn_out + h, g1_ref[l], be1_ref[l])        # residual + LN (dropout = id)

        # ---------------- FFN sub-block ----------------
        t = jnp.dot(h.astype(jnp.bfloat16), w1_ref[l],
                    preferred_element_type=jnp.float32) + b1_ref[l]
        # TODO(synk): HF BERT uses exact erf-GELU; tanh-approx GELU used here (diff ~1e-3).
        t = jax.nn.gelu(t.astype(act_dtype), approximate=True)
        t = jnp.dot(t.astype(jnp.bfloat16), w2_ref[l],
                    preferred_element_type=jnp.float32) + b2_ref[l]
        h = _layer_norm(t + h, g2_ref[l], be2_ref[l])               # residual + LN (dropout = id)

    # ---------------- classifier (self.dropout is identity in eval) ----------------
    out_ref[...] = jnp.dot(h.astype(jnp.bfloat16), cw_ref[...],
                           preferred_element_type=jnp.float32) + cb_ref[...]


# ----------------------------- wrapper -----------------------------

def bert_iso_forward(params, input_ids, mask):
    B, S = input_ids.shape
    ids = input_ids.reshape(B * S, 1).astype(jnp.int32)             # [B*S, 1]
    mask_f = mask.astype(jnp.float32).reshape(B, 1, S)              # [B, 1, S]
    pe = params["pos_emb"][:S]                                      # [S, H]
    te = params["type_emb"][0].reshape(1, HIDDEN)                   # [1, H] (all tokens type 0)

    full2 = lambda r, c: pl.BlockSpec((r, c), lambda b: (0, 0))
    full3 = lambda a, r, c: pl.BlockSpec((a, r, c), lambda b: (0, 0, 0))

    kernel = functools.partial(_fused_forward_kernel,
                               scale=1.0 / math.sqrt(HEAD_DIM),
                               act_dtype=_ACT_DTYPE)

    logits_pad = pl.pallas_call(
        kernel,
        out_shape=jax.ShapeDtypeStruct((B * S, CLS_PAD), jnp.float32),
        grid=(B,),
        in_specs=[
            pl.BlockSpec((SEQ, 1), lambda b: (b, 0)),               # input ids (rows of batch b)
            pl.BlockSpec((None, 1, SEQ), lambda b: (b, 0, 0)),      # attention mask row of batch b
            full2(VOCAB, HIDDEN),                                   # word embeddings (bf16)
            full2(SEQ, HIDDEN),                                     # position embeddings
            full2(1, HIDDEN),                                       # token-type-0 embedding
            full2(1, HIDDEN), full2(1, HIDDEN),                     # embedding LN gamma / beta
            full3(NUM_LAYERS, HIDDEN, QKV_W),                       # fused lane-aligned Wqkv (bf16)
            full3(NUM_LAYERS, 1, QKV_W),                            # bqkv (pad lanes zero)
            full3(NUM_LAYERS, NUM_HEADS * HEAD_PAD, HIDDEN),        # Wo, per-head row-padded (bf16)
            full3(NUM_LAYERS, 1, HIDDEN),                           # bo
            full3(NUM_LAYERS, 1, HIDDEN), full3(NUM_LAYERS, 1, HIDDEN),   # LN1 gamma / beta
            full3(NUM_LAYERS, HIDDEN, INTERMEDIATE),                # W1 (bf16)
            full3(NUM_LAYERS, 1, INTERMEDIATE),                     # b1
            full3(NUM_LAYERS, INTERMEDIATE, HIDDEN),                # W2 (bf16)
            full3(NUM_LAYERS, 1, HIDDEN),                           # b2
            full3(NUM_LAYERS, 1, HIDDEN), full3(NUM_LAYERS, 1, HIDDEN),   # LN2 gamma / beta
            full2(HIDDEN, CLS_PAD),                                 # classifier weight (padded, bf16)
            full2(1, CLS_PAD),                                      # classifier bias (padded)
        ],
        out_specs=pl.BlockSpec((SEQ, CLS_PAD), lambda b: (b, 0)),
        compiler_params=pltpu.CompilerParams(dimension_semantics=("parallel",)),
    )(ids, mask_f, params["word_emb"], pe, te, params["emb_ln_g"], params["emb_ln_b"],
      params["wqkv"], params["bqkv"], params["wo"], params["bo"],
      params["ln1_g"], params["ln1_b"],
      params["w1"], params["b1"], params["w2"], params["b2"],
      params["ln2_g"], params["ln2_b"],
      params["cls_w"], params["cls_b"])

    return logits_pad[:, :NUM_VALUES].reshape(B, S, NUM_VALUES)


# ----------------------------- parameter construction -----------------------------

def init_params(key):
    keys = iter(jax.random.split(key, 8 + NUM_LAYERS * 8))
    dense = lambda shape: jax.random.normal(next(keys), shape, jnp.float32) * 0.02

    def pad_cols(w, width):
        return jnp.pad(w, ((0, 0), (0, width - w.shape[1])))

    wqkv_l, bqkv_l, wo_l, bo_l = [], [], [], []
    ln1g_l, ln1b_l = [], []
    w1_l, b1_l, w2_l, b2_l = [], [], [], []
    ln2g_l, ln2b_l = [], []

    for _ in range(NUM_LAYERS):
        wq, wk, wv = dense((HIDDEN, HIDDEN)), dense((HIDDEN, HIDDEN)), dense((HIDDEN, HIDDEN))
        bq = jnp.zeros((HIDDEN,), jnp.float32)
        bk = jnp.zeros((HIDDEN,), jnp.float32)
        bv = jnp.zeros((HIDDEN,), jnp.float32)
        wo = dense((HIDDEN, HIDDEN))

        head_w, head_b, wo_blocks = [], [], []
        for hd in range(NUM_HEADS):
            sl = slice(hd * HEAD_DIM, (hd + 1) * HEAD_DIM)
            # per-head Q/K/V blocks zero-padded to 128 lanes (pad lanes contribute 0 everywhere)
            head_w += [pad_cols(wq[:, sl], HEAD_PAD),
                       pad_cols(wk[:, sl], HEAD_PAD),
                       pad_cols(wv[:, sl], HEAD_PAD)]
            head_b += [jnp.pad(bq[sl], (0, HEAD_PAD - HEAD_DIM)),
                       jnp.pad(bk[sl], (0, HEAD_PAD - HEAD_DIM)),
                       jnp.pad(bv[sl], (0, HEAD_PAD - HEAD_DIM))]
            # Wo rows of this head, zero-padded to 128 sublanes (zero rows kill padded ctx lanes)
            wo_blocks.append(jnp.pad(wo[sl, :], ((0, HEAD_PAD - HEAD_DIM), (0, 0))))

        wqkv_l.append(jnp.concatenate(head_w, axis=1).astype(jnp.bfloat16))   # [H, QKV_W]
        bqkv_l.append(jnp.concatenate(head_b, axis=0).reshape(1, QKV_W))      # [1, QKV_W]
        wo_l.append(jnp.concatenate(wo_blocks, axis=0).astype(jnp.bfloat16))  # [NH*HEAD_PAD, H]
        bo_l.append(jnp.zeros((1, HIDDEN), jnp.float32))
        ln1g_l.append(jnp.ones((1, HIDDEN), jnp.float32))
        ln1b_l.append(jnp.zeros((1, HIDDEN), jnp.float32))
        w1_l.append(dense((HIDDEN, INTERMEDIATE)).astype(jnp.bfloat16))
        b1_l.append(jnp.zeros((1, INTERMEDIATE), jnp.float32))
        w2_l.append(dense((INTERMEDIATE, HIDDEN)).astype(jnp.bfloat16))
        b2_l.append(jnp.zeros((1, HIDDEN), jnp.float32))
        ln2g_l.append(jnp.ones((1, HIDDEN), jnp.float32))
        ln2b_l.append(jnp.zeros((1, HIDDEN), jnp.float32))

    cls_w = dense((HIDDEN, NUM_VALUES))

    return {
        "word_emb": dense((VOCAB, HIDDEN)).astype(jnp.bfloat16),
        "pos_emb": dense((MAX_POS, HIDDEN)),
        "type_emb": dense((2, HIDDEN)),
        "emb_ln_g": jnp.ones((1, HIDDEN), jnp.float32),
        "emb_ln_b": jnp.zeros((1, HIDDEN), jnp.float32),
        # stacked per-layer weights (leading layer axis; static in-kernel loop indexes it)
        "wqkv": jnp.stack(wqkv_l), "bqkv": jnp.stack(bqkv_l),
        "wo": jnp.stack(wo_l), "bo": jnp.stack(bo_l),
        "ln1_g": jnp.stack(ln1g_l), "ln1_b": jnp.stack(ln1b_l),
        "w1": jnp.stack(w1_l), "b1": jnp.stack(b1_l),
        "w2": jnp.stack(w2_l), "b2": jnp.stack(b2_l),
        "ln2_g": jnp.stack(ln2g_l), "ln2_b": jnp.stack(ln2b_l),
        # classifier padded to 128 lanes (extra cols zero; sliced off in the wrapper)
        "cls_w": jnp.pad(cls_w, ((0, 0), (0, CLS_PAD - NUM_VALUES))).astype(jnp.bfloat16),
        "cls_b": jnp.zeros((1, CLS_PAD), jnp.float32),
    }


if __name__ == "__main__":
    root = jax.random.PRNGKey(0)
    pkey, ikey = jax.random.split(root)
    params = init_params(pkey)

    input_ids = jax.random.randint(ikey, (BATCH, SEQ), 0, VOCAB, dtype=jnp.int32)
    mask = jnp.ones((BATCH, SEQ), dtype=jnp.int32).at[1, SEQ - 16:].set(0)  # pad tail of example 1

    logits = jax.jit(bert_iso_forward)(params, input_ids, mask)
    jax.block_until_ready(logits)
    assert logits.shape == (BATCH, SEQ, NUM_VALUES)
    assert logits.dtype == jnp.float32
    print("KERNEL_OK")
</pallas_src>

<mosaic_0001>
module attributes {stable_mosaic.version = 11 : i64} {
  func.func @_fused_forward_kernel(%arg0: i32, %arg1: memref<128x1xi32, #tpu.memory_space<vmem>>, %arg2: memref<1x1x128xf32, #tpu.memory_space<vmem>>, %arg3: memref<512x128xbf16, #tpu.memory_space<vmem>>, %arg4: memref<128x128xf32, #tpu.memory_space<vmem>>, %arg5: memref<1x128xf32, #tpu.memory_space<vmem>>, %arg6: memref<1x128xf32, #tpu.memory_space<vmem>>, %arg7: memref<1x128xf32, #tpu.memory_space<vmem>>, %arg8: memref<2x128x768xbf16, #tpu.memory_space<vmem>>, %arg9: memref<2x1x768xf32, #tpu.memory_space<vmem>>, %arg10: memref<2x256x128xbf16, #tpu.memory_space<vmem>>, %arg11: memref<2x1x128xf32, #tpu.memory_space<vmem>>, %arg12: memref<2x1x128xf32, #tpu.memory_space<vmem>>, %arg13: memref<2x1x128xf32, #tpu.memory_space<vmem>>, %arg14: memref<2x128x512xbf16, #tpu.memory_space<vmem>>, %arg15: memref<2x1x512xf32, #tpu.memory_space<vmem>>, %arg16: memref<2x512x128xbf16, #tpu.memory_space<vmem>>, %arg17: memref<2x1x128xf32, #tpu.memory_space<vmem>>, %arg18: memref<2x1x128xf32, #tpu.memory_space<vmem>>, %arg19: memref<2x1x128xf32, #tpu.memory_space<vmem>>, %arg20: memref<128x128xbf16, #tpu.memory_space<vmem>>, %arg21: memref<1x128xf32, #tpu.memory_space<vmem>>, %arg22: memref<128x128xf32, #tpu.memory_space<vmem>>) attributes {dimension_semantics = [#tpu.dimension_semantics<parallel>], iteration_bounds = array<i64: 2>, scalar_prefetch = 0 : i64, scratch_operands = 0 : i64, tpu.core_type = #tpu.core_type<tc>, window_params = [{transform_indices = @transform_0, window_bounds = array<i64: 128, 1>}, {transform_indices = @transform_1, window_bounds = array<i64: 1, 1, 128>}, {pipeline_mode = #tpu.pipeline_mode<synchronous>, transform_indices = @transform_2, window_bounds = array<i64: 512, 128>}, {pipeline_mode = #tpu.pipeline_mode<synchronous>, transform_indices = @transform_3, window_bounds = array<i64: 128, 128>}, {pipeline_mode = #tpu.pipeline_mode<synchronous>, transform_indices = @transform_4, window_bounds = array<i64: 1, 128>}, {pipeline_mode = #tpu.pipeline_mode<synchronous>, transform_indices = @transform_5, window_bounds = array<i64: 1, 128>}, {pipeline_mode = #tpu.pipeline_mode<synchronous>, transform_indices = @transform_6, window_bounds = array<i64: 1, 128>}, {pipeline_mode = #tpu.pipeline_mode<synchronous>, transform_indices = @transform_7, window_bounds = array<i64: 2, 128, 768>}, {pipeline_mode = #tpu.pipeline_mode<synchronous>, transform_indices = @transform_8, window_bounds = array<i64: 2, 1, 768>}, {pipeline_mode = #tpu.pipeline_mode<synchronous>, transform_indices = @transform_9, window_bounds = array<i64: 2, 256, 128>}, {pipeline_mode = #tpu.pipeline_mode<synchronous>, transform_indices = @transform_10, window_bounds = array<i64: 2, 1, 128>}, {pipeline_mode = #tpu.pipeline_mode<synchronous>, transform_indices = @transform_11, window_bounds = array<i64: 2, 1, 128>}, {pipeline_mode = #tpu.pipeline_mode<synchronous>, transform_indices = @transform_12, window_bounds = array<i64: 2, 1, 128>}, {pipeline_mode = #tpu.pipeline_mode<synchronous>, transform_indices = @transform_13, window_bounds = array<i64: 2, 128, 512>}, {pipeline_mode = #tpu.pipeline_mode<synchronous>, transform_indices = @transform_14, window_bounds = array<i64: 2, 1, 512>}, {pipeline_mode = #tpu.pipeline_mode<synchronous>, transform_indices = @transform_15, window_bounds = array<i64: 2, 512, 128>}, {pipeline_mode = #tpu.pipeline_mode<synchronous>, transform_indices = @transform_16, window_bounds = array<i64: 2, 1, 128>}, {pipeline_mode = #tpu.pipeline_mode<synchronous>, transform_indices = @transform_17, window_bounds = array<i64: 2, 1, 128>}, {pipeline_mode = #tpu.pipeline_mode<synchronous>, transform_indices = @transform_18, window_bounds = array<i64: 2, 1, 128>}, {pipeline_mode = #tpu.pipeline_mode<synchronous>, transform_indices = @transform_19, window_bounds = array<i64: 128, 128>}, {pipeline_mode = #tpu.pipeline_mode<synchronous>, transform_indices = @transform_20, window_bounds = array<i64: 1, 128>}, {transform_indices = @transform_21, window_bounds = array<i64: 128, 128>}]} {
    %c0 = arith.constant 0 : index
    %c0_0 = arith.constant 0 : index
    %0 = vector.load %arg1[%c0, %c0_0] : memref<128x1xi32, #tpu.memory_space<vmem>>, vector<128x1xi32>
    %1 = tpu.iota {dimensions = array<i32: 1>} : vector<128x512xi32>
    %2 = vector.broadcast %0 : vector<128x1xi32> to vector<128x512xi32>
    %3 = arith.cmpi eq, %2, %1 : vector<128x512xi32>
    %cst = arith.constant 1.000000e+00 : f32
    %cst_1 = arith.constant 0.000000e+00 : f32
    %4 = vector.broadcast %cst : f32 to vector<128x512xf32>
    %5 = vector.broadcast %cst_1 : f32 to vector<128x512xf32>
    %6 = arith.select %3, %4, %5 : vector<128x512xi1>, vector<128x512xf32>
    %7 = arith.truncf %6 : vector<128x512xf32> to vector<128x512xbf16>
    %c0_2 = arith.constant 0 : index
    %c0_3 = arith.constant 0 : index
    %8 = vector.load %arg3[%c0_2, %c0_3] : memref<512x128xbf16, #tpu.memory_space<vmem>>, vector<512x128xbf16>
    %cst_4 = arith.constant dense<0.000000e+00> : vector<128x128xf32>
    %9 = tpu.matmul %7, %8, %cst_4 {dimension_numbers = #tpu.dot_dimension_numbers<[1], [0], [0], [1], [0, 0, 1, 1], [], []>} : vector<128x512xbf16>, vector<512x128xbf16>, vector<128x128xf32> -> vector<128x128xf32>
    %c0_5 = arith.constant 0 : index
    %c0_6 = arith.constant 0 : index
    %10 = vector.load %arg4[%c0_5, %c0_6] : memref<128x128xf32, #tpu.memory_space<vmem>>, vector<128x128xf32>
    %11 = arith.addf %9, %10 : vector<128x128xf32>
    %c0_7 = arith.constant 0 : index
    %c0_8 = arith.constant 0 : index
    %12 = vector.load %arg5[%c0_7, %c0_8] : memref<1x128xf32, #tpu.memory_space<vmem>>, vector<1x128xf32>
    %13 = vector.broadcast %12 : vector<1x128xf32> to vector<128x128xf32>
    %14 = arith.addf %11, %13 : vector<128x128xf32>
    %c0_9 = arith.constant 0 : index
    %c0_10 = arith.constant 0 : index
    %15 = vector.load %arg6[%c0_9, %c0_10] : memref<1x128xf32, #tpu.memory_space<vmem>>, vector<1x128xf32>
    %c0_11 = arith.constant 0 : index
    %c0_12 = arith.constant 0 : index
    %16 = vector.load %arg7[%c0_11, %c0_12] : memref<1x128xf32, #tpu.memory_space<vmem>>, vector<1x128xf32>
    %cst_13 = arith.constant dense<0.000000e+00> : vector<128xf32>
    %17 = vector.multi_reduction <add>, %14, %cst_13 [1] : vector<128x128xf32> to vector<128xf32>
    %18 = vector.shape_cast %17 : vector<128xf32> to vector<128x1xf32>
    %cst_14 = arith.constant 1.280000e+02 : f32
    %19 = vector.broadcast %cst_14 : f32 to vector<128x1xf32>
    %20 = arith.divf %18, %19 : vector<128x1xf32>
    %21 = vector.broadcast %20 : vector<128x1xf32> to vector<128x128xf32>
    %22 = arith.subf %14, %21 : vector<128x128xf32>
    %23 = arith.mulf %22, %22 : vector<128x128xf32>
    %cst_15 = arith.constant dense<0.000000e+00> : vector<128xf32>
    %24 = vector.multi_reduction <add>, %23, %cst_15 [1] : vector<128x128xf32> to vector<128xf32>
    %25 = vector.shape_cast %24 : vector<128xf32> to vector<128x1xf32>
    %cst_16 = arith.constant 1.280000e+02 : f32
    %26 = vector.broadcast %cst_16 : f32 to vector<128x1xf32>
    %27 = arith.divf %25, %26 : vector<128x1xf32>
    %28 = vector.broadcast %20 : vector<128x1xf32> to vector<128x128xf32>
    %29 = arith.subf %14, %28 : vector<128x128xf32>
    %cst_17 = arith.constant 9.99999996E-13 : f32
    %30 = vector.broadcast %cst_17 : f32 to vector<128x1xf32>
    %31 = arith.addf %27, %30 : vector<128x1xf32>
    %32 = math.rsqrt %31 : vector<128x1xf32>
    %33 = vector.broadcast %32 : vector<128x1xf32> to vector<128x128xf32>
    %34 = arith.mulf %29, %33 : vector<128x128xf32>
    %35 = vector.broadcast %15 : vector<1x128xf32> to vector<128x128xf32>
    %36 = arith.mulf %34, %35 : vector<128x128xf32>
    %37 = vector.broadcast %16 : vector<1x128xf32> to vector<128x128xf32>
    %38 = arith.addf %36, %37 : vector<128x128xf32>
    %c0_18 = arith.constant 0 : index
    %c0_19 = arith.constant 0 : index
    %c0_20 = arith.constant 0 : index
    %39 = vector.load %arg2[%c0_18, %c0_19, %c0_20] : memref<1x1x128xf32, #tpu.memory_space<vmem>>, vector<1x1x128xf32>
    %40 = vector.shape_cast %39 : vector<1x1x128xf32> to vector<1x128xf32>
    %cst_21 = arith.constant 1.000000e+00 : f32
    %41 = vector.broadcast %cst_21 : f32 to vector<1x128xf32>
    %42 = arith.subf %41, %40 : vector<1x128xf32>
    %cst_22 = arith.constant -1.000000e+04 : f32
    %43 = vector.broadcast %cst_22 : f32 to vector<1x128xf32>
    %44 = arith.mulf %42, %43 : vector<1x128xf32>
    %45 = vector.shape_cast %44 : vector<1x128xf32> to vector<1x128xf32>
    %46 = vector.broadcast %45 : vector<1x128xf32> to vector<128x128xf32>
    %47 = arith.truncf %38 : vector<128x128xf32> to vector<128x128xbf16>
    %c0_23 = arith.constant 0 : index
    %c0_24 = arith.constant 0 : index
    %c0_25 = arith.constant 0 : index
    %48 = vector.load %arg8[%c0_23, %c0_24, %c0_25] : memref<2x128x768xbf16, #tpu.memory_space<vmem>>, vector<1x128x768xbf16>
    %49 = vector.shape_cast %48 : vector<1x128x768xbf16> to vector<128x768xbf16>
    %cst_26 = arith.constant dense<0.000000e+00> : vector<128x768xf32>
    %50 = tpu.matmul %47, %49, %cst_26 {dimension_numbers = #tpu.dot_dimension_numbers<[1], [0], [0], [1], [0, 0, 1, 1], [], []>} : vector<128x128xbf16>, vector<128x768xbf16>, vector<128x768xf32> -> vector<128x768xf32>
    %c0_27 = arith.constant 0 : index
    %c0_28 = arith.constant 0 : index
    %c0_29 = arith.constant 0 : index
    %51 = vector.load %arg9[%c0_27, %c0_28, %c0_29] : memref<2x1x768xf32, #tpu.memory_space<vmem>>, vector<1x1x768xf32>
    %52 = vector.shape_cast %51 : vector<1x1x768xf32> to vector<1x768xf32>
    %53 = vector.broadcast %52 : vector<1x768xf32> to vector<128x768xf32>
    %54 = arith.addf %50, %53 : vector<128x768xf32>
    %c0_30 = arith.constant 0 : index
    %c0_31 = arith.constant 0 : index
    %c0_32 = arith.constant 0 : index
    %55 = vector.load %arg10[%c0_30, %c0_31, %c0_32] : memref<2x256x128xbf16, #tpu.memory_space<vmem>>, vector<1x256x128xbf16>
    %56 = vector.shape_cast %55 : vector<1x256x128xbf16> to vector<256x128xbf16>
    %57 = vector.extract_strided_slice %54 {offsets = [0, 0], sizes = [128, 128], strides = [1, 1]} : vector<128x768xf32> to vector<128x128xf32>
    %58 = vector.extract_strided_slice %54 {offsets = [0, 128], sizes = [128, 128], strides = [1, 1]} : vector<128x768xf32> to vector<128x128xf32>
    %59 = vector.extract_strided_slice %54 {offsets = [0, 256], sizes = [128, 128], strides = [1, 1]} : vector<128x768xf32> to vector<128x128xf32>
    %60 = arith.truncf %57 : vector<128x128xf32> to vector<128x128xbf16>
    %61 = arith.truncf %58 : vector<128x128xf32> to vector<128x128xbf16>
    %cst_33 = arith.constant dense<0.000000e+00> : vector<128x128xf32>
    %62 = tpu.matmul %60, %61, %cst_33 {dimension_numbers = #tpu.dot_dimension_numbers<[1], [1], [0], [0], [0, 0, 1, 0], [], []>} : vector<128x128xbf16>, vector<128x128xbf16>, vector<128x128xf32> -> vector<128x128xf32>
    %cst_34 = arith.constant 1.250000e-01 : f32
    %63 = vector.broadcast %cst_34 : f32 to vector<128x128xf32>
    %64 = arith.mulf %62, %63 : vector<128x128xf32>
    %65 = arith.addf %64, %46 : vector<128x128xf32>
    %cst_35 = arith.constant dense<0xFF800000> : vector<128xf32>
    %66 = vector.multi_reduction <maximumf>, %65, %cst_35 [1] : vector<128x128xf32> to vector<128xf32>
    %67 = vector.shape_cast %66 : vector<128xf32> to vector<128x1xf32>
    %68 = vector.broadcast %67 : vector<128x1xf32> to vector<128x128xf32>
    %69 = arith.subf %65, %68 : vector<128x128xf32>
    %70 = math.exp %69 : vector<128x128xf32>
    %cst_36 = arith.constant dense<0.000000e+00> : vector<128xf32>
    %71 = vector.multi_reduction <add>, %70, %cst_36 [1] : vector<128x128xf32> to vector<128xf32>
    %72 = vector.shape_cast %71 : vector<128xf32> to vector<128x1xf32>
    %73 = arith.truncf %70 : vector<128x128xf32> to vector<128x128xbf16>
    %74 = arith.truncf %59 : vector<128x128xf32> to vector<128x128xbf16>
    %cst_37 = arith.constant dense<0.000000e+00> : vector<128x128xf32>
    %75 = tpu.matmul %73, %74, %cst_37 {dimension_numbers = #tpu.dot_dimension_numbers<[1], [0], [0], [1], [0, 0, 1, 1], [], []>} : vector<128x128xbf16>, vector<128x128xbf16>, vector<128x128xf32> -> vector<128x128xf32>
    %76 = tpu.reciprocal %72 : vector<128x1xf32> -> vector<128x1xf32>
    %77 = vector.broadcast %76 : vector<128x1xf32> to vector<128x128xf32>
    %78 = arith.mulf %75, %77 : vector<128x128xf32>
    %79 = arith.truncf %78 : vector<128x128xf32> to vector<128x128xbf16>
    %80 = vector.extract_strided_slice %56 {offsets = [0, 0], sizes = [128, 128], strides = [1, 1]} : vector<256x128xbf16> to vector<128x128xbf16>
    %cst_38 = arith.constant dense<0.000000e+00> : vector<128x128xf32>
    %81 = tpu.matmul %79, %80, %cst_38 {dimension_numbers = #tpu.dot_dimension_numbers<[1], [0], [0], [1], [0, 0, 1, 1], [], []>} : vector<128x128xbf16>, vector<128x128xbf16>, vector<128x128xf32> -> vector<128x128xf32>
    %82 = vector.extract_strided_slice %54 {offsets = [0, 384], sizes = [128, 128], strides = [1, 1]} : vector<128x768xf32> to vector<128x128xf32>
    %83 = vector.extract_strided_slice %54 {offsets = [0, 512], sizes = [128, 128], strides = [1, 1]} : vector<128x768xf32> to vector<128x128xf32>
    %84 = vector.extract_strided_slice %54 {offsets = [0, 640], sizes = [128, 128], strides = [1, 1]} : vector<128x768xf32> to vector<128x128xf32>
    %85 = arith.truncf %82 : vector<128x128xf32> to vector<128x128xbf16>
    %86 = arith.truncf %83 : vector<128x128xf32> to vector<128x128xbf16>
    %cst_39 = arith.constant dense<0.000000e+00> : vector<128x128xf32>
    %87 = tpu.matmul %85, %86, %cst_39 {dimension_numbers = #tpu.dot_dimension_numbers<[1], [1], [0], [0], [0, 0, 1, 0], [], []>} : vector<128x128xbf16>, vector<128x128xbf16>, vector<128x128xf32> -> vector<128x128xf32>
    %cst_40 = arith.constant 1.250000e-01 : f32
    %88 = vector.broadcast %cst_40 : f32 to vector<128x128xf32>
    %89 = arith.mulf %87, %88 : vector<128x128xf32>
    %90 = arith.addf %89, %46 : vector<128x128xf32>
    %cst_41 = arith.constant dense<0xFF800000> : vector<128xf32>
    %91 = vector.multi_reduction <maximumf>, %90, %cst_41 [1] : vector<128x128xf32> to vector<128xf32>
    %92 = vector.shape_cast %91 : vector<128xf32> to vector<128x1xf32>
    %93 = vector.broadcast %92 : vector<128x1xf32> to vector<128x128xf32>
    %94 = arith.subf %90, %93 : vector<128x128xf32>
    %95 = math.exp %94 : vector<128x128xf32>
    %cst_42 = arith.constant dense<0.000000e+00> : vector<128xf32>
    %96 = vector.multi_reduction <add>, %95, %cst_42 [1] : vector<128x128xf32> to vector<128xf32>
    %97 = vector.shape_cast %96 : vector<128xf32> to vector<128x1xf32>
    %98 = arith.truncf %95 : vector<128x128xf32> to vector<128x128xbf16>
    %99 = arith.truncf %84 : vector<128x128xf32> to vector<128x128xbf16>
    %cst_43 = arith.constant dense<0.000000e+00> : vector<128x128xf32>
    %100 = tpu.matmul %98, %99, %cst_43 {dimension_numbers = #tpu.dot_dimension_numbers<[1], [0], [0], [1], [0, 0, 1, 1], [], []>} : vector<128x128xbf16>, vector<128x128xbf16>, vector<128x128xf32> -> vector<128x128xf32>
    %101 = tpu.reciprocal %97 : vector<128x1xf32> -> vector<128x1xf32>
    %102 = vector.broadcast %101 : vector<128x1xf32> to vector<128x128xf32>
    %103 = arith.mulf %100, %102 : vector<128x128xf32>
    %104 = arith.truncf %103 : vector<128x128xf32> to vector<128x128xbf16>
    %105 = vector.extract_strided_slice %56 {offsets = [128, 0], sizes = [128, 128], strides = [1, 1]} : vector<256x128xbf16> to vector<128x128xbf16>
    %cst_44 = arith.constant dense<0.000000e+00> : vector<128x128xf32>
    %106 = tpu.matmul %104, %105, %cst_44 {dimension_numbers = #tpu.dot_dimension_numbers<[1], [0], [0], [1], [0, 0, 1, 1], [], []>} : vector<128x128xbf16>, vector<128x128xbf16>, vector<128x128xf32> -> vector<128x128xf32>
    %107 = arith.addf %81, %106 : vector<128x128xf32>
    %c0_45 = arith.constant 0 : index
    %c0_46 = arith.constant 0 : index
    %c0_47 = arith.constant 0 : index
    %108 = vector.load %arg11[%c0_45, %c0_46, %c0_47] : memref<2x1x128xf32, #tpu.memory_space<vmem>>, vector<1x1x128xf32>
    %109 = vector.shape_cast %108 : vector<1x1x128xf32> to vector<1x128xf32>
    %110 = vector.broadcast %109 : vector<1x128xf32> to vector<128x128xf32>
    %111 = arith.addf %107, %110 : vector<128x128xf32>
    %112 = arith.addf %111, %38 : vector<128x128xf32>
    %c0_48 = arith.constant 0 : index
    %c0_49 = arith.constant 0 : index
    %c0_50 = arith.constant 0 : index
    %113 = vector.load %arg12[%c0_48, %c0_49, %c0_50] : memref<2x1x128xf32, #tpu.memory_space<vmem>>, vector<1x1x128xf32>
    %114 = vector.shape_cast %113 : vector<1x1x128xf32> to vector<1x128xf32>
    %c0_51 = arith.constant 0 : index
    %c0_52 = arith.constant 0 : index
    %c0_53 = arith.constant 0 : index
    %115 = vector.load %arg13[%c0_51, %c0_52, %c0_53] : memref<2x1x128xf32, #tpu.memory_space<vmem>>, vector<1x1x128xf32>
    %116 = vector.shape_cast %115 : vector<1x1x128xf32> to vector<1x128xf32>
    %cst_54 = arith.constant dense<0.000000e+00> : vector<128xf32>
    %117 = vector.multi_reduction <add>, %112, %cst_54 [1] : vector<128x128xf32> to vector<128xf32>
    %118 = vector.shape_cast %117 : vector<128xf32> to vector<128x1xf32>
    %cst_55 = arith.constant 1.280000e+02 : f32
    %119 = vector.broadcast %cst_55 : f32 to vector<128x1xf32>
    %120 = arith.divf %118, %119 : vector<128x1xf32>
    %121 = vector.broadcast %120 : vector<128x1xf32> to vector<128x128xf32>
    %122 = arith.subf %112, %121 : vector<128x128xf32>
    %123 = arith.mulf %122, %122 : vector<128x128xf32>
    %cst_56 = arith.constant dense<0.000000e+00> : vector<128xf32>
    %124 = vector.multi_reduction <add>, %123, %cst_56 [1] : vector<128x128xf32> to vector<128xf32>
    %125 = vector.shape_cast %124 : vector<128xf32> to vector<128x1xf32>
    %cst_57 = arith.constant 1.280000e+02 : f32
    %126 = vector.broadcast %cst_57 : f32 to vector<128x1xf32>
    %127 = arith.divf %125, %126 : vector<128x1xf32>
    %128 = vector.broadcast %120 : vector<128x1xf32> to vector<128x128xf32>
    %129 = arith.subf %112, %128 : vector<128x128xf32>
    %cst_58 = arith.constant 9.99999996E-13 : f32
    %130 = vector.broadcast %cst_58 : f32 to vector<128x1xf32>
    %131 = arith.addf %127, %130 : vector<128x1xf32>
    %132 = math.rsqrt %131 : vector<128x1xf32>
    %133 = vector.broadcast %132 : vector<128x1xf32> to vector<128x128xf32>
    %134 = arith.mulf %129, %133 : vector<128x128xf32>
    %135 = vector.broadcast %114 : vector<1x128xf32> to vector<128x128xf32>
    %136 = arith.mulf %134, %135 : vector<128x128xf32>
    %137 = vector.broadcast %116 : vector<1x128xf32> to vector<128x128xf32>
    %138 = arith.addf %136, %137 : vector<128x128xf32>
    %139 = arith.truncf %138 : vector<128x128xf32> to vector<128x128xbf16>
    %c0_59 = arith.constant 0 : index
    %c0_60 = arith.constant 0 : index
    %c0_61 = arith.constant 0 : index
    %140 = vector.load %arg14[%c0_59, %c0_60, %c0_61] : memref<2x128x512xbf16, #tpu.memory_space<vmem>>, vector<1x128x512xbf16>
    %141 = vector.shape_cast %140 : vector<1x128x512xbf16> to vector<128x512xbf16>
    %cst_62 = arith.constant dense<0.000000e+00> : vector<128x512xf32>
    %142 = tpu.matmul %139, %141, %cst_62 {dimension_numbers = #tpu.dot_dimension_numbers<[1], [0], [0], [1], [0, 0, 1, 1], [], []>} : vector<128x128xbf16>, vector<128x512xbf16>, vector<128x512xf32> -> vector<128x512xf32>
    %c0_63 = arith.constant 0 : index
    %c0_64 = arith.constant 0 : index
    %c0_65 = arith.constant 0 : index
    %143 = vector.load %arg15[%c0_63, %c0_64, %c0_65] : memref<2x1x512xf32, #tpu.memory_space<vmem>>, vector<1x1x512xf32>
    %144 = vector.shape_cast %143 : vector<1x1x512xf32> to vector<1x512xf32>
    %145 = vector.broadcast %144 : vector<1x512xf32> to vector<128x512xf32>
    %146 = arith.addf %142, %145 : vector<128x512xf32>
    %147 = arith.mulf %146, %146 : vector<128x512xf32>
    %148 = arith.mulf %146, %147 : vector<128x512xf32>
    %cst_66 = arith.constant 4.471500e-02 : f32
    %149 = vector.broadcast %cst_66 : f32 to vector<128x512xf32>
    %150 = arith.mulf %149, %148 : vector<128x512xf32>
    %151 = arith.addf %146, %150 : vector<128x512xf32>
    %cst_67 = arith.constant 0.797884583 : f32
    %152 = vector.broadcast %cst_67 : f32 to vector<128x512xf32>
    %153 = arith.mulf %152, %151 : vector<128x512xf32>
    %154 = math.tanh %153 : vector<128x512xf32>
    %cst_68 = arith.constant 1.000000e+00 : f32
    %155 = vector.broadcast %cst_68 : f32 to vector<128x512xf32>
    %156 = arith.addf %155, %154 : vector<128x512xf32>
    %cst_69 = arith.constant 5.000000e-01 : f32
    %157 = vector.broadcast %cst_69 : f32 to vector<128x512xf32>
    %158 = arith.mulf %157, %156 : vector<128x512xf32>
    %159 = arith.mulf %146, %158 : vector<128x512xf32>
    %160 = arith.truncf %159 : vector<128x512xf32> to vector<128x512xbf16>
    %c0_70 = arith.constant 0 : index
    %c0_71 = arith.constant 0 : index
    %c0_72 = arith.constant 0 : index
    %161 = vector.load %arg16[%c0_70, %c0_71, %c0_72] : memref<2x512x128xbf16, #tpu.memory_space<vmem>>, vector<1x512x128xbf16>
    %162 = vector.shape_cast %161 : vector<1x512x128xbf16> to vector<512x128xbf16>
    %cst_73 = arith.constant dense<0.000000e+00> : vector<128x128xf32>
    %163 = tpu.matmul %160, %162, %cst_73 {dimension_numbers = #tpu.dot_dimension_numbers<[1], [0], [0], [1], [0, 0, 1, 1], [], []>} : vector<128x512xbf16>, vector<512x128xbf16>, vector<128x128xf32> -> vector<128x128xf32>
    %c0_74 = arith.constant 0 : index
    %c0_75 = arith.constant 0 : index
    %c0_76 = arith.constant 0 : index
    %164 = vector.load %arg17[%c0_74, %c0_75, %c0_76] : memref<2x1x128xf32, #tpu.memory_space<vmem>>, vector<1x1x128xf32>
    %165 = vector.shape_cast %164 : vector<1x1x128xf32> to vector<1x128xf32>
    %166 = vector.broadcast %165 : vector<1x128xf32> to vector<128x128xf32>
    %167 = arith.addf %163, %166 : vector<128x128xf32>
    %168 = arith.addf %167, %138 : vector<128x128xf32>
    %c0_77 = arith.constant 0 : index
    %c0_78 = arith.constant 0 : index
    %c0_79 = arith.constant 0 : index
    %169 = vector.load %arg18[%c0_77, %c0_78, %c0_79] : memref<2x1x128xf32, #tpu.memory_space<vmem>>, vector<1x1x128xf32>
    %170 = vector.shape_cast %169 : vector<1x1x128xf32> to vector<1x128xf32>
    %c0_80 = arith.constant 0 : index
    %c0_81 = arith.constant 0 : index
    %c0_82 = arith.constant 0 : index
    %171 = vector.load %arg19[%c0_80, %c0_81, %c0_82] : memref<2x1x128xf32, #tpu.memory_space<vmem>>, vector<1x1x128xf32>
    %172 = vector.shape_cast %171 : vector<1x1x128xf32> to vector<1x128xf32>
    %cst_83 = arith.constant dense<0.000000e+00> : vector<128xf32>
    %173 = vector.multi_reduction <add>, %168, %cst_83 [1] : vector<128x128xf32> to vector<128xf32>
    %174 = vector.shape_cast %173 : vector<128xf32> to vector<128x1xf32>
    %cst_84 = arith.constant 1.280000e+02 : f32
    %175 = vector.broadcast %cst_84 : f32 to vector<128x1xf32>
    %176 = arith.divf %174, %175 : vector<128x1xf32>
    %177 = vector.broadcast %176 : vector<128x1xf32> to vector<128x128xf32>
    %178 = arith.subf %168, %177 : vector<128x128xf32>
    %179 = arith.mulf %178, %178 : vector<128x128xf32>
    %cst_85 = arith.constant dense<0.000000e+00> : vector<128xf32>
    %180 = vector.multi_reduction <add>, %179, %cst_85 [1] : vector<128x128xf32> to vector<128xf32>
    %181 = vector.shape_cast %180 : vector<128xf32> to vector<128x1xf32>
    %cst_86 = arith.constant 1.280000e+02 : f32
    %182 = vector.broadcast %cst_86 : f32 to vector<128x1xf32>
    %183 = arith.divf %181, %182 : vector<128x1xf32>
    %184 = vector.broadcast %176 : vector<128x1xf32> to vector<128x128xf32>
    %185 = arith.subf %168, %184 : vector<128x128xf32>
    %cst_87 = arith.constant 9.99999996E-13 : f32
    %186 = vector.broadcast %cst_87 : f32 to vector<128x1xf32>
    %187 = arith.addf %183, %186 : vector<128x1xf32>
    %188 = math.rsqrt %187 : vector<128x1xf32>
    %189 = vector.broadcast %188 : vector<128x1xf32> to vector<128x128xf32>
    %190 = arith.mulf %185, %189 : vector<128x128xf32>
    %191 = vector.broadcast %170 : vector<1x128xf32> to vector<128x128xf32>
    %192 = arith.mulf %190, %191 : vector<128x128xf32>
    %193 = vector.broadcast %172 : vector<1x128xf32> to vector<128x128xf32>
    %194 = arith.addf %192, %193 : vector<128x128xf32>
    %195 = arith.truncf %194 : vector<128x128xf32> to vector<128x128xbf16>
    %c1 = arith.constant 1 : index
    %c0_88 = arith.constant 0 : index
    %c0_89 = arith.constant 0 : index
    %196 = vector.load %arg8[%c1, %c0_88, %c0_89] : memref<2x128x768xbf16, #tpu.memory_space<vmem>>, vector<1x128x768xbf16>
    %197 = vector.shape_cast %196 : vector<1x128x768xbf16> to vector<128x768xbf16>
    %cst_90 = arith.constant dense<0.000000e+00> : vector<128x768xf32>
    %198 = tpu.matmul %195, %197, %cst_90 {dimension_numbers = #tpu.dot_dimension_numbers<[1], [0], [0], [1], [0, 0, 1, 1], [], []>} : vector<128x128xbf16>, vector<128x768xbf16>, vector<128x768xf32> -> vector<128x768xf32>
    %c1_91 = arith.constant 1 : index
    %c0_92 = arith.constant 0 : index
    %c0_93 = arith.constant 0 : index
    %199 = vector.load %arg9[%c1_91, %c0_92, %c0_93] : memref<2x1x768xf32, #tpu.memory_space<vmem>>, vector<1x1x768xf32>
    %200 = vector.shape_cast %199 : vector<1x1x768xf32> to vector<1x768xf32>
    %201 = vector.broadcast %200 : vector<1x768xf32> to vector<128x768xf32>
    %202 = arith.addf %198, %201 : vector<128x768xf32>
    %c1_94 = arith.constant 1 : index
    %c0_95 = arith.constant 0 : index
    %c0_96 = arith.constant 0 : index
    %203 = vector.load %arg10[%c1_94, %c0_95, %c0_96] : memref<2x256x128xbf16, #tpu.memory_space<vmem>>, vector<1x256x128xbf16>
    %204 = vector.shape_cast %203 : vector<1x256x128xbf16> to vector<256x128xbf16>
    %205 = vector.extract_strided_slice %202 {offsets = [0, 0], sizes = [128, 128], strides = [1, 1]} : vector<128x768xf32> to vector<128x128xf32>
    %206 = vector.extract_strided_slice %202 {offsets = [0, 128], sizes = [128, 128], strides = [1, 1]} : vector<128x768xf32> to vector<128x128xf32>
    %207 = vector.extract_strided_slice %202 {offsets = [0, 256], sizes = [128, 128], strides = [1, 1]} : vector<128x768xf32> to vector<128x128xf32>
    %208 = arith.truncf %205 : vector<128x128xf32> to vector<128x128xbf16>
    %209 = arith.truncf %206 : vector<128x128xf32> to vector<128x128xbf16>
    %cst_97 = arith.constant dense<0.000000e+00> : vector<128x128xf32>
    %210 = tpu.matmul %208, %209, %cst_97 {dimension_numbers = #tpu.dot_dimension_numbers<[1], [1], [0], [0], [0, 0, 1, 0], [], []>} : vector<128x128xbf16>, vector<128x128xbf16>, vector<128x128xf32> -> vector<128x128xf32>
    %cst_98 = arith.constant 1.250000e-01 : f32
    %211 = vector.broadcast %cst_98 : f32 to vector<128x128xf32>
    %212 = arith.mulf %210, %211 : vector<128x128xf32>
    %213 = arith.addf %212, %46 : vector<128x128xf32>
    %cst_99 = arith.constant dense<0xFF800000> : vector<128xf32>
    %214 = vector.multi_reduction <maximumf>, %213, %cst_99 [1] : vector<128x128xf32> to vector<128xf32>
    %215 = vector.shape_cast %214 : vector<128xf32> to vector<128x1xf32>
    %216 = vector.broadcast %215 : vector<128x1xf32> to vector<128x128xf32>
    %217 = arith.subf %213, %216 : vector<128x128xf32>
    %218 = math.exp %217 : vector<128x128xf32>
    %cst_100 = arith.constant dense<0.000000e+00> : vector<128xf32>
    %219 = vector.multi_reduction <add>, %218, %cst_100 [1] : vector<128x128xf32> to vector<128xf32>
    %220 = vector.shape_cast %219 : vector<128xf32> to vector<128x1xf32>
    %221 = arith.truncf %218 : vector<128x128xf32> to vector<128x128xbf16>
    %222 = arith.truncf %207 : vector<128x128xf32> to vector<128x128xbf16>
    %cst_101 = arith.constant dense<0.000000e+00> : vector<128x128xf32>
    %223 = tpu.matmul %221, %222, %cst_101 {dimension_numbers = #tpu.dot_dimension_numbers<[1], [0], [0], [1], [0, 0, 1, 1], [], []>} : vector<128x128xbf16>, vector<128x128xbf16>, vector<128x128xf32> -> vector<128x128xf32>
    %224 = tpu.reciprocal %220 : vector<128x1xf32> -> vector<128x1xf32>
    %225 = vector.broadcast %224 : vector<128x1xf32> to vector<128x128xf32>
    %226 = arith.mulf %223, %225 : vector<128x128xf32>
    %227 = arith.truncf %226 : vector<128x128xf32> to vector<128x128xbf16>
    %228 = vector.extract_strided_slice %204 {offsets = [0, 0], sizes = [128, 128], strides = [1, 1]} : vector<256x128xbf16> to vector<128x128xbf16>
    %cst_102 = arith.constant dense<0.000000e+00> : vector<128x128xf32>
    %229 = tpu.matmul %227, %228, %cst_102 {dimension_numbers = #tpu.dot_dimension_numbers<[1], [0], [0], [1], [0, 0, 1, 1], [], []>} : vector<128x128xbf16>, vector<128x128xbf16>, vector<128x128xf32> -> vector<128x128xf32>
    %230 = vector.extract_strided_slice %202 {offsets = [0, 384], sizes = [128, 128], strides = [1, 1]} : vector<128x768xf32> to vector<128x128xf32>
    %231 = vector.extract_strided_slice %202 {offsets = [0, 512], sizes = [128, 128], strides = [1, 1]} : vector<128x768xf32> to vector<128x128xf32>
    %232 = vector.extract_strided_slice %202 {offsets = [0, 640], sizes = [128, 128], strides = [1, 1]} : vector<128x768xf32> to vector<128x128xf32>
    %233 = arith.truncf %230 : vector<128x128xf32> to vector<128x128xbf16>
    %234 = arith.truncf %231 : vector<128x128xf32> to vector<128x128xbf16>
    %cst_103 = arith.constant dense<0.000000e+00> : vector<128x128xf32>
    %235 = tpu.matmul %233, %234, %cst_103 {dimension_numbers = #tpu.dot_dimension_numbers<[1], [1], [0], [0], [0, 0, 1, 0], [], []>} : vector<128x128xbf16>, vector<128x128xbf16>, vector<128x128xf32> -> vector<128x128xf32>
    %cst_104 = arith.constant 1.250000e-01 : f32
    %236 = vector.broadcast %cst_104 : f32 to vector<128x128xf32>
    %237 = arith.mulf %235, %236 : vector<128x128xf32>
    %238 = arith.addf %237, %46 : vector<128x128xf32>
    %cst_105 = arith.constant dense<0xFF800000> : vector<128xf32>
    %239 = vector.multi_reduction <maximumf>, %238, %cst_105 [1] : vector<128x128xf32> to vector<128xf32>
    %240 = vector.shape_cast %239 : vector<128xf32> to vector<128x1xf32>
    %241 = vector.broadcast %240 : vector<128x1xf32> to vector<128x128xf32>
    %242 = arith.subf %238, %241 : vector<128x128xf32>
    %243 = math.exp %242 : vector<128x128xf32>
    %cst_106 = arith.constant dense<0.000000e+00> : vector<128xf32>
    %244 = vector.multi_reduction <add>, %243, %cst_106 [1] : vector<128x128xf32> to vector<128xf32>
    %245 = vector.shape_cast %244 : vector<128xf32> to vector<128x1xf32>
    %246 = arith.truncf %243 : vector<128x128xf32> to vector<128x128xbf16>
    %247 = arith.truncf %232 : vector<128x128xf32> to vector<128x128xbf16>
    %cst_107 = arith.constant dense<0.000000e+00> : vector<128x128xf32>
    %248 = tpu.matmul %246, %247, %cst_107 {dimension_numbers = #tpu.dot_dimension_numbers<[1], [0], [0], [1], [0, 0, 1, 1], [], []>} : vector<128x128xbf16>, vector<128x128xbf16>, vector<128x128xf32> -> vector<128x128xf32>
    %249 = tpu.reciprocal %245 : vector<128x1xf32> -> vector<128x1xf32>
    %250 = vector.broadcast %249 : vector<128x1xf32> to vector<128x128xf32>
    %251 = arith.mulf %248, %250 : vector<128x128xf32>
    %252 = arith.truncf %251 : vector<128x128xf32> to vector<128x128xbf16>
    %253 = vector.extract_strided_slice %204 {offsets = [128, 0], sizes = [128, 128], strides = [1, 1]} : vector<256x128xbf16> to vector<128x128xbf16>
    %cst_108 = arith.constant dense<0.000000e+00> : vector<128x128xf32>
    %254 = tpu.matmul %252, %253, %cst_108 {dimension_numbers = #tpu.dot_dimension_numbers<[1], [0], [0], [1], [0, 0, 1, 1], [], []>} : vector<128x128xbf16>, vector<128x128xbf16>, vector<128x128xf32> -> vector<128x128xf32>
    %255 = arith.addf %229, %254 : vector<128x128xf32>
    %c1_109 = arith.constant 1 : index
    %c0_110 = arith.constant 0 : index
    %c0_111 = arith.constant 0 : index
    %256 = vector.load %arg11[%c1_109, %c0_110, %c0_111] : memref<2x1x128xf32, #tpu.memory_space<vmem>>, vector<1x1x128xf32>
    %257 = vector.shape_cast %256 : vector<1x1x128xf32> to vector<1x128xf32>
    %258 = vector.broadcast %257 : vector<1x128xf32> to vector<128x128xf32>
    %259 = arith.addf %255, %258 : vector<128x128xf32>
    %260 = arith.addf %259, %194 : vector<128x128xf32>
    %c1_112 = arith.constant 1 : index
    %c0_113 = arith.constant 0 : index
    %c0_114 = arith.constant 0 : index
    %261 = vector.load %arg12[%c1_112, %c0_113, %c0_114] : memref<2x1x128xf32, #tpu.memory_space<vmem>>, vector<1x1x128xf32>
    %262 = vector.shape_cast %261 : vector<1x1x128xf32> to vector<1x128xf32>
    %c1_115 = arith.constant 1 : index
    %c0_116 = arith.constant 0 : index
    %c0_117 = arith.constant 0 : index
    %263 = vector.load %arg13[%c1_115, %c0_116, %c0_117] : memref<2x1x128xf32, #tpu.memory_space<vmem>>, vector<1x1x128xf32>
    %264 = vector.shape_cast %263 : vector<1x1x128xf32> to vector<1x128xf32>
    %cst_118 = arith.constant dense<0.000000e+00> : vector<128xf32>
    %265 = vector.multi_reduction <add>, %260, %cst_118 [1] : vector<128x128xf32> to vector<128xf32>
    %266 = vector.shape_cast %265 : vector<128xf32> to vector<128x1xf32>
    %cst_119 = arith.constant 1.280000e+02 : f32
    %267 = vector.broadcast %cst_119 : f32 to vector<128x1xf32>
    %268 = arith.divf %266, %267 : vector<128x1xf32>
    %269 = vector.broadcast %268 : vector<128x1xf32> to vector<128x128xf32>
    %270 = arith.subf %260, %269 : vector<128x128xf32>
    %271 = arith.mulf %270, %270 : vector<128x128xf32>
    %cst_120 = arith.constant dense<0.000000e+00> : vector<128xf32>
    %272 = vector.multi_reduction <add>, %271, %cst_120 [1] : vector<128x128xf32> to vector<128xf32>
    %273 = vector.shape_cast %272 : vector<128xf32> to vector<128x1xf32>
    %cst_121 = arith.constant 1.280000e+02 : f32
    %274 = vector.broadcast %cst_121 : f32 to vector<128x1xf32>
    %275 = arith.divf %273, %274 : vector<128x1xf32>
    %276 = vector.broadcast %268 : vector<128x1xf32> to vector<128x128xf32>
    %277 = arith.subf %260, %276 : vector<128x128xf32>
    %cst_122 = arith.constant 9.99999996E-13 : f32
    %278 = vector.broadcast %cst_122 : f32 to vector<128x1xf32>
    %279 = arith.addf %275, %278 : vector<128x1xf32>
    %280 = math.rsqrt %279 : vector<128x1xf32>
    %281 = vector.broadcast %280 : vector<128x1xf32> to vector<128x128xf32>
    %282 = arith.mulf %277, %281 : vector<128x128xf32>
    %283 = vector.broadcast %262 : vector<1x128xf32> to vector<128x128xf32>
    %284 = arith.mulf %282, %283 : vector<128x128xf32>
    %285 = vector.broadcast %264 : vector<1x128xf32> to vector<128x128xf32>
    %286 = arith.addf %284, %285 : vector<128x128xf32>
    %287 = arith.truncf %286 : vector<128x128xf32> to vector<128x128xbf16>
    %c1_123 = arith.constant 1 : index
    %c0_124 = arith.constant 0 : index
    %c0_125 = arith.constant 0 : index
    %288 = vector.load %arg14[%c1_123, %c0_124, %c0_125] : memref<2x128x512xbf16, #tpu.memory_space<vmem>>, vector<1x128x512xbf16>
    %289 = vector.shape_cast %288 : vector<1x128x512xbf16> to vector<128x512xbf16>
    %cst_126 = arith.constant dense<0.000000e+00> : vector<128x512xf32>
    %290 = tpu.matmul %287, %289, %cst_126 {dimension_numbers = #tpu.dot_dimension_numbers<[1], [0], [0], [1], [0, 0, 1, 1], [], []>} : vector<128x128xbf16>, vector<128x512xbf16>, vector<128x512xf32> -> vector<128x512xf32>
    %c1_127 = arith.constant 1 : index
    %c0_128 = arith.constant 0 : index
    %c0_129 = arith.constant 0 : index
    %291 = vector.load %arg15[%c1_127, %c0_128, %c0_129] : memref<2x1x512xf32, #tpu.memory_space<vmem>>, vector<1x1x512xf32>
    %292 = vector.shape_cast %291 : vector<1x1x512xf32> to vector<1x512xf32>
    %293 = vector.broadcast %292 : vector<1x512xf32> to vector<128x512xf32>
    %294 = arith.addf %290, %293 : vector<128x512xf32>
    %295 = arith.mulf %294, %294 : vector<128x512xf32>
    %296 = arith.mulf %294, %295 : vector<128x512xf32>
    %cst_130 = arith.constant 4.471500e-02 : f32
    %297 = vector.broadcast %cst_130 : f32 to vector<128x512xf32>
    %298 = arith.mulf %297, %296 : vector<128x512xf32>
    %299 = arith.addf %294, %298 : vector<128x512xf32>
    %cst_131 = arith.constant 0.797884583 : f32
    %300 = vector.broadcast %cst_131 : f32 to vector<128x512xf32>
    %301 = arith.mulf %300, %299 : vector<128x512xf32>
    %302 = math.tanh %301 : vector<128x512xf32>
    %cst_132 = arith.constant 1.000000e+00 : f32
    %303 = vector.broadcast %cst_132 : f32 to vector<128x512xf32>
    %304 = arith.addf %303, %302 : vector<128x512xf32>
    %cst_133 = arith.constant 5.000000e-01 : f32
    %305 = vector.broadcast %cst_133 : f32 to vector<128x512xf32>
    %306 = arith.mulf %305, %304 : vector<128x512xf32>
    %307 = arith.mulf %294, %306 : vector<128x512xf32>
    %308 = arith.truncf %307 : vector<128x512xf32> to vector<128x512xbf16>
    %c1_134 = arith.constant 1 : index
    %c0_135 = arith.constant 0 : index
    %c0_136 = arith.constant 0 : index
    %309 = vector.load %arg16[%c1_134, %c0_135, %c0_136] : memref<2x512x128xbf16, #tpu.memory_space<vmem>>, vector<1x512x128xbf16>
    %310 = vector.shape_cast %309 : vector<1x512x128xbf16> to vector<512x128xbf16>
    %cst_137 = arith.constant dense<0.000000e+00> : vector<128x128xf32>
    %311 = tpu.matmul %308, %310, %cst_137 {dimension_numbers = #tpu.dot_dimension_numbers<[1], [0], [0], [1], [0, 0, 1, 1], [], []>} : vector<128x512xbf16>, vector<512x128xbf16>, vector<128x128xf32> -> vector<128x128xf32>
    %c1_138 = arith.constant 1 : index
    %c0_139 = arith.constant 0 : index
    %c0_140 = arith.constant 0 : index
    %312 = vector.load %arg17[%c1_138, %c0_139, %c0_140] : memref<2x1x128xf32, #tpu.memory_space<vmem>>, vector<1x1x128xf32>
    %313 = vector.shape_cast %312 : vector<1x1x128xf32> to vector<1x128xf32>
    %314 = vector.broadcast %313 : vector<1x128xf32> to vector<128x128xf32>
    %315 = arith.addf %311, %314 : vector<128x128xf32>
    %316 = arith.addf %315, %286 : vector<128x128xf32>
    %c1_141 = arith.constant 1 : index
    %c0_142 = arith.constant 0 : index
    %c0_143 = arith.constant 0 : index
    %317 = vector.load %arg18[%c1_141, %c0_142, %c0_143] : memref<2x1x128xf32, #tpu.memory_space<vmem>>, vector<1x1x128xf32>
    %318 = vector.shape_cast %317 : vector<1x1x128xf32> to vector<1x128xf32>
    %c1_144 = arith.constant 1 : index
    %c0_145 = arith.constant 0 : index
    %c0_146 = arith.constant 0 : index
    %319 = vector.load %arg19[%c1_144, %c0_145, %c0_146] : memref<2x1x128xf32, #tpu.memory_space<vmem>>, vector<1x1x128xf32>
    %320 = vector.shape_cast %319 : vector<1x1x128xf32> to vector<1x128xf32>
    %cst_147 = arith.constant dense<0.000000e+00> : vector<128xf32>
    %321 = vector.multi_reduction <add>, %316, %cst_147 [1] : vector<128x128xf32> to vector<128xf32>
    %322 = vector.shape_cast %321 : vector<128xf32> to vector<128x1xf32>
    %cst_148 = arith.constant 1.280000e+02 : f32
    %323 = vector.broadcast %cst_148 : f32 to vector<128x1xf32>
    %324 = arith.divf %322, %323 : vector<128x1xf32>
    %325 = vector.broadcast %324 : vector<128x1xf32> to vector<128x128xf32>
    %326 = arith.subf %316, %325 : vector<128x128xf32>
    %327 = arith.mulf %326, %326 : vector<128x128xf32>
    %cst_149 = arith.constant dense<0.000000e+00> : vector<128xf32>
    %328 = vector.multi_reduction <add>, %327, %cst_149 [1] : vector<128x128xf32> to vector<128xf32>
    %329 = vector.shape_cast %328 : vector<128xf32> to vector<128x1xf32>
    %cst_150 = arith.constant 1.280000e+02 : f32
    %330 = vector.broadcast %cst_150 : f32 to vector<128x1xf32>
    %331 = arith.divf %329, %330 : vector<128x1xf32>
    %332 = vector.broadcast %324 : vector<128x1xf32> to vector<128x128xf32>
    %333 = arith.subf %316, %332 : vector<128x128xf32>
    %cst_151 = arith.constant 9.99999996E-13 : f32
    %334 = vector.broadcast %cst_151 : f32 to vector<128x1xf32>
    %335 = arith.addf %331, %334 : vector<128x1xf32>
    %336 = math.rsqrt %335 : vector<128x1xf32>
    %337 = vector.broadcast %336 : vector<128x1xf32> to vector<128x128xf32>
    %338 = arith.mulf %333, %337 : vector<128x128xf32>
    %339 = vector.broadcast %318 : vector<1x128xf32> to vector<128x128xf32>
    %340 = arith.mulf %338, %339 : vector<128x128xf32>
    %341 = vector.broadcast %320 : vector<1x128xf32> to vector<128x128xf32>
    %342 = arith.addf %340, %341 : vector<128x128xf32>
    %343 = arith.truncf %342 : vector<128x128xf32> to vector<128x128xbf16>
    %c0_152 = arith.constant 0 : index
    %c0_153 = arith.constant 0 : index
    %344 = vector.load %arg20[%c0_152, %c0_153] : memref<128x128xbf16, #tpu.memory_space<vmem>>, vector<128x128xbf16>
    %cst_154 = arith.constant dense<0.000000e+00> : vector<128x128xf32>
    %345 = tpu.matmul %343, %344, %cst_154 {dimension_numbers = #tpu.dot_dimension_numbers<[1], [0], [0], [1], [0, 0, 1, 1], [], []>} : vector<128x128xbf16>, vector<128x128xbf16>, vector<128x128xf32> -> vector<128x128xf32>
    %c0_155 = arith.constant 0 : index
    %c0_156 = arith.constant 0 : index
    %346 = vector.load %arg21[%c0_155, %c0_156] : memref<1x128xf32, #tpu.memory_space<vmem>>, vector<1x128xf32>
    %347 = vector.broadcast %346 : vector<1x128xf32> to vector<128x128xf32>
    %348 = arith.addf %345, %347 : vector<128x128xf32>
    %c0_157 = arith.constant 0 : index
    %c0_158 = arith.constant 0 : index
    %349 = vector.load %arg22[%c0_157, %c0_158] : memref<128x128xf32, #tpu.memory_space<vmem>>, vector<128x128xf32>
    tpu.vector_store %arg22[%c0_157, %c0_158], %348 {strides = array<i32>} : memref<128x128xf32, #tpu.memory_space<vmem>>, vector<128x128xf32>,
    return
  }
  func.func @transform_0(%arg0: i32) -> (i32, i32) {
    %c0_i32 = arith.constant 0 : i32
    %c0_i32_0 = arith.constant 0 : i32
    return %arg0, %c0_i32 : i32, i32
  }
  func.func @transform_1(%arg0: i32) -> (i32, i32, i32) {
    %c0_i32 = arith.constant 0 : i32
    %c0_i32_0 = arith.constant 0 : i32
    %c0_i32_1 = arith.constant 0 : i32
    return %arg0, %c0_i32, %c0_i32_0 : i32, i32, i32
  }
  func.func @transform_2(%arg0: i32) -> (i32, i32) {
    %c0_i32 = arith.constant 0 : i32
    %c0_i32_0 = arith.constant 0 : i32
    %c0_i32_1 = arith.constant 0 : i32
    return %c0_i32, %c0_i32_0 : i32, i32
  }
  func.func @transform_3(%arg0: i32) -> (i32, i32) {
    %c0_i32 = arith.constant 0 : i32
    %c0_i32_0 = arith.constant 0 : i32
    %c0_i32_1 = arith.constant 0 : i32
    return %c0_i32, %c0_i32_0 : i32, i32
  }
  func.func @transform_4(%arg0: i32) -> (i32, i32) {
    %c0_i32 = arith.constant 0 : i32
    %c0_i32_0 = arith.constant 0 : i32
    %c0_i32_1 = arith.constant 0 : i32
    return %c0_i32, %c0_i32_0 : i32, i32
  }
  func.func @transform_5(%arg0: i32) -> (i32, i32) {
    %c0_i32 = arith.constant 0 : i32
    %c0_i32_0 = arith.constant 0 : i32
    %c0_i32_1 = arith.constant 0 : i32
    return %c0_i32, %c0_i32_0 : i32, i32
  }
  func.func @transform_6(%arg0: i32) -> (i32, i32) {
    %c0_i32 = arith.constant 0 : i32
    %c0_i32_0 = arith.constant 0 : i32
    %c0_i32_1 = arith.constant 0 : i32
    return %c0_i32, %c0_i32_0 : i32, i32
  }
  func.func @transform_7(%arg0: i32) -> (i32, i32, i32) {
    %c0_i32 = arith.constant 0 : i32
    %c0_i32_0 = arith.constant 0 : i32
    %c0_i32_1 = arith.constant 0 : i32
    %c0_i32_2 = arith.constant 0 : i32
    return %c0_i32, %c0_i32_0, %c0_i32_1 : i32, i32, i32
  }
  func.func @transform_8(%arg0: i32) -> (i32, i32, i32) {
    %c0_i32 = arith.constant 0 : i32
    %c0_i32_0 = arith.constant 0 : i32
    %c0_i32_1 = arith.constant 0 : i32
    %c0_i32_2 = arith.constant 0 : i32
    return %c0_i32, %c0_i32_0, %c0_i32_1 : i32, i32, i32
  }
  func.func @transform_9(%arg0: i32) -> (i32, i32, i32) {
    %c0_i32 = arith.constant 0 : i32
    %c0_i32_0 = arith.constant 0 : i32
    %c0_i32_1 = arith.constant 0 : i32
    %c0_i32_2 = arith.constant 0 : i32
    return %c0_i32, %c0_i32_0, %c0_i32_1 : i32, i32, i32
  }
  func.func @transform_10(%arg0: i32) -> (i32, i32, i32) {
    %c0_i32 = arith.constant 0 : i32
    %c0_i32_0 = arith.constant 0 : i32
    %c0_i32_1 = arith.constant 0 : i32
    %c0_i32_2 = arith.constant 0 : i32
    return %c0_i32, %c0_i32_0, %c0_i32_1 : i32, i32, i32
  }
  func.func @transform_11(%arg0: i32) -> (i32, i32, i32) {
    %c0_i32 = arith.constant 0 : i32
    %c0_i32_0 = arith.constant 0 : i32
    %c0_i32_1 = arith.constant 0 : i32
    %c0_i32_2 = arith.constant 0 : i32
    return %c0_i32, %c0_i32_0, %c0_i32_1 : i32, i32, i32
  }
  func.func @transform_12(%arg0: i32) -> (i32, i32, i32) {
    %c0_i32 = arith.constant 0 : i32
    %c0_i32_0 = arith.constant 0 : i32
    %c0_i32_1 = arith.constant 0 : i32
    %c0_i32_2 = arith.constant 0 : i32
    return %c0_i32, %c0_i32_0, %c0_i32_1 : i32, i32, i32
  }
  func.func @transform_13(%arg0: i32) -> (i32, i32, i32) {
    %c0_i32 = arith.constant 0 : i32
    %c0_i32_0 = arith.constant 0 : i32
    %c0_i32_1 = arith.constant 0 : i32
    %c0_i32_2 = arith.constant 0 : i32
    return %c0_i32, %c0_i32_0, %c0_i32_1 : i32, i32, i32
  }
  func.func @transform_14(%arg0: i32) -> (i32, i32, i32) {
    %c0_i32 = arith.constant 0 : i32
    %c0_i32_0 = arith.constant 0 : i32
    %c0_i32_1 = arith.constant 0 : i32
    %c0_i32_2 = arith.constant 0 : i32
    return %c0_i32, %c0_i32_0, %c0_i32_1 : i32, i32, i32
  }
  func.func @transform_15(%arg0: i32) -> (i32, i32, i32) {
    %c0_i32 = arith.constant 0 : i32
    %c0_i32_0 = arith.constant 0 : i32
    %c0_i32_1 = arith.constant 0 : i32
    %c0_i32_2 = arith.constant 0 : i32
    return %c0_i32, %c0_i32_0, %c0_i32_1 : i32, i32, i32
  }
  func.func @transform_16(%arg0: i32) -> (i32, i32, i32) {
    %c0_i32 = arith.constant 0 : i32
    %c0_i32_0 = arith.constant 0 : i32
    %c0_i32_1 = arith.constant 0 : i32
    %c0_i32_2 = arith.constant 0 : i32
    return %c0_i32, %c0_i32_0, %c0_i32_1 : i32, i32, i32
  }
  func.func @transform_17(%arg0: i32) -> (i32, i32, i32) {
    %c0_i32 = arith.constant 0 : i32
    %c0_i32_0 = arith.constant 0 : i32
    %c0_i32_1 = arith.constant 0 : i32
    %c0_i32_2 = arith.constant 0 : i32
    return %c0_i32, %c0_i32_0, %c0_i32_1 : i32, i32, i32
  }
  func.func @transform_18(%arg0: i32) -> (i32, i32, i32) {
    %c0_i32 = arith.constant 0 : i32
    %c0_i32_0 = arith.constant 0 : i32
    %c0_i32_1 = arith.constant 0 : i32
    %c0_i32_2 = arith.constant 0 : i32
    return %c0_i32, %c0_i32_0, %c0_i32_1 : i32, i32, i32
  }
  func.func @transform_19(%arg0: i32) -> (i32, i32) {
    %c0_i32 = arith.constant 0 : i32
    %c0_i32_0 = arith.constant 0 : i32
    %c0_i32_1 = arith.constant 0 : i32
    return %c0_i32, %c0_i32_0 : i32, i32
  }
  func.func @transform_20(%arg0: i32) -> (i32, i32) {
    %c0_i32 = arith.constant 0 : i32
    %c0_i32_0 = arith.constant 0 : i32
    %c0_i32_1 = arith.constant 0 : i32
    return %c0_i32, %c0_i32_0 : i32, i32
  }
  func.func @transform_21(%arg0: i32) -> (i32, i32) {
    %c0_i32 = arith.constant 0 : i32
    %c0_i32_0 = arith.constant 0 : i32
    return %arg0, %c0_i32 : i32, i32
  }
}

</mosaic_0001>

<llo_original>
// kernel: bert_iso_forward.1
$region0: #{bert_iso_forward.1}
  #allocation0 [shape = 'u32[]', space=smem, size = 0x4, offset = 0x4, fixed_abs, tag = 'smem constant byte address 0x4 - core index']
  #allocation1 [shape = 'u32[144,128]{1,0:T(1,128)}', space=vmem, size = 0x12000, scoped, tag = 'internal scratch']
  %s0 = inlined_call_operand.vmem [shape: s32[256,1], index: 0, kind: input, shape index: {}]
  %s1 = inlined_call_operand.vmem [shape: f32[2,1,128], index: 1, kind: input, shape index: {}]
  %s2 = inlined_call_operand.vmem [shape: bf16[512,128], index: 2, kind: input, shape index: {}]
  %s3 = inlined_call_operand.hbm [shape: f32[128,128], index: 3, kind: input, shape index: {}]
  %s4 = inlined_call_operand.vmem [shape: f32[1,128], index: 4, kind: input, shape index: {}]
  %s5 = inlined_call_operand.vmem [shape: f32[1,128], index: 5, kind: input, shape index: {}]
  %s6 = inlined_call_operand.hbm [shape: f32[1,128], index: 6, kind: input, shape index: {}]
  %s7 = inlined_call_operand.hbm [shape: bf16[2,128,768], index: 7, kind: input, shape index: {}]
  %s8 = inlined_call_operand.vmem [shape: f32[2,1,768], index: 8, kind: input, shape index: {}]
  %s9 = inlined_call_operand.hbm [shape: bf16[2,256,128], index: 9, kind: input, shape index: {}]
  %s10 = inlined_call_operand.vmem [shape: f32[2,1,128], index: 10, kind: input, shape index: {}]
  %s11 = inlined_call_operand.vmem [shape: f32[2,1,128], index: 11, kind: input, shape index: {}]
  %s12 = inlined_call_operand.hbm [shape: f32[2,1,128], index: 12, kind: input, shape index: {}]
  %s13 = inlined_call_operand.hbm [shape: bf16[2,128,512], index: 13, kind: input, shape index: {}]
  %s14 = inlined_call_operand.hbm [shape: f32[2,1,512], index: 14, kind: input, shape index: {}]
  %s15 = inlined_call_operand.hbm [shape: bf16[2,512,128], index: 15, kind: input, shape index: {}]
  %s16 = inlined_call_operand.hbm [shape: f32[2,1,128], index: 16, kind: input, shape index: {}]
  %s17 = inlined_call_operand.hbm [shape: f32[2,1,128], index: 17, kind: input, shape index: {}]
  %s18 = inlined_call_operand.hbm [shape: f32[2,1,128], index: 18, kind: input, shape index: {}]
  %s19 = inlined_call_operand.vmem [shape: bf16[128,128], index: 19, kind: input, shape index: {}]
  %s20 = inlined_call_operand.hbm [shape: f32[1,128], index: 20, kind: input, shape index: {}]
  %s21 = inlined_call_operand.vmem [shape: f32[256,128], index: 21, kind: output, shape index: {}]
  %s22 = sld [smem:[#allocation0]]
  $region165: #{bert_iso_forward.1} parent=0
    _
  %s24 = ssub.s32 1, %s22
  %s25 = scalar_select 0, %s24, %s22
  $region1: #{bert_iso_forward.1} parent=0
    #allocation2 [shape = 'u8[65536]{0}', space=vmem, size = 0x10000, scoped, tag = 'input window, operand 3, single buffered']
    #allocation3 [shape = 's32[2]{0}', space=sflag, size = 0x8, scoped, tag = 'scoped memory for bert_iso_forward.1']
    #allocation4 [shape = 'u8[512]{0}', space=vmem, size = 0x400, scoped, tag = 'input window, operand 6, single buffered']
    #allocation5 [shape = 's32[1]{0}', space=sflag, size = 0x4, scoped, tag = 'scoped memory for bert_iso_forward.1']
    #allocation6 [shape = 'u8[393216]{0}', space=vmem, size = 0x60000, scoped, tag = 'input window, operand 7, single buffered']
    #allocation7 [shape = 'u8[131072]{0}', space=vmem, size = 0x20000, scoped, tag = 'input window, operand 9, single buffered']
    #allocation8 [shape = 's32[1]{0}', space=sflag, size = 0x4, scoped, tag = 'scoped memory for bert_iso_forward.1']
    #allocation9 [shape = 'u8[1024]{0}', space=vmem, size = 0x400, scoped, tag = 'input window, operand 12, single buffered']
    #allocation10 [shape = 'u8[262144]{0}', space=vmem, size = 0x40000, scoped, tag = 'input window, operand 13, single buffered']
    #allocation11 [shape = 's32[1]{0}', space=sflag, size = 0x4, scoped, tag = 'scoped memory for bert_iso_forward.1']
    #allocation12 [shape = 'u8[4096]{0}', space=vmem, size = 0x1000, scoped, tag = 'input window, operand 14, single buffered']
    #allocation13 [shape = 'u8[262144]{0}', space=vmem, size = 0x40000, scoped, tag = 'input window, operand 15, single buffered']
    #allocation14 [shape = 's32[1]{0}', space=sflag, size = 0x4, scoped, tag = 'scoped memory for bert_iso_forward.1']
    #allocation15 [shape = 'u8[1024]{0}', space=vmem, size = 0x400, scoped, tag = 'input window, operand 16, single buffered']
    #allocation16 [shape = 'u8[1024]{0}', space=vmem, size = 0x400, scoped, tag = 'input window, operand 17, single buffered']
    #allocation17 [shape = 's32[1]{0}', space=sflag, size = 0x4, scoped, tag = 'scoped memory for bert_iso_forward.1']
    #allocation18 [shape = 'u8[1024]{0}', space=vmem, size = 0x400, scoped, tag = 'input window, operand 18, single buffered']
    #allocation19 [shape = 'u8[512]{0}', space=vmem, size = 0x400, scoped, tag = 'input window, operand 20, single buffered']
    #allocation20 [shape = 's32[1]{0}', space=sflag, size = 0x4, scoped, tag = 'scoped memory for bert_iso_forward.1']
    %26 = vsyncpa [#allocation3], 0
    %27 = vsyncpa [#allocation5], 0
    %28 = vsyncpa [#allocation8], 0
    %29 = vsyncpa [#allocation11], 0
    %30 = vsyncpa [#allocation14], 0
    %31 = vsyncpa [#allocation17], 0
    %32 = vsyncpa [#allocation20], 0
    loop: start=0, step=1, limit=4
    $region2: #{bert_iso_forward.1} parent=1 // loop_pre_header
      _
    $region3: #{bert_iso_forward.1} parent=1 // loop_header
      %s34 = sphi 0, %s38
      %p35 = scmp.ge.s32.totalorder %s34, 4
      %s44 = sphi 0, %s46
      %s47 = sphi 0, %s44
      %s48 = sphi 0, %s47
      %s64 = sphi 0, %s48
      %s70 = sphi 0, %s72
      %s73 = sphi 0, %s70
      %s74 = sphi 0, %s73
      %s90 = sphi 0, %s74
      %s94 = sphi 0, %s94
      %s96 = sphi 0, %s94
      %s97 = sphi 0, %s96
      %s111 = sphi 0, %s97
      %s115 = sphi 0, %s115
      %s117 = sphi 0, %s115
      %s118 = sphi 0, %s117
      %s132 = sphi 0, %s118
      %s136 = sphi 0, %s136
      %s138 = sphi 0, %s136
      %s139 = sphi 0, %s138
      %s153 = sphi 0, %s139
      %s157 = sphi 0, %s157
      %s159 = sphi 0, %s157
      %s160 = sphi 0, %s159
      %s174 = sphi 0, %s160
      %s178 = sphi 0, %s178
      %s180 = sphi 0, %s178
      %s181 = sphi 0, %s180
      %s195 = sphi 0, %s181
      %s199 = sphi 0, %s199
      %s201 = sphi 0, %s199
      %s202 = sphi 0, %s201
      %s216 = sphi 0, %s202
      %s220 = sphi 0, %s220
      %s222 = sphi 0, %s220
      %s223 = sphi 0, %s222
      %s237 = sphi 0, %s223
      %s241 = sphi 0, %s241
      %s243 = sphi 0, %s241
      %s244 = sphi 0, %s243
      %s258 = sphi 0, %s244
      %s262 = sphi 0, %s262
      %s264 = sphi 0, %s262
      %s265 = sphi 0, %s264
      %s279 = sphi 0, %s265
      %s283 = sphi 0, %s283
      %s285 = sphi 0, %s283
      %s286 = sphi 0, %s285
      %s300 = sphi 0, %s286
      %s304 = sphi 0, %s304
      %s306 = sphi 0, %s304
      %s307 = sphi 0, %s306
      %s321 = sphi 0, %s307
      %s325 = sphi 0, %s325
      %s327 = sphi 0, %s325
      %s328 = sphi 0, %s327
      %s342 = sphi 0, %s328
      %s346 = sphi 0, %s346
      %s348 = sphi 0, %s346
      %s349 = sphi 0, %s348
      %s363 = sphi 0, %s349
      %s367 = sphi 0, %s367
      %s369 = sphi 0, %s367
      %s370 = sphi 0, %s369
      %s384 = sphi 0, %s370
      %s388 = sphi 0, %s388
      %s390 = sphi 0, %s388
      %s391 = sphi 0, %s390
      %s405 = sphi 0, %s391
      %s409 = sphi 0, %s409
      %s411 = sphi 0, %s409
      %s412 = sphi 0, %s411
      %s426 = sphi 0, %s412
      %s430 = sphi 0, %s430
      %s432 = sphi 0, %s430
      %s433 = sphi 0, %s432
      %s447 = sphi 0, %s433
      %s451 = sphi 0, %s451
      %s453 = sphi 0, %s451
      %s454 = sphi 0, %s453
      %s468 = sphi 0, %s454
      %s472 = sphi 0, %s472
      %s474 = sphi 0, %s472
      %s475 = sphi 0, %s474
      %s489 = sphi 0, %s475
      %s495 = sphi 0, %s497
      %s498 = sphi 0, %s495
      %s499 = sphi 0, %s498
      %s515 = sphi 0, %s499
    $region4: #{bert_iso_forward.1} parent=1 // loop_header_branch
      %37 = sbr.rel (%p35) target = $region8
    $region5: #{bert_iso_forward.1} parent=1 // loop_body
      %s39 = ssub.s32 %s34, 1
      %s40 = ssub.s32 %s34, 2
      %s41 = sadd.s32 %s34, 1
      %s42 = ssub.s32 %s34, %s41
      %p43 = scmp.eq.s32.totalorder %s42, 0
      %s45 = sadd.s32 %s44, 1
      %s46 = scalar_select %p43, %s44, %s45
      %p49 = pneg %p43
      %p50 = scmp.eq.s32.totalorder %s34, 1
      %p51 = por %p49, %p50
      %p52 = scmp.ne.s32.totalorder %s44, %s47
      %p53 = scmp.eq.s32.totalorder %s34, 0
      %p54 = por %p52, %p53
      %p55 = scmp.ne.s32.totalorder %s44, %s47
      %p56 = scmp.eq.s32.totalorder %s39, 1
      %p57 = por %p55, %p56
      %p58 = scmp.ne.s32.totalorder %s47, %s48
      %p59 = scmp.eq.s32.totalorder %s39, 0
      %p60 = por %p58, %p59
      %p61 = scmp.ne.s32.totalorder %s47, %s48
      %p62 = scmp.eq.s32.totalorder %s40, 1
      %p63 = por %p61, %p62
      %p65 = scmp.ne.s32.totalorder %s48, %s64
      %p66 = scmp.eq.s32.totalorder %s40, 0
      %p67 = por %p65, %p66
      %s68 = ssub.s32 %s34, %s41
      %p69 = scmp.eq.s32.totalorder %s68, 0
      %s71 = sadd.s32 %s70, 1
      %s72 = scalar_select %p69, %s70, %s71
      %p75 = pneg %p69
      %p76 = scmp.eq.s32.totalorder %s34, 1
      %p77 = por %p75, %p76
      %p78 = scmp.ne.s32.totalorder %s70, %s73
      %p79 = scmp.eq.s32.totalorder %s34, 0
      %p80 = por %p78, %p79
      %p81 = scmp.ne.s32.totalorder %s70, %s73
      %p82 = scmp.eq.s32.totalorder %s39, 1
      %p83 = por %p81, %p82
      %p84 = scmp.ne.s32.totalorder %s73, %s74
      %p85 = scmp.eq.s32.totalorder %s39, 0
      %p86 = por %p84, %p85
      %p87 = scmp.ne.s32.totalorder %s73, %s74
      %p88 = scmp.eq.s32.totalorder %s40, 1
      %p89 = por %p87, %p88
      %p91 = scmp.ne.s32.totalorder %s74, %s90
      %p92 = scmp.eq.s32.totalorder %s40, 0
      %p93 = por %p91, %p92
      %s95 = sadd.s32 %s94, 1
      %p98 = scmp.eq.s32.totalorder %s34, 1
      %p99 = scmp.ne.s32.totalorder %s94, %s96
      %p100 = scmp.eq.s32.totalorder %s34, 0
      %p101 = por %p99, %p100
      %p102 = scmp.ne.s32.totalorder %s94, %s96
      %p103 = scmp.eq.s32.totalorder %s39, 1
      %p104 = por %p102, %p103
      %p105 = scmp.ne.s32.totalorder %s96, %s97
      %p106 = scmp.eq.s32.totalorder %s39, 0
      %p107 = por %p105, %p106
      %p108 = scmp.ne.s32.totalorder %s96, %s97
      %p109 = scmp.eq.s32.totalorder %s40, 1
      %p110 = por %p108, %p109
      %p112 = scmp.ne.s32.totalorder %s97, %s111
      %p113 = scmp.eq.s32.totalorder %s40, 0
      %p114 = por %p112, %p113
      %s116 = sadd.s32 %s115, 1
      %p119 = scmp.eq.s32.totalorder %s34, 1
      %p120 = scmp.ne.s32.totalorder %s115, %s117
      %p121 = scmp.eq.s32.totalorder %s34, 0
      %p122 = por %p120, %p121
      %p123 = scmp.ne.s32.totalorder %s115, %s117
      %p124 = scmp.eq.s32.totalorder %s39, 1
      %p125 = por %p123, %p124
      %p126 = scmp.ne.s32.totalorder %s117, %s118
      %p127 = scmp.eq.s32.totalorder %s39, 0
      %p128 = por %p126, %p127
      %p129 = scmp.ne.s32.totalorder %s117, %s118
      %p130 = scmp.eq.s32.totalorder %s40, 1
      %p131 = por %p129, %p130
      %p133 = scmp.ne.s32.totalorder %s118, %s132
      %p134 = scmp.eq.s32.totalorder %s40, 0
      %p135 = por %p133, %p134
      %s137 = sadd.s32 %s136, 1
      %p140 = scmp.eq.s32.totalorder %s34, 1
      %p141 = scmp.ne.s32.totalorder %s136, %s138
      %p142 = scmp.eq.s32.totalorder %s34, 0
      %p143 = por %p141, %p142
      %p144 = scmp.ne.s32.totalorder %s136, %s138
      %p145 = scmp.eq.s32.totalorder %s39, 1
      %p146 = por %p144, %p145
      %p147 = scmp.ne.s32.totalorder %s138, %s139
      %p148 = scmp.eq.s32.totalorder %s39, 0
      %p149 = por %p147, %p148
      %p150 = scmp.ne.s32.totalorder %s138, %s139
      %p151 = scmp.eq.s32.totalorder %s40, 1
      %p152 = por %p150, %p151
      %p154 = scmp.ne.s32.totalorder %s139, %s153
      %p155 = scmp.eq.s32.totalorder %s40, 0
      %p156 = por %p154, %p155
      %s158 = sadd.s32 %s157, 1
      %p161 = scmp.eq.s32.totalorder %s34, 1
      %p162 = scmp.ne.s32.totalorder %s157, %s159
      %p163 = scmp.eq.s32.totalorder %s34, 0
      %p164 = por %p162, %p163
      %p165 = scmp.ne.s32.totalorder %s157, %s159
      %p166 = scmp.eq.s32.totalorder %s39, 1
      %p167 = por %p165, %p166
      %p168 = scmp.ne.s32.totalorder %s159, %s160
      %p169 = scmp.eq.s32.totalorder %s39, 0
      %p170 = por %p168, %p169
      %p171 = scmp.ne.s32.totalorder %s159, %s160
      %p172 = scmp.eq.s32.totalorder %s40, 1
      %p173 = por %p171, %p172
      %p175 = scmp.ne.s32.totalorder %s160, %s174
      %p176 = scmp.eq.s32.totalorder %s40, 0
      %p177 = por %p175, %p176
      %s179 = sadd.s32 %s178, 1
      %p182 = scmp.eq.s32.totalorder %s34, 1
      %p183 = scmp.ne.s32.totalorder %s178, %s180
      %p184 = scmp.eq.s32.totalorder %s34, 0
      %p185 = por %p183, %p184
      %p186 = scmp.ne.s32.totalorder %s178, %s180
      %p187 = scmp.eq.s32.totalorder %s39, 1
      %p188 = por %p186, %p187
      %p189 = scmp.ne.s32.totalorder %s180, %s181
      %p190 = scmp.eq.s32.totalorder %s39, 0
      %p191 = por %p189, %p190
      %p192 = scmp.ne.s32.totalorder %s180, %s181
      %p193 = scmp.eq.s32.totalorder %s40, 1
      %p194 = por %p192, %p193
      %p196 = scmp.ne.s32.totalorder %s181, %s195
      %p197 = scmp.eq.s32.totalorder %s40, 0
      %p198 = por %p196, %p197
      %s200 = sadd.s32 %s199, 1
      %p203 = scmp.eq.s32.totalorder %s34, 1
      %p204 = scmp.ne.s32.totalorder %s199, %s201
      %p205 = scmp.eq.s32.totalorder %s34, 0
      %p206 = por %p204, %p205
      %p207 = scmp.ne.s32.totalorder %s199, %s201
      %p208 = scmp.eq.s32.totalorder %s39, 1
      %p209 = por %p207, %p208
      %p210 = scmp.ne.s32.totalorder %s201, %s202
      %p211 = scmp.eq.s32.totalorder %s39, 0
      %p212 = por %p210, %p211
      %p213 = scmp.ne.s32.totalorder %s201, %s202
      %p214 = scmp.eq.s32.totalorder %s40, 1
      %p215 = por %p213, %p214
      %p217 = scmp.ne.s32.totalorder %s202, %s216
      %p218 = scmp.eq.s32.totalorder %s40, 0
      %p219 = por %p217, %p218
      %s221 = sadd.s32 %s220, 1
      %p224 = scmp.eq.s32.totalorder %s34, 1
      %p225 = scmp.ne.s32.totalorder %s220, %s222
      %p226 = scmp.eq.s32.totalorder %s34, 0
      %p227 = por %p225, %p226
      %p228 = scmp.ne.s32.totalorder %s220, %s222
      %p229 = scmp.eq.s32.totalorder %s39, 1
      %p230 = por %p228, %p229
      %p231 = scmp.ne.s32.totalorder %s222, %s223
      %p232 = scmp.eq.s32.totalorder %s39, 0
      %p233 = por %p231, %p232
      %p234 = scmp.ne.s32.totalorder %s222, %s223
      %p235 = scmp.eq.s32.totalorder %s40, 1
      %p236 = por %p234, %p235
      %p238 = scmp.ne.s32.totalorder %s223, %s237
      %p239 = scmp.eq.s32.totalorder %s40, 0
      %p240 = por %p238, %p239
      %s242 = sadd.s32 %s241, 1
      %p245 = scmp.eq.s32.totalorder %s34, 1
      %p246 = scmp.ne.s32.totalorder %s241, %s243
      %p247 = scmp.eq.s32.totalorder %s34, 0
      %p248 = por %p246, %p247
      %p249 = scmp.ne.s32.totalorder %s241, %s243
      %p250 = scmp.eq.s32.totalorder %s39, 1
      %p251 = por %p249, %p250
      %p252 = scmp.ne.s32.totalorder %s243, %s244
      %p253 = scmp.eq.s32.totalorder %s39, 0
      %p254 = por %p252, %p253
      %p255 = scmp.ne.s32.totalorder %s243, %s244
      %p256 = scmp.eq.s32.totalorder %s40, 1
      %p257 = por %p255, %p256
      %p259 = scmp.ne.s32.totalorder %s244, %s258
      %p260 = scmp.eq.s32.totalorder %s40, 0
      %p261 = por %p259, %p260
      %s263 = sadd.s32 %s262, 1
      %p266 = scmp.eq.s32.totalorder %s34, 1
      %p267 = scmp.ne.s32.totalorder %s262, %s264
      %p268 = scmp.eq.s32.totalorder %s34, 0
      %p269 = por %p267, %p268
      %p270 = scmp.ne.s32.totalorder %s262, %s264
      %p271 = scmp.eq.s32.totalorder %s39, 1
      %p272 = por %p270, %p271
      %p273 = scmp.ne.s32.totalorder %s264, %s265
      %p274 = scmp.eq.s32.totalorder %s39, 0
      %p275 = por %p273, %p274
      %p276 = scmp.ne.s32.totalorder %s264, %s265
      %p277 = scmp.eq.s32.totalorder %s40, 1
      %p278 = por %p276, %p277
      %p280 = scmp.ne.s32.totalorder %s265, %s279
      %p281 = scmp.eq.s32.totalorder %s40, 0
      %p282 = por %p280, %p281
      %s284 = sadd.s32 %s283, 1
      %p287 = scmp.eq.s32.totalorder %s34, 1
      %p288 = scmp.ne.s32.totalorder %s283, %s285
      %p289 = scmp.eq.s32.totalorder %s34, 0
      %p290 = por %p288, %p289
      %p291 = scmp.ne.s32.totalorder %s283, %s285
      %p292 = scmp.eq.s32.totalorder %s39, 1
      %p293 = por %p291, %p292
      %p294 = scmp.ne.s32.totalorder %s285, %s286
      %p295 = scmp.eq.s32.totalorder %s39, 0
      %p296 = por %p294, %p295
      %p297 = scmp.ne.s32.totalorder %s285, %s286
      %p298 = scmp.eq.s32.totalorder %s40, 1
      %p299 = por %p297, %p298
      %p301 = scmp.ne.s32.totalorder %s286, %s300
      %p302 = scmp.eq.s32.totalorder %s40, 0
      %p303 = por %p301, %p302
      %s305 = sadd.s32 %s304, 1
      %p308 = scmp.eq.s32.totalorder %s34, 1
      %p309 = scmp.ne.s32.totalorder %s304, %s306
      %p310 = scmp.eq.s32.totalorder %s34, 0
      %p311 = por %p309, %p310
      %p312 = scmp.ne.s32.totalorder %s304, %s306
      %p313 = scmp.eq.s32.totalorder %s39, 1
      %p314 = por %p312, %p313
      %p315 = scmp.ne.s32.totalorder %s306, %s307
      %p316 = scmp.eq.s32.totalorder %s39, 0
      %p317 = por %p315, %p316
      %p318 = scmp.ne.s32.totalorder %s306, %s307
      %p319 = scmp.eq.s32.totalorder %s40, 1
      %p320 = por %p318, %p319
      %p322 = scmp.ne.s32.totalorder %s307, %s321
      %p323 = scmp.eq.s32.totalorder %s40, 0
      %p324 = por %p322, %p323
      %s326 = sadd.s32 %s325, 1
      %p329 = scmp.eq.s32.totalorder %s34, 1
      %p330 = scmp.ne.s32.totalorder %s325, %s327
      %p331 = scmp.eq.s32.totalorder %s34, 0
      %p332 = por %p330, %p331
      %p333 = scmp.ne.s32.totalorder %s325, %s327
      %p334 = scmp.eq.s32.totalorder %s39, 1
      %p335 = por %p333, %p334
      %p336 = scmp.ne.s32.totalorder %s327, %s328
      %p337 = scmp.eq.s32.totalorder %s39, 0
      %p338 = por %p336, %p337
      %p339 = scmp.ne.s32.totalorder %s327, %s328
      %p340 = scmp.eq.s32.totalorder %s40, 1
      %p341 = por %p339, %p340
      %p343 = scmp.ne.s32.totalorder %s328, %s342
      %p344 = scmp.eq.s32.totalorder %s40, 0
      %p345 = por %p343, %p344
      %s347 = sadd.s32 %s346, 1
      %p350 = scmp.eq.s32.totalorder %s34, 1
      %p351 = scmp.ne.s32.totalorder %s346, %s348
      %p352 = scmp.eq.s32.totalorder %s34, 0
      %p353 = por %p351, %p352
      %p354 = scmp.ne.s32.totalorder %s346, %s348
      %p355 = scmp.eq.s32.totalorder %s39, 1
      %p356 = por %p354, %p355
      %p357 = scmp.ne.s32.totalorder %s348, %s349
      %p358 = scmp.eq.s32.totalorder %s39, 0
      %p359 = por %p357, %p358
      %p360 = scmp.ne.s32.totalorder %s348, %s349
      %p361 = scmp.eq.s32.totalorder %s40, 1
      %p362 = por %p360, %p361
      %p364 = scmp.ne.s32.totalorder %s349, %s363
      %p365 = scmp.eq.s32.totalorder %s40, 0
      %p366 = por %p364, %p365
      %s368 = sadd.s32 %s367, 1
      %p371 = scmp.eq.s32.totalorder %s34, 1
      %p372 = scmp.ne.s32.totalorder %s367, %s369
      %p373 = scmp.eq.s32.totalorder %s34, 0
      %p374 = por %p372, %p373
      %p375 = scmp.ne.s32.totalorder %s367, %s369
      %p376 = scmp.eq.s32.totalorder %s39, 1
      %p377 = por %p375, %p376
      %p378 = scmp.ne.s32.totalorder %s369, %s370
      %p379 = scmp.eq.s32.totalorder %s39, 0
      %p380 = por %p378, %p379
      %p381 = scmp.ne.s32.totalorder %s369, %s370
      %p382 = scmp.eq.s32.totalorder %s40, 1
      %p383 = por %p381, %p382
      %p385 = scmp.ne.s32.totalorder %s370, %s384
      %p386 = scmp.eq.s32.totalorder %s40, 0
      %p387 = por %p385, %p386
      %s389 = sadd.s32 %s388, 1
      %p392 = scmp.eq.s32.totalorder %s34, 1
      %p393 = scmp.ne.s32.totalorder %s388, %s390
      %p394 = scmp.eq.s32.totalorder %s34, 0
      %p395 = por %p393, %p394
      %p396 = scmp.ne.s32.totalorder %s388, %s390
      %p397 = scmp.eq.s32.totalorder %s39, 1
      %p398 = por %p396, %p397
      %p399 = scmp.ne.s32.totalorder %s390, %s391
      %p400 = scmp.eq.s32.totalorder %s39, 0
      %p401 = por %p399, %p400
      %p402 = scmp.ne.s32.totalorder %s390, %s391
      %p403 = scmp.eq.s32.totalorder %s40, 1
      %p404 = por %p402, %p403
      %p406 = scmp.ne.s32.totalorder %s391, %s405
      %p407 = scmp.eq.s32.totalorder %s40, 0
      %p408 = por %p406, %p407
      %s410 = sadd.s32 %s409, 1
      %p413 = scmp.eq.s32.totalorder %s34, 1
      %p414 = scmp.ne.s32.totalorder %s409, %s411
      %p415 = scmp.eq.s32.totalorder %s34, 0
      %p416 = por %p414, %p415
      %p417 = scmp.ne.s32.totalorder %s409, %s411
      %p418 = scmp.eq.s32.totalorder %s39, 1
      %p419 = por %p417, %p418
      %p420 = scmp.ne.s32.totalorder %s411, %s412
      %p421 = scmp.eq.s32.totalorder %s39, 0
      %p422 = por %p420, %p421
      %p423 = scmp.ne.s32.totalorder %s411, %s412
      %p424 = scmp.eq.s32.totalorder %s40, 1
      %p425 = por %p423, %p424
      %p427 = scmp.ne.s32.totalorder %s412, %s426
      %p428 = scmp.eq.s32.totalorder %s40, 0
      %p429 = por %p427, %p428
      %s431 = sadd.s32 %s430, 1
      %p434 = scmp.eq.s32.totalorder %s34, 1
      %p435 = scmp.ne.s32.totalorder %s430, %s432
      %p436 = scmp.eq.s32.totalorder %s34, 0
      %p437 = por %p435, %p436
      %p438 = scmp.ne.s32.totalorder %s430, %s432
      %p439 = scmp.eq.s32.totalorder %s39, 1
      %p440 = por %p438, %p439
      %p441 = scmp.ne.s32.totalorder %s432, %s433
      %p442 = scmp.eq.s32.totalorder %s39, 0
      %p443 = por %p441, %p442
      %p444 = scmp.ne.s32.totalorder %s432, %s433
      %p445 = scmp.eq.s32.totalorder %s40, 1
      %p446 = por %p444, %p445
      %p448 = scmp.ne.s32.totalorder %s433, %s447
      %p449 = scmp.eq.s32.totalorder %s40, 0
      %p450 = por %p448, %p449
      %s452 = sadd.s32 %s451, 1
      %p455 = scmp.eq.s32.totalorder %s34, 1
      %p456 = scmp.ne.s32.totalorder %s451, %s453
      %p457 = scmp.eq.s32.totalorder %s34, 0
      %p458 = por %p456, %p457
      %p459 = scmp.ne.s32.totalorder %s451, %s453
      %p460 = scmp.eq.s32.totalorder %s39, 1
      %p461 = por %p459, %p460
      %p462 = scmp.ne.s32.totalorder %s453, %s454
      %p463 = scmp.eq.s32.totalorder %s39, 0
      %p464 = por %p462, %p463
      %p465 = scmp.ne.s32.totalorder %s453, %s454
      %p466 = scmp.eq.s32.totalorder %s40, 1
      %p467 = por %p465, %p466
      %p469 = scmp.ne.s32.totalorder %s454, %s468
      %p470 = scmp.eq.s32.totalorder %s40, 0
      %p471 = por %p469, %p470
      %s473 = sadd.s32 %s472, 1
      %p476 = scmp.eq.s32.totalorder %s34, 1
      %p477 = scmp.ne.s32.totalorder %s472, %s474
      %p478 = scmp.eq.s32.totalorder %s34, 0
      %p479 = por %p477, %p478
      %p480 = scmp.ne.s32.totalorder %s472, %s474
      %p481 = scmp.eq.s32.totalorder %s39, 1
      %p482 = por %p480, %p481
      %p483 = scmp.ne.s32.totalorder %s474, %s475
      %p484 = scmp.eq.s32.totalorder %s39, 0
      %p485 = por %p483, %p484
      %p486 = scmp.ne.s32.totalorder %s474, %s475
      %p487 = scmp.eq.s32.totalorder %s40, 1
      %p488 = por %p486, %p487
      %p490 = scmp.ne.s32.totalorder %s475, %s489
      %p491 = scmp.eq.s32.totalorder %s40, 0
      %p492 = por %p490, %p491
      %s493 = ssub.s32 %s34, %s41
      %p494 = scmp.eq.s32.totalorder %s493, 0
      %s496 = sadd.s32 %s495, 1
      %s497 = scalar_select %p494, %s495, %s496
      %p500 = pneg %p494
      %p501 = scmp.eq.s32.totalorder %s34, 1
      %p502 = por %p500, %p501
      %p503 = scmp.ne.s32.totalorder %s495, %s498
      %p504 = scmp.eq.s32.totalorder %s34, 0
      %p505 = por %p503, %p504
      %p506 = scmp.ne.s32.totalorder %s495, %s498
      %p507 = scmp.eq.s32.totalorder %s39, 1
      %p508 = por %p506, %p507
      %p509 = scmp.ne.s32.totalorder %s498, %s499
      %p510 = scmp.eq.s32.totalorder %s39, 0
      %p511 = por %p509, %p510
      %p512 = scmp.ne.s32.totalorder %s498, %s499
      %p513 = scmp.eq.s32.totalorder %s40, 1
      %p514 = por %p512, %p513
      %p516 = scmp.ne.s32.totalorder %s499, %s515
      %p517 = scmp.eq.s32.totalorder %s40, 0
      %p518 = por %p516, %p517
      %p519 = scmp.le.s32.totalorder 1, %s34
      %p520 = scmp.lt.s32.totalorder %s34, 3
      %p521 = pnand %p519, %p520
      %p522 = pneg %p521
      // Predicated region
      $region9: #{bert_iso_forward.1} parent=5 // pred_check
        _
      $region10: #{bert_iso_forward.1} parent=5 // pred_check_branch
        %524 = sbr.rel (%p521) target = $region12
      $region11: #{bert_iso_forward.1} parent=5 // pred_region
        %s525 = ssub.s32 %s34, 1
        // Predicated region
        $region13: #{bert_iso_forward.1} parent=11 // pred_check
          %p526 = pneg %p107
        $region14: #{bert_iso_forward.1} parent=11 // pred_check_branch
          %528 = sbr.rel (%p526) target = $region16
        $region15: #{bert_iso_forward.1} parent=11 // pred_region
          _
        $region16: #{bert_iso_forward.1} parent=11 // pred_fallthru
          _
        // Predicated region
        $region17: #{bert_iso_forward.1} parent=11 // pred_check
          %p529 = pneg %p128
        $region18: #{bert_iso_forward.1} parent=11 // pred_check_branch
          %531 = sbr.rel (%p529) target = $region20
        $region19: #{bert_iso_forward.1} parent=11 // pred_region
          %s533 = ssub.s32 2048, 2048
          %534 = vsyncadd [#allocation3], %s533
          %s535 = sshll.u32 [#allocation2], 4
          %s536 = int_to_ptr.vmem [resolvable:$true] %s535
          %541 = dma.hbm_to_vmem [thread:$0]  %s3, 2048, %s536, [#allocation3], 128, 128, 8
        $region20: #{bert_iso_forward.1} parent=11 // pred_fallthru
          _
        // Predicated region
        $region21: #{bert_iso_forward.1} parent=11 // pred_check
          %p542 = pneg %p149
        $region22: #{bert_iso_forward.1} parent=11 // pred_check_branch
          %544 = sbr.rel (%p542) target = $region24
        $region23: #{bert_iso_forward.1} parent=11 // pred_region
          _
        $region24: #{bert_iso_forward.1} parent=11 // pred_fallthru
          _
        // Predicated region
        $region25: #{bert_iso_forward.1} parent=11 // pred_check
          %p545 = pneg %p170
        $region26: #{bert_iso_forward.1} parent=11 // pred_check_branch
          %547 = sbr.rel (%p545) target = $region28
        $region27: #{bert_iso_forward.1} parent=11 // pred_region
          _
        $region28: #{bert_iso_forward.1} parent=11 // pred_fallthru
          _
        // Predicated region
        $region29: #{bert_iso_forward.1} parent=11 // pred_check
          %p548 = pneg %p191
        $region30: #{bert_iso_forward.1} parent=11 // pred_check_branch
          %550 = sbr.rel (%p548) target = $region32
        $region31: #{bert_iso_forward.1} parent=11 // pred_region
          %s552 = ssub.s32 16, 16
          %553 = vsyncadd [#allocation5], %s552
          %s555 = sshll.u32 [#allocation4], 4
          %s556 = int_to_ptr.vmem [resolvable:$true] %s555
          %558 = dma.hbm_to_vmem [thread:$0]  %s6, 16, %s556, [#allocation5]
        $region32: #{bert_iso_forward.1} parent=11 // pred_fallthru
          _
        // Predicated region
        $region33: #{bert_iso_forward.1} parent=11 // pred_check
          %p559 = pneg %p212
        $region34: #{bert_iso_forward.1} parent=11 // pred_check_branch
          %561 = sbr.rel (%p559) target = $region36
        $region35: #{bert_iso_forward.1} parent=11 // pred_region
          %s563 = ssub.s32 12288, 12288
          %564 = vsyncadd [#allocation5], %s563
          %s565 = sshll.u32 [#allocation6], 4
          %s566 = int_to_ptr.vmem [resolvable:$true] %s565
          %571 = dma.hbm_to_vmem [thread:$0]  %s7, 12288, %s566, [#allocation5], 384, 384, 24
        $region36: #{bert_iso_forward.1} parent=11 // pred_fallthru
          _
        // Predicated region
        $region37: #{bert_iso_forward.1} parent=11 // pred_check
          %p572 = pneg %p233
        $region38: #{bert_iso_forward.1} parent=11 // pred_check_branch
          %574 = sbr.rel (%p572) target = $region40
        $region39: #{bert_iso_forward.1} parent=11 // pred_region
          _
        $region40: #{bert_iso_forward.1} parent=11 // pred_fallthru
          _
        // Predicated region
        $region41: #{bert_iso_forward.1} parent=11 // pred_check
          %p575 = pneg %p254
        $region42: #{bert_iso_forward.1} parent=11 // pred_check_branch
          %577 = sbr.rel (%p575) target = $region44
        $region43: #{bert_iso_forward.1} parent=11 // pred_region
          %s579 = ssub.s32 4096, 4096
          %580 = vsyncadd [#allocation8], %s579
          %s581 = sshll.u32 [#allocation7], 4
          %s582 = int_to_ptr.vmem [resolvable:$true] %s581
          %587 = dma.hbm_to_vmem [thread:$0]  %s9, 4096, %s582, [#allocation8], 64, 64, 4
        $region44: #{bert_iso_forward.1} parent=11 // pred_fallthru
          _
        // Predicated region
        $region45: #{bert_iso_forward.1} parent=11 // pred_check
          %p588 = pneg %p275
        $region46: #{bert_iso_forward.1} parent=11 // pred_check_branch
          %590 = sbr.rel (%p588) target = $region48
        $region47: #{bert_iso_forward.1} parent=11 // pred_region
          _
        $region48: #{bert_iso_forward.1} parent=11 // pred_fallthru
          _
        // Predicated region
        $region49: #{bert_iso_forward.1} parent=11 // pred_check
          %p591 = pneg %p296
        $region50: #{bert_iso_forward.1} parent=11 // pred_check_branch
          %593 = sbr.rel (%p591) target = $region52
        $region51: #{bert_iso_forward.1} parent=11 // pred_region
          _
        $region52: #{bert_iso_forward.1} parent=11 // pred_fallthru
          _
        // Predicated region
        $region53: #{bert_iso_forward.1} parent=11 // pred_check
          %p594 = pneg %p317
        $region54: #{bert_iso_forward.1} parent=11 // pred_check_branch
          %596 = sbr.rel (%p594) target = $region56
        $region55: #{bert_iso_forward.1} parent=11 // pred_region
          %s598 = ssub.s32 32, 32
          %599 = vsyncadd [#allocation8], %s598
          %s600 = sshll.u32 [#allocation9], 4
          %s601 = int_to_ptr.vmem [resolvable:$true] %s600
          %606 = dma.hbm_to_vmem [thread:$0]  %s12, 32, %s601, [#allocation8], 16, 16, 1
        $region56: #{bert_iso_forward.1} parent=11 // pred_fallthru
          _
        // Predicated region
        $region57: #{bert_iso_forward.1} parent=11 // pred_check
          %p607 = pneg %p338
        $region58: #{bert_iso_forward.1} parent=11 // pred_check_branch
          %609 = sbr.rel (%p607) target = $region60
        $region59: #{bert_iso_forward.1} parent=11 // pred_region
          %s611 = ssub.s32 8192, 8192
          %612 = vsyncadd [#allocation11], %s611
          %s613 = sshll.u32 [#allocation10], 4
          %s614 = int_to_ptr.vmem [resolvable:$true] %s613
          %619 = dma.hbm_to_vmem [thread:$0]  %s13, 8192, %s614, [#allocation11], 256, 256, 16
        $region60: #{bert_iso_forward.1} parent=11 // pred_fallthru
          _
        // Predicated region
        $region61: #{bert_iso_forward.1} parent=11 // pred_check
          %p620 = pneg %p359
        $region62: #{bert_iso_forward.1} parent=11 // pred_check_branch
          %622 = sbr.rel (%p620) target = $region64
        $region63: #{bert_iso_forward.1} parent=11 // pred_region
          %s624 = ssub.s32 128, 128
          %625 = vsyncadd [#allocation11], %s624
          %s626 = sshll.u32 [#allocation12], 4
          %s627 = int_to_ptr.vmem [resolvable:$true] %s626
          %632 = dma.hbm_to_vmem [thread:$0]  %s14, 128, %s627, [#allocation11], 64, 64, 4
        $region64: #{bert_iso_forward.1} parent=11 // pred_fallthru
          _
        // Predicated region
        $region65: #{bert_iso_forward.1} parent=11 // pred_check
          %p633 = pneg %p380
        $region66: #{bert_iso_forward.1} parent=11 // pred_check_branch
          %635 = sbr.rel (%p633) target = $region68
        $region67: #{bert_iso_forward.1} parent=11 // pred_region
          %s637 = ssub.s32 8192, 8192
          %638 = vsyncadd [#allocation14], %s637
          %s639 = sshll.u32 [#allocation13], 4
          %s640 = int_to_ptr.vmem [resolvable:$true] %s639
          %645 = dma.hbm_to_vmem [thread:$0]  %s15, 8192, %s640, [#allocation14], 64, 64, 4
        $region68: #{bert_iso_forward.1} parent=11 // pred_fallthru
          _
        // Predicated region
        $region69: #{bert_iso_forward.1} parent=11 // pred_check
          %p646 = pneg %p401
        $region70: #{bert_iso_forward.1} parent=11 // pred_check_branch
          %648 = sbr.rel (%p646) target = $region72
        $region71: #{bert_iso_forward.1} parent=11 // pred_region
          %s650 = ssub.s32 32, 32
          %651 = vsyncadd [#allocation14], %s650
          %s652 = sshll.u32 [#allocation15], 4
          %s653 = int_to_ptr.vmem [resolvable:$true] %s652
          %658 = dma.hbm_to_vmem [thread:$0]  %s16, 32, %s653, [#allocation14], 16, 16, 1
        $region72: #{bert_iso_forward.1} parent=11 // pred_fallthru
          _
        // Predicated region
        $region73: #{bert_iso_forward.1} parent=11 // pred_check
          %p659 = pneg %p422
        $region74: #{bert_iso_forward.1} parent=11 // pred_check_branch
          %661 = sbr.rel (%p659) target = $region76
        $region75: #{bert_iso_forward.1} parent=11 // pred_region
          %s663 = ssub.s32 32, 32
          %664 = vsyncadd [#allocation17], %s663
          %s665 = sshll.u32 [#allocation16], 4
          %s666 = int_to_ptr.vmem [resolvable:$true] %s665
          %671 = dma.hbm_to_vmem [thread:$0]  %s17, 32, %s666, [#allocation17], 16, 16, 1
        $region76: #{bert_iso_forward.1} parent=11 // pred_fallthru
          _
        // Predicated region
        $region77: #{bert_iso_forward.1} parent=11 // pred_check
          %p672 = pneg %p443
        $region78: #{bert_iso_forward.1} parent=11 // pred_check_branch
          %674 = sbr.rel (%p672) target = $region80
        $region79: #{bert_iso_forward.1} parent=11 // pred_region
          %s676 = ssub.s32 32, 32
          %677 = vsyncadd [#allocation17], %s676
          %s678 = sshll.u32 [#allocation18], 4
          %s679 = int_to_ptr.vmem [resolvable:$true] %s678
          %684 = dma.hbm_to_vmem [thread:$0]  %s18, 32, %s679, [#allocation17], 16, 16, 1
        $region80: #{bert_iso_forward.1} parent=11 // pred_fallthru
          _
        // Predicated region
        $region81: #{bert_iso_forward.1} parent=11 // pred_check
          %p685 = pneg %p464
        $region82: #{bert_iso_forward.1} parent=11 // pred_check_branch
          %687 = sbr.rel (%p685) target = $region84
        $region83: #{bert_iso_forward.1} parent=11 // pred_region
          _
        $region84: #{bert_iso_forward.1} parent=11 // pred_fallthru
          _
        // Predicated region
        $region85: #{bert_iso_forward.1} parent=11 // pred_check
          %p688 = pneg %p485
        $region86: #{bert_iso_forward.1} parent=11 // pred_check_branch
          %690 = sbr.rel (%p688) target = $region88
        $region87: #{bert_iso_forward.1} parent=11 // pred_region
          %s692 = ssub.s32 16, 16
          %693 = vsyncadd [#allocation20], %s692
          %s695 = sshll.u32 [#allocation19], 4
          %s696 = int_to_ptr.vmem [resolvable:$true] %s695
          %698 = dma.hbm_to_vmem [thread:$0]  %s20, 16, %s696, [#allocation20]
        $region88: #{bert_iso_forward.1} parent=11 // pred_fallthru
          _
      $region12: #{bert_iso_forward.1} parent=5 // pred_fallthru
        _
      %p699 = scmp.lt.s32.totalorder %s34, 2
      // Predicated region
      $region89: #{bert_iso_forward.1} parent=5 // pred_check
        %p700 = pneg %p699
      $region90: #{bert_iso_forward.1} parent=5 // pred_check_branch
        %702 = sbr.rel (%p700) target = $region92
      $region91: #{bert_iso_forward.1} parent=5 // pred_region
        // Predicated region
        $region93: #{bert_iso_forward.1} parent=91 // pred_check
          %p703 = pneg %p54
        $region94: #{bert_iso_forward.1} parent=91 // pred_check_branch
          %705 = sbr.rel (%p703) target = $region96
        $region95: #{bert_iso_forward.1} parent=91 // pred_region
          %s706 = smul.u32 16, %s34
          %p707 = scmp.lt.s32.totalorder %s706, 31
          %s708 = scalar_select %p707, %s706, 31
          %s709 = smul.addr %s708, 8
          %s710 = scalar_lea.vmem %s0, %s709
          %s711 = smul.u32 16, %s34
        $region96: #{bert_iso_forward.1} parent=91 // pred_fallthru
          _
        // Predicated region
        $region97: #{bert_iso_forward.1} parent=91 // pred_check
          %p712 = pneg %p80
        $region98: #{bert_iso_forward.1} parent=91 // pred_check_branch
          %714 = sbr.rel (%p712) target = $region100
        $region99: #{bert_iso_forward.1} parent=91 // pred_region
          %p715 = scmp.lt.s32.totalorder %s34, 1
          %s716 = scalar_select %p715, %s34, 1
          %s717 = scalar_lea.vmem %s1, %s716
        $region100: #{bert_iso_forward.1} parent=91 // pred_fallthru
          _
      $region92: #{bert_iso_forward.1} parent=5 // pred_fallthru
        _
      %p718 = scmp.le.s32.totalorder 1, %s34
      %p719 = scmp.lt.s32.totalorder %s34, 3
      %p720 = pnand %p718, %p719
      %p721 = pneg %p720
      // Predicated region
      $region101: #{bert_iso_forward.1} parent=5 // pred_check
        _
      $region102: #{bert_iso_forward.1} parent=5 // pred_check_branch
        %723 = sbr.rel (%p720) target = $region104
      $region103: #{bert_iso_forward.1} parent=5 // pred_region
        %s724 = ssub.s32 %s34, 1
        // Predicated region
        $region105: #{bert_iso_forward.1} parent=103 // pred_check
          %p725 = pneg %p128
        $region106: #{bert_iso_forward.1} parent=103 // pred_check_branch
          %727 = sbr.rel (%p725) target = $region108
        $region107: #{bert_iso_forward.1} parent=103 // pred_region
          %728 = dma.done [#allocation3], 2048
        $region108: #{bert_iso_forward.1} parent=103 // pred_fallthru
          _
        // Predicated region
        $region109: #{bert_iso_forward.1} parent=103 // pred_check
          %p729 = pneg %p191
        $region110: #{bert_iso_forward.1} parent=103 // pred_check_branch
          %731 = sbr.rel (%p729) target = $region112
        $region111: #{bert_iso_forward.1} parent=103 // pred_region
          %732 = dma.done [#allocation5], 16
        $region112: #{bert_iso_forward.1} parent=103 // pred_fallthru
          _
        // Predicated region
        $region113: #{bert_iso_forward.1} parent=103 // pred_check
          %p733 = pneg %p212
        $region114: #{bert_iso_forward.1} parent=103 // pred_check_branch
          %735 = sbr.rel (%p733) target = $region116
        $region115: #{bert_iso_forward.1} parent=103 // pred_region
          %736 = dma.done [#allocation5], 12288
        $region116: #{bert_iso_forward.1} parent=103 // pred_fallthru
          _
        // Predicated region
        $region117: #{bert_iso_forward.1} parent=103 // pred_check
          %p737 = pneg %p254
        $region118: #{bert_iso_forward.1} parent=103 // pred_check_branch
          %739 = sbr.rel (%p737) target = $region120
        $region119: #{bert_iso_forward.1} parent=103 // pred_region
          %740 = dma.done [#allocation8], 4096
        $region120: #{bert_iso_forward.1} parent=103 // pred_fallthru
          _
        // Predicated region
        $region121: #{bert_iso_forward.1} parent=103 // pred_check
          %p741 = pneg %p317
        $region122: #{bert_iso_forward.1} parent=103 // pred_check_branch
          %743 = sbr.rel (%p741) target = $region124
        $region123: #{bert_iso_forward.1} parent=103 // pred_region
          %744 = dma.done [#allocation8], 32
        $region124: #{bert_iso_forward.1} parent=103 // pred_fallthru
          _
        // Predicated region
        $region125: #{bert_iso_forward.1} parent=103 // pred_check
          %p745 = pneg %p338
        $region126: #{bert_iso_forward.1} parent=103 // pred_check_branch
          %747 = sbr.rel (%p745) target = $region128
        $region127: #{bert_iso_forward.1} parent=103 // pred_region
          %748 = dma.done [#allocation11], 8192
        $region128: #{bert_iso_forward.1} parent=103 // pred_fallthru
          _
        // Predicated region
        $region129: #{bert_iso_forward.1} parent=103 // pred_check
          %p749 = pneg %p359
        $region130: #{bert_iso_forward.1} parent=103 // pred_check_branch
          %751 = sbr.rel (%p749) target = $region132
        $region131: #{bert_iso_forward.1} parent=103 // pred_region
          %752 = dma.done [#allocation11], 128
        $region132: #{bert_iso_forward.1} parent=103 // pred_fallthru
          _
        // Predicated region
        $region133: #{bert_iso_forward.1} parent=103 // pred_check
          %p753 = pneg %p380
        $region134: #{bert_iso_forward.1} parent=103 // pred_check_branch
          %755 = sbr.rel (%p753) target = $region136
        $region135: #{bert_iso_forward.1} parent=103 // pred_region
          %756 = dma.done [#allocation14], 8192
        $region136: #{bert_iso_forward.1} parent=103 // pred_fallthru
          _
        // Predicated region
        $region137: #{bert_iso_forward.1} parent=103 // pred_check
          %p757 = pneg %p401
        $region138: #{bert_iso_forward.1} parent=103 // pred_check_branch
          %759 = sbr.rel (%p757) target = $region140
        $region139: #{bert_iso_forward.1} parent=103 // pred_region
          %760 = dma.done [#allocation14], 32
        $region140: #{bert_iso_forward.1} parent=103 // pred_fallthru
          _
        // Predicated region
        $region141: #{bert_iso_forward.1} parent=103 // pred_check
          %p761 = pneg %p422
        $region142: #{bert_iso_forward.1} parent=103 // pred_check_branch
          %763 = sbr.rel (%p761) target = $region144
        $region143: #{bert_iso_forward.1} parent=103 // pred_region
          %764 = dma.done [#allocation17], 32
        $region144: #{bert_iso_forward.1} parent=103 // pred_fallthru
          _
        // Predicated region
        $region145: #{bert_iso_forward.1} parent=103 // pred_check
          %p765 = pneg %p443
        $region146: #{bert_iso_forward.1} parent=103 // pred_check_branch
          %767 = sbr.rel (%p765) target = $region148
        $region147: #{bert_iso_forward.1} parent=103 // pred_region
          %768 = dma.done [#allocation17], 32
        $region148: #{bert_iso_forward.1} parent=103 // pred_fallthru
          _
        // Predicated region
        $region149: #{bert_iso_forward.1} parent=103 // pred_check
          %p769 = pneg %p485
        $region150: #{bert_iso_forward.1} parent=103 // pred_check_branch
          %771 = sbr.rel (%p769) target = $region152
        $region151: #{bert_iso_forward.1} parent=103 // pred_region
          %772 = dma.done [#allocation20], 16
        $region152: #{bert_iso_forward.1} parent=103 // pred_fallthru
          _
        %s773 = smul.u32 16, %s39
        %p774 = scmp.lt.s32.totalorder %s773, 31
        %s775 = scalar_select %p774, %s773, 31
        %s776 = smul.addr %s775, 8
        %s777 = scalar_lea.vmem %s0, %s776
        %p778 = pneg %p60
        %p779 = pneg %p57
        %p780 = scmp.lt.s32.totalorder %s39, 1
        %s781 = scalar_select %p780, %s39, 1
        %s782 = scalar_lea.vmem %s1, %s781
        %p783 = pneg %p86
        %p784 = pneg %p83
        %p785 = pneg %p107
        %p786 = pneg %p104
        %p787 = pneg %p128
        %p788 = pneg %p125
        %p789 = pneg %p149
        %p790 = pneg %p146
        %p791 = pneg %p170
        %p792 = pneg %p167
        %p793 = pneg %p191
        %p794 = pneg %p188
        %p795 = pneg %p212
        %p796 = pneg %p209
        %p797 = pneg %p233
        %p798 = pneg %p230
        %p799 = pneg %p254
        %p800 = pneg %p251
        %p801 = pneg %p275
        %p802 = pneg %p272
        %p803 = pneg %p296
        %p804 = pneg %p293
        %p805 = pneg %p317
        %p806 = pneg %p314
        %p807 = pneg %p338
        %p808 = pneg %p335
        %p809 = pneg %p359
        %p810 = pneg %p356
        %p811 = pneg %p380
        %p812 = pneg %p377
        %p813 = pneg %p401
        %p814 = pneg %p398
        %p815 = pneg %p422
        %p816 = pneg %p419
        %p817 = pneg %p443
        %p818 = pneg %p440
        %p819 = pneg %p464
        %p820 = pneg %p461
        %p821 = pneg %p485
        %p822 = pneg %p482
        %p823 = pneg %p511
        %p824 = pneg %p508
        %s825 = smul.u32 16, %s39
        %p826 = scmp.lt.s32.totalorder %s825, 31
        %s827 = scalar_select %p826, %s825, 31
        %s828 = smul.addr %s827, 8
        %s829 = scalar_lea.vmem %s21, %s828
        %s830 = smul.u32 16, %s39
        %p831 = scmp.lt.s32.totalorder %s830, 31
        %s832 = scalar_select %p831, %s830, 31
        %s833 = smul.addr %s832, 8
        %s834 = scalar_lea.vmem %s0, %s833
        %s835 = smul.u32 16, %s39
        %p836 = scmp.lt.s32.totalorder %s39, 1
        %s837 = scalar_select %p836, %s39, 1
        %s838 = scalar_lea.vmem %s1, %s837
        %s839 = smul.u32 16, %s39
        %p840 = scmp.lt.s32.totalorder %s839, 31
        %s841 = scalar_select %p840, %s839, 31
        %s842 = smul.addr %s841, 8
        %s843 = scalar_lea.vmem %s21, %s842
        %s844 = smul.u32 16, %s39
        %v846 = vld [vmem:[%s834] sm:$0xff]
        %v847 = vld [vmem:[%s834 + $0x8] sm:$0xff]
        %v848 = vld [vmem:[%s834 + $0x10] sm:$0xff]
        %v849 = vld [vmem:[%s834 + $0x18] sm:$0xff]
        %v850 = vld [vmem:[%s834 + $0x20] sm:$0xff]
        %v851 = vld [vmem:[%s834 + $0x28] sm:$0xff]
        %v852 = vld [vmem:[%s834 + $0x30] sm:$0xff]
        %v853 = vld [vmem:[%s834 + $0x38] sm:$0xff]
        %v854 = vld [vmem:[%s834 + $0x40] sm:$0xff]
        %v855 = vld [vmem:[%s834 + $0x48] sm:$0xff]
        %v856 = vld [vmem:[%s834 + $0x50] sm:$0xff]
        %v857 = vld [vmem:[%s834 + $0x58] sm:$0xff]
        %v858 = vld [vmem:[%s834 + $0x60] sm:$0xff]
        %v859 = vld [vmem:[%s834 + $0x68] sm:$0xff]
        %v860 = vld [vmem:[%s834 + $0x70] sm:$0xff]
        %v861 = vld [vmem:[%s834 + $0x78] sm:$0xff]
        %v862 = vlaneseq
        %v863 = vand.u32 %v862, 127
        %v864 = vadd.s32 %v863, 128
        %v865 = vadd.s32 %v863, 256
        %v866 = vadd.s32 %v863, 384
        %867 = vset.pattern.permute.xlu0 0
        %868 = vperm.xlu0 %867, %v846
        %v869 = vpop.permute.xlu0 %868
        %870 = vset.pattern.permute.xlu0 0
        %871 = vperm.xlu0 %870, %v847
        %v872 = vpop.permute.xlu0 %871
        %873 = vset.pattern.permute.xlu0 0
        %874 = vperm.xlu0 %873, %v848
        %v875 = vpop.permute.xlu0 %874
        %876 = vset.pattern.permute.xlu0 0
        %877 = vperm.xlu0 %876, %v849
        %v878 = vpop.permute.xlu0 %877
        %879 = vset.pattern.permute.xlu0 0
        %880 = vperm.xlu0 %879, %v850
        %v881 = vpop.permute.xlu0 %880
        %882 = vset.pattern.permute.xlu0 0
        %883 = vperm.xlu0 %882, %v851
        %v884 = vpop.permute.xlu0 %883
        %885 = vset.pattern.permute.xlu0 0
        %886 = vperm.xlu0 %885, %v852
        %v887 = vpop.permute.xlu0 %886
        %888 = vset.pattern.permute.xlu0 0
        %889 = vperm.xlu0 %888, %v853
        %v890 = vpop.permute.xlu0 %889
        %891 = vset.pattern.permute.xlu0 0
        %892 = vperm.xlu0 %891, %v854
        %v893 = vpop.permute.xlu0 %892
        %894 = vset.pattern.permute.xlu0 0
        %895 = vperm.xlu0 %894, %v855
        %v896 = vpop.permute.xlu0 %895
        %897 = vset.pattern.permute.xlu0 0
        %898 = vperm.xlu0 %897, %v856
        %v899 = vpop.permute.xlu0 %898
        %900 = vset.pattern.permute.xlu0 0
        %901 = vperm.xlu0 %900, %v857
        %v902 = vpop.permute.xlu0 %901
        %903 = vset.pattern.permute.xlu0 0
        %904 = vperm.xlu0 %903, %v858
        %v905 = vpop.permute.xlu0 %904
        %906 = vset.pattern.permute.xlu0 0
        %907 = vperm.xlu0 %906, %v859
        %v908 = vpop.permute.xlu0 %907
        %909 = vset.pattern.permute.xlu0 0
        %910 = vperm.xlu0 %909, %v860
        %v911 = vpop.permute.xlu0 %910
        %912 = vset.pattern.permute.xlu0 0
        %913 = vperm.xlu0 %912, %v861
        %v914 = vpop.permute.xlu0 %913
        %vm915 = vcmp.eq.s32.totalorder %v869, %v863
        %vm916 = vcmp.eq.s32.totalorder %v869, %v864
        %vm917 = vcmp.eq.s32.totalorder %v869, %v865
        %vm918 = vcmp.eq.s32.totalorder %v869, %v866
        %vm919 = vcmp.eq.s32.totalorder %v872, %v863
        %vm920 = vcmp.eq.s32.totalorder %v872, %v864
        %vm921 = vcmp.eq.s32.totalorder %v872, %v865
        %vm922 = vcmp.eq.s32.totalorder %v872, %v866
        %vm923 = vcmp.eq.s32.totalorder %v875, %v863
        %vm924 = vcmp.eq.s32.totalorder %v875, %v864
        %vm925 = vcmp.eq.s32.totalorder %v875, %v865
        %vm926 = vcmp.eq.s32.totalorder %v875, %v866
        %vm927 = vcmp.eq.s32.totalorder %v878, %v863
        %vm928 = vcmp.eq.s32.totalorder %v878, %v864
        %vm929 = vcmp.eq.s32.totalorder %v878, %v865
        %vm930 = vcmp.eq.s32.totalorder %v878, %v866
        %vm931 = vcmp.eq.s32.totalorder %v881, %v863
        %vm932 = vcmp.eq.s32.totalorder %v881, %v864
        %vm933 = vcmp.eq.s32.totalorder %v881, %v865
        %vm934 = vcmp.eq.s32.totalorder %v881, %v866
        %vm935 = vcmp.eq.s32.totalorder %v884, %v863
        %vm936 = vcmp.eq.s32.totalorder %v884, %v864
        %vm937 = vcmp.eq.s32.totalorder %v884, %v865
        %vm938 = vcmp.eq.s32.totalorder %v884, %v866
        %vm939 = vcmp.eq.s32.totalorder %v887, %v863
        %vm940 = vcmp.eq.s32.totalorder %v887, %v864
        %vm941 = vcmp.eq.s32.totalorder %v887, %v865
        %vm942 = vcmp.eq.s32.totalorder %v887, %v866
        %vm943 = vcmp.eq.s32.totalorder %v890, %v863
        %vm944 = vcmp.eq.s32.totalorder %v890, %v864
        %vm945 = vcmp.eq.s32.totalorder %v890, %v865
        %vm946 = vcmp.eq.s32.totalorder %v890, %v866
        %vm947 = vcmp.eq.s32.totalorder %v893, %v863
        %vm948 = vcmp.eq.s32.totalorder %v893, %v864
        %vm949 = vcmp.eq.s32.totalorder %v893, %v865
        %vm950 = vcmp.eq.s32.totalorder %v893, %v866
        %vm951 = vcmp.eq.s32.totalorder %v896, %v863
        %vm952 = vcmp.eq.s32.totalorder %v896, %v864
        %vm953 = vcmp.eq.s32.totalorder %v896, %v865
        %vm954 = vcmp.eq.s32.totalorder %v896, %v866
        %vm955 = vcmp.eq.s32.totalorder %v899, %v863
        %vm956 = vcmp.eq.s32.totalorder %v899, %v864
        %vm957 = vcmp.eq.s32.totalorder %v899, %v865
        %vm958 = vcmp.eq.s32.totalorder %v899, %v866
        %vm959 = vcmp.eq.s32.totalorder %v902, %v863
        %vm960 = vcmp.eq.s32.totalorder %v902, %v864
        %vm961 = vcmp.eq.s32.totalorder %v902, %v865
        %vm962 = vcmp.eq.s32.totalorder %v902, %v866
        %vm963 = vcmp.eq.s32.totalorder %v905, %v863
        %vm964 = vcmp.eq.s32.totalorder %v905, %v864
        %vm965 = vcmp.eq.s32.totalorder %v905, %v865
        %vm966 = vcmp.eq.s32.totalorder %v905, %v866
        %vm967 = vcmp.eq.s32.totalorder %v908, %v863
        %vm968 = vcmp.eq.s32.totalorder %v908, %v864
        %vm969 = vcmp.eq.s32.totalorder %v908, %v865
        %vm970 = vcmp.eq.s32.totalorder %v908, %v866
        %vm971 = vcmp.eq.s32.totalorder %v911, %v863
        %vm972 = vcmp.eq.s32.totalorder %v911, %v864
        %vm973 = vcmp.eq.s32.totalorder %v911, %v865
        %vm974 = vcmp.eq.s32.totalorder %v911, %v866
        %vm975 = vcmp.eq.s32.totalorder %v914, %v863
        %vm976 = vcmp.eq.s32.totalorder %v914, %v864
        %vm977 = vcmp.eq.s32.totalorder %v914, %v865
        %vm978 = vcmp.eq.s32.totalorder %v914, %v866
        %v979 = vsel %vm915, 1.0, 0.0
        %v980 = vsel %vm916, 1.0, 0.0
        %v981 = vsel %vm917, 1.0, 0.0
        %v982 = vsel %vm918, 1.0, 0.0
        %v983 = vsel %vm919, 1.0, 0.0
        %v984 = vsel %vm920, 1.0, 0.0
        %v985 = vsel %vm921, 1.0, 0.0
        %v986 = vsel %vm922, 1.0, 0.0
        %v987 = vsel %vm923, 1.0, 0.0
        %v988 = vsel %vm924, 1.0, 0.0
        %v989 = vsel %vm925, 1.0, 0.0
        %v990 = vsel %vm926, 1.0, 0.0
        %v991 = vsel %vm927, 1.0, 0.0
        %v992 = vsel %vm928, 1.0, 0.0
        %v993 = vsel %vm929, 1.0, 0.0
        %v994 = vsel %vm930, 1.0, 0.0
        %v995 = vsel %vm931, 1.0, 0.0
        %v996 = vsel %vm932, 1.0, 0.0
        %v997 = vsel %vm933, 1.0, 0.0
        %v998 = vsel %vm934, 1.0, 0.0
        %v999 = vsel %vm935, 1.0, 0.0
        %v1000 = vsel %vm936, 1.0, 0.0
        %v1001 = vsel %vm937, 1.0, 0.0
        %v1002 = vsel %vm938, 1.0, 0.0
        %v1003 = vsel %vm939, 1.0, 0.0
        %v1004 = vsel %vm940, 1.0, 0.0
        %v1005 = vsel %vm941, 1.0, 0.0
        %v1006 = vsel %vm942, 1.0, 0.0
        %v1007 = vsel %vm943, 1.0, 0.0
        %v1008 = vsel %vm944, 1.0, 0.0
        %v1009 = vsel %vm945, 1.0, 0.0
        %v1010 = vsel %vm946, 1.0, 0.0
        %v1011 = vsel %vm947, 1.0, 0.0
        %v1012 = vsel %vm948, 1.0, 0.0
        %v1013 = vsel %vm949, 1.0, 0.0
        %v1014 = vsel %vm950, 1.0, 0.0
        %v1015 = vsel %vm951, 1.0, 0.0
        %v1016 = vsel %vm952, 1.0, 0.0
        %v1017 = vsel %vm953, 1.0, 0.0
        %v1018 = vsel %vm954, 1.0, 0.0
        %v1019 = vsel %vm955, 1.0, 0.0
        %v1020 = vsel %vm956, 1.0, 0.0
        %v1021 = vsel %vm957, 1.0, 0.0
        %v1022 = vsel %vm958, 1.0, 0.0
        %v1023 = vsel %vm959, 1.0, 0.0
        %v1024 = vsel %vm960, 1.0, 0.0
        %v1025 = vsel %vm961, 1.0, 0.0
        %v1026 = vsel %vm962, 1.0, 0.0
        %v1027 = vsel %vm963, 1.0, 0.0
        %v1028 = vsel %vm964, 1.0, 0.0
        %v1029 = vsel %vm965, 1.0, 0.0
        %v1030 = vsel %vm966, 1.0, 0.0
        %v1031 = vsel %vm967, 1.0, 0.0
        %v1032 = vsel %vm968, 1.0, 0.0
        %v1033 = vsel %vm969, 1.0, 0.0
        %v1034 = vsel %vm970, 1.0, 0.0
        %v1035 = vsel %vm971, 1.0, 0.0
        %v1036 = vsel %vm972, 1.0, 0.0
        %v1037 = vsel %vm973, 1.0, 0.0
        %v1038 = vsel %vm974, 1.0, 0.0
        %v1039 = vsel %vm975, 1.0, 0.0
        %v1040 = vsel %vm976, 1.0, 0.0
        %v1041 = vsel %vm977, 1.0, 0.0
        %v1042 = vsel %vm978, 1.0, 0.0
        %v1043 = vpack.c.bf16 %v983, %v979
        %v1044 = vpack.c.bf16 %v984, %v980
        %v1045 = vpack.c.bf16 %v985, %v981
        %v1046 = vpack.c.bf16 %v986, %v982
        %v1047 = vpack.c.bf16 %v991, %v987
        %v1048 = vpack.c.bf16 %v992, %v988
        %v1049 = vpack.c.bf16 %v993, %v989
        %v1050 = vpack.c.bf16 %v994, %v990
        %v1051 = vpack.c.bf16 %v999, %v995
        %v1052 = vpack.c.bf16 %v1000, %v996
        %v1053 = vpack.c.bf16 %v1001, %v997
        %v1054 = vpack.c.bf16 %v1002, %v998
        %v1055 = vpack.c.bf16 %v1007, %v1003
        %v1056 = vpack.c.bf16 %v1008, %v1004
        %v1057 = vpack.c.bf16 %v1009, %v1005
        %v1058 = vpack.c.bf16 %v1010, %v1006
        %v1059 = vpack.c.bf16 %v1015, %v1011
        %v1060 = vpack.c.bf16 %v1016, %v1012
        %v1061 = vpack.c.bf16 %v1017, %v1013
        %v1062 = vpack.c.bf16 %v1018, %v1014
        %v1063 = vpack.c.bf16 %v1023, %v1019
        %v1064 = vpack.c.bf16 %v1024, %v1020
        %v1065 = vpack.c.bf16 %v1025, %v1021
        %v1066 = vpack.c.bf16 %v1026, %v1022
        %v1067 = vpack.c.bf16 %v1031, %v1027
        %v1068 = vpack.c.bf16 %v1032, %v1028
        %v1069 = vpack.c.bf16 %v1033, %v1029
        %v1070 = vpack.c.bf16 %v1034, %v1030
        %v1071 = vpack.c.bf16 %v1039, %v1035
        %v1072 = vpack.c.bf16 %v1040, %v1036
        %v1073 = vpack.c.bf16 %v1041, %v1037
        %v1074 = vpack.c.bf16 %v1042, %v1038
        %v1075 = vld [vmem:[%s2] sm:$0xf]
        %v1076 = vld [vmem:[%s2 + $0x4] sm:$0xf]
        %v1077 = vld [vmem:[%s2 + $0x8] sm:$0xf]
        %v1078 = vld [vmem:[%s2 + $0xc] sm:$0xf]
        %v1079 = vld [vmem:[%s2 + $0x10] sm:$0xf]
        %v1080 = vld [vmem:[%s2 + $0x14] sm:$0xf]
        %v1081 = vld [vmem:[%s2 + $0x18] sm:$0xf]
        %v1082 = vld [vmem:[%s2 + $0x1c] sm:$0xf]
        %v1083 = vld [vmem:[%s2 + $0x20] sm:$0xf]
        %v1084 = vld [vmem:[%s2 + $0x24] sm:$0xf]
        %v1085 = vld [vmem:[%s2 + $0x28] sm:$0xf]
        %v1086 = vld [vmem:[%s2 + $0x2c] sm:$0xf]
        %v1087 = vld [vmem:[%s2 + $0x30] sm:$0xf]
        %v1088 = vld [vmem:[%s2 + $0x34] sm:$0xf]
        %v1089 = vld [vmem:[%s2 + $0x38] sm:$0xf]
        %v1090 = vld [vmem:[%s2 + $0x3c] sm:$0xf]
        %v1091 = vld [vmem:[%s2 + $0x40] sm:$0xf]
        %v1092 = vld [vmem:[%s2 + $0x44] sm:$0xf]
        %v1093 = vld [vmem:[%s2 + $0x48] sm:$0xf]
        %v1094 = vld [vmem:[%s2 + $0x4c] sm:$0xf]
        %v1095 = vld [vmem:[%s2 + $0x50] sm:$0xf]
        %v1096 = vld [vmem:[%s2 + $0x54] sm:$0xf]
        %v1097 = vld [vmem:[%s2 + $0x58] sm:$0xf]
        %v1098 = vld [vmem:[%s2 + $0x5c] sm:$0xf]
        %v1099 = vld [vmem:[%s2 + $0x60] sm:$0xf]
        %v1100 = vld [vmem:[%s2 + $0x64] sm:$0xf]
        %v1101 = vld [vmem:[%s2 + $0x68] sm:$0xf]
        %v1102 = vld [vmem:[%s2 + $0x6c] sm:$0xf]
        %v1103 = vld [vmem:[%s2 + $0x70] sm:$0xf]
        %v1104 = vld [vmem:[%s2 + $0x74] sm:$0xf]
        %v1105 = vld [vmem:[%s2 + $0x78] sm:$0xf]
        %v1106 = vld [vmem:[%s2 + $0x7c] sm:$0xf]
        %v1107 = vld [vmem:[%s2 + $0x80] sm:$0xf]
        %v1108 = vld [vmem:[%s2 + $0x84] sm:$0xf]
        %v1109 = vld [vmem:[%s2 + $0x88] sm:$0xf]
        %v1110 = vld [vmem:[%s2 + $0x8c] sm:$0xf]
        %v1111 = vld [vmem:[%s2 + $0x90] sm:$0xf]
        %v1112 = vld [vmem:[%s2 + $0x94] sm:$0xf]
        %v1113 = vld [vmem:[%s2 + $0x98] sm:$0xf]
        %v1114 = vld [vmem:[%s2 + $0x9c] sm:$0xf]
        %v1115 = vld [vmem:[%s2 + $0xa0] sm:$0xf]
        %v1116 = vld [vmem:[%s2 + $0xa4] sm:$0xf]
        %v1117 = vld [vmem:[%s2 + $0xa8] sm:$0xf]
        %v1118 = vld [vmem:[%s2 + $0xac] sm:$0xf]
        %v1119 = vld [vmem:[%s2 + $0xb0] sm:$0xf]
        %v1120 = vld [vmem:[%s2 + $0xb4] sm:$0xf]
        %v1121 = vld [vmem:[%s2 + $0xb8] sm:$0xf]
        %v1122 = vld [vmem:[%s2 + $0xbc] sm:$0xf]
        %v1123 = vld [vmem:[%s2 + $0xc0] sm:$0xf]
        %v1124 = vld [vmem:[%s2 + $0xc4] sm:$0xf]
        %v1125 = vld [vmem:[%s2 + $0xc8] sm:$0xf]
        %v1126 = vld [vmem:[%s2 + $0xcc] sm:$0xf]
        %v1127 = vld [vmem:[%s2 + $0xd0] sm:$0xf]
        %v1128 = vld [vmem:[%s2 + $0xd4] sm:$0xf]
        %v1129 = vld [vmem:[%s2 + $0xd8] sm:$0xf]
        %v1130 = vld [vmem:[%s2 + $0xdc] sm:$0xf]
        %v1131 = vld [vmem:[%s2 + $0xe0] sm:$0xf]
        %v1132 = vld [vmem:[%s2 + $0xe4] sm:$0xf]
        %v1133 = vld [vmem:[%s2 + $0xe8] sm:$0xf]
        %v1134 = vld [vmem:[%s2 + $0xec] sm:$0xf]
        %v1135 = vld [vmem:[%s2 + $0xf0] sm:$0xf]
        %v1136 = vld [vmem:[%s2 + $0xf4] sm:$0xf]
        %v1137 = vld [vmem:[%s2 + $0xf8] sm:$0xf]
        %v1138 = vld [vmem:[%s2 + $0xfc] sm:$0xf]
        %v1139 = vld [vmem:[#allocation2] sm:$0xff]
        %v1140 = vld [vmem:[#allocation2 + $0x8] sm:$0xff]
        %v1141 = vld [vmem:[#allocation2 + $0x10] sm:$0xff]
        %v1142 = vld [vmem:[#allocation2 + $0x18] sm:$0xff]
        %v1143 = vld [vmem:[#allocation2 + $0x20] sm:$0xff]
        %v1144 = vld [vmem:[#allocation2 + $0x28] sm:$0xff]
        %v1145 = vld [vmem:[#allocation2 + $0x30] sm:$0xff]
        %v1146 = vld [vmem:[#allocation2 + $0x38] sm:$0xff]
        %v1147 = vld [vmem:[#allocation2 + $0x40] sm:$0xff]
        %v1148 = vld [vmem:[#allocation2 + $0x48] sm:$0xff]
        %v1149 = vld [vmem:[#allocation2 + $0x50] sm:$0xff]
        %v1150 = vld [vmem:[#allocation2 + $0x58] sm:$0xff]
        %v1151 = vld [vmem:[#allocation2 + $0x60] sm:$0xff]
        %v1152 = vld [vmem:[#allocation2 + $0x68] sm:$0xff]
        %v1153 = vld [vmem:[#allocation2 + $0x70] sm:$0xff]
        %v1154 = vld [vmem:[#allocation2 + $0x78] sm:$0xff]
        %v1219 = vunpack.c.l.b16 %v1075
        %v1220 = vunpack.c.l.b16 %v1076
        %v1221 = vunpack.c.l.b16 %v1077
        %v1222 = vunpack.c.l.b16 %v1078
        %v1223 = vunpack.c.l.b16 %v1079
        %v1224 = vunpack.c.l.b16 %v1080
        %v1225 = vunpack.c.l.b16 %v1081
        %v1226 = vunpack.c.l.b16 %v1082
        %v1227 = vunpack.c.l.b16 %v1083
        %v1228 = vunpack.c.l.b16 %v1084
        %v1229 = vunpack.c.l.b16 %v1085
        %v1230 = vunpack.c.l.b16 %v1086
        %v1231 = vunpack.c.l.b16 %v1087
        %v1232 = vunpack.c.l.b16 %v1088
        %v1233 = vunpack.c.l.b16 %v1089
        %v1234 = vunpack.c.l.b16 %v1090
        %v1235 = vunpack.c.l.b16 %v1091
        %v1236 = vunpack.c.l.b16 %v1092
        %v1237 = vunpack.c.l.b16 %v1093
        %v1238 = vunpack.c.l.b16 %v1094
        %v1239 = vunpack.c.l.b16 %v1095
        %v1240 = vunpack.c.l.b16 %v1096
        %v1241 = vunpack.c.l.b16 %v1097
        %v1242 = vunpack.c.l.b16 %v1098
        %v1243 = vunpack.c.l.b16 %v1099
        %v1244 = vunpack.c.l.b16 %v1100
        %v1245 = vunpack.c.l.b16 %v1101
        %v1246 = vunpack.c.l.b16 %v1102
        %v1247 = vunpack.c.l.b16 %v1103
        %v1248 = vunpack.c.l.b16 %v1104
        %v1249 = vunpack.c.l.b16 %v1105
        %v1250 = vunpack.c.l.b16 %v1106
        %v1251 = vunpack.c.l.b16 %v1107
        %v1252 = vunpack.c.l.b16 %v1108
        %v1253 = vunpack.c.l.b16 %v1109
        %v1254 = vunpack.c.l.b16 %v1110
        %v1255 = vunpack.c.l.b16 %v1111
        %v1256 = vunpack.c.l.b16 %v1112
        %v1257 = vunpack.c.l.b16 %v1113
        %v1258 = vunpack.c.l.b16 %v1114
        %v1259 = vunpack.c.l.b16 %v1115
        %v1260 = vunpack.c.l.b16 %v1116
        %v1261 = vunpack.c.l.b16 %v1117
        %v1262 = vunpack.c.l.b16 %v1118
        %v1263 = vunpack.c.l.b16 %v1119
        %v1264 = vunpack.c.l.b16 %v1120
        %v1265 = vunpack.c.l.b16 %v1121
        %v1266 = vunpack.c.l.b16 %v1122
        %v1267 = vunpack.c.l.b16 %v1123
        %v1268 = vunpack.c.l.b16 %v1124
        %v1269 = vunpack.c.l.b16 %v1125
        %v1270 = vunpack.c.l.b16 %v1126
        %v1271 = vunpack.c.l.b16 %v1127
        %v1272 = vunpack.c.l.b16 %v1128
        %v1273 = vunpack.c.l.b16 %v1129
        %v1274 = vunpack.c.l.b16 %v1130
        %v1275 = vunpack.c.l.b16 %v1131
        %v1276 = vunpack.c.l.b16 %v1132
        %v1277 = vunpack.c.l.b16 %v1133
        %v1278 = vunpack.c.l.b16 %v1134
        %v1279 = vunpack.c.l.b16 %v1135
        %v1280 = vunpack.c.l.b16 %v1136
        %v1281 = vunpack.c.l.b16 %v1137
        %v1282 = vunpack.c.l.b16 %v1138
        %v1283 = vpack.c.b16 %v1220, %v1219
        %v1284 = vpack.c.b16 %v1222, %v1221
        %v1285 = vpack.c.b16 %v1224, %v1223
        %v1286 = vpack.c.b16 %v1226, %v1225
        %v1287 = vpack.c.b16 %v1228, %v1227
        %v1288 = vpack.c.b16 %v1230, %v1229
        %v1289 = vpack.c.b16 %v1232, %v1231
        %v1290 = vpack.c.b16 %v1234, %v1233
        %v1291 = vpack.c.b16 %v1236, %v1235
        %v1292 = vpack.c.b16 %v1238, %v1237
        %v1293 = vpack.c.b16 %v1240, %v1239
        %v1294 = vpack.c.b16 %v1242, %v1241
        %v1295 = vpack.c.b16 %v1244, %v1243
        %v1296 = vpack.c.b16 %v1246, %v1245
        %v1297 = vpack.c.b16 %v1248, %v1247
        %v1298 = vpack.c.b16 %v1250, %v1249
        %v1299 = vpack.c.b16 %v1252, %v1251
        %v1300 = vpack.c.b16 %v1254, %v1253
        %v1301 = vpack.c.b16 %v1256, %v1255
        %v1302 = vpack.c.b16 %v1258, %v1257
        %v1303 = vpack.c.b16 %v1260, %v1259
        %v1304 = vpack.c.b16 %v1262, %v1261
        %v1305 = vpack.c.b16 %v1264, %v1263
        %v1306 = vpack.c.b16 %v1266, %v1265
        %v1307 = vpack.c.b16 %v1268, %v1267
        %v1308 = vpack.c.b16 %v1270, %v1269
        %v1309 = vpack.c.b16 %v1272, %v1271
        %v1310 = vpack.c.b16 %v1274, %v1273
        %v1311 = vpack.c.b16 %v1276, %v1275
        %v1312 = vpack.c.b16 %v1278, %v1277
        %v1313 = vpack.c.b16 %v1280, %v1279
        %v1314 = vpack.c.b16 %v1282, %v1281
        %1347 = vmatprep.subr.bf16.mxu0 0
        %1348 = vmatpush1.bf16.msra.mxu0 %v1283
        %1349 = vmatprep.subr.bf16.mxu0 0
        %1350 = vmatpush1.bf16.msra.mxu0 %v1284
        %1351 = vmatprep.subr.bf16.mxu0 0
        %1352 = vmatpush1.bf16.msra.mxu0 %v1285
        %1353 = vmatprep.subr.bf16.mxu0 0
        %1354 = vmatpush1.bf16.msra.mxu0 %v1286
        %1355 = vmatprep.subr.bf16.mxu0 0
        %1356 = vmatpush1.bf16.msra.mxu0 %v1287
        %1357 = vmatprep.subr.bf16.mxu0 0
        %1358 = vmatpush1.bf16.msra.mxu0 %v1288
        %1359 = vmatprep.subr.bf16.mxu0 0
        %1360 = vmatpush1.bf16.msra.mxu0 %v1289
        %1361 = vmatprep.subr.bf16.mxu0 0
        %1362 = vmatpush1.bf16.msra.mxu0 %v1290
        %1363 = vmatprep.subr.bf16.mxu0 0
        %1364 = vmatpush1.bf16.msra.mxu0 %v1291
        %1365 = vmatprep.subr.bf16.mxu0 0
        %1366 = vmatpush1.bf16.msra.mxu0 %v1292
        %1367 = vmatprep.subr.bf16.mxu0 0
        %1368 = vmatpush1.bf16.msra.mxu0 %v1293
        %1369 = vmatprep.subr.bf16.mxu0 0
        %1370 = vmatpush1.bf16.msra.mxu0 %v1294
        %1371 = vmatprep.subr.bf16.mxu0 0
        %1372 = vmatpush1.bf16.msra.mxu0 %v1295
        %1373 = vmatprep.subr.bf16.mxu0 0
        %1374 = vmatpush1.bf16.msra.mxu0 %v1296
        %1375 = vmatprep.subr.bf16.mxu0 0
        %1376 = vmatpush1.bf16.msra.mxu0 %v1297
        %1377 = vmatprep.subr.bf16.mxu0 0
        %1378 = vmatpush1.bf16.msra.mxu0 %v1298
        %1379 = vmatprep.mubr.bf16.mxu0 %v1044
        %1380 = vmatmul.mubr.bf16.gmra.mrb[0].mxu0 %v1043
        %v1381 = vpop.f32.mrb[0].mxu0
        %v1382 = vadd.f32 %v1139, %v1381
        %v1383 = vpop.f32.mrb[0].mxu0
        %v1384 = vpop.f32.mrb[0].mxu0
        %v1385 = vadd.f32 %v1140, %v1384
        %v1386 = vpop.f32.mrb[0].mxu0
        %1387 = vmatprep.mubr.bf16.mxu0 %v1048
        %1388 = vmatmul.mubr.bf16.gmra.mrb[0].mxu0 %v1047
        %v1389 = vpop.f32.mrb[0].mxu0
        %v1390 = vadd.f32 %v1141, %v1389
        %v1391 = vpop.f32.mrb[0].mxu0
        %v1392 = vpop.f32.mrb[0].mxu0
        %v1393 = vadd.f32 %v1142, %v1392
        %v1394 = vpop.f32.mrb[0].mxu0
        %1395 = vmatprep.mubr.bf16.mxu0 %v1052
        %1396 = vmatmul.mubr.bf16.gmra.mrb[0].mxu0 %v1051
        %v1397 = vpop.f32.mrb[0].mxu0
        %v1398 = vadd.f32 %v1143, %v1397
        %v1399 = vpop.f32.mrb[0].mxu0
        %v1400 = vpop.f32.mrb[0].mxu0
        %v1401 = vadd.f32 %v1144, %v1400
        %v1402 = vpop.f32.mrb[0].mxu0
        %1403 = vmatprep.mubr.bf16.mxu0 %v1056
        %1404 = vmatmul.mubr.bf16.gmra.mrb[0].mxu0 %v1055
        %v1405 = vpop.f32.mrb[0].mxu0
        %v1406 = vadd.f32 %v1145, %v1405
        %v1407 = vpop.f32.mrb[0].mxu0
        %v1408 = vpop.f32.mrb[0].mxu0
        %v1409 = vadd.f32 %v1146, %v1408
        %v1410 = vpop.f32.mrb[0].mxu0
        %1411 = vmatprep.mubr.bf16.mxu0 %v1060
        %1412 = vmatmul.mubr.bf16.gmra.mrb[0].mxu0 %v1059
        %v1413 = vpop.f32.mrb[0].mxu0
        %v1414 = vadd.f32 %v1147, %v1413
        %v1415 = vpop.f32.mrb[0].mxu0
        %v1416 = vpop.f32.mrb[0].mxu0
        %v1417 = vadd.f32 %v1148, %v1416
        %v1418 = vpop.f32.mrb[0].mxu0
        %1419 = vmatprep.mubr.bf16.mxu0 %v1064
        %1420 = vmatmul.mubr.bf16.gmra.mrb[0].mxu0 %v1063
        %v1421 = vpop.f32.mrb[0].mxu0
        %v1422 = vadd.f32 %v1149, %v1421
        %v1423 = vpop.f32.mrb[0].mxu0
        %v1424 = vpop.f32.mrb[0].mxu0
        %v1425 = vadd.f32 %v1150, %v1424
        %v1426 = vpop.f32.mrb[0].mxu0
        %1427 = vmatprep.mubr.bf16.mxu0 %v1068
        %1428 = vmatmul.mubr.bf16.gmra.mrb[0].mxu0 %v1067
        %v1429 = vpop.f32.mrb[0].mxu0
        %v1430 = vadd.f32 %v1151, %v1429
        %v1431 = vpop.f32.mrb[0].mxu0
        %v1432 = vpop.f32.mrb[0].mxu0
        %v1433 = vadd.f32 %v1152, %v1432
        %v1434 = vpop.f32.mrb[0].mxu0
        %1435 = vmatprep.mubr.bf16.mxu0 %v1072
        %1436 = vmatmul.mubr.bf16.gmra.mrb[0].mxu0 %v1071
        %v1437 = vpop.f32.mrb[0].mxu0
        %v1438 = vadd.f32 %v1153, %v1437
        %v1439 = vpop.f32.mrb[0].mxu0
        %v1440 = vpop.f32.mrb[0].mxu0
        %v1441 = vadd.f32 %v1154, %v1440
        %v1442 = vpop.f32.mrb[0].mxu0
        %1443 = vdwg.mxu0
        %1444 = vmatprep.subr.bf16.mxu0 0
        %1445 = vmatpush1.bf16.msra.mxu0 %v1299
        %1446 = vmatprep.subr.bf16.mxu0 0
        %1447 = vmatpush1.bf16.msra.mxu0 %v1300
        %1448 = vmatprep.subr.bf16.mxu0 0
        %1449 = vmatpush1.bf16.msra.mxu0 %v1301
        %1450 = vmatprep.subr.bf16.mxu0 0
        %1451 = vmatpush1.bf16.msra.mxu0 %v1302
        %1452 = vmatprep.subr.bf16.mxu0 0
        %1453 = vmatpush1.bf16.msra.mxu0 %v1303
        %1454 = vmatprep.subr.bf16.mxu0 0
        %1455 = vmatpush1.bf16.msra.mxu0 %v1304
        %1456 = vmatprep.subr.bf16.mxu0 0
        %1457 = vmatpush1.bf16.msra.mxu0 %v1305
        %1458 = vmatprep.subr.bf16.mxu0 0
        %1459 = vmatpush1.bf16.msra.mxu0 %v1306
        %1460 = vmatprep.subr.bf16.mxu0 0
        %1461 = vmatpush1.bf16.msra.mxu0 %v1307
        %1462 = vmatprep.subr.bf16.mxu0 0
        %1463 = vmatpush1.bf16.msra.mxu0 %v1308
        %1464 = vmatprep.subr.bf16.mxu0 0
        %1465 = vmatpush1.bf16.msra.mxu0 %v1309
        %1466 = vmatprep.subr.bf16.mxu0 0
        %1467 = vmatpush1.bf16.msra.mxu0 %v1310
        %1468 = vmatprep.subr.bf16.mxu0 0
        %1469 = vmatpush1.bf16.msra.mxu0 %v1311
        %1470 = vmatprep.subr.bf16.mxu0 0
        %1471 = vmatpush1.bf16.msra.mxu0 %v1312
        %1472 = vmatprep.subr.bf16.mxu0 0
        %1473 = vmatpush1.bf16.msra.mxu0 %v1313
        %1474 = vmatprep.subr.bf16.mxu0 0
        %1475 = vmatpush1.bf16.msra.mxu0 %v1314
        %1476 = vmatprep.mubr.bf16.mxu0 %v1046
        %1477 = vmatmul.mubr.bf16.gmra.mrb[0].mxu0 %v1045
        %v1478 = vpop.f32.mrb[0].mxu0
        %v1479 = vadd.f32 %v1382, %v1478
        %v1480 = vpop.f32.mrb[0].mxu0
        %v1481 = vpop.f32.mrb[0].mxu0
        %v1482 = vadd.f32 %v1385, %v1481
        %v1483 = vpop.f32.mrb[0].mxu0
        %1484 = vmatprep.mubr.bf16.mxu0 %v1050
        %1485 = vmatmul.mubr.bf16.gmra.mrb[0].mxu0 %v1049
        %v1486 = vpop.f32.mrb[0].mxu0
        %v1487 = vadd.f32 %v1390, %v1486
        %v1488 = vpop.f32.mrb[0].mxu0
        %v1489 = vpop.f32.mrb[0].mxu0
        %v1490 = vadd.f32 %v1393, %v1489
        %v1491 = vpop.f32.mrb[0].mxu0
        %1492 = vmatprep.mubr.bf16.mxu0 %v1054
        %1493 = vmatmul.mubr.bf16.gmra.mrb[0].mxu0 %v1053
        %v1494 = vpop.f32.mrb[0].mxu0
        %v1495 = vadd.f32 %v1398, %v1494
        %v1496 = vpop.f32.mrb[0].mxu0
        %v1497 = vpop.f32.mrb[0].mxu0
        %v1498 = vadd.f32 %v1401, %v1497
        %v1499 = vpop.f32.mrb[0].mxu0
        %1500 = vmatprep.mubr.bf16.mxu0 %v1058
        %1501 = vmatmul.mubr.bf16.gmra.mrb[0].mxu0 %v1057
        %v1502 = vpop.f32.mrb[0].mxu0
        %v1503 = vadd.f32 %v1406, %v1502
        %v1504 = vpop.f32.mrb[0].mxu0
        %v1505 = vpop.f32.mrb[0].mxu0
        %v1506 = vadd.f32 %v1409, %v1505
        %v1507 = vpop.f32.mrb[0].mxu0
        %1508 = vmatprep.mubr.bf16.mxu0 %v1062
        %1509 = vmatmul.mubr.bf16.gmra.mrb[0].mxu0 %v1061
        %v1510 = vpop.f32.mrb[0].mxu0
        %v1511 = vadd.f32 %v1414, %v1510
        %v1512 = vpop.f32.mrb[0].mxu0
        %v1513 = vpop.f32.mrb[0].mxu0
        %v1514 = vadd.f32 %v1417, %v1513
        %v1515 = vpop.f32.mrb[0].mxu0
        %1516 = vmatprep.mubr.bf16.mxu0 %v1066
        %1517 = vmatmul.mubr.bf16.gmra.mrb[0].mxu0 %v1065
        %v1518 = vpop.f32.mrb[0].mxu0
        %v1519 = vadd.f32 %v1422, %v1518
        %v1520 = vpop.f32.mrb[0].mxu0
        %v1521 = vpop.f32.mrb[0].mxu0
        %v1522 = vadd.f32 %v1425, %v1521
        %v1523 = vpop.f32.mrb[0].mxu0
        %1524 = vmatprep.mubr.bf16.mxu0 %v1070
        %1525 = vmatmul.mubr.bf16.gmra.mrb[0].mxu0 %v1069
        %v1526 = vpop.f32.mrb[0].mxu0
        %v1527 = vadd.f32 %v1430, %v1526
        %v1528 = vpop.f32.mrb[0].mxu0
        %v1529 = vpop.f32.mrb[0].mxu0
        %v1530 = vadd.f32 %v1433, %v1529
        %v1531 = vpop.f32.mrb[0].mxu0
        %1532 = vmatprep.mubr.bf16.mxu0 %v1074
        %1533 = vmatmul.mubr.bf16.gmra.mrb[0].mxu0 %v1073
        %v1534 = vpop.f32.mrb[0].mxu0
        %v1535 = vadd.f32 %v1438, %v1534
        %v1536 = vpop.f32.mrb[0].mxu0
        %v1537 = vpop.f32.mrb[0].mxu0
        %v1538 = vadd.f32 %v1441, %v1537
        %v1539 = vpop.f32.mrb[0].mxu0
        %1540 = vdwg.mxu0
        %v1541 = vld [vmem:[%s4] sm:$0x1]
        %v1543 = vlaneseq
        %v1544 = vshrl.u32 %v1543, 7
        %v1545 = vsub.s32 0, %v1544
        %v1546 = vrot.slane %v1541, %v1545
        %v1548 = vadd.f32 %v1479, %v1546
        %v1549 = vadd.f32 %v1482, %v1546
        %v1550 = vadd.f32 %v1487, %v1546
        %v1551 = vadd.f32 %v1490, %v1546
        %v1552 = vadd.f32 %v1495, %v1546
        %v1553 = vadd.f32 %v1498, %v1546
        %v1554 = vadd.f32 %v1503, %v1546
        %v1555 = vadd.f32 %v1506, %v1546
        %v1556 = vadd.f32 %v1511, %v1546
        %v1557 = vadd.f32 %v1514, %v1546
        %v1558 = vadd.f32 %v1519, %v1546
        %v1559 = vadd.f32 %v1522, %v1546
        %v1560 = vadd.f32 %v1527, %v1546
        %v1561 = vadd.f32 %v1530, %v1546
        %v1562 = vadd.f32 %v1535, %v1546
        %v1563 = vadd.f32 %v1538, %v1546
        %v1564 = vld [vmem:[%s5] sm:$0x1]
        %v1565 = vld [vmem:[#allocation4] sm:$0x1]
        %1566 = vadd.xlane.f32.xlu0 %v1548
        %v1567 = vpop.xlane.xlu0 %1566
        %1568 = vadd.xlane.f32.xlu0 %v1549
        %v1569 = vpop.xlane.xlu0 %1568
        %1570 = vadd.xlane.f32.xlu0 %v1550
        %v1571 = vpop.xlane.xlu0 %1570
        %1572 = vadd.xlane.f32.xlu0 %v1551
        %v1573 = vpop.xlane.xlu0 %1572
        %1574 = vadd.xlane.f32.xlu0 %v1552
        %v1575 = vpop.xlane.xlu0 %1574
        %1576 = vadd.xlane.f32.xlu0 %v1553
        %v1577 = vpop.xlane.xlu0 %1576
        %1578 = vadd.xlane.f32.xlu0 %v1554
        %v1579 = vpop.xlane.xlu0 %1578
        %1580 = vadd.xlane.f32.xlu0 %v1555
        %v1581 = vpop.xlane.xlu0 %1580
        %1582 = vadd.xlane.f32.xlu0 %v1556
        %v1583 = vpop.xlane.xlu0 %1582
        %1584 = vadd.xlane.f32.xlu0 %v1557
        %v1585 = vpop.xlane.xlu0 %1584
        %1586 = vadd.xlane.f32.xlu0 %v1558
        %v1587 = vpop.xlane.xlu0 %1586
        %1588 = vadd.xlane.f32.xlu0 %v1559
        %v1589 = vpop.xlane.xlu0 %1588
        %1590 = vadd.xlane.f32.xlu0 %v1560
        %v1591 = vpop.xlane.xlu0 %1590
        %1592 = vadd.xlane.f32.xlu0 %v1561
        %v1593 = vpop.xlane.xlu0 %1592
        %1594 = vadd.xlane.f32.xlu0 %v1562
        %v1595 = vpop.xlane.xlu0 %1594
        %1596 = vadd.xlane.f32.xlu0 %v1563
        %v1597 = vpop.xlane.xlu0 %1596
        %v1598 = vrcp.pop 128.0
        %v1599 = vmul.f32 %v1567, %v1598
        %v1600 = vmul.f32 %v1569, %v1598
        %v1601 = vmul.f32 %v1571, %v1598
        %v1602 = vmul.f32 %v1573, %v1598
        %v1603 = vmul.f32 %v1575, %v1598
        %v1604 = vmul.f32 %v1577, %v1598
        %v1605 = vmul.f32 %v1579, %v1598
        %v1606 = vmul.f32 %v1581, %v1598
        %v1607 = vmul.f32 %v1583, %v1598
        %v1608 = vmul.f32 %v1585, %v1598
        %v1609 = vmul.f32 %v1587, %v1598
        %v1610 = vmul.f32 %v1589, %v1598
        %v1611 = vmul.f32 %v1591, %v1598
        %v1612 = vmul.f32 %v1593, %v1598
        %v1613 = vmul.f32 %v1595, %v1598
        %v1614 = vmul.f32 %v1597, %v1598
        %v1615 = vsub.f32 %v1548, %v1599
        %v1616 = vsub.f32 %v1549, %v1600
        %v1617 = vsub.f32 %v1550, %v1601
        %v1618 = vsub.f32 %v1551, %v1602
        %v1619 = vsub.f32 %v1552, %v1603
        %v1620 = vsub.f32 %v1553, %v1604
        %v1621 = vsub.f32 %v1554, %v1605
        %v1622 = vsub.f32 %v1555, %v1606
        %v1623 = vsub.f32 %v1556, %v1607
        %v1624 = vsub.f32 %v1557, %v1608
        %v1625 = vsub.f32 %v1558, %v1609
        %v1626 = vsub.f32 %v1559, %v1610
        %v1627 = vsub.f32 %v1560, %v1611
        %v1628 = vsub.f32 %v1561, %v1612
        %v1629 = vsub.f32 %v1562, %v1613
        %v1630 = vsub.f32 %v1563, %v1614
        %v1631 = vmul.f32 %v1615, %v1615
        %v1632 = vmul.f32 %v1616, %v1616
        %v1633 = vmul.f32 %v1617, %v1617
        %v1634 = vmul.f32 %v1618, %v1618
        %v1635 = vmul.f32 %v1619, %v1619
        %v1636 = vmul.f32 %v1620, %v1620
        %v1637 = vmul.f32 %v1621, %v1621
        %v1638 = vmul.f32 %v1622, %v1622
        %v1639 = vmul.f32 %v1623, %v1623
        %v1640 = vmul.f32 %v1624, %v1624
        %v1641 = vmul.f32 %v1625, %v1625
        %v1642 = vmul.f32 %v1626, %v1626
        %v1643 = vmul.f32 %v1627, %v1627
        %v1644 = vmul.f32 %v1628, %v1628
        %v1645 = vmul.f32 %v1629, %v1629
        %v1646 = vmul.f32 %v1630, %v1630
        %1647 = vadd.xlane.f32.xlu0 %v1631
        %v1648 = vpop.xlane.xlu0 %1647
        %1649 = vadd.xlane.f32.xlu0 %v1632
        %v1650 = vpop.xlane.xlu0 %1649
        %1651 = vadd.xlane.f32.xlu0 %v1633
        %v1652 = vpop.xlane.xlu0 %1651
        %1653 = vadd.xlane.f32.xlu0 %v1634
        %v1654 = vpop.xlane.xlu0 %1653
        %1655 = vadd.xlane.f32.xlu0 %v1635
        %v1656 = vpop.xlane.xlu0 %1655
        %1657 = vadd.xlane.f32.xlu0 %v1636
        %v1658 = vpop.xlane.xlu0 %1657
        %1659 = vadd.xlane.f32.xlu0 %v1637
        %v1660 = vpop.xlane.xlu0 %1659
        %1661 = vadd.xlane.f32.xlu0 %v1638
        %v1662 = vpop.xlane.xlu0 %1661
        %1663 = vadd.xlane.f32.xlu0 %v1639
        %v1664 = vpop.xlane.xlu0 %1663
        %1665 = vadd.xlane.f32.xlu0 %v1640
        %v1666 = vpop.xlane.xlu0 %1665
        %1667 = vadd.xlane.f32.xlu0 %v1641
        %v1668 = vpop.xlane.xlu0 %1667
        %1669 = vadd.xlane.f32.xlu0 %v1642
        %v1670 = vpop.xlane.xlu0 %1669
        %1671 = vadd.xlane.f32.xlu0 %v1643
        %v1672 = vpop.xlane.xlu0 %1671
        %1673 = vadd.xlane.f32.xlu0 %v1644
        %v1674 = vpop.xlane.xlu0 %1673
        %1675 = vadd.xlane.f32.xlu0 %v1645
        %v1676 = vpop.xlane.xlu0 %1675
        %1677 = vadd.xlane.f32.xlu0 %v1646
        %v1678 = vpop.xlane.xlu0 %1677
        %v1679 = vmul.f32 %v1648, %v1598
        %v1680 = vmul.f32 %v1650, %v1598
        %v1681 = vmul.f32 %v1652, %v1598
        %v1682 = vmul.f32 %v1654, %v1598
        %v1683 = vmul.f32 %v1656, %v1598
        %v1684 = vmul.f32 %v1658, %v1598
        %v1685 = vmul.f32 %v1660, %v1598
        %v1686 = vmul.f32 %v1662, %v1598
        %v1687 = vmul.f32 %v1664, %v1598
        %v1688 = vmul.f32 %v1666, %v1598
        %v1689 = vmul.f32 %v1668, %v1598
        %v1690 = vmul.f32 %v1670, %v1598
        %v1691 = vmul.f32 %v1672, %v1598
        %v1692 = vmul.f32 %v1674, %v1598
        %v1693 = vmul.f32 %v1676, %v1598
        %v1694 = vmul.f32 %v1678, %v1598
        %v1695 = vadd.f32 %v1679, 1e-12
        %v1696 = vadd.f32 %v1680, 1e-12
        %v1697 = vadd.f32 %v1681, 1e-12
        %v1698 = vadd.f32 %v1682, 1e-12
        %v1699 = vadd.f32 %v1683, 1e-12
        %v1700 = vadd.f32 %v1684, 1e-12
        %v1701 = vadd.f32 %v1685, 1e-12
        %v1702 = vadd.f32 %v1686, 1e-12
        %v1703 = vadd.f32 %v1687, 1e-12
        %v1704 = vadd.f32 %v1688, 1e-12
        %v1705 = vadd.f32 %v1689, 1e-12
        %v1706 = vadd.f32 %v1690, 1e-12
        %v1707 = vadd.f32 %v1691, 1e-12
        %v1708 = vadd.f32 %v1692, 1e-12
        %v1709 = vadd.f32 %v1693, 1e-12
        %v1710 = vadd.f32 %v1694, 1e-12
        %v1711 = vrsqrt.pop %v1695
        %v1712 = vrsqrt.pop %v1696
        %v1713 = vrsqrt.pop %v1697
        %v1714 = vrsqrt.pop %v1698
        %v1715 = vrsqrt.pop %v1699
        %v1716 = vrsqrt.pop %v1700
        %v1717 = vrsqrt.pop %v1701
        %v1718 = vrsqrt.pop %v1702
        %v1719 = vrsqrt.pop %v1703
        %v1720 = vrsqrt.pop %v1704
        %v1721 = vrsqrt.pop %v1705
        %v1722 = vrsqrt.pop %v1706
        %v1723 = vrsqrt.pop %v1707
        %v1724 = vrsqrt.pop %v1708
        %v1725 = vrsqrt.pop %v1709
        %v1726 = vrsqrt.pop %v1710
        %v1727 = vmul.f32 %v1615, %v1711
        %v1728 = vmul.f32 %v1616, %v1712
        %v1729 = vmul.f32 %v1617, %v1713
        %v1730 = vmul.f32 %v1618, %v1714
        %v1731 = vmul.f32 %v1619, %v1715
        %v1732 = vmul.f32 %v1620, %v1716
        %v1733 = vmul.f32 %v1621, %v1717
        %v1734 = vmul.f32 %v1622, %v1718
        %v1735 = vmul.f32 %v1623, %v1719
        %v1736 = vmul.f32 %v1624, %v1720
        %v1737 = vmul.f32 %v1625, %v1721
        %v1738 = vmul.f32 %v1626, %v1722
        %v1739 = vmul.f32 %v1627, %v1723
        %v1740 = vmul.f32 %v1628, %v1724
        %v1741 = vmul.f32 %v1629, %v1725
        %v1742 = vmul.f32 %v1630, %v1726
        %v1744 = vlaneseq
        %v1745 = vshrl.u32 %v1744, 7
        %v1746 = vsub.s32 0, %v1745
        %v1747 = vrot.slane %v1564, %v1746
        %v1749 = vmul.f32 %v1727, %v1747
        %v1750 = vmul.f32 %v1728, %v1747
        %v1751 = vmul.f32 %v1729, %v1747
        %v1752 = vmul.f32 %v1730, %v1747
        %v1753 = vmul.f32 %v1731, %v1747
        %v1754 = vmul.f32 %v1732, %v1747
        %v1755 = vmul.f32 %v1733, %v1747
        %v1756 = vmul.f32 %v1734, %v1747
        %v1757 = vmul.f32 %v1735, %v1747
        %v1758 = vmul.f32 %v1736, %v1747
        %v1759 = vmul.f32 %v1737, %v1747
        %v1760 = vmul.f32 %v1738, %v1747
        %v1761 = vmul.f32 %v1739, %v1747
        %v1762 = vmul.f32 %v1740, %v1747
        %v1763 = vmul.f32 %v1741, %v1747
        %v1764 = vmul.f32 %v1742, %v1747
        %v1766 = vlaneseq
        %v1767 = vshrl.u32 %v1766, 7
        %v1768 = vsub.s32 0, %v1767
        %v1769 = vrot.slane %v1565, %v1768
        %v1771 = vadd.f32 %v1749, %v1769
        %v1772 = vadd.f32 %v1750, %v1769
        %v1773 = vadd.f32 %v1751, %v1769
        %v1774 = vadd.f32 %v1752, %v1769
        %v1775 = vadd.f32 %v1753, %v1769
        %v1776 = vadd.f32 %v1754, %v1769
        %v1777 = vadd.f32 %v1755, %v1769
        %v1778 = vadd.f32 %v1756, %v1769
        %v1779 = vadd.f32 %v1757, %v1769
        %v1780 = vadd.f32 %v1758, %v1769
        %v1781 = vadd.f32 %v1759, %v1769
        %v1782 = vadd.f32 %v1760, %v1769
        %v1783 = vadd.f32 %v1761, %v1769
        %v1784 = vadd.f32 %v1762, %v1769
        %v1785 = vadd.f32 %v1763, %v1769
        %v1786 = vadd.f32 %v1764, %v1769
        %v1787 = vld [vmem:[%s838] sm:$0x1]
        %v1788 = vsub.f32 1.0, %v1787
        %v1789 = vmul.f32 %v1788, -10000.0
        %v1791 = vlaneseq
        %v1792 = vshrl.u32 %v1791, 7
        %v1793 = vsub.s32 0, %v1792
        %v1794 = vrot.slane %v1789, %v1793
        %v1796 = vpack.c.bf16 %v1772, %v1771
        %v1797 = vpack.c.bf16 %v1774, %v1773
        %v1798 = vpack.c.bf16 %v1776, %v1775
        %v1799 = vpack.c.bf16 %v1778, %v1777
        %v1800 = vpack.c.bf16 %v1780, %v1779
        %v1801 = vpack.c.bf16 %v1782, %v1781
        %v1802 = vpack.c.bf16 %v1784, %v1783
        %v1803 = vpack.c.bf16 %v1786, %v1785
        %v1804 = vld [vmem:[#allocation6] sm:$0xff]
        %v1805 = vld [vmem:[#allocation6 + $0x8] sm:$0xff]
        %v1806 = vld [vmem:[#allocation6 + $0x10] sm:$0xff]
        %v1807 = vld [vmem:[#allocation6 + $0x18] sm:$0xff]
        %v1808 = vld [vmem:[#allocation6 + $0x20] sm:$0xff]
        %v1809 = vld [vmem:[#allocation6 + $0x28] sm:$0xff]
        %v1810 = vld [vmem:[#allocation6 + $0x30] sm:$0xff]
        %v1811 = vld [vmem:[#allocation6 + $0x38] sm:$0xff]
        %v1812 = vld [vmem:[#allocation6 + $0x40] sm:$0xff]
        %v1813 = vld [vmem:[#allocation6 + $0x48] sm:$0xff]
        %v1814 = vld [vmem:[#allocation6 + $0x50] sm:$0xff]
        %v1815 = vld [vmem:[#allocation6 + $0x58] sm:$0xff]
        %v1816 = vld [vmem:[#allocation6 + $0x60] sm:$0xff]
        %v1817 = vld [vmem:[#allocation6 + $0x68] sm:$0xff]
        %v1818 = vld [vmem:[#allocation6 + $0x70] sm:$0xff]
        %v1819 = vld [vmem:[#allocation6 + $0x78] sm:$0xff]
        %v1820 = vld [vmem:[#allocation6 + $0x80] sm:$0xff]
        %v1821 = vld [vmem:[#allocation6 + $0x88] sm:$0xff]
        %v1822 = vld [vmem:[#allocation6 + $0x90] sm:$0xff]
        %v1823 = vld [vmem:[#allocation6 + $0x98] sm:$0xff]
        %v1824 = vld [vmem:[#allocation6 + $0xa0] sm:$0xff]
        %v1825 = vld [vmem:[#allocation6 + $0xa8] sm:$0xff]
        %v1826 = vld [vmem:[#allocation6 + $0xb0] sm:$0xff]
        %v1827 = vld [vmem:[#allocation6 + $0xb8] sm:$0xff]
        %v1828 = vld [vmem:[#allocation6 + $0xc0] sm:$0xff]
        %v1829 = vld [vmem:[#allocation6 + $0xc8] sm:$0xff]
        %v1830 = vld [vmem:[#allocation6 + $0xd0] sm:$0xff]
        %v1831 = vld [vmem:[#allocation6 + $0xd8] sm:$0xff]
        %v1832 = vld [vmem:[#allocation6 + $0xe0] sm:$0xff]
        %v1833 = vld [vmem:[#allocation6 + $0xe8] sm:$0xff]
        %v1834 = vld [vmem:[#allocation6 + $0xf0] sm:$0xff]
        %v1835 = vld [vmem:[#allocation6 + $0xf8] sm:$0xff]
        %v1836 = vld [vmem:[#allocation6 + $0x100] sm:$0xff]
        %v1837 = vld [vmem:[#allocation6 + $0x108] sm:$0xff]
        %v1838 = vld [vmem:[#allocation6 + $0x110] sm:$0xff]
        %v1839 = vld [vmem:[#allocation6 + $0x118] sm:$0xff]
        %v1840 = vld [vmem:[#allocation6 + $0x120] sm:$0xff]
        %v1841 = vld [vmem:[#allocation6 + $0x128] sm:$0xff]
        %v1842 = vld [vmem:[#allocation6 + $0x130] sm:$0xff]
        %v1843 = vld [vmem:[#allocation6 + $0x138] sm:$0xff]
        %v1844 = vld [vmem:[#allocation6 + $0x140] sm:$0xff]
        %v1845 = vld [vmem:[#allocation6 + $0x148] sm:$0xff]
        %v1846 = vld [vmem:[#allocation6 + $0x150] sm:$0xff]
        %v1847 = vld [vmem:[#allocation6 + $0x158] sm:$0xff]
        %v1848 = vld [vmem:[#allocation6 + $0x160] sm:$0xff]
        %v1849 = vld [vmem:[#allocation6 + $0x168] sm:$0xff]
        %v1850 = vld [vmem:[#allocation6 + $0x170] sm:$0xff]
        %v1851 = vld [vmem:[#allocation6 + $0x178] sm:$0xff]
        %v1852 = vld [vmem:[%s8] sm:$0x3f]
        %v1854 = vlaneseq
        %v1855 = vshrl.u32 %v1854, 7
        %v1856 = vsub.s32 0, %v1855
        %v1857 = vrot.slane %v1852, %v1856
        %v1858 = vlaneseq
        %v1859 = vshrl.u32 %v1858, 7
        %v1860 = vsub.s32 1, %v1859
        %v1861 = vrot.slane %v1852, %v1860
        %v1862 = vlaneseq
        %v1863 = vshrl.u32 %v1862, 7
        %v1864 = vsub.s32 2, %v1863
        %v1865 = vrot.slane %v1852, %v1864
        %v1866 = vlaneseq
        %v1867 = vshrl.u32 %v1866, 7
        %v1868 = vsub.s32 3, %v1867
        %v1869 = vrot.slane %v1852, %v1868
        %v1870 = vlaneseq
        %v1871 = vshrl.u32 %v1870, 7
        %v1872 = vsub.s32 4, %v1871
        %v1873 = vrot.slane %v1852, %v1872
        %v1874 = vlaneseq
        %v1875 = vshrl.u32 %v1874, 7
        %v1876 = vsub.s32 5, %v1875
        %v1877 = vrot.slane %v1852, %v1876
        %v1932 = vunpack.c.l.b16 %v1804
        %v1933 = vunpack.c.h.b16 %v1804
        %v1934 = vunpack.c.l.b16 %v1805
        %v1935 = vunpack.c.h.b16 %v1805
        %v1936 = vunpack.c.l.b16 %v1806
        %v1937 = vunpack.c.h.b16 %v1806
        %v1938 = vunpack.c.l.b16 %v1807
        %v1939 = vunpack.c.h.b16 %v1807
        %v1940 = vunpack.c.l.b16 %v1808
        %v1941 = vunpack.c.h.b16 %v1808
        %v1942 = vunpack.c.l.b16 %v1809
        %v1943 = vunpack.c.h.b16 %v1809
        %v1944 = vunpack.c.l.b16 %v1810
        %v1945 = vunpack.c.h.b16 %v1810
        %v1946 = vunpack.c.l.b16 %v1811
        %v1947 = vunpack.c.h.b16 %v1811
        %v1948 = vunpack.c.l.b16 %v1812
        %v1949 = vunpack.c.h.b16 %v1812
        %v1950 = vunpack.c.l.b16 %v1813
        %v1951 = vunpack.c.h.b16 %v1813
        %v1952 = vunpack.c.l.b16 %v1814
        %v1953 = vunpack.c.h.b16 %v1814
        %v1954 = vunpack.c.l.b16 %v1815
        %v1955 = vunpack.c.h.b16 %v1815
        %v1956 = vunpack.c.l.b16 %v1816
        %v1957 = vunpack.c.h.b16 %v1816
        %v1958 = vunpack.c.l.b16 %v1817
        %v1959 = vunpack.c.h.b16 %v1817
        %v1960 = vunpack.c.l.b16 %v1818
        %v1961 = vunpack.c.h.b16 %v1818
        %v1962 = vunpack.c.l.b16 %v1819
        %v1963 = vunpack.c.h.b16 %v1819
        %v1964 = vunpack.c.l.b16 %v1820
        %v1965 = vunpack.c.h.b16 %v1820
        %v1966 = vunpack.c.l.b16 %v1821
        %v1967 = vunpack.c.h.b16 %v1821
        %v1968 = vunpack.c.l.b16 %v1822
        %v1969 = vunpack.c.h.b16 %v1822
        %v1970 = vunpack.c.l.b16 %v1823
        %v1971 = vunpack.c.h.b16 %v1823
        %v1972 = vunpack.c.l.b16 %v1824
        %v1973 = vunpack.c.h.b16 %v1824
        %v1974 = vunpack.c.l.b16 %v1825
        %v1975 = vunpack.c.h.b16 %v1825
        %v1976 = vunpack.c.l.b16 %v1826
        %v1977 = vunpack.c.h.b16 %v1826
        %v1978 = vunpack.c.l.b16 %v1827
        %v1979 = vunpack.c.h.b16 %v1827
        %v1980 = vunpack.c.l.b16 %v1828
        %v1981 = vunpack.c.h.b16 %v1828
        %v1982 = vunpack.c.l.b16 %v1829
        %v1983 = vunpack.c.h.b16 %v1829
        %v1984 = vunpack.c.l.b16 %v1830
        %v1985 = vunpack.c.h.b16 %v1830
        %v1986 = vunpack.c.l.b16 %v1831
        %v1987 = vunpack.c.h.b16 %v1831
        %v1988 = vunpack.c.l.b16 %v1832
        %v1989 = vunpack.c.h.b16 %v1832
        %v1990 = vunpack.c.l.b16 %v1833
        %v1991 = vunpack.c.h.b16 %v1833
        %v1992 = vunpack.c.l.b16 %v1834
        %v1993 = vunpack.c.h.b16 %v1834
        %v1994 = vunpack.c.l.b16 %v1835
        %v1995 = vunpack.c.h.b16 %v1835
        %v1996 = vunpack.c.l.b16 %v1836
        %v1997 = vunpack.c.h.b16 %v1836
        %v1998 = vunpack.c.l.b16 %v1837
        %v1999 = vunpack.c.h.b16 %v1837
        %v2000 = vunpack.c.l.b16 %v1838
        %v2001 = vunpack.c.h.b16 %v1838
        %v2002 = vunpack.c.l.b16 %v1839
        %v2003 = vunpack.c.h.b16 %v1839
        %v2004 = vunpack.c.l.b16 %v1840
        %v2005 = vunpack.c.h.b16 %v1840
        %v2006 = vunpack.c.l.b16 %v1841
        %v2007 = vunpack.c.h.b16 %v1841
        %v2008 = vunpack.c.l.b16 %v1842
        %v2009 = vunpack.c.h.b16 %v1842
        %v2010 = vunpack.c.l.b16 %v1843
        %v2011 = vunpack.c.h.b16 %v1843
        %v2012 = vunpack.c.l.b16 %v1844
        %v2013 = vunpack.c.h.b16 %v1844
        %v2014 = vunpack.c.l.b16 %v1845
        %v2015 = vunpack.c.h.b16 %v1845
        %v2016 = vunpack.c.l.b16 %v1846
        %v2017 = vunpack.c.h.b16 %v1846
        %v2018 = vunpack.c.l.b16 %v1847
        %v2019 = vunpack.c.h.b16 %v1847
        %v2020 = vunpack.c.l.b16 %v1848
        %v2021 = vunpack.c.h.b16 %v1848
        %v2022 = vunpack.c.l.b16 %v1849
        %v2023 = vunpack.c.h.b16 %v1849
        %v2024 = vunpack.c.l.b16 %v1850
        %v2025 = vunpack.c.h.b16 %v1850
        %v2026 = vunpack.c.l.b16 %v1851
        %v2027 = vunpack.c.h.b16 %v1851
        %v2028 = vpack.c.b16 %v1938, %v1932
        %v2029 = vpack.c.b16 %v1939, %v1933
        %v2030 = vpack.c.b16 %v1940, %v1934
        %v2031 = vpack.c.b16 %v1941, %v1935
        %v2032 = vpack.c.b16 %v1942, %v1936
        %v2033 = vpack.c.b16 %v1943, %v1937
        %v2034 = vpack.c.b16 %v1950, %v1944
        %v2035 = vpack.c.b16 %v1951, %v1945
        %v2036 = vpack.c.b16 %v1952, %v1946
        %v2037 = vpack.c.b16 %v1953, %v1947
        %v2038 = vpack.c.b16 %v1954, %v1948
        %v2039 = vpack.c.b16 %v1955, %v1949
        %v2040 = vpack.c.b16 %v1962, %v1956
        %v2041 = vpack.c.b16 %v1963, %v1957
        %v2042 = vpack.c.b16 %v1964, %v1958
        %v2043 = vpack.c.b16 %v1965, %v1959
        %v2044 = vpack.c.b16 %v1966, %v1960
        %v2045 = vpack.c.b16 %v1967, %v1961
        %v2046 = vpack.c.b16 %v1974, %v1968
        %v2047 = vpack.c.b16 %v1975, %v1969
        %v2048 = vpack.c.b16 %v1976, %v1970
        %v2049 = vpack.c.b16 %v1977, %v1971
        %v2050 = vpack.c.b16 %v1978, %v1972
        %v2051 = vpack.c.b16 %v1979, %v1973
        %v2052 = vpack.c.b16 %v1986, %v1980
        %v2053 = vpack.c.b16 %v1987, %v1981
        %v2054 = vpack.c.b16 %v1988, %v1982
        %v2055 = vpack.c.b16 %v1989, %v1983
        %v2056 = vpack.c.b16 %v1990, %v1984
        %v2057 = vpack.c.b16 %v1991, %v1985
        %v2058 = vpack.c.b16 %v1998, %v1992
        %v2059 = vpack.c.b16 %v1999, %v1993
        %v2060 = vpack.c.b16 %v2000, %v1994
        %v2061 = vpack.c.b16 %v2001, %v1995
        %v2062 = vpack.c.b16 %v2002, %v1996
        %v2063 = vpack.c.b16 %v2003, %v1997
        %v2064 = vpack.c.b16 %v2010, %v2004
        %v2065 = vpack.c.b16 %v2011, %v2005
        %v2066 = vpack.c.b16 %v2012, %v2006
        %v2067 = vpack.c.b16 %v2013, %v2007
        %v2068 = vpack.c.b16 %v2014, %v2008
        %v2069 = vpack.c.b16 %v2015, %v2009
        %v2070 = vpack.c.b16 %v2022, %v2016
        %v2071 = vpack.c.b16 %v2023, %v2017
        %v2072 = vpack.c.b16 %v2024, %v2018
        %v2073 = vpack.c.b16 %v2025, %v2019
        %v2074 = vpack.c.b16 %v2026, %v2020
        %v2075 = vpack.c.b16 %v2027, %v2021
        %2124 = vmatprep.subr.bf16.mxu0 %v2029
        %2125 = vmatpush1.bf16.msra.mxu0 %v2028
        %2126 = vmatprep.subr.bf16.mxu0 %v2035
        %2127 = vmatpush1.bf16.msra.mxu0 %v2034
        %2128 = vmatprep.subr.bf16.mxu0 %v2041
        %2129 = vmatpush1.bf16.msra.mxu0 %v2040
        %2130 = vmatprep.subr.bf16.mxu0 %v2047
        %2131 = vmatpush1.bf16.msra.mxu0 %v2046
        %2132 = vmatprep.subr.bf16.mxu0 %v2053
        %2133 = vmatpush1.bf16.msra.mxu0 %v2052
        %2134 = vmatprep.subr.bf16.mxu0 %v2059
        %2135 = vmatpush1.bf16.msra.mxu0 %v2058
        %2136 = vmatprep.subr.bf16.mxu0 %v2065
        %2137 = vmatpush1.bf16.msra.mxu0 %v2064
        %2138 = vmatprep.subr.bf16.mxu0 %v2071
        %2139 = vmatpush1.bf16.msra.mxu0 %v2070
        %2140 = vmatprep.subr.bf16.mxu0 0
        %2141 = vmatpush1.bf16.msra.mxu0 0
        %2142 = vmatprep.subr.bf16.mxu0 0
        %2143 = vmatpush1.bf16.msra.mxu0 0
        %2144 = vmatprep.subr.bf16.mxu0 0
        %2145 = vmatpush1.bf16.msra.mxu0 0
        %2146 = vmatprep.subr.bf16.mxu0 0
        %2147 = vmatpush1.bf16.msra.mxu0 0
        %2148 = vmatprep.subr.bf16.mxu0 0
        %2149 = vmatpush1.bf16.msra.mxu0 0
        %2150 = vmatprep.subr.bf16.mxu0 0
        %2151 = vmatpush1.bf16.msra.mxu0 0
        %2152 = vmatprep.subr.bf16.mxu0 0
        %2153 = vmatpush1.bf16.msra.mxu0 0
        %2154 = vmatprep.subr.bf16.mxu0 0
        %2155 = vmatpush1.bf16.msra.mxu0 0
        %2156 = vmatprep.mubr.bf16.mxu0 0
        %2157 = vmatmul.mubr.bf16.gmra.mrb[0].mxu0 %v1796
        %v2158 = vpop.f32.mrb[0].mxu0
        %v2159 = vadd.f32 %v1857, %v2158
        %v2160 = vpop.f32.mrb[0].mxu0
        %v2161 = vadd.f32 %v1861, %v2160
        %v2162 = vpop.f32.mrb[0].mxu0
        %v2163 = vadd.f32 %v1857, %v2162
        %v2164 = vpop.f32.mrb[0].mxu0
        %v2165 = vadd.f32 %v1861, %v2164
        %2166 = vmatprep.mubr.bf16.mxu0 0
        %2167 = vmatmul.mubr.bf16.gmra.mrb[0].mxu0 %v1797
        %v2168 = vpop.f32.mrb[0].mxu0
        %v2169 = vadd.f32 %v1857, %v2168
        %v2170 = vpop.f32.mrb[0].mxu0
        %v2171 = vadd.f32 %v1861, %v2170
        %v2172 = vpop.f32.mrb[0].mxu0
        %v2173 = vadd.f32 %v1857, %v2172
        %v2174 = vpop.f32.mrb[0].mxu0
        %v2175 = vadd.f32 %v1861, %v2174
        %2176 = vmatprep.mubr.bf16.mxu0 0
        %2177 = vmatmul.mubr.bf16.gmra.mrb[0].mxu0 %v1798
        %v2178 = vpop.f32.mrb[0].mxu0
        %v2179 = vadd.f32 %v1857, %v2178
        %v2180 = vpop.f32.mrb[0].mxu0
        %v2181 = vadd.f32 %v1861, %v2180
        %v2182 = vpop.f32.mrb[0].mxu0
        %v2183 = vadd.f32 %v1857, %v2182
        %v2184 = vpop.f32.mrb[0].mxu0
        %v2185 = vadd.f32 %v1861, %v2184
        %2186 = vmatprep.mubr.bf16.mxu0 0
        %2187 = vmatmul.mubr.bf16.gmra.mrb[0].mxu0 %v1799
        %v2188 = vpop.f32.mrb[0].mxu0
        %v2189 = vadd.f32 %v1857, %v2188
        %v2190 = vpop.f32.mrb[0].mxu0
        %v2191 = vadd.f32 %v1861, %v2190
        %v2192 = vpop.f32.mrb[0].mxu0
        %v2193 = vadd.f32 %v1857, %v2192
        %v2194 = vpop.f32.mrb[0].mxu0
        %v2195 = vadd.f32 %v1861, %v2194
        %2196 = vmatprep.mubr.bf16.mxu0 0
        %2197 = vmatmul.mubr.bf16.gmra.mrb[0].mxu0 %v1800
        %v2198 = vpop.f32.mrb[0].mxu0
        %v2199 = vadd.f32 %v1857, %v2198
        %v2200 = vpop.f32.mrb[0].mxu0
        %v2201 = vadd.f32 %v1861, %v2200
        %v2202 = vpop.f32.mrb[0].mxu0
        %v2203 = vadd.f32 %v1857, %v2202
        %v2204 = vpop.f32.mrb[0].mxu0
        %v2205 = vadd.f32 %v1861, %v2204
        %2206 = vmatprep.mubr.bf16.mxu0 0
        %2207 = vmatmul.mubr.bf16.gmra.mrb[0].mxu0 %v1801
        %v2208 = vpop.f32.mrb[0].mxu0
        %v2209 = vadd.f32 %v1857, %v2208
        %v2210 = vpop.f32.mrb[0].mxu0
        %v2211 = vadd.f32 %v1861, %v2210
        %v2212 = vpop.f32.mrb[0].mxu0
        %v2213 = vadd.f32 %v1857, %v2212
        %v2214 = vpop.f32.mrb[0].mxu0
        %v2215 = vadd.f32 %v1861, %v2214
        %2216 = vmatprep.mubr.bf16.mxu0 0
        %2217 = vmatmul.mubr.bf16.gmra.mrb[0].mxu0 %v1802
        %v2218 = vpop.f32.mrb[0].mxu0
        %v2219 = vadd.f32 %v1857, %v2218
        %v2220 = vpop.f32.mrb[0].mxu0
        %v2221 = vadd.f32 %v1861, %v2220
        %v2222 = vpop.f32.mrb[0].mxu0
        %v2223 = vadd.f32 %v1857, %v2222
        %v2224 = vpop.f32.mrb[0].mxu0
        %v2225 = vadd.f32 %v1861, %v2224
        %2226 = vmatprep.mubr.bf16.mxu0 0
        %2227 = vmatmul.mubr.bf16.gmra.mrb[0].mxu0 %v1803
        %v2228 = vpop.f32.mrb[0].mxu0
        %v2229 = vadd.f32 %v1857, %v2228
        %v2230 = vpop.f32.mrb[0].mxu0
        %v2231 = vadd.f32 %v1861, %v2230
        %v2232 = vpop.f32.mrb[0].mxu0
        %v2233 = vadd.f32 %v1857, %v2232
        %v2234 = vpop.f32.mrb[0].mxu0
        %v2235 = vadd.f32 %v1861, %v2234
        %2236 = vdwg.mxu0
        %2237 = vmatprep.subr.bf16.mxu0 %v2031
        %2238 = vmatpush1.bf16.msra.mxu0 %v2030
        %2239 = vmatprep.subr.bf16.mxu0 %v2037
        %2240 = vmatpush1.bf16.msra.mxu0 %v2036
        %2241 = vmatprep.subr.bf16.mxu0 %v2043
        %2242 = vmatpush1.bf16.msra.mxu0 %v2042
        %2243 = vmatprep.subr.bf16.mxu0 %v2049
        %2244 = vmatpush1.bf16.msra.mxu0 %v2048
        %2245 = vmatprep.subr.bf16.mxu0 %v2055
        %2246 = vmatpush1.bf16.msra.mxu0 %v2054
        %2247 = vmatprep.subr.bf16.mxu0 %v2061
        %2248 = vmatpush1.bf16.msra.mxu0 %v2060
        %2249 = vmatprep.subr.bf16.mxu0 %v2067
        %2250 = vmatpush1.bf16.msra.mxu0 %v2066
        %2251 = vmatprep.subr.bf16.mxu0 %v2073
        %2252 = vmatpush1.bf16.msra.mxu0 %v2072
        %2253 = vmatprep.subr.bf16.mxu0 0
        %2254 = vmatpush1.bf16.msra.mxu0 0
        %2255 = vmatprep.subr.bf16.mxu0 0
        %2256 = vmatpush1.bf16.msra.mxu0 0
        %2257 = vmatprep.subr.bf16.mxu0 0
        %2258 = vmatpush1.bf16.msra.mxu0 0
        %2259 = vmatprep.subr.bf16.mxu0 0
        %2260 = vmatpush1.bf16.msra.mxu0 0
        %2261 = vmatprep.subr.bf16.mxu0 0
        %2262 = vmatpush1.bf16.msra.mxu0 0
        %2263 = vmatprep.subr.bf16.mxu0 0
        %2264 = vmatpush1.bf16.msra.mxu0 0
        %2265 = vmatprep.subr.bf16.mxu0 0
        %2266 = vmatpush1.bf16.msra.mxu0 0
        %2267 = vmatprep.subr.bf16.mxu0 0
        %2268 = vmatpush1.bf16.msra.mxu0 0
        %2269 = vmatprep.mubr.bf16.mxu0 0
        %2270 = vmatmul.mubr.bf16.gmra.mrb[0].mxu0 %v1796
        %v2271 = vpop.f32.mrb[0].mxu0
        %v2272 = vadd.f32 %v1865, %v2271
        %v2273 = vpop.f32.mrb[0].mxu0
        %v2274 = vadd.f32 %v1869, %v2273
        %v2275 = vpop.f32.mrb[0].mxu0
        %v2276 = vadd.f32 %v1865, %v2275
        %v2277 = vpop.f32.mrb[0].mxu0
        %v2278 = vadd.f32 %v1869, %v2277
        %2279 = vmatprep.mubr.bf16.mxu0 0
        %2280 = vmatmul.mubr.bf16.gmra.mrb[0].mxu0 %v1797
        %v2281 = vpop.f32.mrb[0].mxu0
        %v2282 = vadd.f32 %v1865, %v2281
        %v2283 = vpop.f32.mrb[0].mxu0
        %v2284 = vadd.f32 %v1869, %v2283
        %v2285 = vpop.f32.mrb[0].mxu0
        %v2286 = vadd.f32 %v1865, %v2285
        %v2287 = vpop.f32.mrb[0].mxu0
        %v2288 = vadd.f32 %v1869, %v2287
        %2289 = vmatprep.mubr.bf16.mxu0 0
        %2290 = vmatmul.mubr.bf16.gmra.mrb[0].mxu0 %v1798
        %v2291 = vpop.f32.mrb[0].mxu0
        %v2292 = vadd.f32 %v1865, %v2291
        %v2293 = vpop.f32.mrb[0].mxu0
        %v2294 = vadd.f32 %v1869, %v2293
        %v2295 = vpop.f32.mrb[0].mxu0
        %v2296 = vadd.f32 %v1865, %v2295
        %v2297 = vpop.f32.mrb[0].mxu0
        %v2298 = vadd.f32 %v1869, %v2297
        %2299 = vmatprep.mubr.bf16.mxu0 0
        %2300 = vmatmul.mubr.bf16.gmra.mrb[0].mxu0 %v1799
        %v2301 = vpop.f32.mrb[0].mxu0
        %v2302 = vadd.f32 %v1865, %v2301
        %v2303 = vpop.f32.mrb[0].mxu0
        %v2304 = vadd.f32 %v1869, %v2303
        %v2305 = vpop.f32.mrb[0].mxu0
        %v2306 = vadd.f32 %v1865, %v2305
        %v2307 = vpop.f32.mrb[0].mxu0
        %v2308 = vadd.f32 %v1869, %v2307
        %2309 = vmatprep.mubr.bf16.mxu0 0
        %2310 = vmatmul.mubr.bf16.gmra.mrb[0].mxu0 %v1800
        %v2311 = vpop.f32.mrb[0].mxu0
        %v2312 = vadd.f32 %v1865, %v2311
        %v2313 = vpop.f32.mrb[0].mxu0
        %v2314 = vadd.f32 %v1869, %v2313
        %v2315 = vpop.f32.mrb[0].mxu0
        %v2316 = vadd.f32 %v1865, %v2315
        %v2317 = vpop.f32.mrb[0].mxu0
        %v2318 = vadd.f32 %v1869, %v2317
        %2319 = vmatprep.mubr.bf16.mxu0 0
        %2320 = vmatmul.mubr.bf16.gmra.mrb[0].mxu0 %v1801
        %v2321 = vpop.f32.mrb[0].mxu0
        %v2322 = vadd.f32 %v1865, %v2321
        %v2323 = vpop.f32.mrb[0].mxu0
        %v2324 = vadd.f32 %v1869, %v2323
        %v2325 = vpop.f32.mrb[0].mxu0
        %v2326 = vadd.f32 %v1865, %v2325
        %v2327 = vpop.f32.mrb[0].mxu0
        %v2328 = vadd.f32 %v1869, %v2327
        %2329 = vmatprep.mubr.bf16.mxu0 0
        %2330 = vmatmul.mubr.bf16.gmra.mrb[0].mxu0 %v1802
        %v2331 = vpop.f32.mrb[0].mxu0
        %v2332 = vadd.f32 %v1865, %v2331
        %v2333 = vpop.f32.mrb[0].mxu0
        %v2334 = vadd.f32 %v1869, %v2333
        %v2335 = vpop.f32.mrb[0].mxu0
        %v2336 = vadd.f32 %v1865, %v2335
        %v2337 = vpop.f32.mrb[0].mxu0
        %v2338 = vadd.f32 %v1869, %v2337
        %2339 = vmatprep.mubr.bf16.mxu0 0
        %2340 = vmatmul.mubr.bf16.gmra.mrb[0].mxu0 %v1803
        %v2341 = vpop.f32.mrb[0].mxu0
        %v2342 = vadd.f32 %v1865, %v2341
        %v2343 = vpop.f32.mrb[0].mxu0
        %v2344 = vadd.f32 %v1869, %v2343
        %v2345 = vpop.f32.mrb[0].mxu0
        %v2346 = vadd.f32 %v1865, %v2345
        %v2347 = vpop.f32.mrb[0].mxu0
        %v2348 = vadd.f32 %v1869, %v2347
        %2349 = vdwg.mxu0
        %2350 = vmatprep.subr.bf16.mxu0 %v2033
        %2351 = vmatpush1.bf16.msra.mxu0 %v2032
        %2352 = vmatprep.subr.bf16.mxu0 %v2039
        %2353 = vmatpush1.bf16.msra.mxu0 %v2038
        %2354 = vmatprep.subr.bf16.mxu0 %v2045
        %2355 = vmatpush1.bf16.msra.mxu0 %v2044
        %2356 = vmatprep.subr.bf16.mxu0 %v2051
        %2357 = vmatpush1.bf16.msra.mxu0 %v2050
        %2358 = vmatprep.subr.bf16.mxu0 %v2057
        %2359 = vmatpush1.bf16.msra.mxu0 %v2056
        %2360 = vmatprep.subr.bf16.mxu0 %v2063
        %2361 = vmatpush1.bf16.msra.mxu0 %v2062
        %2362 = vmatprep.subr.bf16.mxu0 %v2069
        %2363 = vmatpush1.bf16.msra.mxu0 %v2068
        %2364 = vmatprep.subr.bf16.mxu0 %v2075
        %2365 = vmatpush1.bf16.msra.mxu0 %v2074
        %2366 = vmatprep.subr.bf16.mxu0 0
        %2367 = vmatpush1.bf16.msra.mxu0 0
        %2368 = vmatprep.subr.bf16.mxu0 0
        %2369 = vmatpush1.bf16.msra.mxu0 0
        %2370 = vmatprep.subr.bf16.mxu0 0
        %2371 = vmatpush1.bf16.msra.mxu0 0
        %2372 = vmatprep.subr.bf16.mxu0 0
        %2373 = vmatpush1.bf16.msra.mxu0 0
        %2374 = vmatprep.subr.bf16.mxu0 0
        %2375 = vmatpush1.bf16.msra.mxu0 0
        %2376 = vmatprep.subr.bf16.mxu0 0
        %2377 = vmatpush1.bf16.msra.mxu0 0
        %2378 = vmatprep.subr.bf16.mxu0 0
        %2379 = vmatpush1.bf16.msra.mxu0 0
        %2380 = vmatprep.subr.bf16.mxu0 0
        %2381 = vmatpush1.bf16.msra.mxu0 0
        %2382 = vmatprep.mubr.bf16.mxu0 0
        %2383 = vmatmul.mubr.bf16.gmra.mrb[0].mxu0 %v1796
        %v2384 = vpop.f32.mrb[0].mxu0
        %v2385 = vadd.f32 %v1873, %v2384
        %v2386 = vpop.f32.mrb[0].mxu0
        %v2387 = vadd.f32 %v1877, %v2386
        %v2388 = vpop.f32.mrb[0].mxu0
        %v2389 = vadd.f32 %v1873, %v2388
        %v2390 = vpop.f32.mrb[0].mxu0
        %v2391 = vadd.f32 %v1877, %v2390
        %2392 = vmatprep.mubr.bf16.mxu0 0
        %2393 = vmatmul.mubr.bf16.gmra.mrb[0].mxu0 %v1797
        %v2394 = vpop.f32.mrb[0].mxu0
        %v2395 = vadd.f32 %v1873, %v2394
        %v2396 = vpop.f32.mrb[0].mxu0
        %v2397 = vadd.f32 %v1877, %v2396
        %v2398 = vpop.f32.mrb[0].mxu0
        %v2399 = vadd.f32 %v1873, %v2398
        %v2400 = vpop.f32.mrb[0].mxu0
        %v2401 = vadd.f32 %v1877, %v2400
        %2402 = vmatprep.mubr.bf16.mxu0 0
        %2403 = vmatmul.mubr.bf16.gmra.mrb[0].mxu0 %v1798
        %v2404 = vpop.f32.mrb[0].mxu0
        %v2405 = vadd.f32 %v1873, %v2404
        %v2406 = vpop.f32.mrb[0].mxu0
        %v2407 = vadd.f32 %v1877, %v2406
        %v2408 = vpop.f32.mrb[0].mxu0
        %v2409 = vadd.f32 %v1873, %v2408
        %v2410 = vpop.f32.mrb[0].mxu0
        %v2411 = vadd.f32 %v1877, %v2410
        %2412 = vmatprep.mubr.bf16.mxu0 0
        %2413 = vmatmul.mubr.bf16.gmra.mrb[0].mxu0 %v1799
        %v2414 = vpop.f32.mrb[0].mxu0
        %v2415 = vadd.f32 %v1873, %v2414
        %v2416 = vpop.f32.mrb[0].mxu0
        %v2417 = vadd.f32 %v1877, %v2416
        %v2418 = vpop.f32.mrb[0].mxu0
        %v2419 = vadd.f32 %v1873, %v2418
        %v2420 = vpop.f32.mrb[0].mxu0
        %v2421 = vadd.f32 %v1877, %v2420
        %2422 = vmatprep.mubr.bf16.mxu0 0
        %2423 = vmatmul.mubr.bf16.gmra.mrb[0].mxu0 %v1800
        %v2424 = vpop.f32.mrb[0].mxu0
        %v2425 = vadd.f32 %v1873, %v2424
        %v2426 = vpop.f32.mrb[0].mxu0
        %v2427 = vadd.f32 %v1877, %v2426
        %v2428 = vpop.f32.mrb[0].mxu0
        %v2429 = vadd.f32 %v1873, %v2428
        %v2430 = vpop.f32.mrb[0].mxu0
        %v2431 = vadd.f32 %v1877, %v2430
        %2432 = vmatprep.mubr.bf16.mxu0 0
        %2433 = vmatmul.mubr.bf16.gmra.mrb[0].mxu0 %v1801
        %v2434 = vpop.f32.mrb[0].mxu0
        %v2435 = vadd.f32 %v1873, %v2434
        %v2436 = vpop.f32.mrb[0].mxu0
        %v2437 = vadd.f32 %v1877, %v2436
        %v2438 = vpop.f32.mrb[0].mxu0
        %v2439 = vadd.f32 %v1873, %v2438
        %v2440 = vpop.f32.mrb[0].mxu0
        %v2441 = vadd.f32 %v1877, %v2440
        %2442 = vmatprep.mubr.bf16.mxu0 0
        %2443 = vmatmul.mubr.bf16.gmra.mrb[0].mxu0 %v1802
        %v2444 = vpop.f32.mrb[0].mxu0
        %v2445 = vadd.f32 %v1873, %v2444
        %v2446 = vpop.f32.mrb[0].mxu0
        %v2447 = vadd.f32 %v1877, %v2446
        %v2448 = vpop.f32.mrb[0].mxu0
        %v2449 = vadd.f32 %v1873, %v2448
        %v2450 = vpop.f32.mrb[0].mxu0
        %v2451 = vadd.f32 %v1877, %v2450
        %2452 = vmatprep.mubr.bf16.mxu0 0
        %2453 = vmatmul.mubr.bf16.gmra.mrb[0].mxu0 %v1803
        %v2454 = vpop.f32.mrb[0].mxu0
        %v2455 = vadd.f32 %v1873, %v2454
        %v2456 = vpop.f32.mrb[0].mxu0
        %v2457 = vadd.f32 %v1877, %v2456
        %v2458 = vpop.f32.mrb[0].mxu0
        %v2459 = vadd.f32 %v1873, %v2458
        %v2460 = vpop.f32.mrb[0].mxu0
        %v2461 = vadd.f32 %v1877, %v2460
        %2462 = vdwg.mxu0
        %v2463 = vld [vmem:[#allocation7] sm:$0xf]
        %v2464 = vld [vmem:[#allocation7 + $0x4] sm:$0xf]
        %v2465 = vld [vmem:[#allocation7 + $0x8] sm:$0xf]
        %v2466 = vld [vmem:[#allocation7 + $0xc] sm:$0xf]
        %v2467 = vld [vmem:[#allocation7 + $0x10] sm:$0xf]
        %v2468 = vld [vmem:[#allocation7 + $0x14] sm:$0xf]
        %v2469 = vld [vmem:[#allocation7 + $0x18] sm:$0xf]
        %v2470 = vld [vmem:[#allocation7 + $0x1c] sm:$0xf]
        %v2471 = vld [vmem:[#allocation7 + $0x20] sm:$0xf]
        %v2472 = vld [vmem:[#allocation7 + $0x24] sm:$0xf]
        %v2473 = vld [vmem:[#allocation7 + $0x28] sm:$0xf]
        %v2474 = vld [vmem:[#allocation7 + $0x2c] sm:$0xf]
        %v2475 = vld [vmem:[#allocation7 + $0x30] sm:$0xf]
        %v2476 = vld [vmem:[#allocation7 + $0x34] sm:$0xf]
        %v2477 = vld [vmem:[#allocation7 + $0x38] sm:$0xf]
        %v2478 = vld [vmem:[#allocation7 + $0x3c] sm:$0xf]
        %v2479 = vld [vmem:[#allocation7 + $0x40] sm:$0xf]
        %v2480 = vld [vmem:[#allocation7 + $0x44] sm:$0xf]
        %v2481 = vld [vmem:[#allocation7 + $0x48] sm:$0xf]
        %v2482 = vld [vmem:[#allocation7 + $0x4c] sm:$0xf]
        %v2483 = vld [vmem:[#allocation7 + $0x50] sm:$0xf]
        %v2484 = vld [vmem:[#allocation7 + $0x54] sm:$0xf]
        %v2485 = vld [vmem:[#allocation7 + $0x58] sm:$0xf]
        %v2486 = vld [vmem:[#allocation7 + $0x5c] sm:$0xf]
        %v2487 = vld [vmem:[#allocation7 + $0x60] sm:$0xf]
        %v2488 = vld [vmem:[#allocation7 + $0x64] sm:$0xf]
        %v2489 = vld [vmem:[#allocation7 + $0x68] sm:$0xf]
        %v2490 = vld [vmem:[#allocation7 + $0x6c] sm:$0xf]
        %v2491 = vld [vmem:[#allocation7 + $0x70] sm:$0xf]
        %v2492 = vld [vmem:[#allocation7 + $0x74] sm:$0xf]
        %v2493 = vld [vmem:[#allocation7 + $0x78] sm:$0xf]
        %v2494 = vld [vmem:[#allocation7 + $0x7c] sm:$0xf]
        %v2495 = vpack.c.bf16 %v2163, %v2159
        %v2496 = vpack.c.bf16 %v2173, %v2169
        %v2497 = vpack.c.bf16 %v2183, %v2179
        %v2498 = vpack.c.bf16 %v2193, %v2189
        %v2499 = vpack.c.bf16 %v2203, %v2199
        %v2500 = vpack.c.bf16 %v2213, %v2209
        %v2501 = vpack.c.bf16 %v2223, %v2219
        %v2502 = vpack.c.bf16 %v2233, %v2229
        %v2503 = vpack.c.bf16 %v2165, %v2161
        %v2504 = vpack.c.bf16 %v2175, %v2171
        %v2505 = vpack.c.bf16 %v2185, %v2181
        %v2506 = vpack.c.bf16 %v2195, %v2191
        %v2507 = vpack.c.bf16 %v2205, %v2201
        %v2508 = vpack.c.bf16 %v2215, %v2211
        %v2509 = vpack.c.bf16 %v2225, %v2221
        %v2510 = vpack.c.bf16 %v2235, %v2231
        %2511 = vmatprep.subr.bf16.mxu0 0
        %2512 = vmatpush1.bf16.xpose.msra.mxu0 %v2503
        %2513 = vmatprep.subr.bf16.mxu0 0
        %2514 = vmatpush1.bf16.xpose.msra.mxu0 %v2504
        %2515 = vmatprep.subr.bf16.mxu0 0
        %2516 = vmatpush1.bf16.xpose.msra.mxu0 %v2505
        %2517 = vmatprep.subr.bf16.mxu0 0
        %2518 = vmatpush1.bf16.xpose.msra.mxu0 %v2506
        %2519 = vmatprep.subr.bf16.mxu0 0
        %2520 = vmatpush1.bf16.xpose.msra.mxu0 %v2507
        %2521 = vmatprep.subr.bf16.mxu0 0
        %2522 = vmatpush1.bf16.xpose.msra.mxu0 %v2508
        %2523 = vmatprep.subr.bf16.mxu0 0
        %2524 = vmatpush1.bf16.xpose.msra.mxu0 %v2509
        %2525 = vmatprep.subr.bf16.mxu0 0
        %2526 = vmatpush1.bf16.xpose.msra.mxu0 %v2510
        %2527 = vmatprep.subr.bf16.mxu0 0
        %2528 = vmatpush1.bf16.xpose.msra.mxu0 0
        %2529 = vmatprep.subr.bf16.mxu0 0
        %2530 = vmatpush1.bf16.xpose.msra.mxu0 0
        %2531 = vmatprep.subr.bf16.mxu0 0
        %2532 = vmatpush1.bf16.xpose.msra.mxu0 0
        %2533 = vmatprep.subr.bf16.mxu0 0
        %2534 = vmatpush1.bf16.xpose.msra.mxu0 0
        %2535 = vmatprep.subr.bf16.mxu0 0
        %2536 = vmatpush1.bf16.xpose.msra.mxu0 0
        %2537 = vmatprep.subr.bf16.mxu0 0
        %2538 = vmatpush1.bf16.xpose.msra.mxu0 0
        %2539 = vmatprep.subr.bf16.mxu0 0
        %2540 = vmatpush1.bf16.xpose.msra.mxu0 0
        %2541 = vmatprep.subr.bf16.mxu0 0
        %2542 = vmatpush1.bf16.xpose.msra.mxu0 0
        %2543 = vmatprep.mubr.bf16.mxu0 0
        %2544 = vmatmul.mubr.bf16.gmra.mrb[0].mxu0 %v2495
        %v2545 = vpop.f32.mrb[0].mxu0
        %v2546 = vadd.f32 0.0, %v2545
        %v2547 = vpop.f32.mrb[0].mxu0
        %v2548 = vpop.f32.mrb[0].mxu0
        %v2549 = vadd.f32 0.0, %v2548
        %v2550 = vpop.f32.mrb[0].mxu0
        %2551 = vmatprep.mubr.bf16.mxu0 0
        %2552 = vmatmul.mubr.bf16.gmra.mrb[0].mxu0 %v2496
        %v2553 = vpop.f32.mrb[0].mxu0
        %v2554 = vadd.f32 0.0, %v2553
        %v2555 = vpop.f32.mrb[0].mxu0
        %v2556 = vpop.f32.mrb[0].mxu0
        %v2557 = vadd.f32 0.0, %v2556
        %v2558 = vpop.f32.mrb[0].mxu0
        %2559 = vmatprep.mubr.bf16.mxu0 0
        %2560 = vmatmul.mubr.bf16.gmra.mrb[0].mxu0 %v2497
        %v2561 = vpop.f32.mrb[0].mxu0
        %v2562 = vadd.f32 0.0, %v2561
        %v2563 = vpop.f32.mrb[0].mxu0
        %v2564 = vpop.f32.mrb[0].mxu0
        %v2565 = vadd.f32 0.0, %v2564
        %v2566 = vpop.f32.mrb[0].mxu0
        %2567 = vmatprep.mubr.bf16.mxu0 0
        %2568 = vmatmul.mubr.bf16.gmra.mrb[0].mxu0 %v2498
        %v2569 = vpop.f32.mrb[0].mxu0
        %v2570 = vadd.f32 0.0, %v2569
        %v2571 = vpop.f32.mrb[0].mxu0
        %v2572 = vpop.f32.mrb[0].mxu0
        %v2573 = vadd.f32 0.0, %v2572
        %v2574 = vpop.f32.mrb[0].mxu0
        %2575 = vmatprep.mubr.bf16.mxu0 0
        %2576 = vmatmul.mubr.bf16.gmra.mrb[0].mxu0 %v2499
        %v2577 = vpop.f32.mrb[0].mxu0
        %v2578 = vadd.f32 0.0, %v2577
        %v2579 = vpop.f32.mrb[0].mxu0
        %v2580 = vpop.f32.mrb[0].mxu0
        %v2581 = vadd.f32 0.0, %v2580
        %v2582 = vpop.f32.mrb[0].mxu0
        %2583 = vmatprep.mubr.bf16.mxu0 0
        %2584 = vmatmul.mubr.bf16.gmra.mrb[0].mxu0 %v2500
        %v2585 = vpop.f32.mrb[0].mxu0
        %v2586 = vadd.f32 0.0, %v2585
        %v2587 = vpop.f32.mrb[0].mxu0
        %v2588 = vpop.f32.mrb[0].mxu0
        %v2589 = vadd.f32 0.0, %v2588
        %v2590 = vpop.f32.mrb[0].mxu0
        %2591 = vmatprep.mubr.bf16.mxu0 0
        %2592 = vmatmul.mubr.bf16.gmra.mrb[0].mxu0 %v2501
        %v2593 = vpop.f32.mrb[0].mxu0
        %v2594 = vadd.f32 0.0, %v2593
        %v2595 = vpop.f32.mrb[0].mxu0
        %v2596 = vpop.f32.mrb[0].mxu0
        %v2597 = vadd.f32 0.0, %v2596
        %v2598 = vpop.f32.mrb[0].mxu0
        %2599 = vmatprep.mubr.bf16.mxu0 0
        %2600 = vmatmul.mubr.bf16.gmra.mrb[0].mxu0 %v2502
        %v2601 = vpop.f32.mrb[0].mxu0
        %v2602 = vadd.f32 0.0, %v2601
        %v2603 = vpop.f32.mrb[0].mxu0
        %v2604 = vpop.f32.mrb[0].mxu0
        %v2605 = vadd.f32 0.0, %v2604
        %v2606 = vpop.f32.mrb[0].mxu0
        %2607 = vdwg.mxu0
        %v2608 = vmul.f32 %v2546, 0.125
        %v2609 = vmul.f32 %v2549, 0.125
        %v2610 = vmul.f32 %v2554, 0.125
        %v2611 = vmul.f32 %v2557, 0.125
        %v2612 = vmul.f32 %v2562, 0.125
        %v2613 = vmul.f32 %v2565, 0.125
        %v2614 = vmul.f32 %v2570, 0.125
        %v2615 = vmul.f32 %v2573, 0.125
        %v2616 = vmul.f32 %v2578, 0.125
        %v2617 = vmul.f32 %v2581, 0.125
        %v2618 = vmul.f32 %v2586, 0.125
        %v2619 = vmul.f32 %v2589, 0.125
        %v2620 = vmul.f32 %v2594, 0.125
        %v2621 = vmul.f32 %v2597, 0.125
        %v2622 = vmul.f32 %v2602, 0.125
        %v2623 = vmul.f32 %v2605, 0.125
        %v2624 = vadd.f32 %v2608, %v1794
        %v2625 = vadd.f32 %v2609, %v1794
        %v2626 = vadd.f32 %v2610, %v1794
        %v2627 = vadd.f32 %v2611, %v1794
        %v2628 = vadd.f32 %v2612, %v1794
        %v2629 = vadd.f32 %v2613, %v1794
        %v2630 = vadd.f32 %v2614, %v1794
        %v2631 = vadd.f32 %v2615, %v1794
        %v2632 = vadd.f32 %v2616, %v1794
        %v2633 = vadd.f32 %v2617, %v1794
        %v2634 = vadd.f32 %v2618, %v1794
        %v2635 = vadd.f32 %v2619, %v1794
        %v2636 = vadd.f32 %v2620, %v1794
        %v2637 = vadd.f32 %v2621, %v1794
        %v2638 = vadd.f32 %v2622, %v1794
        %v2639 = vadd.f32 %v2623, %v1794
        %2640 = vmax.xlane.f32.xlu0 %v2624
        %v2641 = vpop.xlane.xlu0 %2640
        %2642 = vmax.xlane.f32.xlu0 %v2625
        %v2643 = vpop.xlane.xlu0 %2642
        %2644 = vmax.xlane.f32.xlu0 %v2626
        %v2645 = vpop.xlane.xlu0 %2644
        %2646 = vmax.xlane.f32.xlu0 %v2627
        %v2647 = vpop.xlane.xlu0 %2646
        %2648 = vmax.xlane.f32.xlu0 %v2628
        %v2649 = vpop.xlane.xlu0 %2648
        %2650 = vmax.xlane.f32.xlu0 %v2629
        %v2651 = vpop.xlane.xlu0 %2650
        %2652 = vmax.xlane.f32.xlu0 %v2630
        %v2653 = vpop.xlane.xlu0 %2652
        %2654 = vmax.xlane.f32.xlu0 %v2631
        %v2655 = vpop.xlane.xlu0 %2654
        %2656 = vmax.xlane.f32.xlu0 %v2632
        %v2657 = vpop.xlane.xlu0 %2656
        %2658 = vmax.xlane.f32.xlu0 %v2633
        %v2659 = vpop.xlane.xlu0 %2658
        %2660 = vmax.xlane.f32.xlu0 %v2634
        %v2661 = vpop.xlane.xlu0 %2660
        %2662 = vmax.xlane.f32.xlu0 %v2635
        %v2663 = vpop.xlane.xlu0 %2662
        %2664 = vmax.xlane.f32.xlu0 %v2636
        %v2665 = vpop.xlane.xlu0 %2664
        %2666 = vmax.xlane.f32.xlu0 %v2637
        %v2667 = vpop.xlane.xlu0 %2666
        %2668 = vmax.xlane.f32.xlu0 %v2638
        %v2669 = vpop.xlane.xlu0 %2668
        %2670 = vmax.xlane.f32.xlu0 %v2639
        %v2671 = vpop.xlane.xlu0 %2670
        %v2672 = vsub.f32 %v2624, %v2641
        %v2673 = vsub.f32 %v2625, %v2643
        %v2674 = vsub.f32 %v2626, %v2645
        %v2675 = vsub.f32 %v2627, %v2647
        %v2676 = vsub.f32 %v2628, %v2649
        %v2677 = vsub.f32 %v2629, %v2651
        %v2678 = vsub.f32 %v2630, %v2653
        %v2679 = vsub.f32 %v2631, %v2655
        %v2680 = vsub.f32 %v2632, %v2657
        %v2681 = vsub.f32 %v2633, %v2659
        %v2682 = vsub.f32 %v2634, %v2661
        %v2683 = vsub.f32 %v2635, %v2663
        %v2684 = vsub.f32 %v2636, %v2665
        %v2685 = vsub.f32 %v2637, %v2667
        %v2686 = vsub.f32 %v2638, %v2669
        %v2687 = vsub.f32 %v2639, %v2671
        %v2688 = vmul.f32 %v2672, 1.442695
        %v2689 = vpow.pop %v2688
        %v2690 = vmul.f32 %v2673, 1.442695
        %v2691 = vpow.pop %v2690
        %v2692 = vmul.f32 %v2674, 1.442695
        %v2693 = vpow.pop %v2692
        %v2694 = vmul.f32 %v2675, 1.442695
        %v2695 = vpow.pop %v2694
        %v2696 = vmul.f32 %v2676, 1.442695
        %v2697 = vpow.pop %v2696
        %v2698 = vmul.f32 %v2677, 1.442695
        %v2699 = vpow.pop %v2698
        %v2700 = vmul.f32 %v2678, 1.442695
        %v2701 = vpow.pop %v2700
        %v2702 = vmul.f32 %v2679, 1.442695
        %v2703 = vpow.pop %v2702
        %v2704 = vmul.f32 %v2680, 1.442695
        %v2705 = vpow.pop %v2704
        %v2706 = vmul.f32 %v2681, 1.442695
        %v2707 = vpow.pop %v2706
        %v2708 = vmul.f32 %v2682, 1.442695
        %v2709 = vpow.pop %v2708
        %v2710 = vmul.f32 %v2683, 1.442695
        %v2711 = vpow.pop %v2710
        %v2712 = vmul.f32 %v2684, 1.442695
        %v2713 = vpow.pop %v2712
        %v2714 = vmul.f32 %v2685, 1.442695
        %v2715 = vpow.pop %v2714
        %v2716 = vmul.f32 %v2686, 1.442695
        %v2717 = vpow.pop %v2716
        %v2718 = vmul.f32 %v2687, 1.442695
        %v2719 = vpow.pop %v2718
        %2720 = vadd.xlane.f32.xlu0 %v2689
        %v2721 = vpop.xlane.xlu0 %2720
        %2722 = vadd.xlane.f32.xlu0 %v2691
        %v2723 = vpop.xlane.xlu0 %2722
        %2724 = vadd.xlane.f32.xlu0 %v2693
        %v2725 = vpop.xlane.xlu0 %2724
        %2726 = vadd.xlane.f32.xlu0 %v2695
        %v2727 = vpop.xlane.xlu0 %2726
        %2728 = vadd.xlane.f32.xlu0 %v2697
        %v2729 = vpop.xlane.xlu0 %2728
        %2730 = vadd.xlane.f32.xlu0 %v2699
        %v2731 = vpop.xlane.xlu0 %2730
        %2732 = vadd.xlane.f32.xlu0 %v2701
        %v2733 = vpop.xlane.xlu0 %2732
        %2734 = vadd.xlane.f32.xlu0 %v2703
        %v2735 = vpop.xlane.xlu0 %2734
        %2736 = vadd.xlane.f32.xlu0 %v2705
        %v2737 = vpop.xlane.xlu0 %2736
        %2738 = vadd.xlane.f32.xlu0 %v2707
        %v2739 = vpop.xlane.xlu0 %2738
        %2740 = vadd.xlane.f32.xlu0 %v2709
        %v2741 = vpop.xlane.xlu0 %2740
        %2742 = vadd.xlane.f32.xlu0 %v2711
        %v2743 = vpop.xlane.xlu0 %2742
        %2744 = vadd.xlane.f32.xlu0 %v2713
        %v2745 = vpop.xlane.xlu0 %2744
        %2746 = vadd.xlane.f32.xlu0 %v2715
        %v2747 = vpop.xlane.xlu0 %2746
        %2748 = vadd.xlane.f32.xlu0 %v2717
        %v2749 = vpop.xlane.xlu0 %2748
        %2750 = vadd.xlane.f32.xlu0 %v2719
        %v2751 = vpop.xlane.xlu0 %2750
        %v2752 = vpack.c.bf16 %v2691, %v2689
        %v2753 = vpack.c.bf16 %v2695, %v2693
        %v2754 = vpack.c.bf16 %v2699, %v2697
        %v2755 = vpack.c.bf16 %v2703, %v2701
        %v2756 = vpack.c.bf16 %v2707, %v2705
        %v2757 = vpack.c.bf16 %v2711, %v2709
        %v2758 = vpack.c.bf16 %v2715, %v2713
        %v2759 = vpack.c.bf16 %v2719, %v2717
        %v2760 = vpack.c.bf16 %v2276, %v2272
        %v2761 = vpack.c.bf16 %v2286, %v2282
        %v2762 = vpack.c.bf16 %v2296, %v2292
        %v2763 = vpack.c.bf16 %v2306, %v2302
        %v2764 = vpack.c.bf16 %v2316, %v2312
        %v2765 = vpack.c.bf16 %v2326, %v2322
        %v2766 = vpack.c.bf16 %v2336, %v2332
        %v2767 = vpack.c.bf16 %v2346, %v2342
        %2768 = vmatprep.subr.bf16.mxu0 0
        %2769 = vmatpush1.bf16.msra.mxu0 %v2760
        %2770 = vmatprep.subr.bf16.mxu0 0
        %2771 = vmatpush1.bf16.msra.mxu0 %v2761
        %2772 = vmatprep.subr.bf16.mxu0 0
        %2773 = vmatpush1.bf16.msra.mxu0 %v2762
        %2774 = vmatprep.subr.bf16.mxu0 0
        %2775 = vmatpush1.bf16.msra.mxu0 %v2763
        %2776 = vmatprep.subr.bf16.mxu0 0
        %2777 = vmatpush1.bf16.msra.mxu0 %v2764
        %2778 = vmatprep.subr.bf16.mxu0 0
        %2779 = vmatpush1.bf16.msra.mxu0 %v2765
        %2780 = vmatprep.subr.bf16.mxu0 0
        %2781 = vmatpush1.bf16.msra.mxu0 %v2766
        %2782 = vmatprep.subr.bf16.mxu0 0
        %2783 = vmatpush1.bf16.msra.mxu0 %v2767
        %2784 = vmatprep.subr.bf16.mxu0 0
        %2785 = vmatpush1.bf16.msra.mxu0 0
        %2786 = vmatprep.subr.bf16.mxu0 0
        %2787 = vmatpush1.bf16.msra.mxu0 0
        %2788 = vmatprep.subr.bf16.mxu0 0
        %2789 = vmatpush1.bf16.msra.mxu0 0
        %2790 = vmatprep.subr.bf16.mxu0 0
        %2791 = vmatpush1.bf16.msra.mxu0 0
        %2792 = vmatprep.subr.bf16.mxu0 0
        %2793 = vmatpush1.bf16.msra.mxu0 0
        %2794 = vmatprep.subr.bf16.mxu0 0
        %2795 = vmatpush1.bf16.msra.mxu0 0
        %2796 = vmatprep.subr.bf16.mxu0 0
        %2797 = vmatpush1.bf16.msra.mxu0 0
        %2798 = vmatprep.subr.bf16.mxu0 0
        %2799 = vmatpush1.bf16.msra.mxu0 0
        %2800 = vmatprep.mubr.bf16.mxu0 0
        %2801 = vmatmul.mubr.bf16.gmra.mrb[0].mxu0 %v2752
        %v2802 = vpop.f32.mrb[0].mxu0
        %v2803 = vadd.f32 0.0, %v2802
        %v2804 = vpop.f32.mrb[0].mxu0
        %v2805 = vpop.f32.mrb[0].mxu0
        %v2806 = vadd.f32 0.0, %v2805
        %v2807 = vpop.f32.mrb[0].mxu0
        %2808 = vmatprep.mubr.bf16.mxu0 0
        %2809 = vmatmul.mubr.bf16.gmra.mrb[0].mxu0 %v2753
        %v2810 = vpop.f32.mrb[0].mxu0
        %v2811 = vadd.f32 0.0, %v2810
        %v2812 = vpop.f32.mrb[0].mxu0
        %v2813 = vpop.f32.mrb[0].mxu0
        %v2814 = vadd.f32 0.0, %v2813
        %v2815 = vpop.f32.mrb[0].mxu0
        %2816 = vmatprep.mubr.bf16.mxu0 0
        %2817 = vmatmul.mubr.bf16.gmra.mrb[0].mxu0 %v2754
        %v2818 = vpop.f32.mrb[0].mxu0
        %v2819 = vadd.f32 0.0, %v2818
        %v2820 = vpop.f32.mrb[0].mxu0
        %v2821 = vpop.f32.mrb[0].mxu0
        %v2822 = vadd.f32 0.0, %v2821
        %v2823 = vpop.f32.mrb[0].mxu0
        %2824 = vmatprep.mubr.bf16.mxu0 0
        %2825 = vmatmul.mubr.bf16.gmra.mrb[0].mxu0 %v2755
        %v2826 = vpop.f32.mrb[0].mxu0
        %v2827 = vadd.f32 0.0, %v2826
        %v2828 = vpop.f32.mrb[0].mxu0
        %v2829 = vpop.f32.mrb[0].mxu0
        %v2830 = vadd.f32 0.0, %v2829
        %v2831 = vpop.f32.mrb[0].mxu0
        %2832 = vmatprep.mubr.bf16.mxu0 0
        %2833 = vmatmul.mubr.bf16.gmra.mrb[0].mxu0 %v2756
        %v2834 = vpop.f32.mrb[0].mxu0
        %v2835 = vadd.f32 0.0, %v2834
        %v2836 = vpop.f32.mrb[0].mxu0
        %v2837 = vpop.f32.mrb[0].mxu0
        %v2838 = vadd.f32 0.0, %v2837
        %v2839 = vpop.f32.mrb[0].mxu0
        %2840 = vmatprep.mubr.bf16.mxu0 0
        %2841 = vmatmul.mubr.bf16.gmra.mrb[0].mxu0 %v2757
        %v2842 = vpop.f32.mrb[0].mxu0
        %v2843 = vadd.f32 0.0, %v2842
        %v2844 = vpop.f32.mrb[0].mxu0
        %v2845 = vpop.f32.mrb[0].mxu0
        %v2846 = vadd.f32 0.0, %v2845
        %v2847 = vpop.f32.mrb[0].mxu0
        %2848 = vmatprep.mubr.bf16.mxu0 0
        %2849 = vmatmul.mubr.bf16.gmra.mrb[0].mxu0 %v2758
        %v2850 = vpop.f32.mrb[0].mxu0
        %v2851 = vadd.f32 0.0, %v2850
        %v2852 = vpop.f32.mrb[0].mxu0
        %v2853 = vpop.f32.mrb[0].mxu0
        %v2854 = vadd.f32 0.0, %v2853
        %v2855 = vpop.f32.mrb[0].mxu0
        %2856 = vmatprep.mubr.bf16.mxu0 0
        %2857 = vmatmul.mubr.bf16.gmra.mrb[0].mxu0 %v2759
        %v2858 = vpop.f32.mrb[0].mxu0
        %v2859 = vadd.f32 0.0, %v2858
        %v2860 = vpop.f32.mrb[0].mxu0
        %v2861 = vpop.f32.mrb[0].mxu0
        %v2862 = vadd.f32 0.0, %v2861
        %v2863 = vpop.f32.mrb[0].mxu0
        %2864 = vdwg.mxu0
        %v2865 = vrcp.pop %v2721
        %v2866 = vrcp.pop %v2723
        %v2867 = vrcp.pop %v2725
        %v2868 = vrcp.pop %v2727
        %v2869 = vrcp.pop %v2729
        %v2870 = vrcp.pop %v2731
        %v2871 = vrcp.pop %v2733
        %v2872 = vrcp.pop %v2735
        %v2873 = vrcp.pop %v2737
        %v2874 = vrcp.pop %v2739
        %v2875 = vrcp.pop %v2741
        %v2876 = vrcp.pop %v2743
        %v2877 = vrcp.pop %v2745
        %v2878 = vrcp.pop %v2747
        %v2879 = vrcp.pop %v2749
        %v2880 = vrcp.pop %v2751
        %v2881 = vmul.f32 %v2803, %v2865
        %v2882 = vmul.f32 %v2806, %v2866
        %v2883 = vmul.f32 %v2811, %v2867
        %v2884 = vmul.f32 %v2814, %v2868
        %v2885 = vmul.f32 %v2819, %v2869
        %v2886 = vmul.f32 %v2822, %v2870
        %v2887 = vmul.f32 %v2827, %v2871
        %v2888 = vmul.f32 %v2830, %v2872
        %v2889 = vmul.f32 %v2835, %v2873
        %v2890 = vmul.f32 %v2838, %v2874
        %v2891 = vmul.f32 %v2843, %v2875
        %v2892 = vmul.f32 %v2846, %v2876
        %v2893 = vmul.f32 %v2851, %v2877
        %v2894 = vmul.f32 %v2854, %v2878
        %v2895 = vmul.f32 %v2859, %v2879
        %v2896 = vmul.f32 %v2862, %v2880
        %v2897 = vpack.c.bf16 %v2882, %v2881
        %v2898 = vpack.c.bf16 %v2884, %v2883
        %v2899 = vpack.c.bf16 %v2886, %v2885
        %v2900 = vpack.c.bf16 %v2888, %v2887
        %v2901 = vpack.c.bf16 %v2890, %v2889
        %v2902 = vpack.c.bf16 %v2892, %v2891
        %v2903 = vpack.c.bf16 %v2894, %v2893
        %v2904 = vpack.c.bf16 %v2896, %v2895
        %v2905 = vpack.c.bf16 %v2278, %v2274
        %v2906 = vpack.c.bf16 %v2288, %v2284
        %v2907 = vpack.c.bf16 %v2298, %v2294
        %v2908 = vpack.c.bf16 %v2308, %v2304
        %v2909 = vpack.c.bf16 %v2318, %v2314
        %v2910 = vpack.c.bf16 %v2328, %v2324
        %v2911 = vpack.c.bf16 %v2338, %v2334
        %v2912 = vpack.c.bf16 %v2348, %v2344
        %v2913 = vpack.c.bf16 %v2389, %v2385
        %v2914 = vpack.c.bf16 %v2399, %v2395
        %v2915 = vpack.c.bf16 %v2409, %v2405
        %v2916 = vpack.c.bf16 %v2419, %v2415
        %v2917 = vpack.c.bf16 %v2429, %v2425
        %v2918 = vpack.c.bf16 %v2439, %v2435
        %v2919 = vpack.c.bf16 %v2449, %v2445
        %v2920 = vpack.c.bf16 %v2459, %v2455
        %2921 = vmatprep.subr.bf16.mxu0 0
        %2922 = vmatpush1.bf16.xpose.msra.mxu0 %v2913
        %2923 = vmatprep.subr.bf16.mxu0 0
        %2924 = vmatpush1.bf16.xpose.msra.mxu0 %v2914
        %2925 = vmatprep.subr.bf16.mxu0 0
        %2926 = vmatpush1.bf16.xpose.msra.mxu0 %v2915
        %2927 = vmatprep.subr.bf16.mxu0 0
        %2928 = vmatpush1.bf16.xpose.msra.mxu0 %v2916
        %2929 = vmatprep.subr.bf16.mxu0 0
        %2930 = vmatpush1.bf16.xpose.msra.mxu0 %v2917
        %2931 = vmatprep.subr.bf16.mxu0 0
        %2932 = vmatpush1.bf16.xpose.msra.mxu0 %v2918
        %2933 = vmatprep.subr.bf16.mxu0 0
        %2934 = vmatpush1.bf16.xpose.msra.mxu0 %v2919
        %2935 = vmatprep.subr.bf16.mxu0 0
        %2936 = vmatpush1.bf16.xpose.msra.mxu0 %v2920
        %2937 = vmatprep.subr.bf16.mxu0 0
        %2938 = vmatpush1.bf16.xpose.msra.mxu0 0
        %2939 = vmatprep.subr.bf16.mxu0 0
        %2940 = vmatpush1.bf16.xpose.msra.mxu0 0
        %2941 = vmatprep.subr.bf16.mxu0 0
        %2942 = vmatpush1.bf16.xpose.msra.mxu0 0
        %2943 = vmatprep.subr.bf16.mxu0 0
        %2944 = vmatpush1.bf16.xpose.msra.mxu0 0
        %2945 = vmatprep.subr.bf16.mxu0 0
        %2946 = vmatpush1.bf16.xpose.msra.mxu0 0
        %2947 = vmatprep.subr.bf16.mxu0 0
        %2948 = vmatpush1.bf16.xpose.msra.mxu0 0
        %2949 = vmatprep.subr.bf16.mxu0 0
        %2950 = vmatpush1.bf16.xpose.msra.mxu0 0
        %2951 = vmatprep.subr.bf16.mxu0 0
        %2952 = vmatpush1.bf16.xpose.msra.mxu0 0
        %2953 = vmatprep.mubr.bf16.mxu0 0
        %2954 = vmatmul.mubr.bf16.gmra.mrb[0].mxu0 %v2905
        %v2955 = vpop.f32.mrb[0].mxu0
        %v2956 = vadd.f32 0.0, %v2955
        %v2957 = vpop.f32.mrb[0].mxu0
        %v2958 = vpop.f32.mrb[0].mxu0
        %v2959 = vadd.f32 0.0, %v2958
        %v2960 = vpop.f32.mrb[0].mxu0
        %2961 = vmatprep.mubr.bf16.mxu0 0
        %2962 = vmatmul.mubr.bf16.gmra.mrb[0].mxu0 %v2906
        %v2963 = vpop.f32.mrb[0].mxu0
        %v2964 = vadd.f32 0.0, %v2963
        %v2965 = vpop.f32.mrb[0].mxu0
        %v2966 = vpop.f32.mrb[0].mxu0
        %v2967 = vadd.f32 0.0, %v2966
        %v2968 = vpop.f32.mrb[0].mxu0
        %2969 = vmatprep.mubr.bf16.mxu0 0
        %2970 = vmatmul.mubr.bf16.gmra.mrb[0].mxu0 %v2907
        %v2971 = vpop.f32.mrb[0].mxu0
        %v2972 = vadd.f32 0.0, %v2971
        %v2973 = vpop.f32.mrb[0].mxu0
        %v2974 = vpop.f32.mrb[0].mxu0
        %v2975 = vadd.f32 0.0, %v2974
        %v2976 = vpop.f32.mrb[0].mxu0
        %2977 = vmatprep.mubr.bf16.mxu0 0
        %2978 = vmatmul.mubr.bf16.gmra.mrb[0].mxu0 %v2908
        %v2979 = vpop.f32.mrb[0].mxu0
        %v2980 = vadd.f32 0.0, %v2979
        %v2981 = vpop.f32.mrb[0].mxu0
        %v2982 = vpop.f32.mrb[0].mxu0
        %v2983 = vadd.f32 0.0, %v2982
        %v2984 = vpop.f32.mrb[0].mxu0
        %2985 = vmatprep.mubr.bf16.mxu0 0
        %2986 = vmatmul.mubr.bf16.gmra.mrb[0].mxu0 %v2909
        %v2987 = vpop.f32.mrb[0].mxu0
        %v2988 = vadd.f32 0.0, %v2987
        %v2989 = vpop.f32.mrb[0].mxu0
        %v2990 = vpop.f32.mrb[0].mxu0
        %v2991 = vadd.f32 0.0, %v2990
        %v2992 = vpop.f32.mrb[0].mxu0
        %2993 = vmatprep.mubr.bf16.mxu0 0
        %2994 = vmatmul.mubr.bf16.gmra.mrb[0].mxu0 %v2910
        %v2995 = vpop.f32.mrb[0].mxu0
        %v2996 = vadd.f32 0.0, %v2995
        %v2997 = vpop.f32.mrb[0].mxu0
        %v2998 = vpop.f32.mrb[0].mxu0
        %v2999 = vadd.f32 0.0, %v2998
        %v3000 = vpop.f32.mrb[0].mxu0
        %3001 = vmatprep.mubr.bf16.mxu0 0
        %3002 = vmatmul.mubr.bf16.gmra.mrb[0].mxu0 %v2911
        %v3003 = vpop.f32.mrb[0].mxu0
        %v3004 = vadd.f32 0.0, %v3003
        %v3005 = vpop.f32.mrb[0].mxu0
        %v3006 = vpop.f32.mrb[0].mxu0
        %v3007 = vadd.f32 0.0, %v3006
        %v3008 = vpop.f32.mrb[0].mxu0
        %3009 = vmatprep.mubr.bf16.mxu0 0
        %3010 = vmatmul.mubr.bf16.gmra.mrb[0].mxu0 %v2912
        %v3011 = vpop.f32.mrb[0].mxu0
        %v3012 = vadd.f32 0.0, %v3011
        %v3013 = vpop.f32.mrb[0].mxu0
        %v3014 = vpop.f32.mrb[0].mxu0
        %v3015 = vadd.f32 0.0, %v3014
        %v3016 = vpop.f32.mrb[0].mxu0
        %3017 = vdwg.mxu0
        %v3018 = vmul.f32 %v2956, 0.125
        %v3019 = vmul.f32 %v2959, 0.125
        %v3020 = vmul.f32 %v2964, 0.125
        %v3021 = vmul.f32 %v2967, 0.125
        %v3022 = vmul.f32 %v2972, 0.125
        %v3023 = vmul.f32 %v2975, 0.125
        %v3024 = vmul.f32 %v2980, 0.125
        %v3025 = vmul.f32 %v2983, 0.125
        %v3026 = vmul.f32 %v2988, 0.125
        %v3027 = vmul.f32 %v2991, 0.125
        %v3028 = vmul.f32 %v2996, 0.125
        %v3029 = vmul.f32 %v2999, 0.125
        %v3030 = vmul.f32 %v3004, 0.125
        %v3031 = vmul.f32 %v3007, 0.125
        %v3032 = vmul.f32 %v3012, 0.125
        %v3033 = vmul.f32 %v3015, 0.125
        %v3034 = vadd.f32 %v3018, %v1794
        %v3035 = vadd.f32 %v3019, %v1794
        %v3036 = vadd.f32 %v3020, %v1794
        %v3037 = vadd.f32 %v3021, %v1794
        %v3038 = vadd.f32 %v3022, %v1794
        %v3039 = vadd.f32 %v3023, %v1794
        %v3040 = vadd.f32 %v3024, %v1794
        %v3041 = vadd.f32 %v3025, %v1794
        %v3042 = vadd.f32 %v3026, %v1794
        %v3043 = vadd.f32 %v3027, %v1794
        %v3044 = vadd.f32 %v3028, %v1794
        %v3045 = vadd.f32 %v3029, %v1794
        %v3046 = vadd.f32 %v3030, %v1794
        %v3047 = vadd.f32 %v3031, %v1794
        %v3048 = vadd.f32 %v3032, %v1794
        %v3049 = vadd.f32 %v3033, %v1794
        %3050 = vmax.xlane.f32.xlu0 %v3034
        %v3051 = vpop.xlane.xlu0 %3050
        %3052 = vmax.xlane.f32.xlu0 %v3035
        %v3053 = vpop.xlane.xlu0 %3052
        %3054 = vmax.xlane.f32.xlu0 %v3036
        %v3055 = vpop.xlane.xlu0 %3054
        %3056 = vmax.xlane.f32.xlu0 %v3037
        %v3057 = vpop.xlane.xlu0 %3056
        %3058 = vmax.xlane.f32.xlu0 %v3038
        %v3059 = vpop.xlane.xlu0 %3058
        %3060 = vmax.xlane.f32.xlu0 %v3039
        %v3061 = vpop.xlane.xlu0 %3060
        %3062 = vmax.xlane.f32.xlu0 %v3040
        %v3063 = vpop.xlane.xlu0 %3062
        %3064 = vmax.xlane.f32.xlu0 %v3041
        %v3065 = vpop.xlane.xlu0 %3064
        %3066 = vmax.xlane.f32.xlu0 %v3042
        %v3067 = vpop.xlane.xlu0 %3066
        %3068 = vmax.xlane.f32.xlu0 %v3043
        %v3069 = vpop.xlane.xlu0 %3068
        %3070 = vmax.xlane.f32.xlu0 %v3044
        %v3071 = vpop.xlane.xlu0 %3070
        %3072 = vmax.xlane.f32.xlu0 %v3045
        %v3073 = vpop.xlane.xlu0 %3072
        %3074 = vmax.xlane.f32.xlu0 %v3046
        %v3075 = vpop.xlane.xlu0 %3074
        %3076 = vmax.xlane.f32.xlu0 %v3047
        %v3077 = vpop.xlane.xlu0 %3076
        %3078 = vmax.xlane.f32.xlu0 %v3048
        %v3079 = vpop.xlane.xlu0 %3078
        %3080 = vmax.xlane.f32.xlu0 %v3049
        %v3081 = vpop.xlane.xlu0 %3080
        %v3082 = vsub.f32 %v3034, %v3051
        %v3083 = vsub.f32 %v3035, %v3053
        %v3084 = vsub.f32 %v3036, %v3055
        %v3085 = vsub.f32 %v3037, %v3057
        %v3086 = vsub.f32 %v3038, %v3059
        %v3087 = vsub.f32 %v3039, %v3061
        %v3088 = vsub.f32 %v3040, %v3063
        %v3089 = vsub.f32 %v3041, %v3065
        %v3090 = vsub.f32 %v3042, %v3067
        %v3091 = vsub.f32 %v3043, %v3069
        %v3092 = vsub.f32 %v3044, %v3071
        %v3093 = vsub.f32 %v3045, %v3073
        %v3094 = vsub.f32 %v3046, %v3075
        %v3095 = vsub.f32 %v3047, %v3077
        %v3096 = vsub.f32 %v3048, %v3079
        %v3097 = vsub.f32 %v3049, %v3081
        %v3098 = vmul.f32 %v3082, 1.442695
        %v3099 = vpow.pop %v3098
        %v3100 = vmul.f32 %v3083, 1.442695
        %v3101 = vpow.pop %v3100
        %v3102 = vmul.f32 %v3084, 1.442695
        %v3103 = vpow.pop %v3102
        %v3104 = vmul.f32 %v3085, 1.442695
        %v3105 = vpow.pop %v3104
        %v3106 = vmul.f32 %v3086, 1.442695
        %v3107 = vpow.pop %v3106
        %v3108 = vmul.f32 %v3087, 1.442695
        %v3109 = vpow.pop %v3108
        %v3110 = vmul.f32 %v3088, 1.442695
        %v3111 = vpow.pop %v3110
        %v3112 = vmul.f32 %v3089, 1.442695
        %v3113 = vpow.pop %v3112
        %v3114 = vmul.f32 %v3090, 1.442695
        %v3115 = vpow.pop %v3114
        %v3116 = vmul.f32 %v3091, 1.442695
        %v3117 = vpow.pop %v3116
        %v3118 = vmul.f32 %v3092, 1.442695
        %v3119 = vpow.pop %v3118
        %v3120 = vmul.f32 %v3093, 1.442695
        %v3121 = vpow.pop %v3120
        %v3122 = vmul.f32 %v3094, 1.442695
        %v3123 = vpow.pop %v3122
        %v3124 = vmul.f32 %v3095, 1.442695
        %v3125 = vpow.pop %v3124
        %v3126 = vmul.f32 %v3096, 1.442695
        %v3127 = vpow.pop %v3126
        %v3128 = vmul.f32 %v3097, 1.442695
        %v3129 = vpow.pop %v3128
        %3130 = vadd.xlane.f32.xlu0 %v3099
        %v3131 = vpop.xlane.xlu0 %3130
        %3132 = vadd.xlane.f32.xlu0 %v3101
        %v3133 = vpop.xlane.xlu0 %3132
        %3134 = vadd.xlane.f32.xlu0 %v3103
        %v3135 = vpop.xlane.xlu0 %3134
        %3136 = vadd.xlane.f32.xlu0 %v3105
        %v3137 = vpop.xlane.xlu0 %3136
        %3138 = vadd.xlane.f32.xlu0 %v3107
        %v3139 = vpop.xlane.xlu0 %3138
        %3140 = vadd.xlane.f32.xlu0 %v3109
        %v3141 = vpop.xlane.xlu0 %3140
        %3142 = vadd.xlane.f32.xlu0 %v3111
        %v3143 = vpop.xlane.xlu0 %3142
        %3144 = vadd.xlane.f32.xlu0 %v3113
        %v3145 = vpop.xlane.xlu0 %3144
        %3146 = vadd.xlane.f32.xlu0 %v3115
        %v3147 = vpop.xlane.xlu0 %3146
        %3148 = vadd.xlane.f32.xlu0 %v3117
        %v3149 = vpop.xlane.xlu0 %3148
        %3150 = vadd.xlane.f32.xlu0 %v3119
        %v3151 = vpop.xlane.xlu0 %3150
        %3152 = vadd.xlane.f32.xlu0 %v3121
        %v3153 = vpop.xlane.xlu0 %3152
        %3154 = vadd.xlane.f32.xlu0 %v3123
        %v3155 = vpop.xlane.xlu0 %3154
        %3156 = vadd.xlane.f32.xlu0 %v3125
        %v3157 = vpop.xlane.xlu0 %3156
        %3158 = vadd.xlane.f32.xlu0 %v3127
        %v3159 = vpop.xlane.xlu0 %3158
        %3160 = vadd.xlane.f32.xlu0 %v3129
        %v3161 = vpop.xlane.xlu0 %3160
        %v3162 = vpack.c.bf16 %v3101, %v3099
        %v3163 = vpack.c.bf16 %v3105, %v3103
        %v3164 = vpack.c.bf16 %v3109, %v3107
        %v3165 = vpack.c.bf16 %v3113, %v3111
        %v3166 = vpack.c.bf16 %v3117, %v3115
        %v3167 = vpack.c.bf16 %v3121, %v3119
        %v3168 = vpack.c.bf16 %v3125, %v3123
        %v3169 = vpack.c.bf16 %v3129, %v3127
        %v3170 = vpack.c.bf16 %v2391, %v2387
        %v3171 = vpack.c.bf16 %v2401, %v2397
        %v3172 = vpack.c.bf16 %v2411, %v2407
        %v3173 = vpack.c.bf16 %v2421, %v2417
        %v3174 = vpack.c.bf16 %v2431, %v2427
        %v3175 = vpack.c.bf16 %v2441, %v2437
        %v3176 = vpack.c.bf16 %v2451, %v2447
        %v3177 = vpack.c.bf16 %v2461, %v2457
        %3178 = vmatprep.subr.bf16.mxu0 0
        %3179 = vmatpush1.bf16.msra.mxu0 %v3170
        %3180 = vmatprep.subr.bf16.mxu0 0
        %3181 = vmatpush1.bf16.msra.mxu0 %v3171
        %3182 = vmatprep.subr.bf16.mxu0 0
        %3183 = vmatpush1.bf16.msra.mxu0 %v3172
        %3184 = vmatprep.subr.bf16.mxu0 0
        %3185 = vmatpush1.bf16.msra.mxu0 %v3173
        %3186 = vmatprep.subr.bf16.mxu0 0
        %3187 = vmatpush1.bf16.msra.mxu0 %v3174
        %3188 = vmatprep.subr.bf16.mxu0 0
        %3189 = vmatpush1.bf16.msra.mxu0 %v3175
        %3190 = vmatprep.subr.bf16.mxu0 0
        %3191 = vmatpush1.bf16.msra.mxu0 %v3176
        %3192 = vmatprep.subr.bf16.mxu0 0
        %3193 = vmatpush1.bf16.msra.mxu0 %v3177
        %3194 = vmatprep.subr.bf16.mxu0 0
        %3195 = vmatpush1.bf16.msra.mxu0 0
        %3196 = vmatprep.subr.bf16.mxu0 0
        %3197 = vmatpush1.bf16.msra.mxu0 0
        %3198 = vmatprep.subr.bf16.mxu0 0
        %3199 = vmatpush1.bf16.msra.mxu0 0
        %3200 = vmatprep.subr.bf16.mxu0 0
        %3201 = vmatpush1.bf16.msra.mxu0 0
        %3202 = vmatprep.subr.bf16.mxu0 0
        %3203 = vmatpush1.bf16.msra.mxu0 0
        %3204 = vmatprep.subr.bf16.mxu0 0
        %3205 = vmatpush1.bf16.msra.mxu0 0
        %3206 = vmatprep.subr.bf16.mxu0 0
        %3207 = vmatpush1.bf16.msra.mxu0 0
        %3208 = vmatprep.subr.bf16.mxu0 0
        %3209 = vmatpush1.bf16.msra.mxu0 0
        %3210 = vmatprep.mubr.bf16.mxu0 0
        %3211 = vmatmul.mubr.bf16.gmra.mrb[0].mxu0 %v3162
        %v3212 = vpop.f32.mrb[0].mxu0
        %v3213 = vadd.f32 0.0, %v3212
        %v3214 = vpop.f32.mrb[0].mxu0
        %v3215 = vpop.f32.mrb[0].mxu0
        %v3216 = vadd.f32 0.0, %v3215
        %v3217 = vpop.f32.mrb[0].mxu0
        %3218 = vmatprep.mubr.bf16.mxu0 0
        %3219 = vmatmul.mubr.bf16.gmra.mrb[0].mxu0 %v3163
        %v3220 = vpop.f32.mrb[0].mxu0
        %v3221 = vadd.f32 0.0, %v3220
        %v3222 = vpop.f32.mrb[0].mxu0
        %v3223 = vpop.f32.mrb[0].mxu0
        %v3224 = vadd.f32 0.0, %v3223
        %v3225 = vpop.f32.mrb[0].mxu0
        %3226 = vmatprep.mubr.bf16.mxu0 0
        %3227 = vmatmul.mubr.bf16.gmra.mrb[0].mxu0 %v3164
        %v3228 = vpop.f32.mrb[0].mxu0
        %v3229 = vadd.f32 0.0, %v3228
        %v3230 = vpop.f32.mrb[0].mxu0
        %v3231 = vpop.f32.mrb[0].mxu0
        %v3232 = vadd.f32 0.0, %v3231
        %v3233 = vpop.f32.mrb[0].mxu0
        %3234 = vmatprep.mubr.bf16.mxu0 0
        %3235 = vmatmul.mubr.bf16.gmra.mrb[0].mxu0 %v3165
        %v3236 = vpop.f32.mrb[0].mxu0
        %v3237 = vadd.f32 0.0, %v3236
        %v3238 = vpop.f32.mrb[0].mxu0
        %v3239 = vpop.f32.mrb[0].mxu0
        %v3240 = vadd.f32 0.0, %v3239
        %v3241 = vpop.f32.mrb[0].mxu0
        %3242 = vmatprep.mubr.bf16.mxu0 0
        %3243 = vmatmul.mubr.bf16.gmra.mrb[0].mxu0 %v3166
        %v3244 = vpop.f32.mrb[0].mxu0
        %v3245 = vadd.f32 0.0, %v3244
        %v3246 = vpop.f32.mrb[0].mxu0
        %v3247 = vpop.f32.mrb[0].mxu0
        %v3248 = vadd.f32 0.0, %v3247
        %v3249 = vpop.f32.mrb[0].mxu0
        %3250 = vmatprep.mubr.bf16.mxu0 0
        %3251 = vmatmul.mubr.bf16.gmra.mrb[0].mxu0 %v3167
        %v3252 = vpop.f32.mrb[0].mxu0
        %v3253 = vadd.f32 0.0, %v3252
        %v3254 = vpop.f32.mrb[0].mxu0
        %v3255 = vpop.f32.mrb[0].mxu0
        %v3256 = vadd.f32 0.0, %v3255
        %v3257 = vpop.f32.mrb[0].mxu0
        %3258 = vmatprep.mubr.bf16.mxu0 0
        %3259 = vmatmul.mubr.bf16.gmra.mrb[0].mxu0 %v3168
        %v3260 = vpop.f32.mrb[0].mxu0
        %v3261 = vadd.f32 0.0, %v3260
        %v3262 = vpop.f32.mrb[0].mxu0
        %v3263 = vpop.f32.mrb[0].mxu0
        %v3264 = vadd.f32 0.0, %v3263
        %v3265 = vpop.f32.mrb[0].mxu0
        %3266 = vmatprep.mubr.bf16.mxu0 0
        %3267 = vmatmul.mubr.bf16.gmra.mrb[0].mxu0 %v3169
        %v3268 = vpop.f32.mrb[0].mxu0
        %v3269 = vadd.f32 0.0, %v3268
        %v3270 = vpop.f32.mrb[0].mxu0
        %v3271 = vpop.f32.mrb[0].mxu0
        %v3272 = vadd.f32 0.0, %v3271
        %v3273 = vpop.f32.mrb[0].mxu0
        %3274 = vdwg.mxu0
        %v3275 = vrcp.pop %v3131
        %v3276 = vrcp.pop %v3133
        %v3277 = vrcp.pop %v3135
        %v3278 = vrcp.pop %v3137
        %v3279 = vrcp.pop %v3139
        %v3280 = vrcp.pop %v3141
        %v3281 = vrcp.pop %v3143
        %v3282 = vrcp.pop %v3145
        %v3283 = vrcp.pop %v3147
        %v3284 = vrcp.pop %v3149
        %v3285 = vrcp.pop %v3151
        %v3286 = vrcp.pop %v3153
        %v3287 = vrcp.pop %v3155
        %v3288 = vrcp.pop %v3157
        %v3289 = vrcp.pop %v3159
        %v3290 = vrcp.pop %v3161
        %v3291 = vmul.f32 %v3213, %v3275
        %v3292 = vmul.f32 %v3216, %v3276
        %v3293 = vmul.f32 %v3221, %v3277
        %v3294 = vmul.f32 %v3224, %v3278
        %v3295 = vmul.f32 %v3229, %v3279
        %v3296 = vmul.f32 %v3232, %v3280
        %v3297 = vmul.f32 %v3237, %v3281
        %v3298 = vmul.f32 %v3240, %v3282
        %v3299 = vmul.f32 %v3245, %v3283
        %v3300 = vmul.f32 %v3248, %v3284
        %v3301 = vmul.f32 %v3253, %v3285
        %v3302 = vmul.f32 %v3256, %v3286
        %v3303 = vmul.f32 %v3261, %v3287
        %v3304 = vmul.f32 %v3264, %v3288
        %v3305 = vmul.f32 %v3269, %v3289
        %v3306 = vmul.f32 %v3272, %v3290
        %v3307 = vpack.c.bf16 %v3292, %v3291
        %v3308 = vpack.c.bf16 %v3294, %v3293
        %v3309 = vpack.c.bf16 %v3296, %v3295
        %v3310 = vpack.c.bf16 %v3298, %v3297
        %v3311 = vpack.c.bf16 %v3300, %v3299
        %v3312 = vpack.c.bf16 %v3302, %v3301
        %v3313 = vpack.c.bf16 %v3304, %v3303
        %v3314 = vpack.c.bf16 %v3306, %v3305
        %v3331 = vunpack.c.l.b16 %v2479
        %v3332 = vunpack.c.l.b16 %v2480
        %v3333 = vunpack.c.l.b16 %v2481
        %v3334 = vunpack.c.l.b16 %v2482
        %v3335 = vunpack.c.l.b16 %v2483
        %v3336 = vunpack.c.l.b16 %v2484
        %v3337 = vunpack.c.l.b16 %v2485
        %v3338 = vunpack.c.l.b16 %v2486
        %v3339 = vunpack.c.l.b16 %v2487
        %v3340 = vunpack.c.l.b16 %v2488
        %v3341 = vunpack.c.l.b16 %v2489
        %v3342 = vunpack.c.l.b16 %v2490
        %v3343 = vunpack.c.l.b16 %v2491
        %v3344 = vunpack.c.l.b16 %v2492
        %v3345 = vunpack.c.l.b16 %v2493
        %v3346 = vunpack.c.l.b16 %v2494
        %v3347 = vpack.c.b16 %v3332, %v3331
        %v3348 = vpack.c.b16 %v3334, %v3333
        %v3349 = vpack.c.b16 %v3336, %v3335
        %v3350 = vpack.c.b16 %v3338, %v3337
        %v3351 = vpack.c.b16 %v3340, %v3339
        %v3352 = vpack.c.b16 %v3342, %v3341
        %v3353 = vpack.c.b16 %v3344, %v3343
        %v3354 = vpack.c.b16 %v3346, %v3345
        %3363 = vmatprep.subr.bf16.mxu0 0
        %3364 = vmatpush1.bf16.msra.mxu0 %v3347
        %3365 = vmatprep.subr.bf16.mxu0 0
        %3366 = vmatpush1.bf16.msra.mxu0 %v3348
        %3367 = vmatprep.subr.bf16.mxu0 0
        %3368 = vmatpush1.bf16.msra.mxu0 %v3349
        %3369 = vmatprep.subr.bf16.mxu0 0
        %3370 = vmatpush1.bf16.msra.mxu0 %v3350
        %3371 = vmatprep.subr.bf16.mxu0 0
        %3372 = vmatpush1.bf16.msra.mxu0 %v3351
        %3373 = vmatprep.subr.bf16.mxu0 0
        %3374 = vmatpush1.bf16.msra.mxu0 %v3352
        %3375 = vmatprep.subr.bf16.mxu0 0
        %3376 = vmatpush1.bf16.msra.mxu0 %v3353
        %3377 = vmatprep.subr.bf16.mxu0 0
        %3378 = vmatpush1.bf16.msra.mxu0 %v3354
        %3379 = vmatprep.subr.bf16.mxu0 0
        %3380 = vmatpush1.bf16.msra.mxu0 0
        %3381 = vmatprep.subr.bf16.mxu0 0
        %3382 = vmatpush1.bf16.msra.mxu0 0
        %3383 = vmatprep.subr.bf16.mxu0 0
        %3384 = vmatpush1.bf16.msra.mxu0 0
        %3385 = vmatprep.subr.bf16.mxu0 0
        %3386 = vmatpush1.bf16.msra.mxu0 0
        %3387 = vmatprep.subr.bf16.mxu0 0
        %3388 = vmatpush1.bf16.msra.mxu0 0
        %3389 = vmatprep.subr.bf16.mxu0 0
        %3390 = vmatpush1.bf16.msra.mxu0 0
        %3391 = vmatprep.subr.bf16.mxu0 0
        %3392 = vmatpush1.bf16.msra.mxu0 0
        %3393 = vmatprep.subr.bf16.mxu0 0
        %3394 = vmatpush1.bf16.msra.mxu0 0
        %3395 = vmatprep.mubr.bf16.mxu0 0
        %3396 = vmatmul.mubr.bf16.gmra.mrb[0].mxu0 %v3307
        %v3397 = vpop.f32.mrb[0].mxu0
        %v3398 = vadd.f32 0.0, %v3397
        %v3399 = vpop.f32.mrb[0].mxu0
        %v3400 = vpop.f32.mrb[0].mxu0
        %v3401 = vadd.f32 0.0, %v3400
        %v3402 = vpop.f32.mrb[0].mxu0
        %3403 = vmatprep.mubr.bf16.mxu0 0
        %3404 = vmatmul.mubr.bf16.gmra.mrb[0].mxu0 %v3308
        %v3405 = vpop.f32.mrb[0].mxu0
        %v3406 = vadd.f32 0.0, %v3405
        %v3407 = vpop.f32.mrb[0].mxu0
        %v3408 = vpop.f32.mrb[0].mxu0
        %v3409 = vadd.f32 0.0, %v3408
        %v3410 = vpop.f32.mrb[0].mxu0
        %3411 = vmatprep.mubr.bf16.mxu0 0
        %3412 = vmatmul.mubr.bf16.gmra.mrb[0].mxu0 %v3309
        %v3413 = vpop.f32.mrb[0].mxu0
        %v3414 = vadd.f32 0.0, %v3413
        %v3415 = vpop.f32.mrb[0].mxu0
        %v3416 = vpop.f32.mrb[0].mxu0
        %v3417 = vadd.f32 0.0, %v3416
        %v3418 = vpop.f32.mrb[0].mxu0
        %3419 = vmatprep.mubr.bf16.mxu0 0
        %3420 = vmatmul.mubr.bf16.gmra.mrb[0].mxu0 %v3310
        %v3421 = vpop.f32.mrb[0].mxu0
        %v3422 = vadd.f32 0.0, %v3421
        %v3423 = vpop.f32.mrb[0].mxu0
        %v3424 = vpop.f32.mrb[0].mxu0
        %v3425 = vadd.f32 0.0, %v3424
        %v3426 = vpop.f32.mrb[0].mxu0
        %3427 = vmatprep.mubr.bf16.mxu0 0
        %3428 = vmatmul.mubr.bf16.gmra.mrb[0].mxu0 %v3311
        %v3429 = vpop.f32.mrb[0].mxu0
        %v3430 = vadd.f32 0.0, %v3429
        %v3431 = vpop.f32.mrb[0].mxu0
        %v3432 = vpop.f32.mrb[0].mxu0
        %v3433 = vadd.f32 0.0, %v3432
        %v3434 = vpop.f32.mrb[0].mxu0
        %3435 = vmatprep.mubr.bf16.mxu0 0
        %3436 = vmatmul.mubr.bf16.gmra.mrb[0].mxu0 %v3312
        %v3437 = vpop.f32.mrb[0].mxu0
        %v3438 = vadd.f32 0.0, %v3437
        %v3439 = vpop.f32.mrb[0].mxu0
        %v3440 = vpop.f32.mrb[0].mxu0
        %v3441 = vadd.f32 0.0, %v3440
        %v3442 = vpop.f32.mrb[0].mxu0
        %3443 = vmatprep.mubr.bf16.mxu0 0
        %3444 = vmatmul.mubr.bf16.gmra.mrb[0].mxu0 %v3313
        %v3445 = vpop.f32.mrb[0].mxu0
        %v3446 = vadd.f32 0.0, %v3445
        %v3447 = vpop.f32.mrb[0].mxu0
        %v3448 = vpop.f32.mrb[0].mxu0
        %v3449 = vadd.f32 0.0, %v3448
        %v3450 = vpop.f32.mrb[0].mxu0
        %3451 = vmatprep.mubr.bf16.mxu0 0
        %3452 = vmatmul.mubr.bf16.gmra.mrb[0].mxu0 %v3314
        %v3453 = vpop.f32.mrb[0].mxu0
        %v3454 = vadd.f32 0.0, %v3453
        %v3455 = vpop.f32.mrb[0].mxu0
        %v3456 = vpop.f32.mrb[0].mxu0
        %v3457 = vadd.f32 0.0, %v3456
        %v3458 = vpop.f32.mrb[0].mxu0
        %3459 = vdwg.mxu0
        %v3476 = vunpack.c.l.b16 %v2463
        %v3477 = vunpack.c.l.b16 %v2464
        %v3478 = vunpack.c.l.b16 %v2465
        %v3479 = vunpack.c.l.b16 %v2466
        %v3480 = vunpack.c.l.b16 %v2467
        %v3481 = vunpack.c.l.b16 %v2468
        %v3482 = vunpack.c.l.b16 %v2469
        %v3483 = vunpack.c.l.b16 %v2470
        %v3484 = vunpack.c.l.b16 %v2471
        %v3485 = vunpack.c.l.b16 %v2472
        %v3486 = vunpack.c.l.b16 %v2473
        %v3487 = vunpack.c.l.b16 %v2474
        %v3488 = vunpack.c.l.b16 %v2475
        %v3489 = vunpack.c.l.b16 %v2476
        %v3490 = vunpack.c.l.b16 %v2477
        %v3491 = vunpack.c.l.b16 %v2478
        %v3492 = vpack.c.b16 %v3477, %v3476
        %v3493 = vpack.c.b16 %v3479, %v3478
        %v3494 = vpack.c.b16 %v3481, %v3480
        %v3495 = vpack.c.b16 %v3483, %v3482
        %v3496 = vpack.c.b16 %v3485, %v3484
        %v3497 = vpack.c.b16 %v3487, %v3486
        %v3498 = vpack.c.b16 %v3489, %v3488
        %v3499 = vpack.c.b16 %v3491, %v3490
        %3508 = vmatprep.subr.bf16.mxu0 0
        %3509 = vmatpush1.bf16.msra.mxu0 %v3492
        %3510 = vmatprep.subr.bf16.mxu0 0
        %3511 = vmatpush1.bf16.msra.mxu0 %v3493
        %3512 = vmatprep.subr.bf16.mxu0 0
        %3513 = vmatpush1.bf16.msra.mxu0 %v3494
        %3514 = vmatprep.subr.bf16.mxu0 0
        %3515 = vmatpush1.bf16.msra.mxu0 %v3495
        %3516 = vmatprep.subr.bf16.mxu0 0
        %3517 = vmatpush1.bf16.msra.mxu0 %v3496
        %3518 = vmatprep.subr.bf16.mxu0 0
        %3519 = vmatpush1.bf16.msra.mxu0 %v3497
        %3520 = vmatprep.subr.bf16.mxu0 0
        %3521 = vmatpush1.bf16.msra.mxu0 %v3498
        %3522 = vmatprep.subr.bf16.mxu0 0
        %3523 = vmatpush1.bf16.msra.mxu0 %v3499
        %3524 = vmatprep.subr.bf16.mxu0 0
        %3525 = vmatpush1.bf16.msra.mxu0 0
        %3526 = vmatprep.subr.bf16.mxu0 0
        %3527 = vmatpush1.bf16.msra.mxu0 0
        %3528 = vmatprep.subr.bf16.mxu0 0
        %3529 = vmatpush1.bf16.msra.mxu0 0
        %3530 = vmatprep.subr.bf16.mxu0 0
        %3531 = vmatpush1.bf16.msra.mxu0 0
        %3532 = vmatprep.subr.bf16.mxu0 0
        %3533 = vmatpush1.bf16.msra.mxu0 0
        %3534 = vmatprep.subr.bf16.mxu0 0
        %3535 = vmatpush1.bf16.msra.mxu0 0
        %3536 = vmatprep.subr.bf16.mxu0 0
        %3537 = vmatpush1.bf16.msra.mxu0 0
        %3538 = vmatprep.subr.bf16.mxu0 0
        %3539 = vmatpush1.bf16.msra.mxu0 0
        %3540 = vmatprep.mubr.bf16.mxu0 0
        %3541 = vmatmul.mubr.bf16.gmra.mrb[0].mxu0 %v2897
        %v3542 = vpop.f32.mrb[0].mxu0
        %v3543 = vadd.f32 %v3398, %v3542
        %v3544 = vpop.f32.mrb[0].mxu0
        %v3545 = vpop.f32.mrb[0].mxu0
        %v3546 = vadd.f32 %v3401, %v3545
        %v3547 = vpop.f32.mrb[0].mxu0
        %3548 = vmatprep.mubr.bf16.mxu0 0
        %3549 = vmatmul.mubr.bf16.gmra.mrb[0].mxu0 %v2898
        %v3550 = vpop.f32.mrb[0].mxu0
        %v3551 = vadd.f32 %v3406, %v3550
        %v3552 = vpop.f32.mrb[0].mxu0
        %v3553 = vpop.f32.mrb[0].mxu0
        %v3554 = vadd.f32 %v3409, %v3553
        %v3555 = vpop.f32.mrb[0].mxu0
        %3556 = vmatprep.mubr.bf16.mxu0 0
        %3557 = vmatmul.mubr.bf16.gmra.mrb[0].mxu0 %v2899
        %v3558 = vpop.f32.mrb[0].mxu0
        %v3559 = vadd.f32 %v3414, %v3558
        %v3560 = vpop.f32.mrb[0].mxu0
        %v3561 = vpop.f32.mrb[0].mxu0
        %v3562 = vadd.f32 %v3417, %v3561
        %v3563 = vpop.f32.mrb[0].mxu0
        %3564 = vmatprep.mubr.bf16.mxu0 0
        %3565 = vmatmul.mubr.bf16.gmra.mrb[0].mxu0 %v2900
        %v3566 = vpop.f32.mrb[0].mxu0
        %v3567 = vadd.f32 %v3422, %v3566
        %v3568 = vpop.f32.mrb[0].mxu0
        %v3569 = vpop.f32.mrb[0].mxu0
        %v3570 = vadd.f32 %v3425, %v3569
        %v3571 = vpop.f32.mrb[0].mxu0
        %3572 = vmatprep.mubr.bf16.mxu0 0
        %3573 = vmatmul.mubr.bf16.gmra.mrb[0].mxu0 %v2901
        %v3574 = vpop.f32.mrb[0].mxu0
        %v3575 = vadd.f32 %v3430, %v3574
        %v3576 = vpop.f32.mrb[0].mxu0
        %v3577 = vpop.f32.mrb[0].mxu0
        %v3578 = vadd.f32 %v3433, %v3577
        %v3579 = vpop.f32.mrb[0].mxu0
        %3580 = vmatprep.mubr.bf16.mxu0 0
        %3581 = vmatmul.mubr.bf16.gmra.mrb[0].mxu0 %v2902
        %v3582 = vpop.f32.mrb[0].mxu0
        %v3583 = vadd.f32 %v3438, %v3582
        %v3584 = vpop.f32.mrb[0].mxu0
        %v3585 = vpop.f32.mrb[0].mxu0
        %v3586 = vadd.f32 %v3441, %v3585
        %v3587 = vpop.f32.mrb[0].mxu0
        %3588 = vmatprep.mubr.bf16.mxu0 0
        %3589 = vmatmul.mubr.bf16.gmra.mrb[0].mxu0 %v2903
        %v3590 = vpop.f32.mrb[0].mxu0
        %v3591 = vadd.f32 %v3446, %v3590
        %v3592 = vpop.f32.mrb[0].mxu0
        %v3593 = vpop.f32.mrb[0].mxu0
        %v3594 = vadd.f32 %v3449, %v3593
        %v3595 = vpop.f32.mrb[0].mxu0
        %3596 = vmatprep.mubr.bf16.mxu0 0
        %3597 = vmatmul.mubr.bf16.gmra.mrb[0].mxu0 %v2904
        %v3598 = vpop.f32.mrb[0].mxu0
        %v3599 = vadd.f32 %v3454, %v3598
        %v3600 = vpop.f32.mrb[0].mxu0
        %v3601 = vpop.f32.mrb[0].mxu0
        %v3602 = vadd.f32 %v3457, %v3601
        %v3603 = vpop.f32.mrb[0].mxu0
        %3604 = vdwg.mxu0
        %v3605 = vld [vmem:[%s10] sm:$0x1]
        %v3607 = vlaneseq
        %v3608 = vshrl.u32 %v3607, 7
        %v3609 = vsub.s32 0, %v3608
        %v3610 = vrot.slane %v3605, %v3609
        %v3612 = vadd.f32 %v3543, %v3610
        %v3613 = vadd.f32 %v3546, %v3610
        %v3614 = vadd.f32 %v3551, %v3610
        %v3615 = vadd.f32 %v3554, %v3610
        %v3616 = vadd.f32 %v3559, %v3610
        %v3617 = vadd.f32 %v3562, %v3610
        %v3618 = vadd.f32 %v3567, %v3610
        %v3619 = vadd.f32 %v3570, %v3610
        %v3620 = vadd.f32 %v3575, %v3610
        %v3621 = vadd.f32 %v3578, %v3610
        %v3622 = vadd.f32 %v3583, %v3610
        %v3623 = vadd.f32 %v3586, %v3610
        %v3624 = vadd.f32 %v3591, %v3610
        %v3625 = vadd.f32 %v3594, %v3610
        %v3626 = vadd.f32 %v3599, %v3610
        %v3627 = vadd.f32 %v3602, %v3610
        %v3628 = vadd.f32 %v3612, %v1771
        %v3629 = vadd.f32 %v3613, %v1772
        %v3630 = vadd.f32 %v3614, %v1773
        %v3631 = vadd.f32 %v3615, %v1774
        %v3632 = vadd.f32 %v3616, %v1775
        %v3633 = vadd.f32 %v3617, %v1776
        %v3634 = vadd.f32 %v3618, %v1777
        %v3635 = vadd.f32 %v3619, %v1778
        %v3636 = vadd.f32 %v3620, %v1779
        %v3637 = vadd.f32 %v3621, %v1780
        %v3638 = vadd.f32 %v3622, %v1781
        %v3639 = vadd.f32 %v3623, %v1782
        %v3640 = vadd.f32 %v3624, %v1783
        %v3641 = vadd.f32 %v3625, %v1784
        %v3642 = vadd.f32 %v3626, %v1785
        %v3643 = vadd.f32 %v3627, %v1786
        %v3644 = vld [vmem:[%s11] sm:$0x1]
        %v3645 = vld [vmem:[#allocation9] sm:$0x1]
        %3646 = vadd.xlane.f32.xlu0 %v3628
        %v3647 = vpop.xlane.xlu0 %3646
        %3648 = vadd.xlane.f32.xlu0 %v3629
        %v3649 = vpop.xlane.xlu0 %3648
        %3650 = vadd.xlane.f32.xlu0 %v3630
        %v3651 = vpop.xlane.xlu0 %3650
        %3652 = vadd.xlane.f32.xlu0 %v3631
        %v3653 = vpop.xlane.xlu0 %3652
        %3654 = vadd.xlane.f32.xlu0 %v3632
        %v3655 = vpop.xlane.xlu0 %3654
        %3656 = vadd.xlane.f32.xlu0 %v3633
        %v3657 = vpop.xlane.xlu0 %3656
        %3658 = vadd.xlane.f32.xlu0 %v3634
        %v3659 = vpop.xlane.xlu0 %3658
        %3660 = vadd.xlane.f32.xlu0 %v3635
        %v3661 = vpop.xlane.xlu0 %3660
        %3662 = vadd.xlane.f32.xlu0 %v3636
        %v3663 = vpop.xlane.xlu0 %3662
        %3664 = vadd.xlane.f32.xlu0 %v3637
        %v3665 = vpop.xlane.xlu0 %3664
        %3666 = vadd.xlane.f32.xlu0 %v3638
        %v3667 = vpop.xlane.xlu0 %3666
        %3668 = vadd.xlane.f32.xlu0 %v3639
        %v3669 = vpop.xlane.xlu0 %3668
        %3670 = vadd.xlane.f32.xlu0 %v3640
        %v3671 = vpop.xlane.xlu0 %3670
        %3672 = vadd.xlane.f32.xlu0 %v3641
        %v3673 = vpop.xlane.xlu0 %3672
        %3674 = vadd.xlane.f32.xlu0 %v3642
        %v3675 = vpop.xlane.xlu0 %3674
        %3676 = vadd.xlane.f32.xlu0 %v3643
        %v3677 = vpop.xlane.xlu0 %3676
        %v3678 = vmul.f32 %v3647, %v1598
        %v3679 = vmul.f32 %v3649, %v1598
        %v3680 = vmul.f32 %v3651, %v1598
        %v3681 = vmul.f32 %v3653, %v1598
        %v3682 = vmul.f32 %v3655, %v1598
        %v3683 = vmul.f32 %v3657, %v1598
        %v3684 = vmul.f32 %v3659, %v1598
        %v3685 = vmul.f32 %v3661, %v1598
        %v3686 = vmul.f32 %v3663, %v1598
        %v3687 = vmul.f32 %v3665, %v1598
        %v3688 = vmul.f32 %v3667, %v1598
        %v3689 = vmul.f32 %v3669, %v1598
        %v3690 = vmul.f32 %v3671, %v1598
        %v3691 = vmul.f32 %v3673, %v1598
        %v3692 = vmul.f32 %v3675, %v1598
        %v3693 = vmul.f32 %v3677, %v1598
        %v3694 = vsub.f32 %v3628, %v3678
        %v3695 = vsub.f32 %v3629, %v3679
        %v3696 = vsub.f32 %v3630, %v3680
        %v3697 = vsub.f32 %v3631, %v3681
        %v3698 = vsub.f32 %v3632, %v3682
        %v3699 = vsub.f32 %v3633, %v3683
        %v3700 = vsub.f32 %v3634, %v3684
        %v3701 = vsub.f32 %v3635, %v3685
        %v3702 = vsub.f32 %v3636, %v3686
        %v3703 = vsub.f32 %v3637, %v3687
        %v3704 = vsub.f32 %v3638, %v3688
        %v3705 = vsub.f32 %v3639, %v3689
        %v3706 = vsub.f32 %v3640, %v3690
        %v3707 = vsub.f32 %v3641, %v3691
        %v3708 = vsub.f32 %v3642, %v3692
        %v3709 = vsub.f32 %v3643, %v3693
        %v3710 = vmul.f32 %v3694, %v3694
        %v3711 = vmul.f32 %v3695, %v3695
        %v3712 = vmul.f32 %v3696, %v3696
        %v3713 = vmul.f32 %v3697, %v3697
        %v3714 = vmul.f32 %v3698, %v3698
        %v3715 = vmul.f32 %v3699, %v3699
        %v3716 = vmul.f32 %v3700, %v3700
        %v3717 = vmul.f32 %v3701, %v3701
        %v3718 = vmul.f32 %v3702, %v3702
        %v3719 = vmul.f32 %v3703, %v3703
        %v3720 = vmul.f32 %v3704, %v3704
        %v3721 = vmul.f32 %v3705, %v3705
        %v3722 = vmul.f32 %v3706, %v3706
        %v3723 = vmul.f32 %v3707, %v3707
        %v3724 = vmul.f32 %v3708, %v3708
        %v3725 = vmul.f32 %v3709, %v3709
        %3726 = vadd.xlane.f32.xlu0 %v3710
        %v3727 = vpop.xlane.xlu0 %3726
        %3728 = vadd.xlane.f32.xlu0 %v3711
        %v3729 = vpop.xlane.xlu0 %3728
        %3730 = vadd.xlane.f32.xlu0 %v3712
        %v3731 = vpop.xlane.xlu0 %3730
        %3732 = vadd.xlane.f32.xlu0 %v3713
        %v3733 = vpop.xlane.xlu0 %3732
        %3734 = vadd.xlane.f32.xlu0 %v3714
        %v3735 = vpop.xlane.xlu0 %3734
        %3736 = vadd.xlane.f32.xlu0 %v3715
        %v3737 = vpop.xlane.xlu0 %3736
        %3738 = vadd.xlane.f32.xlu0 %v3716
        %v3739 = vpop.xlane.xlu0 %3738
        %3740 = vadd.xlane.f32.xlu0 %v3717
        %v3741 = vpop.xlane.xlu0 %3740
        %3742 = vadd.xlane.f32.xlu0 %v3718
        %v3743 = vpop.xlane.xlu0 %3742
        %3744 = vadd.xlane.f32.xlu0 %v3719
        %v3745 = vpop.xlane.xlu0 %3744
        %3746 = vadd.xlane.f32.xlu0 %v3720
        %v3747 = vpop.xlane.xlu0 %3746
        %3748 = vadd.xlane.f32.xlu0 %v3721
        %v3749 = vpop.xlane.xlu0 %3748
        %3750 = vadd.xlane.f32.xlu0 %v3722
        %v3751 = vpop.xlane.xlu0 %3750
        %3752 = vadd.xlane.f32.xlu0 %v3723
        %v3753 = vpop.xlane.xlu0 %3752
        %3754 = vadd.xlane.f32.xlu0 %v3724
        %v3755 = vpop.xlane.xlu0 %3754
        %3756 = vadd.xlane.f32.xlu0 %v3725
        %v3757 = vpop.xlane.xlu0 %3756
        %v3758 = vmul.f32 %v3727, %v1598
        %v3759 = vmul.f32 %v3729, %v1598
        %v3760 = vmul.f32 %v3731, %v1598
        %v3761 = vmul.f32 %v3733, %v1598
        %v3762 = vmul.f32 %v3735, %v1598
        %v3763 = vmul.f32 %v3737, %v1598
        %v3764 = vmul.f32 %v3739, %v1598
        %v3765 = vmul.f32 %v3741, %v1598
        %v3766 = vmul.f32 %v3743, %v1598
        %v3767 = vmul.f32 %v3745, %v1598
        %v3768 = vmul.f32 %v3747, %v1598
        %v3769 = vmul.f32 %v3749, %v1598
        %v3770 = vmul.f32 %v3751, %v1598
        %v3771 = vmul.f32 %v3753, %v1598
        %v3772 = vmul.f32 %v3755, %v1598
        %v3773 = vmul.f32 %v3757, %v1598
        %v3774 = vadd.f32 %v3758, 1e-12
        %v3775 = vadd.f32 %v3759, 1e-12
        %v3776 = vadd.f32 %v3760, 1e-12
        %v3777 = vadd.f32 %v3761, 1e-12
        %v3778 = vadd.f32 %v3762, 1e-12
        %v3779 = vadd.f32 %v3763, 1e-12
        %v3780 = vadd.f32 %v3764, 1e-12
        %v3781 = vadd.f32 %v3765, 1e-12
        %v3782 = vadd.f32 %v3766, 1e-12
        %v3783 = vadd.f32 %v3767, 1e-12
        %v3784 = vadd.f32 %v3768, 1e-12
        %v3785 = vadd.f32 %v3769, 1e-12
        %v3786 = vadd.f32 %v3770, 1e-12
        %v3787 = vadd.f32 %v3771, 1e-12
        %v3788 = vadd.f32 %v3772, 1e-12
        %v3789 = vadd.f32 %v3773, 1e-12
        %v3790 = vrsqrt.pop %v3774
        %v3791 = vrsqrt.pop %v3775
        %v3792 = vrsqrt.pop %v3776
        %v3793 = vrsqrt.pop %v3777
        %v3794 = vrsqrt.pop %v3778
        %v3795 = vrsqrt.pop %v3779
        %v3796 = vrsqrt.pop %v3780
        %v3797 = vrsqrt.pop %v3781
        %v3798 = vrsqrt.pop %v3782
        %v3799 = vrsqrt.pop %v3783
        %v3800 = vrsqrt.pop %v3784
        %v3801 = vrsqrt.pop %v3785
        %v3802 = vrsqrt.pop %v3786
        %v3803 = vrsqrt.pop %v3787
        %v3804 = vrsqrt.pop %v3788
        %v3805 = vrsqrt.pop %v3789
        %v3806 = vmul.f32 %v3694, %v3790
        %v3807 = vmul.f32 %v3695, %v3791
        %v3808 = vmul.f32 %v3696, %v3792
        %v3809 = vmul.f32 %v3697, %v3793
        %v3810 = vmul.f32 %v3698, %v3794
        %v3811 = vmul.f32 %v3699, %v3795
        %v3812 = vmul.f32 %v3700, %v3796
        %v3813 = vmul.f32 %v3701, %v3797
        %v3814 = vmul.f32 %v3702, %v3798
        %v3815 = vmul.f32 %v3703, %v3799
        %v3816 = vmul.f32 %v3704, %v3800
        %v3817 = vmul.f32 %v3705, %v3801
        %v3818 = vmul.f32 %v3706, %v3802
        %v3819 = vmul.f32 %v3707, %v3803
        %v3820 = vmul.f32 %v3708, %v3804
        %v3821 = vmul.f32 %v3709, %v3805
        %v3823 = vlaneseq
        %v3824 = vshrl.u32 %v3823, 7
        %v3825 = vsub.s32 0, %v3824
        %v3826 = vrot.slane %v3644, %v3825
        %v3828 = vmul.f32 %v3806, %v3826
        %v3829 = vmul.f32 %v3807, %v3826
        %v3830 = vmul.f32 %v3808, %v3826
        %v3831 = vmul.f32 %v3809, %v3826
        %v3832 = vmul.f32 %v3810, %v3826
        %v3833 = vmul.f32 %v3811, %v3826
        %v3834 = vmul.f32 %v3812, %v3826
        %v3835 = vmul.f32 %v3813, %v3826
        %v3836 = vmul.f32 %v3814, %v3826
        %v3837 = vmul.f32 %v3815, %v3826
        %v3838 = vmul.f32 %v3816, %v3826
        %v3839 = vmul.f32 %v3817, %v3826
        %v3840 = vmul.f32 %v3818, %v3826
        %v3841 = vmul.f32 %v3819, %v3826
        %v3842 = vmul.f32 %v3820, %v3826
        %v3843 = vmul.f32 %v3821, %v3826
        %v3845 = vlaneseq
        %v3846 = vshrl.u32 %v3845, 7
        %v3847 = vsub.s32 0, %v3846
        %v3848 = vrot.slane %v3645, %v3847
        %v3850 = vadd.f32 %v3828, %v3848
        %v3851 = vadd.f32 %v3829, %v3848
        %v3852 = vadd.f32 %v3830, %v3848
        %v3853 = vadd.f32 %v3831, %v3848
        %v3854 = vadd.f32 %v3832, %v3848
        %v3855 = vadd.f32 %v3833, %v3848
        %v3856 = vadd.f32 %v3834, %v3848
        %v3857 = vadd.f32 %v3835, %v3848
        %v3858 = vadd.f32 %v3836, %v3848
        %v3859 = vadd.f32 %v3837, %v3848
        %v3860 = vadd.f32 %v3838, %v3848
        %v3861 = vadd.f32 %v3839, %v3848
        %v3862 = vadd.f32 %v3840, %v3848
        %v3863 = vadd.f32 %v3841, %v3848
        %v3864 = vadd.f32 %v3842, %v3848
        %v3865 = vadd.f32 %v3843, %v3848
        %v3866 = vpack.c.bf16 %v3851, %v3850
        %v3867 = vpack.c.bf16 %v3853, %v3852
        %v3868 = vpack.c.bf16 %v3855, %v3854
        %v3869 = vpack.c.bf16 %v3857, %v3856
        %v3870 = vpack.c.bf16 %v3859, %v3858
        %v3871 = vpack.c.bf16 %v3861, %v3860
        %v3872 = vpack.c.bf16 %v3863, %v3862
        %v3873 = vpack.c.bf16 %v3865, %v3864
        %v3874 = vld [vmem:[#allocation10] sm:$0xff]
        %v3875 = vld [vmem:[#allocation10 + $0x8] sm:$0xff]
        %v3876 = vld [vmem:[#allocation10 + $0x10] sm:$0xff]
        %v3877 = vld [vmem:[#allocation10 + $0x18] sm:$0xff]
        %v3878 = vld [vmem:[#allocation10 + $0x20] sm:$0xff]
        %v3879 = vld [vmem:[#allocation10 + $0x28] sm:$0xff]
        %v3880 = vld [vmem:[#allocation10 + $0x30] sm:$0xff]
        %v3881 = vld [vmem:[#allocation10 + $0x38] sm:$0xff]
        %v3882 = vld [vmem:[#allocation10 + $0x40] sm:$0xff]
        %v3883 = vld [vmem:[#allocation10 + $0x48] sm:$0xff]
        %v3884 = vld [vmem:[#allocation10 + $0x50] sm:$0xff]
        %v3885 = vld [vmem:[#allocation10 + $0x58] sm:$0xff]
        %v3886 = vld [vmem:[#allocation10 + $0x60] sm:$0xff]
        %v3887 = vld [vmem:[#allocation10 + $0x68] sm:$0xff]
        %v3888 = vld [vmem:[#allocation10 + $0x70] sm:$0xff]
        %v3889 = vld [vmem:[#allocation10 + $0x78] sm:$0xff]
        %v3890 = vld [vmem:[#allocation10 + $0x80] sm:$0xff]
        %v3891 = vld [vmem:[#allocation10 + $0x88] sm:$0xff]
        %v3892 = vld [vmem:[#allocation10 + $0x90] sm:$0xff]
        %v3893 = vld [vmem:[#allocation10 + $0x98] sm:$0xff]
        %v3894 = vld [vmem:[#allocation10 + $0xa0] sm:$0xff]
        %v3895 = vld [vmem:[#allocation10 + $0xa8] sm:$0xff]
        %v3896 = vld [vmem:[#allocation10 + $0xb0] sm:$0xff]
        %v3897 = vld [vmem:[#allocation10 + $0xb8] sm:$0xff]
        %v3898 = vld [vmem:[#allocation10 + $0xc0] sm:$0xff]
        %v3899 = vld [vmem:[#allocation10 + $0xc8] sm:$0xff]
        %v3900 = vld [vmem:[#allocation10 + $0xd0] sm:$0xff]
        %v3901 = vld [vmem:[#allocation10 + $0xd8] sm:$0xff]
        %v3902 = vld [vmem:[#allocation10 + $0xe0] sm:$0xff]
        %v3903 = vld [vmem:[#allocation10 + $0xe8] sm:$0xff]
        %v3904 = vld [vmem:[#allocation10 + $0xf0] sm:$0xff]
        %v3905 = vld [vmem:[#allocation10 + $0xf8] sm:$0xff]
        %v3906 = vld [vmem:[#allocation12] sm:$0xf]
        %v3908 = vlaneseq
        %v3909 = vshrl.u32 %v3908, 7
        %v3910 = vsub.s32 0, %v3909
        %v3911 = vrot.slane %v3906, %v3910
        %v3912 = vlaneseq
        %v3913 = vshrl.u32 %v3912, 7
        %v3914 = vsub.s32 1, %v3913
        %v3915 = vrot.slane %v3906, %v3914
        %v3916 = vlaneseq
        %v3917 = vshrl.u32 %v3916, 7
        %v3918 = vsub.s32 2, %v3917
        %v3919 = vrot.slane %v3906, %v3918
        %v3920 = vlaneseq
        %v3921 = vshrl.u32 %v3920, 7
        %v3922 = vsub.s32 3, %v3921
        %v3923 = vrot.slane %v3906, %v3922
        %v3960 = vunpack.c.l.b16 %v3874
        %v3961 = vunpack.c.h.b16 %v3874
        %v3962 = vunpack.c.l.b16 %v3875
        %v3963 = vunpack.c.h.b16 %v3875
        %v3964 = vunpack.c.l.b16 %v3876
        %v3965 = vunpack.c.h.b16 %v3876
        %v3966 = vunpack.c.l.b16 %v3877
        %v3967 = vunpack.c.h.b16 %v3877
        %v3968 = vunpack.c.l.b16 %v3878
        %v3969 = vunpack.c.h.b16 %v3878
        %v3970 = vunpack.c.l.b16 %v3879
        %v3971 = vunpack.c.h.b16 %v3879
        %v3972 = vunpack.c.l.b16 %v3880
        %v3973 = vunpack.c.h.b16 %v3880
        %v3974 = vunpack.c.l.b16 %v3881
        %v3975 = vunpack.c.h.b16 %v3881
        %v3976 = vunpack.c.l.b16 %v3882
        %v3977 = vunpack.c.h.b16 %v3882
        %v3978 = vunpack.c.l.b16 %v3883
        %v3979 = vunpack.c.h.b16 %v3883
        %v3980 = vunpack.c.l.b16 %v3884
        %v3981 = vunpack.c.h.b16 %v3884
        %v3982 = vunpack.c.l.b16 %v3885
        %v3983 = vunpack.c.h.b16 %v3885
        %v3984 = vunpack.c.l.b16 %v3886
        %v3985 = vunpack.c.h.b16 %v3886
        %v3986 = vunpack.c.l.b16 %v3887
        %v3987 = vunpack.c.h.b16 %v3887
        %v3988 = vunpack.c.l.b16 %v3888
        %v3989 = vunpack.c.h.b16 %v3888
        %v3990 = vunpack.c.l.b16 %v3889
        %v3991 = vunpack.c.h.b16 %v3889
        %v3992 = vunpack.c.l.b16 %v3890
        %v3993 = vunpack.c.h.b16 %v3890
        %v3994 = vunpack.c.l.b16 %v3891
        %v3995 = vunpack.c.h.b16 %v3891
        %v3996 = vunpack.c.l.b16 %v3892
        %v3997 = vunpack.c.h.b16 %v3892
        %v3998 = vunpack.c.l.b16 %v3893
        %v3999 = vunpack.c.h.b16 %v3893
        %v4000 = vunpack.c.l.b16 %v3894
        %v4001 = vunpack.c.h.b16 %v3894
        %v4002 = vunpack.c.l.b16 %v3895
        %v4003 = vunpack.c.h.b16 %v3895
        %v4004 = vunpack.c.l.b16 %v3896
        %v4005 = vunpack.c.h.b16 %v3896
        %v4006 = vunpack.c.l.b16 %v3897
        %v4007 = vunpack.c.h.b16 %v3897
        %v4008 = vunpack.c.l.b16 %v3898
        %v4009 = vunpack.c.h.b16 %v3898
        %v4010 = vunpack.c.l.b16 %v3899
        %v4011 = vunpack.c.h.b16 %v3899
        %v4012 = vunpack.c.l.b16 %v3900
        %v4013 = vunpack.c.h.b16 %v3900
        %v4014 = vunpack.c.l.b16 %v3901
        %v4015 = vunpack.c.h.b16 %v3901
        %v4016 = vunpack.c.l.b16 %v3902
        %v4017 = vunpack.c.h.b16 %v3902
        %v4018 = vunpack.c.l.b16 %v3903
        %v4019 = vunpack.c.h.b16 %v3903
        %v4020 = vunpack.c.l.b16 %v3904
        %v4021 = vunpack.c.h.b16 %v3904
        %v4022 = vunpack.c.l.b16 %v3905
        %v4023 = vunpack.c.h.b16 %v3905
        %v4024 = vpack.c.b16 %v3964, %v3960
        %v4025 = vpack.c.b16 %v3965, %v3961
        %v4026 = vpack.c.b16 %v3966, %v3962
        %v4027 = vpack.c.b16 %v3967, %v3963
        %v4028 = vpack.c.b16 %v3972, %v3968
        %v4029 = vpack.c.b16 %v3973, %v3969
        %v4030 = vpack.c.b16 %v3974, %v3970
        %v4031 = vpack.c.b16 %v3975, %v3971
        %v4032 = vpack.c.b16 %v3980, %v3976
        %v4033 = vpack.c.b16 %v3981, %v3977
        %v4034 = vpack.c.b16 %v3982, %v3978
        %v4035 = vpack.c.b16 %v3983, %v3979
        %v4036 = vpack.c.b16 %v3988, %v3984
        %v4037 = vpack.c.b16 %v3989, %v3985
        %v4038 = vpack.c.b16 %v3990, %v3986
        %v4039 = vpack.c.b16 %v3991, %v3987
        %v4040 = vpack.c.b16 %v3996, %v3992
        %v4041 = vpack.c.b16 %v3997, %v3993
        %v4042 = vpack.c.b16 %v3998, %v3994
        %v4043 = vpack.c.b16 %v3999, %v3995
        %v4044 = vpack.c.b16 %v4004, %v4000
        %v4045 = vpack.c.b16 %v4005, %v4001
        %v4046 = vpack.c.b16 %v4006, %v4002
        %v4047 = vpack.c.b16 %v4007, %v4003
        %v4048 = vpack.c.b16 %v4012, %v4008
        %v4049 = vpack.c.b16 %v4013, %v4009
        %v4050 = vpack.c.b16 %v4014, %v4010
        %v4051 = vpack.c.b16 %v4015, %v4011
        %v4052 = vpack.c.b16 %v4020, %v4016
        %v4053 = vpack.c.b16 %v4021, %v4017
        %v4054 = vpack.c.b16 %v4022, %v4018
        %v4055 = vpack.c.b16 %v4023, %v4019
        %4088 = vmatprep.subr.bf16.mxu0 %v4025
        %4089 = vmatpush1.bf16.msra.mxu0 %v4024
        %4090 = vmatprep.subr.bf16.mxu0 %v4029
        %4091 = vmatpush1.bf16.msra.mxu0 %v4028
        %4092 = vmatprep.subr.bf16.mxu0 %v4033
        %4093 = vmatpush1.bf16.msra.mxu0 %v4032
        %4094 = vmatprep.subr.bf16.mxu0 %v4037
        %4095 = vmatpush1.bf16.msra.mxu0 %v4036
        %4096 = vmatprep.subr.bf16.mxu0 %v4041
        %4097 = vmatpush1.bf16.msra.mxu0 %v4040
        %4098 = vmatprep.subr.bf16.mxu0 %v4045
        %4099 = vmatpush1.bf16.msra.mxu0 %v4044
        %4100 = vmatprep.subr.bf16.mxu0 %v4049
        %4101 = vmatpush1.bf16.msra.mxu0 %v4048
        %4102 = vmatprep.subr.bf16.mxu0 %v4053
        %4103 = vmatpush1.bf16.msra.mxu0 %v4052
        %4104 = vmatprep.subr.bf16.mxu0 0
        %4105 = vmatpush1.bf16.msra.mxu0 0
        %4106 = vmatprep.subr.bf16.mxu0 0
        %4107 = vmatpush1.bf16.msra.mxu0 0
        %4108 = vmatprep.subr.bf16.mxu0 0
        %4109 = vmatpush1.bf16.msra.mxu0 0
        %4110 = vmatprep.subr.bf16.mxu0 0
        %4111 = vmatpush1.bf16.msra.mxu0 0
        %4112 = vmatprep.subr.bf16.mxu0 0
        %4113 = vmatpush1.bf16.msra.mxu0 0
        %4114 = vmatprep.subr.bf16.mxu0 0
        %4115 = vmatpush1.bf16.msra.mxu0 0
        %4116 = vmatprep.subr.bf16.mxu0 0
        %4117 = vmatpush1.bf16.msra.mxu0 0
        %4118 = vmatprep.subr.bf16.mxu0 0
        %4119 = vmatpush1.bf16.msra.mxu0 0
        %4120 = vmatprep.mubr.bf16.mxu0 0
        %4121 = vmatmul.mubr.bf16.gmra.mrb[0].mxu0 %v3866
        %v4122 = vpop.f32.mrb[0].mxu0
        %v4123 = vadd.f32 %v3911, %v4122
        %v4124 = vpop.f32.mrb[0].mxu0
        %v4125 = vadd.f32 %v3915, %v4124
        %v4126 = vpop.f32.mrb[0].mxu0
        %v4127 = vadd.f32 %v3911, %v4126
        %v4128 = vpop.f32.mrb[0].mxu0
        %v4129 = vadd.f32 %v3915, %v4128
        %4130 = vmatprep.mubr.bf16.mxu0 0
        %4131 = vmatmul.mubr.bf16.gmra.mrb[0].mxu0 %v3867
        %v4132 = vpop.f32.mrb[0].mxu0
        %v4133 = vadd.f32 %v3911, %v4132
        %v4134 = vpop.f32.mrb[0].mxu0
        %v4135 = vadd.f32 %v3915, %v4134
        %v4136 = vpop.f32.mrb[0].mxu0
        %v4137 = vadd.f32 %v3911, %v4136
        %v4138 = vpop.f32.mrb[0].mxu0
        %v4139 = vadd.f32 %v3915, %v4138
        %4140 = vmatprep.mubr.bf16.mxu0 0
        %4141 = vmatmul.mubr.bf16.gmra.mrb[0].mxu0 %v3868
        %v4142 = vpop.f32.mrb[0].mxu0
        %v4143 = vadd.f32 %v3911, %v4142
        %v4144 = vpop.f32.mrb[0].mxu0
        %v4145 = vadd.f32 %v3915, %v4144
        %v4146 = vpop.f32.mrb[0].mxu0
        %v4147 = vadd.f32 %v3911, %v4146
        %v4148 = vpop.f32.mrb[0].mxu0
        %v4149 = vadd.f32 %v3915, %v4148
        %4150 = vmatprep.mubr.bf16.mxu0 0
        %4151 = vmatmul.mubr.bf16.gmra.mrb[0].mxu0 %v3869
        %v4152 = vpop.f32.mrb[0].mxu0
        %v4153 = vadd.f32 %v3911, %v4152
        %v4154 = vpop.f32.mrb[0].mxu0
        %v4155 = vadd.f32 %v3915, %v4154
        %v4156 = vpop.f32.mrb[0].mxu0
        %v4157 = vadd.f32 %v3911, %v4156
        %v4158 = vpop.f32.mrb[0].mxu0
        %v4159 = vadd.f32 %v3915, %v4158
        %4160 = vmatprep.mubr.bf16.mxu0 0
        %4161 = vmatmul.mubr.bf16.gmra.mrb[0].mxu0 %v3870
        %v4162 = vpop.f32.mrb[0].mxu0
        %v4163 = vadd.f32 %v3911, %v4162
        %v4164 = vpop.f32.mrb[0].mxu0
        %v4165 = vadd.f32 %v3915, %v4164
        %v4166 = vpop.f32.mrb[0].mxu0
        %v4167 = vadd.f32 %v3911, %v4166
        %v4168 = vpop.f32.mrb[0].mxu0
        %v4169 = vadd.f32 %v3915, %v4168
        %4170 = vmatprep.mubr.bf16.mxu0 0
        %4171 = vmatmul.mubr.bf16.gmra.mrb[0].mxu0 %v3871
        %v4172 = vpop.f32.mrb[0].mxu0
        %v4173 = vadd.f32 %v3911, %v4172
        %v4174 = vpop.f32.mrb[0].mxu0
        %v4175 = vadd.f32 %v3915, %v4174
        %v4176 = vpop.f32.mrb[0].mxu0
        %v4177 = vadd.f32 %v3911, %v4176
        %v4178 = vpop.f32.mrb[0].mxu0
        %v4179 = vadd.f32 %v3915, %v4178
        %4180 = vmatprep.mubr.bf16.mxu0 0
        %4181 = vmatmul.mubr.bf16.gmra.mrb[0].mxu0 %v3872
        %v4182 = vpop.f32.mrb[0].mxu0
        %v4183 = vadd.f32 %v3911, %v4182
        %v4184 = vpop.f32.mrb[0].mxu0
        %v4185 = vadd.f32 %v3915, %v4184
        %v4186 = vpop.f32.mrb[0].mxu0
        %v4187 = vadd.f32 %v3911, %v4186
        %v4188 = vpop.f32.mrb[0].mxu0
        %v4189 = vadd.f32 %v3915, %v4188
        %4190 = vmatprep.mubr.bf16.mxu0 0
        %4191 = vmatmul.mubr.bf16.gmra.mrb[0].mxu0 %v3873
        %v4192 = vpop.f32.mrb[0].mxu0
        %v4193 = vadd.f32 %v3911, %v4192
        %v4194 = vpop.f32.mrb[0].mxu0
        %v4195 = vadd.f32 %v3915, %v4194
        %v4196 = vpop.f32.mrb[0].mxu0
        %v4197 = vadd.f32 %v3911, %v4196
        %v4198 = vpop.f32.mrb[0].mxu0
        %v4199 = vadd.f32 %v3915, %v4198
        %4200 = vdwg.mxu0
        %4201 = vmatprep.subr.bf16.mxu0 %v4027
        %4202 = vmatpush1.bf16.msra.mxu0 %v4026
        %4203 = vmatprep.subr.bf16.mxu0 %v4031
        %4204 = vmatpush1.bf16.msra.mxu0 %v4030
        %4205 = vmatprep.subr.bf16.mxu0 %v4035
        %4206 = vmatpush1.bf16.msra.mxu0 %v4034
        %4207 = vmatprep.subr.bf16.mxu0 %v4039
        %4208 = vmatpush1.bf16.msra.mxu0 %v4038
        %4209 = vmatprep.subr.bf16.mxu0 %v4043
        %4210 = vmatpush1.bf16.msra.mxu0 %v4042
        %4211 = vmatprep.subr.bf16.mxu0 %v4047
        %4212 = vmatpush1.bf16.msra.mxu0 %v4046
        %4213 = vmatprep.subr.bf16.mxu0 %v4051
        %4214 = vmatpush1.bf16.msra.mxu0 %v4050
        %4215 = vmatprep.subr.bf16.mxu0 %v4055
        %4216 = vmatpush1.bf16.msra.mxu0 %v4054
        %4217 = vmatprep.subr.bf16.mxu0 0
        %4218 = vmatpush1.bf16.msra.mxu0 0
        %4219 = vmatprep.subr.bf16.mxu0 0
        %4220 = vmatpush1.bf16.msra.mxu0 0
        %4221 = vmatprep.subr.bf16.mxu0 0
        %4222 = vmatpush1.bf16.msra.mxu0 0
        %4223 = vmatprep.subr.bf16.mxu0 0
        %4224 = vmatpush1.bf16.msra.mxu0 0
        %4225 = vmatprep.subr.bf16.mxu0 0
        %4226 = vmatpush1.bf16.msra.mxu0 0
        %4227 = vmatprep.subr.bf16.mxu0 0
        %4228 = vmatpush1.bf16.msra.mxu0 0
        %4229 = vmatprep.subr.bf16.mxu0 0
        %4230 = vmatpush1.bf16.msra.mxu0 0
        %4231 = vmatprep.subr.bf16.mxu0 0
        %4232 = vmatpush1.bf16.msra.mxu0 0
        %4233 = vmatprep.mubr.bf16.mxu0 0
        %4234 = vmatmul.mubr.bf16.gmra.mrb[0].mxu0 %v3866
        %v4235 = vpop.f32.mrb[0].mxu0
        %v4236 = vadd.f32 %v3919, %v4235
        %v4237 = vpop.f32.mrb[0].mxu0
        %v4238 = vadd.f32 %v3923, %v4237
        %v4239 = vpop.f32.mrb[0].mxu0
        %v4240 = vadd.f32 %v3919, %v4239
        %v4241 = vpop.f32.mrb[0].mxu0
        %v4242 = vadd.f32 %v3923, %v4241
        %4243 = vmatprep.mubr.bf16.mxu0 0
        %4244 = vmatmul.mubr.bf16.gmra.mrb[0].mxu0 %v3867
        %v4245 = vpop.f32.mrb[0].mxu0
        %v4246 = vadd.f32 %v3919, %v4245
        %v4247 = vpop.f32.mrb[0].mxu0
        %v4248 = vadd.f32 %v3923, %v4247
        %v4249 = vpop.f32.mrb[0].mxu0
        %v4250 = vadd.f32 %v3919, %v4249
        %v4251 = vpop.f32.mrb[0].mxu0
        %v4252 = vadd.f32 %v3923, %v4251
        %4253 = vmatprep.mubr.bf16.mxu0 0
        %4254 = vmatmul.mubr.bf16.gmra.mrb[0].mxu0 %v3868
        %v4255 = vpop.f32.mrb[0].mxu0
        %v4256 = vadd.f32 %v3919, %v4255
        %v4257 = vpop.f32.mrb[0].mxu0
        %v4258 = vadd.f32 %v3923, %v4257
        %v4259 = vpop.f32.mrb[0].mxu0
        %v4260 = vadd.f32 %v3919, %v4259
        %v4261 = vpop.f32.mrb[0].mxu0
        %v4262 = vadd.f32 %v3923, %v4261
        %4263 = vmatprep.mubr.bf16.mxu0 0
        %4264 = vmatmul.mubr.bf16.gmra.mrb[0].mxu0 %v3869
        %v4265 = vpop.f32.mrb[0].mxu0
        %v4266 = vadd.f32 %v3919, %v4265
        %v4267 = vpop.f32.mrb[0].mxu0
        %v4268 = vadd.f32 %v3923, %v4267
        %v4269 = vpop.f32.mrb[0].mxu0
        %v4270 = vadd.f32 %v3919, %v4269
        %v4271 = vpop.f32.mrb[0].mxu0
        %v4272 = vadd.f32 %v3923, %v4271
        %4273 = vmatprep.mubr.bf16.mxu0 0
        %4274 = vmatmul.mubr.bf16.gmra.mrb[0].mxu0 %v3870
        %v4275 = vpop.f32.mrb[0].mxu0
        %v4276 = vadd.f32 %v3919, %v4275
        %v4277 = vpop.f32.mrb[0].mxu0
        %v4278 = vadd.f32 %v3923, %v4277
        %v4279 = vpop.f32.mrb[0].mxu0
        %v4280 = vadd.f32 %v3919, %v4279
        %v4281 = vpop.f32.mrb[0].mxu0
        %v4282 = vadd.f32 %v3923, %v4281
        %4283 = vmatprep.mubr.bf16.mxu0 0
        %4284 = vmatmul.mubr.bf16.gmra.mrb[0].mxu0 %v3871
        %v4285 = vpop.f32.mrb[0].mxu0
        %v4286 = vadd.f32 %v3919, %v4285
        %v4287 = vpop.f32.mrb[0].mxu0
        %v4288 = vadd.f32 %v3923, %v4287
        %v4289 = vpop.f32.mrb[0].mxu0
        %v4290 = vadd.f32 %v3919, %v4289
        %v4291 = vpop.f32.mrb[0].mxu0
        %v4292 = vadd.f32 %v3923, %v4291
        %4293 = vmatprep.mubr.bf16.mxu0 0
        %4294 = vmatmul.mubr.bf16.gmra.mrb[0].mxu0 %v3872
        %v4295 = vpop.f32.mrb[0].mxu0
        %v4296 = vadd.f32 %v3919, %v4295
        %v4297 = vpop.f32.mrb[0].mxu0
        %v4298 = vadd.f32 %v3923, %v4297
        %v4299 = vpop.f32.mrb[0].mxu0
        %v4300 = vadd.f32 %v3919, %v4299
        %v4301 = vpop.f32.mrb[0].mxu0
        %v4302 = vadd.f32 %v3923, %v4301
        %4303 = vmatprep.mubr.bf16.mxu0 0
        %4304 = vmatmul.mubr.bf16.gmra.mrb[0].mxu0 %v3873
        %v4305 = vpop.f32.mrb[0].mxu0
        %v4306 = vadd.f32 %v3919, %v4305
        %v4307 = vpop.f32.mrb[0].mxu0
        %v4308 = vadd.f32 %v3923, %v4307
        %v4309 = vpop.f32.mrb[0].mxu0
        %v4310 = vadd.f32 %v3919, %v4309
        %v4311 = vpop.f32.mrb[0].mxu0
        %v4312 = vadd.f32 %v3923, %v4311
        %4313 = vdwg.mxu0
        %v4314 = vmul.f32 %v4123, %v4123
        %v4315 = vmul.f32 %v4125, %v4125
        %v4316 = vmul.f32 %v4236, %v4236
        %v4317 = vmul.f32 %v4238, %v4238
        %v4318 = vmul.f32 %v4127, %v4127
        %v4319 = vmul.f32 %v4129, %v4129
        %v4320 = vmul.f32 %v4240, %v4240
        %v4321 = vmul.f32 %v4242, %v4242
        %v4322 = vmul.f32 %v4133, %v4133
        %v4323 = vmul.f32 %v4135, %v4135
        %v4324 = vmul.f32 %v4246, %v4246
        %v4325 = vmul.f32 %v4248, %v4248
        %v4326 = vmul.f32 %v4137, %v4137
        %v4327 = vmul.f32 %v4139, %v4139
        %v4328 = vmul.f32 %v4250, %v4250
        %v4329 = vmul.f32 %v4252, %v4252
        %v4330 = vmul.f32 %v4143, %v4143
        %v4331 = vmul.f32 %v4145, %v4145
        %v4332 = vmul.f32 %v4256, %v4256
        %v4333 = vmul.f32 %v4258, %v4258
        %v4334 = vmul.f32 %v4147, %v4147
        %v4335 = vmul.f32 %v4149, %v4149
        %v4336 = vmul.f32 %v4260, %v4260
        %v4337 = vmul.f32 %v4262, %v4262
        %v4338 = vmul.f32 %v4153, %v4153
        %v4339 = vmul.f32 %v4155, %v4155
        %v4340 = vmul.f32 %v4266, %v4266
        %v4341 = vmul.f32 %v4268, %v4268
        %v4342 = vmul.f32 %v4157, %v4157
        %v4343 = vmul.f32 %v4159, %v4159
        %v4344 = vmul.f32 %v4270, %v4270
        %v4345 = vmul.f32 %v4272, %v4272
        %v4346 = vmul.f32 %v4163, %v4163
        %v4347 = vmul.f32 %v4165, %v4165
        %v4348 = vmul.f32 %v4276, %v4276
        %v4349 = vmul.f32 %v4278, %v4278
        %v4350 = vmul.f32 %v4167, %v4167
        %v4351 = vmul.f32 %v4169, %v4169
        %v4352 = vmul.f32 %v4280, %v4280
        %v4353 = vmul.f32 %v4282, %v4282
        %v4354 = vmul.f32 %v4173, %v4173
        %v4355 = vmul.f32 %v4175, %v4175
        %v4356 = vmul.f32 %v4286, %v4286
        %v4357 = vmul.f32 %v4288, %v4288
        %v4358 = vmul.f32 %v4177, %v4177
        %v4359 = vmul.f32 %v4179, %v4179
        %v4360 = vmul.f32 %v4290, %v4290
        %v4361 = vmul.f32 %v4292, %v4292
        %v4362 = vmul.f32 %v4183, %v4183
        %v4363 = vmul.f32 %v4185, %v4185
        %v4364 = vmul.f32 %v4296, %v4296
        %v4365 = vmul.f32 %v4298, %v4298
        %v4366 = vmul.f32 %v4187, %v4187
        %v4367 = vmul.f32 %v4189, %v4189
        %v4368 = vmul.f32 %v4300, %v4300
        %v4369 = vmul.f32 %v4302, %v4302
        %v4370 = vmul.f32 %v4193, %v4193
        %v4371 = vmul.f32 %v4195, %v4195
        %v4372 = vmul.f32 %v4306, %v4306
        %v4373 = vmul.f32 %v4308, %v4308
        %v4374 = vmul.f32 %v4197, %v4197
        %v4375 = vmul.f32 %v4199, %v4199
        %v4376 = vmul.f32 %v4310, %v4310
        %v4377 = vmul.f32 %v4312, %v4312
        %v4378 = vmul.f32 %v4123, %v4314
        %v4379 = vmul.f32 %v4125, %v4315
        %v4380 = vmul.f32 %v4236, %v4316
        %v4381 = vmul.f32 %v4238, %v4317
        %v4382 = vmul.f32 %v4127, %v4318
        %v4383 = vmul.f32 %v4129, %v4319
        %v4384 = vmul.f32 %v4240, %v4320
        %v4385 = vmul.f32 %v4242, %v4321
        %v4386 = vmul.f32 %v4133, %v4322
        %v4387 = vmul.f32 %v4135, %v4323
        %v4388 = vmul.f32 %v4246, %v4324
        %v4389 = vmul.f32 %v4248, %v4325
        %v4390 = vmul.f32 %v4137, %v4326
        %v4391 = vmul.f32 %v4139, %v4327
        %v4392 = vmul.f32 %v4250, %v4328
        %v4393 = vmul.f32 %v4252, %v4329
        %v4394 = vmul.f32 %v4143, %v4330
        %v4395 = vmul.f32 %v4145, %v4331
        %v4396 = vmul.f32 %v4256, %v4332
        %v4397 = vmul.f32 %v4258, %v4333
        %v4398 = vmul.f32 %v4147, %v4334
        %v4399 = vmul.f32 %v4149, %v4335
        %v4400 = vmul.f32 %v4260, %v4336
        %v4401 = vmul.f32 %v4262, %v4337
        %v4402 = vmul.f32 %v4153, %v4338
        %v4403 = vmul.f32 %v4155, %v4339
        %v4404 = vmul.f32 %v4266, %v4340
        %v4405 = vmul.f32 %v4268, %v4341
        %v4406 = vmul.f32 %v4157, %v4342
        %v4407 = vmul.f32 %v4159, %v4343
        %v4408 = vmul.f32 %v4270, %v4344
        %v4409 = vmul.f32 %v4272, %v4345
        %v4410 = vmul.f32 %v4163, %v4346
        %v4411 = vmul.f32 %v4165, %v4347
        %v4412 = vmul.f32 %v4276, %v4348
        %v4413 = vmul.f32 %v4278, %v4349
        %v4414 = vmul.f32 %v4167, %v4350
        %v4415 = vmul.f32 %v4169, %v4351
        %v4416 = vmul.f32 %v4280, %v4352
        %v4417 = vmul.f32 %v4282, %v4353
        %v4418 = vmul.f32 %v4173, %v4354
        %v4419 = vmul.f32 %v4175, %v4355
        %v4420 = vmul.f32 %v4286, %v4356
        %v4421 = vmul.f32 %v4288, %v4357
        %v4422 = vmul.f32 %v4177, %v4358
        %v4423 = vmul.f32 %v4179, %v4359
        %v4424 = vmul.f32 %v4290, %v4360
        %v4425 = vmul.f32 %v4292, %v4361
        %v4426 = vmul.f32 %v4183, %v4362
        %v4427 = vmul.f32 %v4185, %v4363
        %v4428 = vmul.f32 %v4296, %v4364
        %v4429 = vmul.f32 %v4298, %v4365
        %v4430 = vmul.f32 %v4187, %v4366
        %v4431 = vmul.f32 %v4189, %v4367
        %v4432 = vmul.f32 %v4300, %v4368
        %v4433 = vmul.f32 %v4302, %v4369
        %v4434 = vmul.f32 %v4193, %v4370
        %v4435 = vmul.f32 %v4195, %v4371
        %v4436 = vmul.f32 %v4306, %v4372
        %v4437 = vmul.f32 %v4308, %v4373
        %v4438 = vmul.f32 %v4197, %v4374
        %v4439 = vmul.f32 %v4199, %v4375
        %v4440 = vmul.f32 %v4310, %v4376
        %v4441 = vmul.f32 %v4312, %v4377
        %v4442 = vmul.f32 %v4378, 0.044715
        %v4443 = vmul.f32 %v4379, 0.044715
        %v4444 = vmul.f32 %v4380, 0.044715
        %v4445 = vmul.f32 %v4381, 0.044715
        %v4446 = vmul.f32 %v4382, 0.044715
        %v4447 = vmul.f32 %v4383, 0.044715
        %v4448 = vmul.f32 %v4384, 0.044715
        %v4449 = vmul.f32 %v4385, 0.044715
        %v4450 = vmul.f32 %v4386, 0.044715
        %v4451 = vmul.f32 %v4387, 0.044715
        %v4452 = vmul.f32 %v4388, 0.044715
        %v4453 = vmul.f32 %v4389, 0.044715
        %v4454 = vmul.f32 %v4390, 0.044715
        %v4455 = vmul.f32 %v4391, 0.044715
        %v4456 = vmul.f32 %v4392, 0.044715
        %v4457 = vmul.f32 %v4393, 0.044715
        %v4458 = vmul.f32 %v4394, 0.044715
        %v4459 = vmul.f32 %v4395, 0.044715
        %v4460 = vmul.f32 %v4396, 0.044715
        %v4461 = vmul.f32 %v4397, 0.044715
        %v4462 = vmul.f32 %v4398, 0.044715
        %v4463 = vmul.f32 %v4399, 0.044715
        %v4464 = vmul.f32 %v4400, 0.044715
        %v4465 = vmul.f32 %v4401, 0.044715
        %v4466 = vmul.f32 %v4402, 0.044715
        %v4467 = vmul.f32 %v4403, 0.044715
        %v4468 = vmul.f32 %v4404, 0.044715
        %v4469 = vmul.f32 %v4405, 0.044715
        %v4470 = vmul.f32 %v4406, 0.044715
        %v4471 = vmul.f32 %v4407, 0.044715
        %v4472 = vmul.f32 %v4408, 0.044715
        %v4473 = vmul.f32 %v4409, 0.044715
        %v4474 = vmul.f32 %v4410, 0.044715
        %v4475 = vmul.f32 %v4411, 0.044715
        %v4476 = vmul.f32 %v4412, 0.044715
        %v4477 = vmul.f32 %v4413, 0.044715
        %v4478 = vmul.f32 %v4414, 0.044715
        %v4479 = vmul.f32 %v4415, 0.044715
        %v4480 = vmul.f32 %v4416, 0.044715
        %v4481 = vmul.f32 %v4417, 0.044715
        %v4482 = vmul.f32 %v4418, 0.044715
        %v4483 = vmul.f32 %v4419, 0.044715
        %v4484 = vmul.f32 %v4420, 0.044715
        %v4485 = vmul.f32 %v4421, 0.044715
        %v4486 = vmul.f32 %v4422, 0.044715
        %v4487 = vmul.f32 %v4423, 0.044715
        %v4488 = vmul.f32 %v4424, 0.044715
        %v4489 = vmul.f32 %v4425, 0.044715
        %v4490 = vmul.f32 %v4426, 0.044715
        %v4491 = vmul.f32 %v4427, 0.044715
        %v4492 = vmul.f32 %v4428, 0.044715
        %v4493 = vmul.f32 %v4429, 0.044715
        %v4494 = vmul.f32 %v4430, 0.044715
        %v4495 = vmul.f32 %v4431, 0.044715
        %v4496 = vmul.f32 %v4432, 0.044715
        %v4497 = vmul.f32 %v4433, 0.044715
        %v4498 = vmul.f32 %v4434, 0.044715
        %v4499 = vmul.f32 %v4435, 0.044715
        %v4500 = vmul.f32 %v4436, 0.044715
        %v4501 = vmul.f32 %v4437, 0.044715
        %v4502 = vmul.f32 %v4438, 0.044715
        %v4503 = vmul.f32 %v4439, 0.044715
        %v4504 = vmul.f32 %v4440, 0.044715
        %v4505 = vmul.f32 %v4441, 0.044715
        %v4506 = vadd.f32 %v4123, %v4442
        %v4507 = vadd.f32 %v4125, %v4443
        %v4508 = vadd.f32 %v4236, %v4444
        %v4509 = vadd.f32 %v4238, %v4445
        %v4510 = vadd.f32 %v4127, %v4446
        %v4511 = vadd.f32 %v4129, %v4447
        %v4512 = vadd.f32 %v4240, %v4448
        %v4513 = vadd.f32 %v4242, %v4449
        %v4514 = vadd.f32 %v4133, %v4450
        %v4515 = vadd.f32 %v4135, %v4451
        %v4516 = vadd.f32 %v4246, %v4452
        %v4517 = vadd.f32 %v4248, %v4453
        %v4518 = vadd.f32 %v4137, %v4454
        %v4519 = vadd.f32 %v4139, %v4455
        %v4520 = vadd.f32 %v4250, %v4456
        %v4521 = vadd.f32 %v4252, %v4457
        %v4522 = vadd.f32 %v4143, %v4458
        %v4523 = vadd.f32 %v4145, %v4459
        %v4524 = vadd.f32 %v4256, %v4460
        %v4525 = vadd.f32 %v4258, %v4461
        %v4526 = vadd.f32 %v4147, %v4462
        %v4527 = vadd.f32 %v4149, %v4463
        %v4528 = vadd.f32 %v4260, %v4464
        %v4529 = vadd.f32 %v4262, %v4465
        %v4530 = vadd.f32 %v4153, %v4466
        %v4531 = vadd.f32 %v4155, %v4467
        %v4532 = vadd.f32 %v4266, %v4468
        %v4533 = vadd.f32 %v4268, %v4469
        %v4534 = vadd.f32 %v4157, %v4470
        %v4535 = vadd.f32 %v4159, %v4471
        %v4536 = vadd.f32 %v4270, %v4472
        %v4537 = vadd.f32 %v4272, %v4473
        %v4538 = vadd.f32 %v4163, %v4474
        %v4539 = vadd.f32 %v4165, %v4475
        %v4540 = vadd.f32 %v4276, %v4476
        %v4541 = vadd.f32 %v4278, %v4477
        %v4542 = vadd.f32 %v4167, %v4478
        %v4543 = vadd.f32 %v4169, %v4479
        %v4544 = vadd.f32 %v4280, %v4480
        %v4545 = vadd.f32 %v4282, %v4481
        %v4546 = vadd.f32 %v4173, %v4482
        %v4547 = vadd.f32 %v4175, %v4483
        %v4548 = vadd.f32 %v4286, %v4484
        %v4549 = vadd.f32 %v4288, %v4485
        %v4550 = vadd.f32 %v4177, %v4486
        %v4551 = vadd.f32 %v4179, %v4487
        %v4552 = vadd.f32 %v4290, %v4488
        %v4553 = vadd.f32 %v4292, %v4489
        %v4554 = vadd.f32 %v4183, %v4490
        %v4555 = vadd.f32 %v4185, %v4491
        %v4556 = vadd.f32 %v4296, %v4492
        %v4557 = vadd.f32 %v4298, %v4493
        %v4558 = vadd.f32 %v4187, %v4494
        %v4559 = vadd.f32 %v4189, %v4495
        %v4560 = vadd.f32 %v4300, %v4496
        %v4561 = vadd.f32 %v4302, %v4497
        %v4562 = vadd.f32 %v4193, %v4498
        %v4563 = vadd.f32 %v4195, %v4499
        %v4564 = vadd.f32 %v4306, %v4500
        %v4565 = vadd.f32 %v4308, %v4501
        %v4566 = vadd.f32 %v4197, %v4502
        %v4567 = vadd.f32 %v4199, %v4503
        %v4568 = vadd.f32 %v4310, %v4504
        %v4569 = vadd.f32 %v4312, %v4505
        %v4570 = vmul.f32 %v4506, 0.7978846
        %v4571 = vmul.f32 %v4507, 0.7978846
        %v4572 = vmul.f32 %v4508, 0.7978846
        %v4573 = vmul.f32 %v4509, 0.7978846
        %v4574 = vmul.f32 %v4510, 0.7978846
        %v4575 = vmul.f32 %v4511, 0.7978846
        %v4576 = vmul.f32 %v4512, 0.7978846
        %v4577 = vmul.f32 %v4513, 0.7978846
        %v4578 = vmul.f32 %v4514, 0.7978846
        %v4579 = vmul.f32 %v4515, 0.7978846
        %v4580 = vmul.f32 %v4516, 0.7978846
        %v4581 = vmul.f32 %v4517, 0.7978846
        %v4582 = vmul.f32 %v4518, 0.7978846
        %v4583 = vmul.f32 %v4519, 0.7978846
        %v4584 = vmul.f32 %v4520, 0.7978846
        %v4585 = vmul.f32 %v4521, 0.7978846
        %v4586 = vmul.f32 %v4522, 0.7978846
        %v4587 = vmul.f32 %v4523, 0.7978846
        %v4588 = vmul.f32 %v4524, 0.7978846
        %v4589 = vmul.f32 %v4525, 0.7978846
        %v4590 = vmul.f32 %v4526, 0.7978846
        %v4591 = vmul.f32 %v4527, 0.7978846
        %v4592 = vmul.f32 %v4528, 0.7978846
        %v4593 = vmul.f32 %v4529, 0.7978846
        %v4594 = vmul.f32 %v4530, 0.7978846
        %v4595 = vmul.f32 %v4531, 0.7978846
        %v4596 = vmul.f32 %v4532, 0.7978846
        %v4597 = vmul.f32 %v4533, 0.7978846
        %v4598 = vmul.f32 %v4534, 0.7978846
        %v4599 = vmul.f32 %v4535, 0.7978846
        %v4600 = vmul.f32 %v4536, 0.7978846
        %v4601 = vmul.f32 %v4537, 0.7978846
        %v4602 = vmul.f32 %v4538, 0.7978846
        %v4603 = vmul.f32 %v4539, 0.7978846
        %v4604 = vmul.f32 %v4540, 0.7978846
        %v4605 = vmul.f32 %v4541, 0.7978846
        %v4606 = vmul.f32 %v4542, 0.7978846
        %v4607 = vmul.f32 %v4543, 0.7978846
        %v4608 = vmul.f32 %v4544, 0.7978846
        %v4609 = vmul.f32 %v4545, 0.7978846
        %v4610 = vmul.f32 %v4546, 0.7978846
        %v4611 = vmul.f32 %v4547, 0.7978846
        %v4612 = vmul.f32 %v4548, 0.7978846
        %v4613 = vmul.f32 %v4549, 0.7978846
        %v4614 = vmul.f32 %v4550, 0.7978846
        %v4615 = vmul.f32 %v4551, 0.7978846
        %v4616 = vmul.f32 %v4552, 0.7978846
        %v4617 = vmul.f32 %v4553, 0.7978846
        %v4618 = vmul.f32 %v4554, 0.7978846
        %v4619 = vmul.f32 %v4555, 0.7978846
        %v4620 = vmul.f32 %v4556, 0.7978846
        %v4621 = vmul.f32 %v4557, 0.7978846
        %v4622 = vmul.f32 %v4558, 0.7978846
        %v4623 = vmul.f32 %v4559, 0.7978846
        %v4624 = vmul.f32 %v4560, 0.7978846
        %v4625 = vmul.f32 %v4561, 0.7978846
        %v4626 = vmul.f32 %v4562, 0.7978846
        %v4627 = vmul.f32 %v4563, 0.7978846
        %v4628 = vmul.f32 %v4564, 0.7978846
        %v4629 = vmul.f32 %v4565, 0.7978846
        %v4630 = vmul.f32 %v4566, 0.7978846
        %v4631 = vmul.f32 %v4567, 0.7978846
        %v4632 = vmul.f32 %v4568, 0.7978846
        %v4633 = vmul.f32 %v4569, 0.7978846
        %v4634 = vtanh.pop %v4570
        %v4635 = vtanh.pop %v4571
        %v4636 = vtanh.pop %v4572
        %v4637 = vtanh.pop %v4573
        %v4638 = vtanh.pop %v4574
        %v4639 = vtanh.pop %v4575
        %v4640 = vtanh.pop %v4576
        %v4641 = vtanh.pop %v4577
        %v4642 = vtanh.pop %v4578
        %v4643 = vtanh.pop %v4579
        %v4644 = vtanh.pop %v4580
        %v4645 = vtanh.pop %v4581
        %v4646 = vtanh.pop %v4582
        %v4647 = vtanh.pop %v4583
        %v4648 = vtanh.pop %v4584
        %v4649 = vtanh.pop %v4585
        %v4650 = vtanh.pop %v4586
        %v4651 = vtanh.pop %v4587
        %v4652 = vtanh.pop %v4588
        %v4653 = vtanh.pop %v4589
        %v4654 = vtanh.pop %v4590
        %v4655 = vtanh.pop %v4591
        %v4656 = vtanh.pop %v4592
        %v4657 = vtanh.pop %v4593
        %v4658 = vtanh.pop %v4594
        %v4659 = vtanh.pop %v4595
        %v4660 = vtanh.pop %v4596
        %v4661 = vtanh.pop %v4597
        %v4662 = vtanh.pop %v4598
        %v4663 = vtanh.pop %v4599
        %v4664 = vtanh.pop %v4600
        %v4665 = vtanh.pop %v4601
        %v4666 = vtanh.pop %v4602
        %v4667 = vtanh.pop %v4603
        %v4668 = vtanh.pop %v4604
        %v4669 = vtanh.pop %v4605
        %v4670 = vtanh.pop %v4606
        %v4671 = vtanh.pop %v4607
        %v4672 = vtanh.pop %v4608
        %v4673 = vtanh.pop %v4609
        %v4674 = vtanh.pop %v4610
        %v4675 = vtanh.pop %v4611
        %v4676 = vtanh.pop %v4612
        %v4677 = vtanh.pop %v4613
        %v4678 = vtanh.pop %v4614
        %v4679 = vtanh.pop %v4615
        %v4680 = vtanh.pop %v4616
        %v4681 = vtanh.pop %v4617
        %v4682 = vtanh.pop %v4618
        %v4683 = vtanh.pop %v4619
        %v4684 = vtanh.pop %v4620
        %v4685 = vtanh.pop %v4621
        %v4686 = vtanh.pop %v4622
        %v4687 = vtanh.pop %v4623
        %v4688 = vtanh.pop %v4624
        %v4689 = vtanh.pop %v4625
        %v4690 = vtanh.pop %v4626
        %v4691 = vtanh.pop %v4627
        %v4692 = vtanh.pop %v4628
        %v4693 = vtanh.pop %v4629
        %v4694 = vtanh.pop %v4630
        %v4695 = vtanh.pop %v4631
        %v4696 = vtanh.pop %v4632
        %v4697 = vtanh.pop %v4633
        %v4698 = vadd.f32 %v4634, 1.0
        %v4699 = vadd.f32 %v4635, 1.0
        %v4700 = vadd.f32 %v4636, 1.0
        %v4701 = vadd.f32 %v4637, 1.0
        %v4702 = vadd.f32 %v4638, 1.0
        %v4703 = vadd.f32 %v4639, 1.0
        %v4704 = vadd.f32 %v4640, 1.0
        %v4705 = vadd.f32 %v4641, 1.0
        %v4706 = vadd.f32 %v4642, 1.0
        %v4707 = vadd.f32 %v4643, 1.0
        %v4708 = vadd.f32 %v4644, 1.0
        %v4709 = vadd.f32 %v4645, 1.0
        %v4710 = vadd.f32 %v4646, 1.0
        %v4711 = vadd.f32 %v4647, 1.0
        %v4712 = vadd.f32 %v4648, 1.0
        %v4713 = vadd.f32 %v4649, 1.0
        %v4714 = vadd.f32 %v4650, 1.0
        %v4715 = vadd.f32 %v4651, 1.0
        %v4716 = vadd.f32 %v4652, 1.0
        %v4717 = vadd.f32 %v4653, 1.0
        %v4718 = vadd.f32 %v4654, 1.0
        %v4719 = vadd.f32 %v4655, 1.0
        %v4720 = vadd.f32 %v4656, 1.0
        %v4721 = vadd.f32 %v4657, 1.0
        %v4722 = vadd.f32 %v4658, 1.0
        %v4723 = vadd.f32 %v4659, 1.0
        %v4724 = vadd.f32 %v4660, 1.0
        %v4725 = vadd.f32 %v4661, 1.0
        %v4726 = vadd.f32 %v4662, 1.0
        %v4727 = vadd.f32 %v4663, 1.0
        %v4728 = vadd.f32 %v4664, 1.0
        %v4729 = vadd.f32 %v4665, 1.0
        %v4730 = vadd.f32 %v4666, 1.0
        %v4731 = vadd.f32 %v4667, 1.0
        %v4732 = vadd.f32 %v4668, 1.0
        %v4733 = vadd.f32 %v4669, 1.0
        %v4734 = vadd.f32 %v4670, 1.0
        %v4735 = vadd.f32 %v4671, 1.0
        %v4736 = vadd.f32 %v4672, 1.0
        %v4737 = vadd.f32 %v4673, 1.0
        %v4738 = vadd.f32 %v4674, 1.0
        %v4739 = vadd.f32 %v4675, 1.0
        %v4740 = vadd.f32 %v4676, 1.0
        %v4741 = vadd.f32 %v4677, 1.0
        %v4742 = vadd.f32 %v4678, 1.0
        %v4743 = vadd.f32 %v4679, 1.0
        %v4744 = vadd.f32 %v4680, 1.0
        %v4745 = vadd.f32 %v4681, 1.0
        %v4746 = vadd.f32 %v4682, 1.0
        %v4747 = vadd.f32 %v4683, 1.0
        %v4748 = vadd.f32 %v4684, 1.0
        %v4749 = vadd.f32 %v4685, 1.0
        %v4750 = vadd.f32 %v4686, 1.0
        %v4751 = vadd.f32 %v4687, 1.0
        %v4752 = vadd.f32 %v4688, 1.0
        %v4753 = vadd.f32 %v4689, 1.0
        %v4754 = vadd.f32 %v4690, 1.0
        %v4755 = vadd.f32 %v4691, 1.0
        %v4756 = vadd.f32 %v4692, 1.0
        %v4757 = vadd.f32 %v4693, 1.0
        %v4758 = vadd.f32 %v4694, 1.0
        %v4759 = vadd.f32 %v4695, 1.0
        %v4760 = vadd.f32 %v4696, 1.0
        %v4761 = vadd.f32 %v4697, 1.0
        %v4762 = vmul.f32 %v4698, 0.5
        %v4763 = vmul.f32 %v4699, 0.5
        %v4764 = vmul.f32 %v4700, 0.5
        %v4765 = vmul.f32 %v4701, 0.5
        %v4766 = vmul.f32 %v4702, 0.5
        %v4767 = vmul.f32 %v4703, 0.5
        %v4768 = vmul.f32 %v4704, 0.5
        %v4769 = vmul.f32 %v4705, 0.5
        %v4770 = vmul.f32 %v4706, 0.5
        %v4771 = vmul.f32 %v4707, 0.5
        %v4772 = vmul.f32 %v4708, 0.5
        %v4773 = vmul.f32 %v4709, 0.5
        %v4774 = vmul.f32 %v4710, 0.5
        %v4775 = vmul.f32 %v4711, 0.5
        %v4776 = vmul.f32 %v4712, 0.5
        %v4777 = vmul.f32 %v4713, 0.5
        %v4778 = vmul.f32 %v4714, 0.5
        %v4779 = vmul.f32 %v4715, 0.5
        %v4780 = vmul.f32 %v4716, 0.5
        %v4781 = vmul.f32 %v4717, 0.5
        %v4782 = vmul.f32 %v4718, 0.5
        %v4783 = vmul.f32 %v4719, 0.5
        %v4784 = vmul.f32 %v4720, 0.5
        %v4785 = vmul.f32 %v4721, 0.5
        %v4786 = vmul.f32 %v4722, 0.5
        %v4787 = vmul.f32 %v4723, 0.5
        %v4788 = vmul.f32 %v4724, 0.5
        %v4789 = vmul.f32 %v4725, 0.5
        %v4790 = vmul.f32 %v4726, 0.5
        %v4791 = vmul.f32 %v4727, 0.5
        %v4792 = vmul.f32 %v4728, 0.5
        %v4793 = vmul.f32 %v4729, 0.5
        %v4794 = vmul.f32 %v4730, 0.5
        %v4795 = vmul.f32 %v4731, 0.5
        %v4796 = vmul.f32 %v4732, 0.5
        %v4797 = vmul.f32 %v4733, 0.5
        %v4798 = vmul.f32 %v4734, 0.5
        %v4799 = vmul.f32 %v4735, 0.5
        %v4800 = vmul.f32 %v4736, 0.5
        %v4801 = vmul.f32 %v4737, 0.5
        %v4802 = vmul.f32 %v4738, 0.5
        %v4803 = vmul.f32 %v4739, 0.5
        %v4804 = vmul.f32 %v4740, 0.5
        %v4805 = vmul.f32 %v4741, 0.5
        %v4806 = vmul.f32 %v4742, 0.5
        %v4807 = vmul.f32 %v4743, 0.5
        %v4808 = vmul.f32 %v4744, 0.5
        %v4809 = vmul.f32 %v4745, 0.5
        %v4810 = vmul.f32 %v4746, 0.5
        %v4811 = vmul.f32 %v4747, 0.5
        %v4812 = vmul.f32 %v4748, 0.5
        %v4813 = vmul.f32 %v4749, 0.5
        %v4814 = vmul.f32 %v4750, 0.5
        %v4815 = vmul.f32 %v4751, 0.5
        %v4816 = vmul.f32 %v4752, 0.5
        %v4817 = vmul.f32 %v4753, 0.5
        %v4818 = vmul.f32 %v4754, 0.5
        %v4819 = vmul.f32 %v4755, 0.5
        %v4820 = vmul.f32 %v4756, 0.5
        %v4821 = vmul.f32 %v4757, 0.5
        %v4822 = vmul.f32 %v4758, 0.5
        %v4823 = vmul.f32 %v4759, 0.5
        %v4824 = vmul.f32 %v4760, 0.5
        %v4825 = vmul.f32 %v4761, 0.5
        %v4826 = vmul.f32 %v4123, %v4762
        %v4827 = vmul.f32 %v4125, %v4763
        %v4828 = vmul.f32 %v4236, %v4764
        %v4829 = vmul.f32 %v4238, %v4765
        %v4830 = vmul.f32 %v4127, %v4766
        %v4831 = vmul.f32 %v4129, %v4767
        %v4832 = vmul.f32 %v4240, %v4768
        %v4833 = vmul.f32 %v4242, %v4769
        %v4834 = vmul.f32 %v4133, %v4770
        %v4835 = vmul.f32 %v4135, %v4771
        %v4836 = vmul.f32 %v4246, %v4772
        %v4837 = vmul.f32 %v4248, %v4773
        %v4838 = vmul.f32 %v4137, %v4774
        %v4839 = vmul.f32 %v4139, %v4775
        %v4840 = vmul.f32 %v4250, %v4776
        %v4841 = vmul.f32 %v4252, %v4777
        %v4842 = vmul.f32 %v4143, %v4778
        %v4843 = vmul.f32 %v4145, %v4779
        %v4844 = vmul.f32 %v4256, %v4780
        %v4845 = vmul.f32 %v4258, %v4781
        %v4846 = vmul.f32 %v4147, %v4782
        %v4847 = vmul.f32 %v4149, %v4783
        %v4848 = vmul.f32 %v4260, %v4784
        %v4849 = vmul.f32 %v4262, %v4785
        %v4850 = vmul.f32 %v4153, %v4786
        %v4851 = vmul.f32 %v4155, %v4787
        %v4852 = vmul.f32 %v4266, %v4788
        %v4853 = vmul.f32 %v4268, %v4789
        %v4854 = vmul.f32 %v4157, %v4790
        %v4855 = vmul.f32 %v4159, %v4791
        %v4856 = vmul.f32 %v4270, %v4792
        %v4857 = vmul.f32 %v4272, %v4793
        %v4858 = vmul.f32 %v4163, %v4794
        %v4859 = vmul.f32 %v4165, %v4795
        %v4860 = vmul.f32 %v4276, %v4796
        %v4861 = vmul.f32 %v4278, %v4797
        %v4862 = vmul.f32 %v4167, %v4798
        %v4863 = vmul.f32 %v4169, %v4799
        %v4864 = vmul.f32 %v4280, %v4800
        %v4865 = vmul.f32 %v4282, %v4801
        %v4866 = vmul.f32 %v4173, %v4802
        %v4867 = vmul.f32 %v4175, %v4803
        %v4868 = vmul.f32 %v4286, %v4804
        %v4869 = vmul.f32 %v4288, %v4805
        %v4870 = vmul.f32 %v4177, %v4806
        %v4871 = vmul.f32 %v4179, %v4807
        %v4872 = vmul.f32 %v4290, %v4808
        %v4873 = vmul.f32 %v4292, %v4809
        %v4874 = vmul.f32 %v4183, %v4810
        %v4875 = vmul.f32 %v4185, %v4811
        %v4876 = vmul.f32 %v4296, %v4812
        %v4877 = vmul.f32 %v4298, %v4813
        %v4878 = vmul.f32 %v4187, %v4814
        %v4879 = vmul.f32 %v4189, %v4815
        %v4880 = vmul.f32 %v4300, %v4816
        %v4881 = vmul.f32 %v4302, %v4817
        %v4882 = vmul.f32 %v4193, %v4818
        %v4883 = vmul.f32 %v4195, %v4819
        %v4884 = vmul.f32 %v4306, %v4820
        %v4885 = vmul.f32 %v4308, %v4821
        %v4886 = vmul.f32 %v4197, %v4822
        %v4887 = vmul.f32 %v4199, %v4823
        %v4888 = vmul.f32 %v4310, %v4824
        %v4889 = vmul.f32 %v4312, %v4825
        %v4890 = vpack.c.bf16 %v4830, %v4826
        %v4891 = vpack.c.bf16 %v4831, %v4827
        %v4892 = vpack.c.bf16 %v4832, %v4828
        %v4893 = vpack.c.bf16 %v4833, %v4829
        %v4894 = vpack.c.bf16 %v4838, %v4834
        %v4895 = vpack.c.bf16 %v4839, %v4835
        %v4896 = vpack.c.bf16 %v4840, %v4836
        %v4897 = vpack.c.bf16 %v4841, %v4837
        %v4898 = vpack.c.bf16 %v4846, %v4842
        %v4899 = vpack.c.bf16 %v4847, %v4843
        %v4900 = vpack.c.bf16 %v4848, %v4844
        %v4901 = vpack.c.bf16 %v4849, %v4845
        %v4902 = vpack.c.bf16 %v4854, %v4850
        %v4903 = vpack.c.bf16 %v4855, %v4851
        %v4904 = vpack.c.bf16 %v4856, %v4852
        %v4905 = vpack.c.bf16 %v4857, %v4853
        %v4906 = vpack.c.bf16 %v4862, %v4858
        %v4907 = vpack.c.bf16 %v4863, %v4859
        %v4908 = vpack.c.bf16 %v4864, %v4860
        %v4909 = vpack.c.bf16 %v4865, %v4861
        %v4910 = vpack.c.bf16 %v4870, %v4866
        %v4911 = vpack.c.bf16 %v4871, %v4867
        %v4912 = vpack.c.bf16 %v4872, %v4868
        %v4913 = vpack.c.bf16 %v4873, %v4869
        %v4914 = vpack.c.bf16 %v4878, %v4874
        %v4915 = vpack.c.bf16 %v4879, %v4875
        %v4916 = vpack.c.bf16 %v4880, %v4876
        %v4917 = vpack.c.bf16 %v4881, %v4877
        %v4918 = vpack.c.bf16 %v4886, %v4882
        %v4919 = vpack.c.bf16 %v4887, %v4883
        %v4920 = vpack.c.bf16 %v4888, %v4884
        %v4921 = vpack.c.bf16 %v4889, %v4885
        %v4922 = vld [vmem:[#allocation13] sm:$0xf]
        %v4923 = vld [vmem:[#allocation13 + $0x4] sm:$0xf]
        %v4924 = vld [vmem:[#allocation13 + $0x8] sm:$0xf]
        %v4925 = vld [vmem:[#allocation13 + $0xc] sm:$0xf]
        %v4926 = vld [vmem:[#allocation13 + $0x10] sm:$0xf]
        %v4927 = vld [vmem:[#allocation13 + $0x14] sm:$0xf]
        %v4928 = vld [vmem:[#allocation13 + $0x18] sm:$0xf]
        %v4929 = vld [vmem:[#allocation13 + $0x1c] sm:$0xf]
        %v4930 = vld [vmem:[#allocation13 + $0x20] sm:$0xf]
        %v4931 = vld [vmem:[#allocation13 + $0x24] sm:$0xf]
        %v4932 = vld [vmem:[#allocation13 + $0x28] sm:$0xf]
        %v4933 = vld [vmem:[#allocation13 + $0x2c] sm:$0xf]
        %v4934 = vld [vmem:[#allocation13 + $0x30] sm:$0xf]
        %v4935 = vld [vmem:[#allocation13 + $0x34] sm:$0xf]
        %v4936 = vld [vmem:[#allocation13 + $0x38] sm:$0xf]
        %v4937 = vld [vmem:[#allocation13 + $0x3c] sm:$0xf]
        %v4938 = vld [vmem:[#allocation13 + $0x40] sm:$0xf]
        %v4939 = vld [vmem:[#allocation13 + $0x44] sm:$0xf]
        %v4940 = vld [vmem:[#allocation13 + $0x48] sm:$0xf]
        %v4941 = vld [vmem:[#allocation13 + $0x4c] sm:$0xf]
        %v4942 = vld [vmem:[#allocation13 + $0x50] sm:$0xf]
        %v4943 = vld [vmem:[#allocation13 + $0x54] sm:$0xf]
        %v4944 = vld [vmem:[#allocation13 + $0x58] sm:$0xf]
        %v4945 = vld [vmem:[#allocation13 + $0x5c] sm:$0xf]
        %v4946 = vld [vmem:[#allocation13 + $0x60] sm:$0xf]
        %v4947 = vld [vmem:[#allocation13 + $0x64] sm:$0xf]
        %v4948 = vld [vmem:[#allocation13 + $0x68] sm:$0xf]
        %v4949 = vld [vmem:[#allocation13 + $0x6c] sm:$0xf]
        %v4950 = vld [vmem:[#allocation13 + $0x70] sm:$0xf]
        %v4951 = vld [vmem:[#allocation13 + $0x74] sm:$0xf]
        %v4952 = vld [vmem:[#allocation13 + $0x78] sm:$0xf]
        %v4953 = vld [vmem:[#allocation13 + $0x7c] sm:$0xf]
        %v4954 = vld [vmem:[#allocation13 + $0x80] sm:$0xf]
        %v4955 = vld [vmem:[#allocation13 + $0x84] sm:$0xf]
        %v4956 = vld [vmem:[#allocation13 + $0x88] sm:$0xf]
        %v4957 = vld [vmem:[#allocation13 + $0x8c] sm:$0xf]
        %v4958 = vld [vmem:[#allocation13 + $0x90] sm:$0xf]
        %v4959 = vld [vmem:[#allocation13 + $0x94] sm:$0xf]
        %v4960 = vld [vmem:[#allocation13 + $0x98] sm:$0xf]
        %v4961 = vld [vmem:[#allocation13 + $0x9c] sm:$0xf]
        %v4962 = vld [vmem:[#allocation13 + $0xa0] sm:$0xf]
        %v4963 = vld [vmem:[#allocation13 + $0xa4] sm:$0xf]
        %v4964 = vld [vmem:[#allocation13 + $0xa8] sm:$0xf]
        %v4965 = vld [vmem:[#allocation13 + $0xac] sm:$0xf]
        %v4966 = vld [vmem:[#allocation13 + $0xb0] sm:$0xf]
        %v4967 = vld [vmem:[#allocation13 + $0xb4] sm:$0xf]
        %v4968 = vld [vmem:[#allocation13 + $0xb8] sm:$0xf]
        %v4969 = vld [vmem:[#allocation13 + $0xbc] sm:$0xf]
        %v4970 = vld [vmem:[#allocation13 + $0xc0] sm:$0xf]
        %v4971 = vld [vmem:[#allocation13 + $0xc4] sm:$0xf]
        %v4972 = vld [vmem:[#allocation13 + $0xc8] sm:$0xf]
        %v4973 = vld [vmem:[#allocation13 + $0xcc] sm:$0xf]
        %v4974 = vld [vmem:[#allocation13 + $0xd0] sm:$0xf]
        %v4975 = vld [vmem:[#allocation13 + $0xd4] sm:$0xf]
        %v4976 = vld [vmem:[#allocation13 + $0xd8] sm:$0xf]
        %v4977 = vld [vmem:[#allocation13 + $0xdc] sm:$0xf]
        %v4978 = vld [vmem:[#allocation13 + $0xe0] sm:$0xf]
        %v4979 = vld [vmem:[#allocation13 + $0xe4] sm:$0xf]
        %v4980 = vld [vmem:[#allocation13 + $0xe8] sm:$0xf]
        %v4981 = vld [vmem:[#allocation13 + $0xec] sm:$0xf]
        %v4982 = vld [vmem:[#allocation13 + $0xf0] sm:$0xf]
        %v4983 = vld [vmem:[#allocation13 + $0xf4] sm:$0xf]
        %v4984 = vld [vmem:[#allocation13 + $0xf8] sm:$0xf]
        %v4985 = vld [vmem:[#allocation13 + $0xfc] sm:$0xf]
        %v4986 = vld [vmem:[#allocation15] sm:$0x1]
        %v4988 = vlaneseq
        %v4989 = vshrl.u32 %v4988, 7
        %v4990 = vsub.s32 0, %v4989
        %v4991 = vrot.slane %v4986, %v4990
        %v5057 = vunpack.c.l.b16 %v4922
        %v5058 = vunpack.c.l.b16 %v4923
        %v5059 = vunpack.c.l.b16 %v4924
        %v5060 = vunpack.c.l.b16 %v4925
        %v5061 = vunpack.c.l.b16 %v4926
        %v5062 = vunpack.c.l.b16 %v4927
        %v5063 = vunpack.c.l.b16 %v4928
        %v5064 = vunpack.c.l.b16 %v4929
        %v5065 = vunpack.c.l.b16 %v4930
        %v5066 = vunpack.c.l.b16 %v4931
        %v5067 = vunpack.c.l.b16 %v4932
        %v5068 = vunpack.c.l.b16 %v4933
        %v5069 = vunpack.c.l.b16 %v4934
        %v5070 = vunpack.c.l.b16 %v4935
        %v5071 = vunpack.c.l.b16 %v4936
        %v5072 = vunpack.c.l.b16 %v4937
        %v5073 = vunpack.c.l.b16 %v4938
        %v5074 = vunpack.c.l.b16 %v4939
        %v5075 = vunpack.c.l.b16 %v4940
        %v5076 = vunpack.c.l.b16 %v4941
        %v5077 = vunpack.c.l.b16 %v4942
        %v5078 = vunpack.c.l.b16 %v4943
        %v5079 = vunpack.c.l.b16 %v4944
        %v5080 = vunpack.c.l.b16 %v4945
        %v5081 = vunpack.c.l.b16 %v4946
        %v5082 = vunpack.c.l.b16 %v4947
        %v5083 = vunpack.c.l.b16 %v4948
        %v5084 = vunpack.c.l.b16 %v4949
        %v5085 = vunpack.c.l.b16 %v4950
        %v5086 = vunpack.c.l.b16 %v4951
        %v5087 = vunpack.c.l.b16 %v4952
        %v5088 = vunpack.c.l.b16 %v4953
        %v5089 = vunpack.c.l.b16 %v4954
        %v5090 = vunpack.c.l.b16 %v4955
        %v5091 = vunpack.c.l.b16 %v4956
        %v5092 = vunpack.c.l.b16 %v4957
        %v5093 = vunpack.c.l.b16 %v4958
        %v5094 = vunpack.c.l.b16 %v4959
        %v5095 = vunpack.c.l.b16 %v4960
        %v5096 = vunpack.c.l.b16 %v4961
        %v5097 = vunpack.c.l.b16 %v4962
        %v5098 = vunpack.c.l.b16 %v4963
        %v5099 = vunpack.c.l.b16 %v4964
        %v5100 = vunpack.c.l.b16 %v4965
        %v5101 = vunpack.c.l.b16 %v4966
        %v5102 = vunpack.c.l.b16 %v4967
        %v5103 = vunpack.c.l.b16 %v4968
        %v5104 = vunpack.c.l.b16 %v4969
        %v5105 = vunpack.c.l.b16 %v4970
        %v5106 = vunpack.c.l.b16 %v4971
        %v5107 = vunpack.c.l.b16 %v4972
        %v5108 = vunpack.c.l.b16 %v4973
        %v5109 = vunpack.c.l.b16 %v4974
        %v5110 = vunpack.c.l.b16 %v4975
        %v5111 = vunpack.c.l.b16 %v4976
        %v5112 = vunpack.c.l.b16 %v4977
        %v5113 = vunpack.c.l.b16 %v4978
        %v5114 = vunpack.c.l.b16 %v4979
        %v5115 = vunpack.c.l.b16 %v4980
        %v5116 = vunpack.c.l.b16 %v4981
        %v5117 = vunpack.c.l.b16 %v4982
        %v5118 = vunpack.c.l.b16 %v4983
        %v5119 = vunpack.c.l.b16 %v4984
        %v5120 = vunpack.c.l.b16 %v4985
        %v5121 = vpack.c.b16 %v5058, %v5057
        %v5122 = vpack.c.b16 %v5060, %v5059
        %v5123 = vpack.c.b16 %v5062, %v5061
        %v5124 = vpack.c.b16 %v5064, %v5063
        %v5125 = vpack.c.b16 %v5066, %v5065
        %v5126 = vpack.c.b16 %v5068, %v5067
        %v5127 = vpack.c.b16 %v5070, %v5069
        %v5128 = vpack.c.b16 %v5072, %v5071
        %v5129 = vpack.c.b16 %v5074, %v5073
        %v5130 = vpack.c.b16 %v5076, %v5075
        %v5131 = vpack.c.b16 %v5078, %v5077
        %v5132 = vpack.c.b16 %v5080, %v5079
        %v5133 = vpack.c.b16 %v5082, %v5081
        %v5134 = vpack.c.b16 %v5084, %v5083
        %v5135 = vpack.c.b16 %v5086, %v5085
        %v5136 = vpack.c.b16 %v5088, %v5087
        %v5137 = vpack.c.b16 %v5090, %v5089
        %v5138 = vpack.c.b16 %v5092, %v5091
        %v5139 = vpack.c.b16 %v5094, %v5093
        %v5140 = vpack.c.b16 %v5096, %v5095
        %v5141 = vpack.c.b16 %v5098, %v5097
        %v5142 = vpack.c.b16 %v5100, %v5099
        %v5143 = vpack.c.b16 %v5102, %v5101
        %v5144 = vpack.c.b16 %v5104, %v5103
        %v5145 = vpack.c.b16 %v5106, %v5105
        %v5146 = vpack.c.b16 %v5108, %v5107
        %v5147 = vpack.c.b16 %v5110, %v5109
        %v5148 = vpack.c.b16 %v5112, %v5111
        %v5149 = vpack.c.b16 %v5114, %v5113
        %v5150 = vpack.c.b16 %v5116, %v5115
        %v5151 = vpack.c.b16 %v5118, %v5117
        %v5152 = vpack.c.b16 %v5120, %v5119
        %5185 = vmatprep.subr.bf16.mxu0 0
        %5186 = vmatpush1.bf16.msra.mxu0 %v5121
        %5187 = vmatprep.subr.bf16.mxu0 0
        %5188 = vmatpush1.bf16.msra.mxu0 %v5122
        %5189 = vmatprep.subr.bf16.mxu0 0
        %5190 = vmatpush1.bf16.msra.mxu0 %v5123
        %5191 = vmatprep.subr.bf16.mxu0 0
        %5192 = vmatpush1.bf16.msra.mxu0 %v5124
        %5193 = vmatprep.subr.bf16.mxu0 0
        %5194 = vmatpush1.bf16.msra.mxu0 %v5125
        %5195 = vmatprep.subr.bf16.mxu0 0
        %5196 = vmatpush1.bf16.msra.mxu0 %v5126
        %5197 = vmatprep.subr.bf16.mxu0 0
        %5198 = vmatpush1.bf16.msra.mxu0 %v5127
        %5199 = vmatprep.subr.bf16.mxu0 0
        %5200 = vmatpush1.bf16.msra.mxu0 %v5128
        %5201 = vmatprep.subr.bf16.mxu0 0
        %5202 = vmatpush1.bf16.msra.mxu0 %v5129
        %5203 = vmatprep.subr.bf16.mxu0 0
        %5204 = vmatpush1.bf16.msra.mxu0 %v5130
        %5205 = vmatprep.subr.bf16.mxu0 0
        %5206 = vmatpush1.bf16.msra.mxu0 %v5131
        %5207 = vmatprep.subr.bf16.mxu0 0
        %5208 = vmatpush1.bf16.msra.mxu0 %v5132
        %5209 = vmatprep.subr.bf16.mxu0 0
        %5210 = vmatpush1.bf16.msra.mxu0 %v5133
        %5211 = vmatprep.subr.bf16.mxu0 0
        %5212 = vmatpush1.bf16.msra.mxu0 %v5134
        %5213 = vmatprep.subr.bf16.mxu0 0
        %5214 = vmatpush1.bf16.msra.mxu0 %v5135
        %5215 = vmatprep.subr.bf16.mxu0 0
        %5216 = vmatpush1.bf16.msra.mxu0 %v5136
        %5217 = vmatprep.mubr.bf16.mxu0 %v4891
        %5218 = vmatmul.mubr.bf16.gmra.mrb[0].mxu0 %v4890
        %v5219 = vpop.f32.mrb[0].mxu0
        %v5220 = vadd.f32 %v4991, %v5219
        %v5221 = vpop.f32.mrb[0].mxu0
        %v5222 = vpop.f32.mrb[0].mxu0
        %v5223 = vadd.f32 %v4991, %v5222
        %v5224 = vpop.f32.mrb[0].mxu0
        %5225 = vmatprep.mubr.bf16.mxu0 %v4895
        %5226 = vmatmul.mubr.bf16.gmra.mrb[0].mxu0 %v4894
        %v5227 = vpop.f32.mrb[0].mxu0
        %v5228 = vadd.f32 %v4991, %v5227
        %v5229 = vpop.f32.mrb[0].mxu0
        %v5230 = vpop.f32.mrb[0].mxu0
        %v5231 = vadd.f32 %v4991, %v5230
        %v5232 = vpop.f32.mrb[0].mxu0
        %5233 = vmatprep.mubr.bf16.mxu0 %v4899
        %5234 = vmatmul.mubr.bf16.gmra.mrb[0].mxu0 %v4898
        %v5235 = vpop.f32.mrb[0].mxu0
        %v5236 = vadd.f32 %v4991, %v5235
        %v5237 = vpop.f32.mrb[0].mxu0
        %v5238 = vpop.f32.mrb[0].mxu0
        %v5239 = vadd.f32 %v4991, %v5238
        %v5240 = vpop.f32.mrb[0].mxu0
        %5241 = vmatprep.mubr.bf16.mxu0 %v4903
        %5242 = vmatmul.mubr.bf16.gmra.mrb[0].mxu0 %v4902
        %v5243 = vpop.f32.mrb[0].mxu0
        %v5244 = vadd.f32 %v4991, %v5243
        %v5245 = vpop.f32.mrb[0].mxu0
        %v5246 = vpop.f32.mrb[0].mxu0
        %v5247 = vadd.f32 %v4991, %v5246
        %v5248 = vpop.f32.mrb[0].mxu0
        %5249 = vmatprep.mubr.bf16.mxu0 %v4907
        %5250 = vmatmul.mubr.bf16.gmra.mrb[0].mxu0 %v4906
        %v5251 = vpop.f32.mrb[0].mxu0
        %v5252 = vadd.f32 %v4991, %v5251
        %v5253 = vpop.f32.mrb[0].mxu0
        %v5254 = vpop.f32.mrb[0].mxu0
        %v5255 = vadd.f32 %v4991, %v5254
        %v5256 = vpop.f32.mrb[0].mxu0
        %5257 = vmatprep.mubr.bf16.mxu0 %v4911
        %5258 = vmatmul.mubr.bf16.gmra.mrb[0].mxu0 %v4910
        %v5259 = vpop.f32.mrb[0].mxu0
        %v5260 = vadd.f32 %v4991, %v5259
        %v5261 = vpop.f32.mrb[0].mxu0
        %v5262 = vpop.f32.mrb[0].mxu0
        %v5263 = vadd.f32 %v4991, %v5262
        %v5264 = vpop.f32.mrb[0].mxu0
        %5265 = vmatprep.mubr.bf16.mxu0 %v4915
        %5266 = vmatmul.mubr.bf16.gmra.mrb[0].mxu0 %v4914
        %v5267 = vpop.f32.mrb[0].mxu0
        %v5268 = vadd.f32 %v4991, %v5267
        %v5269 = vpop.f32.mrb[0].mxu0
        %v5270 = vpop.f32.mrb[0].mxu0
        %v5271 = vadd.f32 %v4991, %v5270
        %v5272 = vpop.f32.mrb[0].mxu0
        %5273 = vmatprep.mubr.bf16.mxu0 %v4919
        %5274 = vmatmul.mubr.bf16.gmra.mrb[0].mxu0 %v4918
        %v5275 = vpop.f32.mrb[0].mxu0
        %v5276 = vadd.f32 %v4991, %v5275
        %v5277 = vpop.f32.mrb[0].mxu0
        %v5278 = vpop.f32.mrb[0].mxu0
        %v5279 = vadd.f32 %v4991, %v5278
        %v5280 = vpop.f32.mrb[0].mxu0
        %5281 = vdwg.mxu0
        %5282 = vmatprep.subr.bf16.mxu0 0
        %5283 = vmatpush1.bf16.msra.mxu0 %v5137
        %5284 = vmatprep.subr.bf16.mxu0 0
        %5285 = vmatpush1.bf16.msra.mxu0 %v5138
        %5286 = vmatprep.subr.bf16.mxu0 0
        %5287 = vmatpush1.bf16.msra.mxu0 %v5139
        %5288 = vmatprep.subr.bf16.mxu0 0
        %5289 = vmatpush1.bf16.msra.mxu0 %v5140
        %5290 = vmatprep.subr.bf16.mxu0 0
        %5291 = vmatpush1.bf16.msra.mxu0 %v5141
        %5292 = vmatprep.subr.bf16.mxu0 0
        %5293 = vmatpush1.bf16.msra.mxu0 %v5142
        %5294 = vmatprep.subr.bf16.mxu0 0
        %5295 = vmatpush1.bf16.msra.mxu0 %v5143
        %5296 = vmatprep.subr.bf16.mxu0 0
        %5297 = vmatpush1.bf16.msra.mxu0 %v5144
        %5298 = vmatprep.subr.bf16.mxu0 0
        %5299 = vmatpush1.bf16.msra.mxu0 %v5145
        %5300 = vmatprep.subr.bf16.mxu0 0
        %5301 = vmatpush1.bf16.msra.mxu0 %v5146
        %5302 = vmatprep.subr.bf16.mxu0 0
        %5303 = vmatpush1.bf16.msra.mxu0 %v5147
        %5304 = vmatprep.subr.bf16.mxu0 0
        %5305 = vmatpush1.bf16.msra.mxu0 %v5148
        %5306 = vmatprep.subr.bf16.mxu0 0
        %5307 = vmatpush1.bf16.msra.mxu0 %v5149
        %5308 = vmatprep.subr.bf16.mxu0 0
        %5309 = vmatpush1.bf16.msra.mxu0 %v5150
        %5310 = vmatprep.subr.bf16.mxu0 0
        %5311 = vmatpush1.bf16.msra.mxu0 %v5151
        %5312 = vmatprep.subr.bf16.mxu0 0
        %5313 = vmatpush1.bf16.msra.mxu0 %v5152
        %5314 = vmatprep.mubr.bf16.mxu0 %v4893
        %5315 = vmatmul.mubr.bf16.gmra.mrb[0].mxu0 %v4892
        %v5316 = vpop.f32.mrb[0].mxu0
        %v5317 = vadd.f32 %v5220, %v5316
        %v5318 = vpop.f32.mrb[0].mxu0
        %v5319 = vpop.f32.mrb[0].mxu0
        %v5320 = vadd.f32 %v5223, %v5319
        %v5321 = vpop.f32.mrb[0].mxu0
        %5322 = vmatprep.mubr.bf16.mxu0 %v4897
        %5323 = vmatmul.mubr.bf16.gmra.mrb[0].mxu0 %v4896
        %v5324 = vpop.f32.mrb[0].mxu0
        %v5325 = vadd.f32 %v5228, %v5324
        %v5326 = vpop.f32.mrb[0].mxu0
        %v5327 = vpop.f32.mrb[0].mxu0
        %v5328 = vadd.f32 %v5231, %v5327
        %v5329 = vpop.f32.mrb[0].mxu0
        %5330 = vmatprep.mubr.bf16.mxu0 %v4901
        %5331 = vmatmul.mubr.bf16.gmra.mrb[0].mxu0 %v4900
        %v5332 = vpop.f32.mrb[0].mxu0
        %v5333 = vadd.f32 %v5236, %v5332
        %v5334 = vpop.f32.mrb[0].mxu0
        %v5335 = vpop.f32.mrb[0].mxu0
        %v5336 = vadd.f32 %v5239, %v5335
        %v5337 = vpop.f32.mrb[0].mxu0
        %5338 = vmatprep.mubr.bf16.mxu0 %v4905
        %5339 = vmatmul.mubr.bf16.gmra.mrb[0].mxu0 %v4904
        %v5340 = vpop.f32.mrb[0].mxu0
        %v5341 = vadd.f32 %v5244, %v5340
        %v5342 = vpop.f32.mrb[0].mxu0
        %v5343 = vpop.f32.mrb[0].mxu0
        %v5344 = vadd.f32 %v5247, %v5343
        %v5345 = vpop.f32.mrb[0].mxu0
        %5346 = vmatprep.mubr.bf16.mxu0 %v4909
        %5347 = vmatmul.mubr.bf16.gmra.mrb[0].mxu0 %v4908
        %v5348 = vpop.f32.mrb[0].mxu0
        %v5349 = vadd.f32 %v5252, %v5348
        %v5350 = vpop.f32.mrb[0].mxu0
        %v5351 = vpop.f32.mrb[0].mxu0
        %v5352 = vadd.f32 %v5255, %v5351
        %v5353 = vpop.f32.mrb[0].mxu0
        %5354 = vmatprep.mubr.bf16.mxu0 %v4913
        %5355 = vmatmul.mubr.bf16.gmra.mrb[0].mxu0 %v4912
        %v5356 = vpop.f32.mrb[0].mxu0
        %v5357 = vadd.f32 %v5260, %v5356
        %v5358 = vpop.f32.mrb[0].mxu0
        %v5359 = vpop.f32.mrb[0].mxu0
        %v5360 = vadd.f32 %v5263, %v5359
        %v5361 = vpop.f32.mrb[0].mxu0
        %5362 = vmatprep.mubr.bf16.mxu0 %v4917
        %5363 = vmatmul.mubr.bf16.gmra.mrb[0].mxu0 %v4916
        %v5364 = vpop.f32.mrb[0].mxu0
        %v5365 = vadd.f32 %v5268, %v5364
        %v5366 = vpop.f32.mrb[0].mxu0
        %v5367 = vpop.f32.mrb[0].mxu0
        %v5368 = vadd.f32 %v5271, %v5367
        %v5369 = vpop.f32.mrb[0].mxu0
        %5370 = vmatprep.mubr.bf16.mxu0 %v4921
        %5371 = vmatmul.mubr.bf16.gmra.mrb[0].mxu0 %v4920
        %v5372 = vpop.f32.mrb[0].mxu0
        %v5373 = vadd.f32 %v5276, %v5372
        %v5374 = vpop.f32.mrb[0].mxu0
        %v5375 = vpop.f32.mrb[0].mxu0
        %v5376 = vadd.f32 %v5279, %v5375
        %v5377 = vpop.f32.mrb[0].mxu0
        %5378 = vdwg.mxu0
        %v5379 = vadd.f32 %v5317, %v3850
        %v5380 = vadd.f32 %v5320, %v3851
        %v5381 = vadd.f32 %v5325, %v3852
        %v5382 = vadd.f32 %v5328, %v3853
        %v5383 = vadd.f32 %v5333, %v3854
        %v5384 = vadd.f32 %v5336, %v3855
        %v5385 = vadd.f32 %v5341, %v3856
        %v5386 = vadd.f32 %v5344, %v3857
        %v5387 = vadd.f32 %v5349, %v3858
        %v5388 = vadd.f32 %v5352, %v3859
        %v5389 = vadd.f32 %v5357, %v3860
        %v5390 = vadd.f32 %v5360, %v3861
        %v5391 = vadd.f32 %v5365, %v3862
        %v5392 = vadd.f32 %v5368, %v3863
        %v5393 = vadd.f32 %v5373, %v3864
        %v5394 = vadd.f32 %v5376, %v3865
        %v5395 = vld [vmem:[#allocation16] sm:$0x1]
        %v5396 = vld [vmem:[#allocation18] sm:$0x1]
        %5397 = vadd.xlane.f32.xlu0 %v5379
        %v5398 = vpop.xlane.xlu0 %5397
        %5399 = vadd.xlane.f32.xlu0 %v5380
        %v5400 = vpop.xlane.xlu0 %5399
        %5401 = vadd.xlane.f32.xlu0 %v5381
        %v5402 = vpop.xlane.xlu0 %5401
        %5403 = vadd.xlane.f32.xlu0 %v5382
        %v5404 = vpop.xlane.xlu0 %5403
        %5405 = vadd.xlane.f32.xlu0 %v5383
        %v5406 = vpop.xlane.xlu0 %5405
        %5407 = vadd.xlane.f32.xlu0 %v5384
        %v5408 = vpop.xlane.xlu0 %5407
        %5409 = vadd.xlane.f32.xlu0 %v5385
        %v5410 = vpop.xlane.xlu0 %5409
        %5411 = vadd.xlane.f32.xlu0 %v5386
        %v5412 = vpop.xlane.xlu0 %5411
        %5413 = vadd.xlane.f32.xlu0 %v5387
        %v5414 = vpop.xlane.xlu0 %5413
        %5415 = vadd.xlane.f32.xlu0 %v5388
        %v5416 = vpop.xlane.xlu0 %5415
        %5417 = vadd.xlane.f32.xlu0 %v5389
        %v5418 = vpop.xlane.xlu0 %5417
        %5419 = vadd.xlane.f32.xlu0 %v5390
        %v5420 = vpop.xlane.xlu0 %5419
        %5421 = vadd.xlane.f32.xlu0 %v5391
        %v5422 = vpop.xlane.xlu0 %5421
        %5423 = vadd.xlane.f32.xlu0 %v5392
        %v5424 = vpop.xlane.xlu0 %5423
        %5425 = vadd.xlane.f32.xlu0 %v5393
        %v5426 = vpop.xlane.xlu0 %5425
        %5427 = vadd.xlane.f32.xlu0 %v5394
        %v5428 = vpop.xlane.xlu0 %5427
        %v5429 = vmul.f32 %v5398, %v1598
        %v5430 = vmul.f32 %v5400, %v1598
        %v5431 = vmul.f32 %v5402, %v1598
        %v5432 = vmul.f32 %v5404, %v1598
        %v5433 = vmul.f32 %v5406, %v1598
        %v5434 = vmul.f32 %v5408, %v1598
        %v5435 = vmul.f32 %v5410, %v1598
        %v5436 = vmul.f32 %v5412, %v1598
        %v5437 = vmul.f32 %v5414, %v1598
        %v5438 = vmul.f32 %v5416, %v1598
        %v5439 = vmul.f32 %v5418, %v1598
        %v5440 = vmul.f32 %v5420, %v1598
        %v5441 = vmul.f32 %v5422, %v1598
        %v5442 = vmul.f32 %v5424, %v1598
        %v5443 = vmul.f32 %v5426, %v1598
        %v5444 = vmul.f32 %v5428, %v1598
        %v5445 = vsub.f32 %v5379, %v5429
        %v5446 = vsub.f32 %v5380, %v5430
        %v5447 = vsub.f32 %v5381, %v5431
        %v5448 = vsub.f32 %v5382, %v5432
        %v5449 = vsub.f32 %v5383, %v5433
        %v5450 = vsub.f32 %v5384, %v5434
        %v5451 = vsub.f32 %v5385, %v5435
        %v5452 = vsub.f32 %v5386, %v5436
        %v5453 = vsub.f32 %v5387, %v5437
        %v5454 = vsub.f32 %v5388, %v5438
        %v5455 = vsub.f32 %v5389, %v5439
        %v5456 = vsub.f32 %v5390, %v5440
        %v5457 = vsub.f32 %v5391, %v5441
        %v5458 = vsub.f32 %v5392, %v5442
        %v5459 = vsub.f32 %v5393, %v5443
        %v5460 = vsub.f32 %v5394, %v5444
        %v5461 = vmul.f32 %v5445, %v5445
        %v5462 = vmul.f32 %v5446, %v5446
        %v5463 = vmul.f32 %v5447, %v5447
        %v5464 = vmul.f32 %v5448, %v5448
        %v5465 = vmul.f32 %v5449, %v5449
        %v5466 = vmul.f32 %v5450, %v5450
        %v5467 = vmul.f32 %v5451, %v5451
        %v5468 = vmul.f32 %v5452, %v5452
        %v5469 = vmul.f32 %v5453, %v5453
        %v5470 = vmul.f32 %v5454, %v5454
        %v5471 = vmul.f32 %v5455, %v5455
        %v5472 = vmul.f32 %v5456, %v5456
        %v5473 = vmul.f32 %v5457, %v5457
        %v5474 = vmul.f32 %v5458, %v5458
        %v5475 = vmul.f32 %v5459, %v5459
        %v5476 = vmul.f32 %v5460, %v5460
        %5477 = vadd.xlane.f32.xlu0 %v5461
        %v5478 = vpop.xlane.xlu0 %5477
        %5479 = vadd.xlane.f32.xlu0 %v5462
        %v5480 = vpop.xlane.xlu0 %5479
        %5481 = vadd.xlane.f32.xlu0 %v5463
        %v5482 = vpop.xlane.xlu0 %5481
        %5483 = vadd.xlane.f32.xlu0 %v5464
        %v5484 = vpop.xlane.xlu0 %5483
        %5485 = vadd.xlane.f32.xlu0 %v5465
        %v5486 = vpop.xlane.xlu0 %5485
        %5487 = vadd.xlane.f32.xlu0 %v5466
        %v5488 = vpop.xlane.xlu0 %5487
        %5489 = vadd.xlane.f32.xlu0 %v5467
        %v5490 = vpop.xlane.xlu0 %5489
        %5491 = vadd.xlane.f32.xlu0 %v5468
        %v5492 = vpop.xlane.xlu0 %5491
        %5493 = vadd.xlane.f32.xlu0 %v5469
        %v5494 = vpop.xlane.xlu0 %5493
        %5495 = vadd.xlane.f32.xlu0 %v5470
        %v5496 = vpop.xlane.xlu0 %5495
        %5497 = vadd.xlane.f32.xlu0 %v5471
        %v5498 = vpop.xlane.xlu0 %5497
        %5499 = vadd.xlane.f32.xlu0 %v5472
        %v5500 = vpop.xlane.xlu0 %5499
        %5501 = vadd.xlane.f32.xlu0 %v5473
        %v5502 = vpop.xlane.xlu0 %5501
        %5503 = vadd.xlane.f32.xlu0 %v5474
        %v5504 = vpop.xlane.xlu0 %5503
        %5505 = vadd.xlane.f32.xlu0 %v5475
        %v5506 = vpop.xlane.xlu0 %5505
        %5507 = vadd.xlane.f32.xlu0 %v5476
        %v5508 = vpop.xlane.xlu0 %5507
        %v5509 = vmul.f32 %v5478, %v1598
        %v5510 = vmul.f32 %v5480, %v1598
        %v5511 = vmul.f32 %v5482, %v1598
        %v5512 = vmul.f32 %v5484, %v1598
        %v5513 = vmul.f32 %v5486, %v1598
        %v5514 = vmul.f32 %v5488, %v1598
        %v5515 = vmul.f32 %v5490, %v1598
        %v5516 = vmul.f32 %v5492, %v1598
        %v5517 = vmul.f32 %v5494, %v1598
        %v5518 = vmul.f32 %v5496, %v1598
        %v5519 = vmul.f32 %v5498, %v1598
        %v5520 = vmul.f32 %v5500, %v1598
        %v5521 = vmul.f32 %v5502, %v1598
        %v5522 = vmul.f32 %v5504, %v1598
        %v5523 = vmul.f32 %v5506, %v1598
        %v5524 = vmul.f32 %v5508, %v1598
        %v5525 = vadd.f32 %v5509, 1e-12
        %v5526 = vadd.f32 %v5510, 1e-12
        %v5527 = vadd.f32 %v5511, 1e-12
        %v5528 = vadd.f32 %v5512, 1e-12
        %v5529 = vadd.f32 %v5513, 1e-12
        %v5530 = vadd.f32 %v5514, 1e-12
        %v5531 = vadd.f32 %v5515, 1e-12
        %v5532 = vadd.f32 %v5516, 1e-12
        %v5533 = vadd.f32 %v5517, 1e-12
        %v5534 = vadd.f32 %v5518, 1e-12
        %v5535 = vadd.f32 %v5519, 1e-12
        %v5536 = vadd.f32 %v5520, 1e-12
        %v5537 = vadd.f32 %v5521, 1e-12
        %v5538 = vadd.f32 %v5522, 1e-12
        %v5539 = vadd.f32 %v5523, 1e-12
        %v5540 = vadd.f32 %v5524, 1e-12
        %v5541 = vrsqrt.pop %v5525
        %v5542 = vrsqrt.pop %v5526
        %v5543 = vrsqrt.pop %v5527
        %v5544 = vrsqrt.pop %v5528
        %v5545 = vrsqrt.pop %v5529
        %v5546 = vrsqrt.pop %v5530
        %v5547 = vrsqrt.pop %v5531
        %v5548 = vrsqrt.pop %v5532
        %v5549 = vrsqrt.pop %v5533
        %v5550 = vrsqrt.pop %v5534
        %v5551 = vrsqrt.pop %v5535
        %v5552 = vrsqrt.pop %v5536
        %v5553 = vrsqrt.pop %v5537
        %v5554 = vrsqrt.pop %v5538
        %v5555 = vrsqrt.pop %v5539
        %v5556 = vrsqrt.pop %v5540
        %v5557 = vmul.f32 %v5445, %v5541
        %v5558 = vmul.f32 %v5446, %v5542
        %v5559 = vmul.f32 %v5447, %v5543
        %v5560 = vmul.f32 %v5448, %v5544
        %v5561 = vmul.f32 %v5449, %v5545
        %v5562 = vmul.f32 %v5450, %v5546
        %v5563 = vmul.f32 %v5451, %v5547
        %v5564 = vmul.f32 %v5452, %v5548
        %v5565 = vmul.f32 %v5453, %v5549
        %v5566 = vmul.f32 %v5454, %v5550
        %v5567 = vmul.f32 %v5455, %v5551
        %v5568 = vmul.f32 %v5456, %v5552
        %v5569 = vmul.f32 %v5457, %v5553
        %v5570 = vmul.f32 %v5458, %v5554
        %v5571 = vmul.f32 %v5459, %v5555
        %v5572 = vmul.f32 %v5460, %v5556
        %v5574 = vlaneseq
        %v5575 = vshrl.u32 %v5574, 7
        %v5576 = vsub.s32 0, %v5575
        %v5577 = vrot.slane %v5395, %v5576
        %v5579 = vmul.f32 %v5557, %v5577
        %v5580 = vmul.f32 %v5558, %v5577
        %v5581 = vmul.f32 %v5559, %v5577
        %v5582 = vmul.f32 %v5560, %v5577
        %v5583 = vmul.f32 %v5561, %v5577
        %v5584 = vmul.f32 %v5562, %v5577
        %v5585 = vmul.f32 %v5563, %v5577
        %v5586 = vmul.f32 %v5564, %v5577
        %v5587 = vmul.f32 %v5565, %v5577
        %v5588 = vmul.f32 %v5566, %v5577
        %v5589 = vmul.f32 %v5567, %v5577
        %v5590 = vmul.f32 %v5568, %v5577
        %v5591 = vmul.f32 %v5569, %v5577
        %v5592 = vmul.f32 %v5570, %v5577
        %v5593 = vmul.f32 %v5571, %v5577
        %v5594 = vmul.f32 %v5572, %v5577
        %v5596 = vlaneseq
        %v5597 = vshrl.u32 %v5596, 7
        %v5598 = vsub.s32 0, %v5597
        %v5599 = vrot.slane %v5396, %v5598
        %v5601 = vadd.f32 %v5579, %v5599
        %v5602 = vadd.f32 %v5580, %v5599
        %v5603 = vadd.f32 %v5581, %v5599
        %v5604 = vadd.f32 %v5582, %v5599
        %v5605 = vadd.f32 %v5583, %v5599
        %v5606 = vadd.f32 %v5584, %v5599
        %v5607 = vadd.f32 %v5585, %v5599
        %v5608 = vadd.f32 %v5586, %v5599
        %v5609 = vadd.f32 %v5587, %v5599
        %v5610 = vadd.f32 %v5588, %v5599
        %v5611 = vadd.f32 %v5589, %v5599
        %v5612 = vadd.f32 %v5590, %v5599
        %v5613 = vadd.f32 %v5591, %v5599
        %v5614 = vadd.f32 %v5592, %v5599
        %v5615 = vadd.f32 %v5593, %v5599
        %v5616 = vadd.f32 %v5594, %v5599
        %v5617 = vpack.c.bf16 %v5602, %v5601
        %v5618 = vpack.c.bf16 %v5604, %v5603
        %v5619 = vpack.c.bf16 %v5606, %v5605
        %v5620 = vpack.c.bf16 %v5608, %v5607
        %v5621 = vpack.c.bf16 %v5610, %v5609
        %v5622 = vpack.c.bf16 %v5612, %v5611
        %v5623 = vpack.c.bf16 %v5614, %v5613
        %v5624 = vpack.c.bf16 %v5616, %v5615
        %s5625 = scalar_lea.vmem [#allocation6], 384
        %v5626 = vld [vmem:[%s5625] sm:$0xff]
        %v5627 = vld [vmem:[%s5625 + $0x8] sm:$0xff]
        %v5628 = vld [vmem:[%s5625 + $0x10] sm:$0xff]
        %v5629 = vld [vmem:[%s5625 + $0x18] sm:$0xff]
        %v5630 = vld [vmem:[%s5625 + $0x20] sm:$0xff]
        %v5631 = vld [vmem:[%s5625 + $0x28] sm:$0xff]
        %v5632 = vld [vmem:[%s5625 + $0x30] sm:$0xff]
        %v5633 = vld [vmem:[%s5625 + $0x38] sm:$0xff]
        %v5634 = vld [vmem:[%s5625 + $0x40] sm:$0xff]
        %v5635 = vld [vmem:[%s5625 + $0x48] sm:$0xff]
        %v5636 = vld [vmem:[%s5625 + $0x50] sm:$0xff]
        %v5637 = vld [vmem:[%s5625 + $0x58] sm:$0xff]
        %v5638 = vld [vmem:[%s5625 + $0x60] sm:$0xff]
        %v5639 = vld [vmem:[%s5625 + $0x68] sm:$0xff]
        %v5640 = vld [vmem:[%s5625 + $0x70] sm:$0xff]
        %v5641 = vld [vmem:[%s5625 + $0x78] sm:$0xff]
        %v5642 = vld [vmem:[%s5625 + $0x80] sm:$0xff]
        %v5643 = vld [vmem:[%s5625 + $0x88] sm:$0xff]
        %v5644 = vld [vmem:[%s5625 + $0x90] sm:$0xff]
        %v5645 = vld [vmem:[%s5625 + $0x98] sm:$0xff]
        %v5646 = vld [vmem:[%s5625 + $0xa0] sm:$0xff]
        %v5647 = vld [vmem:[%s5625 + $0xa8] sm:$0xff]
        %v5648 = vld [vmem:[%s5625 + $0xb0] sm:$0xff]
        %v5649 = vld [vmem:[%s5625 + $0xb8] sm:$0xff]
        %v5650 = vld [vmem:[%s5625 + $0xc0] sm:$0xff]
        %v5651 = vld [vmem:[%s5625 + $0xc8] sm:$0xff]
        %v5652 = vld [vmem:[%s5625 + $0xd0] sm:$0xff]
        %v5653 = vld [vmem:[%s5625 + $0xd8] sm:$0xff]
        %v5654 = vld [vmem:[%s5625 + $0xe0] sm:$0xff]
        %v5655 = vld [vmem:[%s5625 + $0xe8] sm:$0xff]
        %v5656 = vld [vmem:[%s5625 + $0xf0] sm:$0xff]
        %v5657 = vld [vmem:[%s5625 + $0xf8] sm:$0xff]
        %v5658 = vld [vmem:[%s5625 + $0x100] sm:$0xff]
        %v5659 = vld [vmem:[%s5625 + $0x108] sm:$0xff]
        %v5660 = vld [vmem:[%s5625 + $0x110] sm:$0xff]
        %v5661 = vld [vmem:[%s5625 + $0x118] sm:$0xff]
        %v5662 = vld [vmem:[%s5625 + $0x120] sm:$0xff]
        %v5663 = vld [vmem:[%s5625 + $0x128] sm:$0xff]
        %v5664 = vld [vmem:[%s5625 + $0x130] sm:$0xff]
        %v5665 = vld [vmem:[%s5625 + $0x138] sm:$0xff]
        %v5666 = vld [vmem:[%s5625 + $0x140] sm:$0xff]
        %v5667 = vld [vmem:[%s5625 + $0x148] sm:$0xff]
        %v5668 = vld [vmem:[%s5625 + $0x150] sm:$0xff]
        %v5669 = vld [vmem:[%s5625 + $0x158] sm:$0xff]
        %v5670 = vld [vmem:[%s5625 + $0x160] sm:$0xff]
        %v5671 = vld [vmem:[%s5625 + $0x168] sm:$0xff]
        %v5672 = vld [vmem:[%s5625 + $0x170] sm:$0xff]
        %v5673 = vld [vmem:[%s5625 + $0x178] sm:$0xff]
        %s5674 = scalar_lea.vmem %s8, 6
        %v5675 = vld [vmem:[%s5674] sm:$0x3f]
        %v5677 = vlaneseq
        %v5678 = vshrl.u32 %v5677, 7
        %v5679 = vsub.s32 0, %v5678
        %v5680 = vrot.slane %v5675, %v5679
        %v5681 = vlaneseq
        %v5682 = vshrl.u32 %v5681, 7
        %v5683 = vsub.s32 1, %v5682
        %v5684 = vrot.slane %v5675, %v5683
        %v5685 = vlaneseq
        %v5686 = vshrl.u32 %v5685, 7
        %v5687 = vsub.s32 2, %v5686
        %v5688 = vrot.slane %v5675, %v5687
        %v5689 = vlaneseq
        %v5690 = vshrl.u32 %v5689, 7
        %v5691 = vsub.s32 3, %v5690
        %v5692 = vrot.slane %v5675, %v5691
        %v5693 = vlaneseq
        %v5694 = vshrl.u32 %v5693, 7
        %v5695 = vsub.s32 4, %v5694
        %v5696 = vrot.slane %v5675, %v5695
        %v5697 = vlaneseq
        %v5698 = vshrl.u32 %v5697, 7
        %v5699 = vsub.s32 5, %v5698
        %v5700 = vrot.slane %v5675, %v5699
        %v5755 = vunpack.c.l.b16 %v5626
        %v5756 = vunpack.c.h.b16 %v5626
        %v5757 = vunpack.c.l.b16 %v5627
        %v5758 = vunpack.c.h.b16 %v5627
        %v5759 = vunpack.c.l.b16 %v5628
        %v5760 = vunpack.c.h.b16 %v5628
        %v5761 = vunpack.c.l.b16 %v5629
        %v5762 = vunpack.c.h.b16 %v5629
        %v5763 = vunpack.c.l.b16 %v5630
        %v5764 = vunpack.c.h.b16 %v5630
        %v5765 = vunpack.c.l.b16 %v5631
        %v5766 = vunpack.c.h.b16 %v5631
        %v5767 = vunpack.c.l.b16 %v5632
        %v5768 = vunpack.c.h.b16 %v5632
        %v5769 = vunpack.c.l.b16 %v5633
        %v5770 = vunpack.c.h.b16 %v5633
        %v5771 = vunpack.c.l.b16 %v5634
        %v5772 = vunpack.c.h.b16 %v5634
        %v5773 = vunpack.c.l.b16 %v5635
        %v5774 = vunpack.c.h.b16 %v5635
        %v5775 = vunpack.c.l.b16 %v5636
        %v5776 = vunpack.c.h.b16 %v5636
        %v5777 = vunpack.c.l.b16 %v5637
        %v5778 = vunpack.c.h.b16 %v5637
        %v5779 = vunpack.c.l.b16 %v5638
        %v5780 = vunpack.c.h.b16 %v5638
        %v5781 = vunpack.c.l.b16 %v5639
        %v5782 = vunpack.c.h.b16 %v5639
        %v5783 = vunpack.c.l.b16 %v5640
        %v5784 = vunpack.c.h.b16 %v5640
        %v5785 = vunpack.c.l.b16 %v5641
        %v5786 = vunpack.c.h.b16 %v5641
        %v5787 = vunpack.c.l.b16 %v5642
        %v5788 = vunpack.c.h.b16 %v5642
        %v5789 = vunpack.c.l.b16 %v5643
        %v5790 = vunpack.c.h.b16 %v5643
        %v5791 = vunpack.c.l.b16 %v5644
        %v5792 = vunpack.c.h.b16 %v5644
        %v5793 = vunpack.c.l.b16 %v5645
        %v5794 = vunpack.c.h.b16 %v5645
        %v5795 = vunpack.c.l.b16 %v5646
        %v5796 = vunpack.c.h.b16 %v5646
        %v5797 = vunpack.c.l.b16 %v5647
        %v5798 = vunpack.c.h.b16 %v5647
        %v5799 = vunpack.c.l.b16 %v5648
        %v5800 = vunpack.c.h.b16 %v5648
        %v5801 = vunpack.c.l.b16 %v5649
        %v5802 = vunpack.c.h.b16 %v5649
        %v5803 = vunpack.c.l.b16 %v5650
        %v5804 = vunpack.c.h.b16 %v5650
        %v5805 = vunpack.c.l.b16 %v5651
        %v5806 = vunpack.c.h.b16 %v5651
        %v5807 = vunpack.c.l.b16 %v5652
        %v5808 = vunpack.c.h.b16 %v5652
        %v5809 = vunpack.c.l.b16 %v5653
        %v5810 = vunpack.c.h.b16 %v5653
        %v5811 = vunpack.c.l.b16 %v5654
        %v5812 = vunpack.c.h.b16 %v5654
        %v5813 = vunpack.c.l.b16 %v5655
        %v5814 = vunpack.c.h.b16 %v5655
        %v5815 = vunpack.c.l.b16 %v5656
        %v5816 = vunpack.c.h.b16 %v5656
        %v5817 = vunpack.c.l.b16 %v5657
        %v5818 = vunpack.c.h.b16 %v5657
        %v5819 = vunpack.c.l.b16 %v5658
        %v5820 = vunpack.c.h.b16 %v5658
        %v5821 = vunpack.c.l.b16 %v5659
        %v5822 = vunpack.c.h.b16 %v5659
        %v5823 = vunpack.c.l.b16 %v5660
        %v5824 = vunpack.c.h.b16 %v5660
        %v5825 = vunpack.c.l.b16 %v5661
        %v5826 = vunpack.c.h.b16 %v5661
        %v5827 = vunpack.c.l.b16 %v5662
        %v5828 = vunpack.c.h.b16 %v5662
        %v5829 = vunpack.c.l.b16 %v5663
        %v5830 = vunpack.c.h.b16 %v5663
        %v5831 = vunpack.c.l.b16 %v5664
        %v5832 = vunpack.c.h.b16 %v5664
        %v5833 = vunpack.c.l.b16 %v5665
        %v5834 = vunpack.c.h.b16 %v5665
        %v5835 = vunpack.c.l.b16 %v5666
        %v5836 = vunpack.c.h.b16 %v5666
        %v5837 = vunpack.c.l.b16 %v5667
        %v5838 = vunpack.c.h.b16 %v5667
        %v5839 = vunpack.c.l.b16 %v5668
        %v5840 = vunpack.c.h.b16 %v5668
        %v5841 = vunpack.c.l.b16 %v5669
        %v5842 = vunpack.c.h.b16 %v5669
        %v5843 = vunpack.c.l.b16 %v5670
        %v5844 = vunpack.c.h.b16 %v5670
        %v5845 = vunpack.c.l.b16 %v5671
        %v5846 = vunpack.c.h.b16 %v5671
        %v5847 = vunpack.c.l.b16 %v5672
        %v5848 = vunpack.c.h.b16 %v5672
        %v5849 = vunpack.c.l.b16 %v5673
        %v5850 = vunpack.c.h.b16 %v5673
        %v5851 = vpack.c.b16 %v5761, %v5755
        %v5852 = vpack.c.b16 %v5762, %v5756
        %v5853 = vpack.c.b16 %v5763, %v5757
        %v5854 = vpack.c.b16 %v5764, %v5758
        %v5855 = vpack.c.b16 %v5765, %v5759
        %v5856 = vpack.c.b16 %v5766, %v5760
        %v5857 = vpack.c.b16 %v5773, %v5767
        %v5858 = vpack.c.b16 %v5774, %v5768
        %v5859 = vpack.c.b16 %v5775, %v5769
        %v5860 = vpack.c.b16 %v5776, %v5770
        %v5861 = vpack.c.b16 %v5777, %v5771
        %v5862 = vpack.c.b16 %v5778, %v5772
        %v5863 = vpack.c.b16 %v5785, %v5779
        %v5864 = vpack.c.b16 %v5786, %v5780
        %v5865 = vpack.c.b16 %v5787, %v5781
        %v5866 = vpack.c.b16 %v5788, %v5782
        %v5867 = vpack.c.b16 %v5789, %v5783
        %v5868 = vpack.c.b16 %v5790, %v5784
        %v5869 = vpack.c.b16 %v5797, %v5791
        %v5870 = vpack.c.b16 %v5798, %v5792
        %v5871 = vpack.c.b16 %v5799, %v5793
        %v5872 = vpack.c.b16 %v5800, %v5794
        %v5873 = vpack.c.b16 %v5801, %v5795
        %v5874 = vpack.c.b16 %v5802, %v5796
        %v5875 = vpack.c.b16 %v5809, %v5803
        %v5876 = vpack.c.b16 %v5810, %v5804
        %v5877 = vpack.c.b16 %v5811, %v5805
        %v5878 = vpack.c.b16 %v5812, %v5806
        %v5879 = vpack.c.b16 %v5813, %v5807
        %v5880 = vpack.c.b16 %v5814, %v5808
        %v5881 = vpack.c.b16 %v5821, %v5815
        %v5882 = vpack.c.b16 %v5822, %v5816
        %v5883 = vpack.c.b16 %v5823, %v5817
        %v5884 = vpack.c.b16 %v5824, %v5818
        %v5885 = vpack.c.b16 %v5825, %v5819
        %v5886 = vpack.c.b16 %v5826, %v5820
        %v5887 = vpack.c.b16 %v5833, %v5827
        %v5888 = vpack.c.b16 %v5834, %v5828
        %v5889 = vpack.c.b16 %v5835, %v5829
        %v5890 = vpack.c.b16 %v5836, %v5830
        %v5891 = vpack.c.b16 %v5837, %v5831
        %v5892 = vpack.c.b16 %v5838, %v5832
        %v5893 = vpack.c.b16 %v5845, %v5839
        %v5894 = vpack.c.b16 %v5846, %v5840
        %v5895 = vpack.c.b16 %v5847, %v5841
        %v5896 = vpack.c.b16 %v5848, %v5842
        %v5897 = vpack.c.b16 %v5849, %v5843
        %v5898 = vpack.c.b16 %v5850, %v5844
        %5947 = vmatprep.subr.bf16.mxu0 %v5852
        %5948 = vmatpush1.bf16.msra.mxu0 %v5851
        %5949 = vmatprep.subr.bf16.mxu0 %v5858
        %5950 = vmatpush1.bf16.msra.mxu0 %v5857
        %5951 = vmatprep.subr.bf16.mxu0 %v5864
        %5952 = vmatpush1.bf16.msra.mxu0 %v5863
        %5953 = vmatprep.subr.bf16.mxu0 %v5870
        %5954 = vmatpush1.bf16.msra.mxu0 %v5869
        %5955 = vmatprep.subr.bf16.mxu0 %v5876
        %5956 = vmatpush1.bf16.msra.mxu0 %v5875
        %5957 = vmatprep.subr.bf16.mxu0 %v5882
        %5958 = vmatpush1.bf16.msra.mxu0 %v5881
        %5959 = vmatprep.subr.bf16.mxu0 %v5888
        %5960 = vmatpush1.bf16.msra.mxu0 %v5887
        %5961 = vmatprep.subr.bf16.mxu0 %v5894
        %5962 = vmatpush1.bf16.msra.mxu0 %v5893
        %5963 = vmatprep.subr.bf16.mxu0 0
        %5964 = vmatpush1.bf16.msra.mxu0 0
        %5965 = vmatprep.subr.bf16.mxu0 0
        %5966 = vmatpush1.bf16.msra.mxu0 0
        %5967 = vmatprep.subr.bf16.mxu0 0
        %5968 = vmatpush1.bf16.msra.mxu0 0
        %5969 = vmatprep.subr.bf16.mxu0 0
        %5970 = vmatpush1.bf16.msra.mxu0 0
        %5971 = vmatprep.subr.bf16.mxu0 0
        %5972 = vmatpush1.bf16.msra.mxu0 0
        %5973 = vmatprep.subr.bf16.mxu0 0
        %5974 = vmatpush1.bf16.msra.mxu0 0
        %5975 = vmatprep.subr.bf16.mxu0 0
        %5976 = vmatpush1.bf16.msra.mxu0 0
        %5977 = vmatprep.subr.bf16.mxu0 0
        %5978 = vmatpush1.bf16.msra.mxu0 0
        %5979 = vmatprep.mubr.bf16.mxu0 0
        %5980 = vmatmul.mubr.bf16.gmra.mrb[0].mxu0 %v5617
        %v5981 = vpop.f32.mrb[0].mxu0
        %v5982 = vadd.f32 %v5680, %v5981
        %v5983 = vpop.f32.mrb[0].mxu0
        %v5984 = vadd.f32 %v5684, %v5983
        %v5985 = vpop.f32.mrb[0].mxu0
        %v5986 = vadd.f32 %v5680, %v5985
        %v5987 = vpop.f32.mrb[0].mxu0
        %v5988 = vadd.f32 %v5684, %v5987
        %5989 = vmatprep.mubr.bf16.mxu0 0
        %5990 = vmatmul.mubr.bf16.gmra.mrb[0].mxu0 %v5618
        %v5991 = vpop.f32.mrb[0].mxu0
        %v5992 = vadd.f32 %v5680, %v5991
        %v5993 = vpop.f32.mrb[0].mxu0
        %v5994 = vadd.f32 %v5684, %v5993
        %v5995 = vpop.f32.mrb[0].mxu0
        %v5996 = vadd.f32 %v5680, %v5995
        %v5997 = vpop.f32.mrb[0].mxu0
        %v5998 = vadd.f32 %v5684, %v5997
        %5999 = vmatprep.mubr.bf16.mxu0 0
        %6000 = vmatmul.mubr.bf16.gmra.mrb[0].mxu0 %v5619
        %v6001 = vpop.f32.mrb[0].mxu0
        %v6002 = vadd.f32 %v5680, %v6001
        %v6003 = vpop.f32.mrb[0].mxu0
        %v6004 = vadd.f32 %v5684, %v6003
        %v6005 = vpop.f32.mrb[0].mxu0
        %v6006 = vadd.f32 %v5680, %v6005
        %v6007 = vpop.f32.mrb[0].mxu0
        %v6008 = vadd.f32 %v5684, %v6007
        %6009 = vmatprep.mubr.bf16.mxu0 0
        %6010 = vmatmul.mubr.bf16.gmra.mrb[0].mxu0 %v5620
        %v6011 = vpop.f32.mrb[0].mxu0
        %v6012 = vadd.f32 %v5680, %v6011
        %v6013 = vpop.f32.mrb[0].mxu0
        %v6014 = vadd.f32 %v5684, %v6013
        %v6015 = vpop.f32.mrb[0].mxu0
        %v6016 = vadd.f32 %v5680, %v6015
        %v6017 = vpop.f32.mrb[0].mxu0
        %v6018 = vadd.f32 %v5684, %v6017
        %6019 = vmatprep.mubr.bf16.mxu0 0
        %6020 = vmatmul.mubr.bf16.gmra.mrb[0].mxu0 %v5621
        %v6021 = vpop.f32.mrb[0].mxu0
        %v6022 = vadd.f32 %v5680, %v6021
        %v6023 = vpop.f32.mrb[0].mxu0
        %v6024 = vadd.f32 %v5684, %v6023
        %v6025 = vpop.f32.mrb[0].mxu0
        %v6026 = vadd.f32 %v5680, %v6025
        %v6027 = vpop.f32.mrb[0].mxu0
        %v6028 = vadd.f32 %v5684, %v6027
        %6029 = vmatprep.mubr.bf16.mxu0 0
        %6030 = vmatmul.mubr.bf16.gmra.mrb[0].mxu0 %v5622
        %v6031 = vpop.f32.mrb[0].mxu0
        %v6032 = vadd.f32 %v5680, %v6031
        %v6033 = vpop.f32.mrb[0].mxu0
        %v6034 = vadd.f32 %v5684, %v6033
        %v6035 = vpop.f32.mrb[0].mxu0
        %v6036 = vadd.f32 %v5680, %v6035
        %v6037 = vpop.f32.mrb[0].mxu0
        %v6038 = vadd.f32 %v5684, %v6037
        %6039 = vmatprep.mubr.bf16.mxu0 0
        %6040 = vmatmul.mubr.bf16.gmra.mrb[0].mxu0 %v5623
        %v6041 = vpop.f32.mrb[0].mxu0
        %v6042 = vadd.f32 %v5680, %v6041
        %v6043 = vpop.f32.mrb[0].mxu0
        %v6044 = vadd.f32 %v5684, %v6043
        %v6045 = vpop.f32.mrb[0].mxu0
        %v6046 = vadd.f32 %v5680, %v6045
        %v6047 = vpop.f32.mrb[0].mxu0
        %v6048 = vadd.f32 %v5684, %v6047
        %6049 = vmatprep.mubr.bf16.mxu0 0
        %6050 = vmatmul.mubr.bf16.gmra.mrb[0].mxu0 %v5624
        %v6051 = vpop.f32.mrb[0].mxu0
        %v6052 = vadd.f32 %v5680, %v6051
        %v6053 = vpop.f32.mrb[0].mxu0
        %v6054 = vadd.f32 %v5684, %v6053
        %v6055 = vpop.f32.mrb[0].mxu0
        %v6056 = vadd.f32 %v5680, %v6055
        %v6057 = vpop.f32.mrb[0].mxu0
        %v6058 = vadd.f32 %v5684, %v6057
        %6059 = vdwg.mxu0
        %6060 = vmatprep.subr.bf16.mxu0 %v5854
        %6061 = vmatpush1.bf16.msra.mxu0 %v5853
        %6062 = vmatprep.subr.bf16.mxu0 %v5860
        %6063 = vmatpush1.bf16.msra.mxu0 %v5859
        %6064 = vmatprep.subr.bf16.mxu0 %v5866
        %6065 = vmatpush1.bf16.msra.mxu0 %v5865
        %6066 = vmatprep.subr.bf16.mxu0 %v5872
        %6067 = vmatpush1.bf16.msra.mxu0 %v5871
        %6068 = vmatprep.subr.bf16.mxu0 %v5878
        %6069 = vmatpush1.bf16.msra.mxu0 %v5877
        %6070 = vmatprep.subr.bf16.mxu0 %v5884
        %6071 = vmatpush1.bf16.msra.mxu0 %v5883
        %6072 = vmatprep.subr.bf16.mxu0 %v5890
        %6073 = vmatpush1.bf16.msra.mxu0 %v5889
        %6074 = vmatprep.subr.bf16.mxu0 %v5896
        %6075 = vmatpush1.bf16.msra.mxu0 %v5895
        %6076 = vmatprep.subr.bf16.mxu0 0
        %6077 = vmatpush1.bf16.msra.mxu0 0
        %6078 = vmatprep.subr.bf16.mxu0 0
        %6079 = vmatpush1.bf16.msra.mxu0 0
        %6080 = vmatprep.subr.bf16.mxu0 0
        %6081 = vmatpush1.bf16.msra.mxu0 0
        %6082 = vmatprep.subr.bf16.mxu0 0
        %6083 = vmatpush1.bf16.msra.mxu0 0
        %6084 = vmatprep.subr.bf16.mxu0 0
        %6085 = vmatpush1.bf16.msra.mxu0 0
        %6086 = vmatprep.subr.bf16.mxu0 0
        %6087 = vmatpush1.bf16.msra.mxu0 0
        %6088 = vmatprep.subr.bf16.mxu0 0
        %6089 = vmatpush1.bf16.msra.mxu0 0
        %6090 = vmatprep.subr.bf16.mxu0 0
        %6091 = vmatpush1.bf16.msra.mxu0 0
        %6092 = vmatprep.mubr.bf16.mxu0 0
        %6093 = vmatmul.mubr.bf16.gmra.mrb[0].mxu0 %v5617
        %v6094 = vpop.f32.mrb[0].mxu0
        %v6095 = vadd.f32 %v5688, %v6094
        %v6096 = vpop.f32.mrb[0].mxu0
        %v6097 = vadd.f32 %v5692, %v6096
        %v6098 = vpop.f32.mrb[0].mxu0
        %v6099 = vadd.f32 %v5688, %v6098
        %v6100 = vpop.f32.mrb[0].mxu0
        %v6101 = vadd.f32 %v5692, %v6100
        %6102 = vmatprep.mubr.bf16.mxu0 0
        %6103 = vmatmul.mubr.bf16.gmra.mrb[0].mxu0 %v5618
        %v6104 = vpop.f32.mrb[0].mxu0
        %v6105 = vadd.f32 %v5688, %v6104
        %v6106 = vpop.f32.mrb[0].mxu0
        %v6107 = vadd.f32 %v5692, %v6106
        %v6108 = vpop.f32.mrb[0].mxu0
        %v6109 = vadd.f32 %v5688, %v6108
        %v6110 = vpop.f32.mrb[0].mxu0
        %v6111 = vadd.f32 %v5692, %v6110
        %6112 = vmatprep.mubr.bf16.mxu0 0
        %6113 = vmatmul.mubr.bf16.gmra.mrb[0].mxu0 %v5619
        %v6114 = vpop.f32.mrb[0].mxu0
        %v6115 = vadd.f32 %v5688, %v6114
        %v6116 = vpop.f32.mrb[0].mxu0
        %v6117 = vadd.f32 %v5692, %v6116
        %v6118 = vpop.f32.mrb[0].mxu0
        %v6119 = vadd.f32 %v5688, %v6118
        %v6120 = vpop.f32.mrb[0].mxu0
        %v6121 = vadd.f32 %v5692, %v6120
        %6122 = vmatprep.mubr.bf16.mxu0 0
        %6123 = vmatmul.mubr.bf16.gmra.mrb[0].mxu0 %v5620
        %v6124 = vpop.f32.mrb[0].mxu0
        %v6125 = vadd.f32 %v5688, %v6124
        %v6126 = vpop.f32.mrb[0].mxu0
        %v6127 = vadd.f32 %v5692, %v6126
        %v6128 = vpop.f32.mrb[0].mxu0
        %v6129 = vadd.f32 %v5688, %v6128
        %v6130 = vpop.f32.mrb[0].mxu0
        %v6131 = vadd.f32 %v5692, %v6130
        %6132 = vmatprep.mubr.bf16.mxu0 0
        %6133 = vmatmul.mubr.bf16.gmra.mrb[0].mxu0 %v5621
        %v6134 = vpop.f32.mrb[0].mxu0
        %v6135 = vadd.f32 %v5688, %v6134
        %v6136 = vpop.f32.mrb[0].mxu0
        %v6137 = vadd.f32 %v5692, %v6136
        %v6138 = vpop.f32.mrb[0].mxu0
        %v6139 = vadd.f32 %v5688, %v6138
        %v6140 = vpop.f32.mrb[0].mxu0
        %v6141 = vadd.f32 %v5692, %v6140
        %6142 = vmatprep.mubr.bf16.mxu0 0
        %6143 = vmatmul.mubr.bf16.gmra.mrb[0].mxu0 %v5622
        %v6144 = vpop.f32.mrb[0].mxu0
        %v6145 = vadd.f32 %v5688, %v6144
        %v6146 = vpop.f32.mrb[0].mxu0
        %v6147 = vadd.f32 %v5692, %v6146
        %v6148 = vpop.f32.mrb[0].mxu0
        %v6149 = vadd.f32 %v5688, %v6148
        %v6150 = vpop.f32.mrb[0].mxu0
        %v6151 = vadd.f32 %v5692, %v6150
        %6152 = vmatprep.mubr.bf16.mxu0 0
        %6153 = vmatmul.mubr.bf16.gmra.mrb[0].mxu0 %v5623
        %v6154 = vpop.f32.mrb[0].mxu0
        %v6155 = vadd.f32 %v5688, %v6154
        %v6156 = vpop.f32.mrb[0].mxu0
        %v6157 = vadd.f32 %v5692, %v6156
        %v6158 = vpop.f32.mrb[0].mxu0
        %v6159 = vadd.f32 %v5688, %v6158
        %v6160 = vpop.f32.mrb[0].mxu0
        %v6161 = vadd.f32 %v5692, %v6160
        %6162 = vmatprep.mubr.bf16.mxu0 0
        %6163 = vmatmul.mubr.bf16.gmra.mrb[0].mxu0 %v5624
        %v6164 = vpop.f32.mrb[0].mxu0
        %v6165 = vadd.f32 %v5688, %v6164
        %v6166 = vpop.f32.mrb[0].mxu0
        %v6167 = vadd.f32 %v5692, %v6166
        %v6168 = vpop.f32.mrb[0].mxu0
        %v6169 = vadd.f32 %v5688, %v6168
        %v6170 = vpop.f32.mrb[0].mxu0
        %v6171 = vadd.f32 %v5692, %v6170
        %6172 = vdwg.mxu0
        %6173 = vmatprep.subr.bf16.mxu0 %v5856
        %6174 = vmatpush1.bf16.msra.mxu0 %v5855
        %6175 = vmatprep.subr.bf16.mxu0 %v5862
        %6176 = vmatpush1.bf16.msra.mxu0 %v5861
        %6177 = vmatprep.subr.bf16.mxu0 %v5868
        %6178 = vmatpush1.bf16.msra.mxu0 %v5867
        %6179 = vmatprep.subr.bf16.mxu0 %v5874
        %6180 = vmatpush1.bf16.msra.mxu0 %v5873
        %6181 = vmatprep.subr.bf16.mxu0 %v5880
        %6182 = vmatpush1.bf16.msra.mxu0 %v5879
        %6183 = vmatprep.subr.bf16.mxu0 %v5886
        %6184 = vmatpush1.bf16.msra.mxu0 %v5885
        %6185 = vmatprep.subr.bf16.mxu0 %v5892
        %6186 = vmatpush1.bf16.msra.mxu0 %v5891
        %6187 = vmatprep.subr.bf16.mxu0 %v5898
        %6188 = vmatpush1.bf16.msra.mxu0 %v5897
        %6189 = vmatprep.subr.bf16.mxu0 0
        %6190 = vmatpush1.bf16.msra.mxu0 0
        %6191 = vmatprep.subr.bf16.mxu0 0
        %6192 = vmatpush1.bf16.msra.mxu0 0
        %6193 = vmatprep.subr.bf16.mxu0 0
        %6194 = vmatpush1.bf16.msra.mxu0 0
        %6195 = vmatprep.subr.bf16.mxu0 0
        %6196 = vmatpush1.bf16.msra.mxu0 0
        %6197 = vmatprep.subr.bf16.mxu0 0
        %6198 = vmatpush1.bf16.msra.mxu0 0
        %6199 = vmatprep.subr.bf16.mxu0 0
        %6200 = vmatpush1.bf16.msra.mxu0 0
        %6201 = vmatprep.subr.bf16.mxu0 0
        %6202 = vmatpush1.bf16.msra.mxu0 0
        %6203 = vmatprep.subr.bf16.mxu0 0
        %6204 = vmatpush1.bf16.msra.mxu0 0
        %6205 = vmatprep.mubr.bf16.mxu0 0
        %6206 = vmatmul.mubr.bf16.gmra.mrb[0].mxu0 %v5617
        %v6207 = vpop.f32.mrb[0].mxu0
        %v6208 = vadd.f32 %v5696, %v6207
        %v6209 = vpop.f32.mrb[0].mxu0
        %v6210 = vadd.f32 %v5700, %v6209
        %v6211 = vpop.f32.mrb[0].mxu0
        %v6212 = vadd.f32 %v5696, %v6211
        %v6213 = vpop.f32.mrb[0].mxu0
        %v6214 = vadd.f32 %v5700, %v6213
        %6215 = vmatprep.mubr.bf16.mxu0 0
        %6216 = vmatmul.mubr.bf16.gmra.mrb[0].mxu0 %v5618
        %v6217 = vpop.f32.mrb[0].mxu0
        %v6218 = vadd.f32 %v5696, %v6217
        %v6219 = vpop.f32.mrb[0].mxu0
        %v6220 = vadd.f32 %v5700, %v6219
        %v6221 = vpop.f32.mrb[0].mxu0
        %v6222 = vadd.f32 %v5696, %v6221
        %v6223 = vpop.f32.mrb[0].mxu0
        %v6224 = vadd.f32 %v5700, %v6223
        %6225 = vmatprep.mubr.bf16.mxu0 0
        %6226 = vmatmul.mubr.bf16.gmra.mrb[0].mxu0 %v5619
        %v6227 = vpop.f32.mrb[0].mxu0
        %v6228 = vadd.f32 %v5696, %v6227
        %v6229 = vpop.f32.mrb[0].mxu0
        %v6230 = vadd.f32 %v5700, %v6229
        %v6231 = vpop.f32.mrb[0].mxu0
        %v6232 = vadd.f32 %v5696, %v6231
        %v6233 = vpop.f32.mrb[0].mxu0
        %v6234 = vadd.f32 %v5700, %v6233
        %6235 = vmatprep.mubr.bf16.mxu0 0
        %6236 = vmatmul.mubr.bf16.gmra.mrb[0].mxu0 %v5620
        %v6237 = vpop.f32.mrb[0].mxu0
        %v6238 = vadd.f32 %v5696, %v6237
        %v6239 = vpop.f32.mrb[0].mxu0
        %v6240 = vadd.f32 %v5700, %v6239
        %v6241 = vpop.f32.mrb[0].mxu0
        %v6242 = vadd.f32 %v5696, %v6241
        %v6243 = vpop.f32.mrb[0].mxu0
        %v6244 = vadd.f32 %v5700, %v6243
        %6245 = vmatprep.mubr.bf16.mxu0 0
        %6246 = vmatmul.mubr.bf16.gmra.mrb[0].mxu0 %v5621
        %v6247 = vpop.f32.mrb[0].mxu0
        %v6248 = vadd.f32 %v5696, %v6247
        %v6249 = vpop.f32.mrb[0].mxu0
        %v6250 = vadd.f32 %v5700, %v6249
        %v6251 = vpop.f32.mrb[0].mxu0
        %v6252 = vadd.f32 %v5696, %v6251
        %v6253 = vpop.f32.mrb[0].mxu0
        %v6254 = vadd.f32 %v5700, %v6253
        %6255 = vmatprep.mubr.bf16.mxu0 0
        %6256 = vmatmul.mubr.bf16.gmra.mrb[0].mxu0 %v5622
        %v6257 = vpop.f32.mrb[0].mxu0
        %v6258 = vadd.f32 %v5696, %v6257
        %v6259 = vpop.f32.mrb[0].mxu0
        %v6260 = vadd.f32 %v5700, %v6259
        %v6261 = vpop.f32.mrb[0].mxu0
        %v6262 = vadd.f32 %v5696, %v6261
        %v6263 = vpop.f32.mrb[0].mxu0
        %v6264 = vadd.f32 %v5700, %v6263
        %6265 = vmatprep.mubr.bf16.mxu0 0
        %6266 = vmatmul.mubr.bf16.gmra.mrb[0].mxu0 %v5623
        %v6267 = vpop.f32.mrb[0].mxu0
        %v6268 = vadd.f32 %v5696, %v6267
        %v6269 = vpop.f32.mrb[0].mxu0
        %v6270 = vadd.f32 %v5700, %v6269
        %v6271 = vpop.f32.mrb[0].mxu0
        %v6272 = vadd.f32 %v5696, %v6271
        %v6273 = vpop.f32.mrb[0].mxu0
        %v6274 = vadd.f32 %v5700, %v6273
        %6275 = vmatprep.mubr.bf16.mxu0 0
        %6276 = vmatmul.mubr.bf16.gmra.mrb[0].mxu0 %v5624
        %v6277 = vpop.f32.mrb[0].mxu0
        %v6278 = vadd.f32 %v5696, %v6277
        %v6279 = vpop.f32.mrb[0].mxu0
        %v6280 = vadd.f32 %v5700, %v6279
        %v6281 = vpop.f32.mrb[0].mxu0
        %v6282 = vadd.f32 %v5696, %v6281
        %v6283 = vpop.f32.mrb[0].mxu0
        %v6284 = vadd.f32 %v5700, %v6283
        %6285 = vdwg.mxu0
        %s6286 = scalar_lea.vmem [#allocation7], 128
        %v6287 = vld [vmem:[%s6286] sm:$0xf]
        %v6288 = vld [vmem:[%s6286 + $0x4] sm:$0xf]
        %v6289 = vld [vmem:[%s6286 + $0x8] sm:$0xf]
        %v6290 = vld [vmem:[%s6286 + $0xc] sm:$0xf]
        %v6291 = vld [vmem:[%s6286 + $0x10] sm:$0xf]
        %v6292 = vld [vmem:[%s6286 + $0x14] sm:$0xf]
        %v6293 = vld [vmem:[%s6286 + $0x18] sm:$0xf]
        %v6294 = vld [vmem:[%s6286 + $0x1c] sm:$0xf]
        %v6295 = vld [vmem:[%s6286 + $0x20] sm:$0xf]
        %v6296 = vld [vmem:[%s6286 + $0x24] sm:$0xf]
        %v6297 = vld [vmem:[%s6286 + $0x28] sm:$0xf]
        %v6298 = vld [vmem:[%s6286 + $0x2c] sm:$0xf]
        %v6299 = vld [vmem:[%s6286 + $0x30] sm:$0xf]
        %v6300 = vld [vmem:[%s6286 + $0x34] sm:$0xf]
        %v6301 = vld [vmem:[%s6286 + $0x38] sm:$0xf]
        %v6302 = vld [vmem:[%s6286 + $0x3c] sm:$0xf]
        %v6303 = vld [vmem:[%s6286 + $0x40] sm:$0xf]
        %v6304 = vld [vmem:[%s6286 + $0x44] sm:$0xf]
        %v6305 = vld [vmem:[%s6286 + $0x48] sm:$0xf]
        %v6306 = vld [vmem:[%s6286 + $0x4c] sm:$0xf]
        %v6307 = vld [vmem:[%s6286 + $0x50] sm:$0xf]
        %v6308 = vld [vmem:[%s6286 + $0x54] sm:$0xf]
        %v6309 = vld [vmem:[%s6286 + $0x58] sm:$0xf]
        %v6310 = vld [vmem:[%s6286 + $0x5c] sm:$0xf]
        %v6311 = vld [vmem:[%s6286 + $0x60] sm:$0xf]
        %v6312 = vld [vmem:[%s6286 + $0x64] sm:$0xf]
        %v6313 = vld [vmem:[%s6286 + $0x68] sm:$0xf]
        %v6314 = vld [vmem:[%s6286 + $0x6c] sm:$0xf]
        %v6315 = vld [vmem:[%s6286 + $0x70] sm:$0xf]
        %v6316 = vld [vmem:[%s6286 + $0x74] sm:$0xf]
        %v6317 = vld [vmem:[%s6286 + $0x78] sm:$0xf]
        %v6318 = vld [vmem:[%s6286 + $0x7c] sm:$0xf]
        %v6319 = vpack.c.bf16 %v5986, %v5982
        %v6320 = vpack.c.bf16 %v5996, %v5992
        %v6321 = vpack.c.bf16 %v6006, %v6002
        %v6322 = vpack.c.bf16 %v6016, %v6012
        %v6323 = vpack.c.bf16 %v6026, %v6022
        %v6324 = vpack.c.bf16 %v6036, %v6032
        %v6325 = vpack.c.bf16 %v6046, %v6042
        %v6326 = vpack.c.bf16 %v6056, %v6052
        %v6327 = vpack.c.bf16 %v5988, %v5984
        %v6328 = vpack.c.bf16 %v5998, %v5994
        %v6329 = vpack.c.bf16 %v6008, %v6004
        %v6330 = vpack.c.bf16 %v6018, %v6014
        %v6331 = vpack.c.bf16 %v6028, %v6024
        %v6332 = vpack.c.bf16 %v6038, %v6034
        %v6333 = vpack.c.bf16 %v6048, %v6044
        %v6334 = vpack.c.bf16 %v6058, %v6054
        %6335 = vmatprep.subr.bf16.mxu0 0
        %6336 = vmatpush1.bf16.xpose.msra.mxu0 %v6327
        %6337 = vmatprep.subr.bf16.mxu0 0
        %6338 = vmatpush1.bf16.xpose.msra.mxu0 %v6328
        %6339 = vmatprep.subr.bf16.mxu0 0
        %6340 = vmatpush1.bf16.xpose.msra.mxu0 %v6329
        %6341 = vmatprep.subr.bf16.mxu0 0
        %6342 = vmatpush1.bf16.xpose.msra.mxu0 %v6330
        %6343 = vmatprep.subr.bf16.mxu0 0
        %6344 = vmatpush1.bf16.xpose.msra.mxu0 %v6331
        %6345 = vmatprep.subr.bf16.mxu0 0
        %6346 = vmatpush1.bf16.xpose.msra.mxu0 %v6332
        %6347 = vmatprep.subr.bf16.mxu0 0
        %6348 = vmatpush1.bf16.xpose.msra.mxu0 %v6333
        %6349 = vmatprep.subr.bf16.mxu0 0
        %6350 = vmatpush1.bf16.xpose.msra.mxu0 %v6334
        %6351 = vmatprep.subr.bf16.mxu0 0
        %6352 = vmatpush1.bf16.xpose.msra.mxu0 0
        %6353 = vmatprep.subr.bf16.mxu0 0
        %6354 = vmatpush1.bf16.xpose.msra.mxu0 0
        %6355 = vmatprep.subr.bf16.mxu0 0
        %6356 = vmatpush1.bf16.xpose.msra.mxu0 0
        %6357 = vmatprep.subr.bf16.mxu0 0
        %6358 = vmatpush1.bf16.xpose.msra.mxu0 0
        %6359 = vmatprep.subr.bf16.mxu0 0
        %6360 = vmatpush1.bf16.xpose.msra.mxu0 0
        %6361 = vmatprep.subr.bf16.mxu0 0
        %6362 = vmatpush1.bf16.xpose.msra.mxu0 0
        %6363 = vmatprep.subr.bf16.mxu0 0
        %6364 = vmatpush1.bf16.xpose.msra.mxu0 0
        %6365 = vmatprep.subr.bf16.mxu0 0
        %6366 = vmatpush1.bf16.xpose.msra.mxu0 0
        %6367 = vmatprep.mubr.bf16.mxu0 0
        %6368 = vmatmul.mubr.bf16.gmra.mrb[0].mxu0 %v6319
        %v6369 = vpop.f32.mrb[0].mxu0
        %v6370 = vadd.f32 0.0, %v6369
        %v6371 = vpop.f32.mrb[0].mxu0
        %v6372 = vpop.f32.mrb[0].mxu0
        %v6373 = vadd.f32 0.0, %v6372
        %v6374 = vpop.f32.mrb[0].mxu0
        %6375 = vmatprep.mubr.bf16.mxu0 0
        %6376 = vmatmul.mubr.bf16.gmra.mrb[0].mxu0 %v6320
        %v6377 = vpop.f32.mrb[0].mxu0
        %v6378 = vadd.f32 0.0, %v6377
        %v6379 = vpop.f32.mrb[0].mxu0
        %v6380 = vpop.f32.mrb[0].mxu0
        %v6381 = vadd.f32 0.0, %v6380
        %v6382 = vpop.f32.mrb[0].mxu0
        %6383 = vmatprep.mubr.bf16.mxu0 0
        %6384 = vmatmul.mubr.bf16.gmra.mrb[0].mxu0 %v6321
        %v6385 = vpop.f32.mrb[0].mxu0
        %v6386 = vadd.f32 0.0, %v6385
        %v6387 = vpop.f32.mrb[0].mxu0
        %v6388 = vpop.f32.mrb[0].mxu0
        %v6389 = vadd.f32 0.0, %v6388
        %v6390 = vpop.f32.mrb[0].mxu0
        %6391 = vmatprep.mubr.bf16.mxu0 0
        %6392 = vmatmul.mubr.bf16.gmra.mrb[0].mxu0 %v6322
        %v6393 = vpop.f32.mrb[0].mxu0
        %v6394 = vadd.f32 0.0, %v6393
        %v6395 = vpop.f32.mrb[0].mxu0
        %v6396 = vpop.f32.mrb[0].mxu0
        %v6397 = vadd.f32 0.0, %v6396
        %v6398 = vpop.f32.mrb[0].mxu0
        %6399 = vmatprep.mubr.bf16.mxu0 0
        %6400 = vmatmul.mubr.bf16.gmra.mrb[0].mxu0 %v6323
        %v6401 = vpop.f32.mrb[0].mxu0
        %v6402 = vadd.f32 0.0, %v6401
        %v6403 = vpop.f32.mrb[0].mxu0
        %v6404 = vpop.f32.mrb[0].mxu0
        %v6405 = vadd.f32 0.0, %v6404
        %v6406 = vpop.f32.mrb[0].mxu0
        %6407 = vmatprep.mubr.bf16.mxu0 0
        %6408 = vmatmul.mubr.bf16.gmra.mrb[0].mxu0 %v6324
        %v6409 = vpop.f32.mrb[0].mxu0
        %v6410 = vadd.f32 0.0, %v6409
        %v6411 = vpop.f32.mrb[0].mxu0
        %v6412 = vpop.f32.mrb[0].mxu0
        %v6413 = vadd.f32 0.0, %v6412
        %v6414 = vpop.f32.mrb[0].mxu0
        %6415 = vmatprep.mubr.bf16.mxu0 0
        %6416 = vmatmul.mubr.bf16.gmra.mrb[0].mxu0 %v6325
        %v6417 = vpop.f32.mrb[0].mxu0
        %v6418 = vadd.f32 0.0, %v6417
        %v6419 = vpop.f32.mrb[0].mxu0
        %v6420 = vpop.f32.mrb[0].mxu0
        %v6421 = vadd.f32 0.0, %v6420
        %v6422 = vpop.f32.mrb[0].mxu0
        %6423 = vmatprep.mubr.bf16.mxu0 0
        %6424 = vmatmul.mubr.bf16.gmra.mrb[0].mxu0 %v6326
        %v6425 = vpop.f32.mrb[0].mxu0
        %v6426 = vadd.f32 0.0, %v6425
        %v6427 = vpop.f32.mrb[0].mxu0
        %v6428 = vpop.f32.mrb[0].mxu0
        %v6429 = vadd.f32 0.0, %v6428
        %v6430 = vpop.f32.mrb[0].mxu0
        %6431 = vdwg.mxu0
        %v6432 = vmul.f32 %v6370, 0.125
        %v6433 = vmul.f32 %v6373, 0.125
        %v6434 = vmul.f32 %v6378, 0.125
        %v6435 = vmul.f32 %v6381, 0.125
        %v6436 = vmul.f32 %v6386, 0.125
        %v6437 = vmul.f32 %v6389, 0.125
        %v6438 = vmul.f32 %v6394, 0.125
        %v6439 = vmul.f32 %v6397, 0.125
        %v6440 = vmul.f32 %v6402, 0.125
        %v6441 = vmul.f32 %v6405, 0.125
        %v6442 = vmul.f32 %v6410, 0.125
        %v6443 = vmul.f32 %v6413, 0.125
        %v6444 = vmul.f32 %v6418, 0.125
        %v6445 = vmul.f32 %v6421, 0.125
        %v6446 = vmul.f32 %v6426, 0.125
        %v6447 = vmul.f32 %v6429, 0.125
        %v6448 = vadd.f32 %v6432, %v1794
        %v6449 = vadd.f32 %v6433, %v1794
        %v6450 = vadd.f32 %v6434, %v1794
        %v6451 = vadd.f32 %v6435, %v1794
        %v6452 = vadd.f32 %v6436, %v1794
        %v6453 = vadd.f32 %v6437, %v1794
        %v6454 = vadd.f32 %v6438, %v1794
        %v6455 = vadd.f32 %v6439, %v1794
        %v6456 = vadd.f32 %v6440, %v1794
        %v6457 = vadd.f32 %v6441, %v1794
        %v6458 = vadd.f32 %v6442, %v1794
        %v6459 = vadd.f32 %v6443, %v1794
        %v6460 = vadd.f32 %v6444, %v1794
        %v6461 = vadd.f32 %v6445, %v1794
        %v6462 = vadd.f32 %v6446, %v1794
        %v6463 = vadd.f32 %v6447, %v1794
        %6464 = vmax.xlane.f32.xlu0 %v6448
        %v6465 = vpop.xlane.xlu0 %6464
        %6466 = vmax.xlane.f32.xlu0 %v6449
        %v6467 = vpop.xlane.xlu0 %6466
        %6468 = vmax.xlane.f32.xlu0 %v6450
        %v6469 = vpop.xlane.xlu0 %6468
        %6470 = vmax.xlane.f32.xlu0 %v6451
        %v6471 = vpop.xlane.xlu0 %6470
        %6472 = vmax.xlane.f32.xlu0 %v6452
        %v6473 = vpop.xlane.xlu0 %6472
        %6474 = vmax.xlane.f32.xlu0 %v6453
        %v6475 = vpop.xlane.xlu0 %6474
        %6476 = vmax.xlane.f32.xlu0 %v6454
        %v6477 = vpop.xlane.xlu0 %6476
        %6478 = vmax.xlane.f32.xlu0 %v6455
        %v6479 = vpop.xlane.xlu0 %6478
        %6480 = vmax.xlane.f32.xlu0 %v6456
        %v6481 = vpop.xlane.xlu0 %6480
        %6482 = vmax.xlane.f32.xlu0 %v6457
        %v6483 = vpop.xlane.xlu0 %6482
        %6484 = vmax.xlane.f32.xlu0 %v6458
        %v6485 = vpop.xlane.xlu0 %6484
        %6486 = vmax.xlane.f32.xlu0 %v6459
        %v6487 = vpop.xlane.xlu0 %6486
        %6488 = vmax.xlane.f32.xlu0 %v6460
        %v6489 = vpop.xlane.xlu0 %6488
        %6490 = vmax.xlane.f32.xlu0 %v6461
        %v6491 = vpop.xlane.xlu0 %6490
        %6492 = vmax.xlane.f32.xlu0 %v6462
        %v6493 = vpop.xlane.xlu0 %6492
        %6494 = vmax.xlane.f32.xlu0 %v6463
        %v6495 = vpop.xlane.xlu0 %6494
        %v6496 = vsub.f32 %v6448, %v6465
        %v6497 = vsub.f32 %v6449, %v6467
        %v6498 = vsub.f32 %v6450, %v6469
        %v6499 = vsub.f32 %v6451, %v6471
        %v6500 = vsub.f32 %v6452, %v6473
        %v6501 = vsub.f32 %v6453, %v6475
        %v6502 = vsub.f32 %v6454, %v6477
        %v6503 = vsub.f32 %v6455, %v6479
        %v6504 = vsub.f32 %v6456, %v6481
        %v6505 = vsub.f32 %v6457, %v6483
        %v6506 = vsub.f32 %v6458, %v6485
        %v6507 = vsub.f32 %v6459, %v6487
        %v6508 = vsub.f32 %v6460, %v6489
        %v6509 = vsub.f32 %v6461, %v6491
        %v6510 = vsub.f32 %v6462, %v6493
        %v6511 = vsub.f32 %v6463, %v6495
        %v6512 = vmul.f32 %v6496, 1.442695
        %v6513 = vpow.pop %v6512
        %v6514 = vmul.f32 %v6497, 1.442695
        %v6515 = vpow.pop %v6514
        %v6516 = vmul.f32 %v6498, 1.442695
        %v6517 = vpow.pop %v6516
        %v6518 = vmul.f32 %v6499, 1.442695
        %v6519 = vpow.pop %v6518
        %v6520 = vmul.f32 %v6500, 1.442695
        %v6521 = vpow.pop %v6520
        %v6522 = vmul.f32 %v6501, 1.442695
        %v6523 = vpow.pop %v6522
        %v6524 = vmul.f32 %v6502, 1.442695
        %v6525 = vpow.pop %v6524
        %v6526 = vmul.f32 %v6503, 1.442695
        %v6527 = vpow.pop %v6526
        %v6528 = vmul.f32 %v6504, 1.442695
        %v6529 = vpow.pop %v6528
        %v6530 = vmul.f32 %v6505, 1.442695
        %v6531 = vpow.pop %v6530
        %v6532 = vmul.f32 %v6506, 1.442695
        %v6533 = vpow.pop %v6532
        %v6534 = vmul.f32 %v6507, 1.442695
        %v6535 = vpow.pop %v6534
        %v6536 = vmul.f32 %v6508, 1.442695
        %v6537 = vpow.pop %v6536
        %v6538 = vmul.f32 %v6509, 1.442695
        %v6539 = vpow.pop %v6538
        %v6540 = vmul.f32 %v6510, 1.442695
        %v6541 = vpow.pop %v6540
        %v6542 = vmul.f32 %v6511, 1.442695
        %v6543 = vpow.pop %v6542
        %6544 = vadd.xlane.f32.xlu0 %v6513
        %v6545 = vpop.xlane.xlu0 %6544
        %6546 = vadd.xlane.f32.xlu0 %v6515
        %v6547 = vpop.xlane.xlu0 %6546
        %6548 = vadd.xlane.f32.xlu0 %v6517
        %v6549 = vpop.xlane.xlu0 %6548
        %6550 = vadd.xlane.f32.xlu0 %v6519
        %v6551 = vpop.xlane.xlu0 %6550
        %6552 = vadd.xlane.f32.xlu0 %v6521
        %v6553 = vpop.xlane.xlu0 %6552
        %6554 = vadd.xlane.f32.xlu0 %v6523
        %v6555 = vpop.xlane.xlu0 %6554
        %6556 = vadd.xlane.f32.xlu0 %v6525
        %v6557 = vpop.xlane.xlu0 %6556
        %6558 = vadd.xlane.f32.xlu0 %v6527
        %v6559 = vpop.xlane.xlu0 %6558
        %6560 = vadd.xlane.f32.xlu0 %v6529
        %v6561 = vpop.xlane.xlu0 %6560
        %6562 = vadd.xlane.f32.xlu0 %v6531
        %v6563 = vpop.xlane.xlu0 %6562
        %6564 = vadd.xlane.f32.xlu0 %v6533
        %v6565 = vpop.xlane.xlu0 %6564
        %6566 = vadd.xlane.f32.xlu0 %v6535
        %v6567 = vpop.xlane.xlu0 %6566
        %6568 = vadd.xlane.f32.xlu0 %v6537
        %v6569 = vpop.xlane.xlu0 %6568
        %6570 = vadd.xlane.f32.xlu0 %v6539
        %v6571 = vpop.xlane.xlu0 %6570
        %6572 = vadd.xlane.f32.xlu0 %v6541
        %v6573 = vpop.xlane.xlu0 %6572
        %6574 = vadd.xlane.f32.xlu0 %v6543
        %v6575 = vpop.xlane.xlu0 %6574
        %v6576 = vpack.c.bf16 %v6515, %v6513
        %v6577 = vpack.c.bf16 %v6519, %v6517
        %v6578 = vpack.c.bf16 %v6523, %v6521
        %v6579 = vpack.c.bf16 %v6527, %v6525
        %v6580 = vpack.c.bf16 %v6531, %v6529
        %v6581 = vpack.c.bf16 %v6535, %v6533
        %v6582 = vpack.c.bf16 %v6539, %v6537
        %v6583 = vpack.c.bf16 %v6543, %v6541
        %v6584 = vpack.c.bf16 %v6099, %v6095
        %v6585 = vpack.c.bf16 %v6109, %v6105
        %v6586 = vpack.c.bf16 %v6119, %v6115
        %v6587 = vpack.c.bf16 %v6129, %v6125
        %v6588 = vpack.c.bf16 %v6139, %v6135
        %v6589 = vpack.c.bf16 %v6149, %v6145
        %v6590 = vpack.c.bf16 %v6159, %v6155
        %v6591 = vpack.c.bf16 %v6169, %v6165
        %6592 = vmatprep.subr.bf16.mxu0 0
        %6593 = vmatpush1.bf16.msra.mxu0 %v6584
        %6594 = vmatprep.subr.bf16.mxu0 0
        %6595 = vmatpush1.bf16.msra.mxu0 %v6585
        %6596 = vmatprep.subr.bf16.mxu0 0
        %6597 = vmatpush1.bf16.msra.mxu0 %v6586
        %6598 = vmatprep.subr.bf16.mxu0 0
        %6599 = vmatpush1.bf16.msra.mxu0 %v6587
        %6600 = vmatprep.subr.bf16.mxu0 0
        %6601 = vmatpush1.bf16.msra.mxu0 %v6588
        %6602 = vmatprep.subr.bf16.mxu0 0
        %6603 = vmatpush1.bf16.msra.mxu0 %v6589
        %6604 = vmatprep.subr.bf16.mxu0 0
        %6605 = vmatpush1.bf16.msra.mxu0 %v6590
        %6606 = vmatprep.subr.bf16.mxu0 0
        %6607 = vmatpush1.bf16.msra.mxu0 %v6591
        %6608 = vmatprep.subr.bf16.mxu0 0
        %6609 = vmatpush1.bf16.msra.mxu0 0
        %6610 = vmatprep.subr.bf16.mxu0 0
        %6611 = vmatpush1.bf16.msra.mxu0 0
        %6612 = vmatprep.subr.bf16.mxu0 0
        %6613 = vmatpush1.bf16.msra.mxu0 0
        %6614 = vmatprep.subr.bf16.mxu0 0
        %6615 = vmatpush1.bf16.msra.mxu0 0
        %6616 = vmatprep.subr.bf16.mxu0 0
        %6617 = vmatpush1.bf16.msra.mxu0 0
        %6618 = vmatprep.subr.bf16.mxu0 0
        %6619 = vmatpush1.bf16.msra.mxu0 0
        %6620 = vmatprep.subr.bf16.mxu0 0
        %6621 = vmatpush1.bf16.msra.mxu0 0
        %6622 = vmatprep.subr.bf16.mxu0 0
        %6623 = vmatpush1.bf16.msra.mxu0 0
        %6624 = vmatprep.mubr.bf16.mxu0 0
        %6625 = vmatmul.mubr.bf16.gmra.mrb[0].mxu0 %v6576
        %v6626 = vpop.f32.mrb[0].mxu0
        %v6627 = vadd.f32 0.0, %v6626
        %v6628 = vpop.f32.mrb[0].mxu0
        %v6629 = vpop.f32.mrb[0].mxu0
        %v6630 = vadd.f32 0.0, %v6629
        %v6631 = vpop.f32.mrb[0].mxu0
        %6632 = vmatprep.mubr.bf16.mxu0 0
        %6633 = vmatmul.mubr.bf16.gmra.mrb[0].mxu0 %v6577
        %v6634 = vpop.f32.mrb[0].mxu0
        %v6635 = vadd.f32 0.0, %v6634
        %v6636 = vpop.f32.mrb[0].mxu0
        %v6637 = vpop.f32.mrb[0].mxu0
        %v6638 = vadd.f32 0.0, %v6637
        %v6639 = vpop.f32.mrb[0].mxu0
        %6640 = vmatprep.mubr.bf16.mxu0 0
        %6641 = vmatmul.mubr.bf16.gmra.mrb[0].mxu0 %v6578
        %v6642 = vpop.f32.mrb[0].mxu0
        %v6643 = vadd.f32 0.0, %v6642
        %v6644 = vpop.f32.mrb[0].mxu0
        %v6645 = vpop.f32.mrb[0].mxu0
        %v6646 = vadd.f32 0.0, %v6645
        %v6647 = vpop.f32.mrb[0].mxu0
        %6648 = vmatprep.mubr.bf16.mxu0 0
        %6649 = vmatmul.mubr.bf16.gmra.mrb[0].mxu0 %v6579
        %v6650 = vpop.f32.mrb[0].mxu0
        %v6651 = vadd.f32 0.0, %v6650
        %v6652 = vpop.f32.mrb[0].mxu0
        %v6653 = vpop.f32.mrb[0].mxu0
        %v6654 = vadd.f32 0.0, %v6653
        %v6655 = vpop.f32.mrb[0].mxu0
        %6656 = vmatprep.mubr.bf16.mxu0 0
        %6657 = vmatmul.mubr.bf16.gmra.mrb[0].mxu0 %v6580
        %v6658 = vpop.f32.mrb[0].mxu0
        %v6659 = vadd.f32 0.0, %v6658
        %v6660 = vpop.f32.mrb[0].mxu0
        %v6661 = vpop.f32.mrb[0].mxu0
        %v6662 = vadd.f32 0.0, %v6661
        %v6663 = vpop.f32.mrb[0].mxu0
        %6664 = vmatprep.mubr.bf16.mxu0 0
        %6665 = vmatmul.mubr.bf16.gmra.mrb[0].mxu0 %v6581
        %v6666 = vpop.f32.mrb[0].mxu0
        %v6667 = vadd.f32 0.0, %v6666
        %v6668 = vpop.f32.mrb[0].mxu0
        %v6669 = vpop.f32.mrb[0].mxu0
        %v6670 = vadd.f32 0.0, %v6669
        %v6671 = vpop.f32.mrb[0].mxu0
        %6672 = vmatprep.mubr.bf16.mxu0 0
        %6673 = vmatmul.mubr.bf16.gmra.mrb[0].mxu0 %v6582
        %v6674 = vpop.f32.mrb[0].mxu0
        %v6675 = vadd.f32 0.0, %v6674
        %v6676 = vpop.f32.mrb[0].mxu0
        %v6677 = vpop.f32.mrb[0].mxu0
        %v6678 = vadd.f32 0.0, %v6677
        %v6679 = vpop.f32.mrb[0].mxu0
        %6680 = vmatprep.mubr.bf16.mxu0 0
        %6681 = vmatmul.mubr.bf16.gmra.mrb[0].mxu0 %v6583
        %v6682 = vpop.f32.mrb[0].mxu0
        %v6683 = vadd.f32 0.0, %v6682
        %v6684 = vpop.f32.mrb[0].mxu0
        %v6685 = vpop.f32.mrb[0].mxu0
        %v6686 = vadd.f32 0.0, %v6685
        %v6687 = vpop.f32.mrb[0].mxu0
        %6688 = vdwg.mxu0
        %v6689 = vrcp.pop %v6545
        %v6690 = vrcp.pop %v6547
        %v6691 = vrcp.pop %v6549
        %v6692 = vrcp.pop %v6551
        %v6693 = vrcp.pop %v6553
        %v6694 = vrcp.pop %v6555
        %v6695 = vrcp.pop %v6557
        %v6696 = vrcp.pop %v6559
        %v6697 = vrcp.pop %v6561
        %v6698 = vrcp.pop %v6563
        %v6699 = vrcp.pop %v6565
        %v6700 = vrcp.pop %v6567
        %v6701 = vrcp.pop %v6569
        %v6702 = vrcp.pop %v6571
        %v6703 = vrcp.pop %v6573
        %v6704 = vrcp.pop %v6575
        %v6705 = vmul.f32 %v6627, %v6689
        %v6706 = vmul.f32 %v6630, %v6690
        %v6707 = vmul.f32 %v6635, %v6691
        %v6708 = vmul.f32 %v6638, %v6692
        %v6709 = vmul.f32 %v6643, %v6693
        %v6710 = vmul.f32 %v6646, %v6694
        %v6711 = vmul.f32 %v6651, %v6695
        %v6712 = vmul.f32 %v6654, %v6696
        %v6713 = vmul.f32 %v6659, %v6697
        %v6714 = vmul.f32 %v6662, %v6698
        %v6715 = vmul.f32 %v6667, %v6699
        %v6716 = vmul.f32 %v6670, %v6700
        %v6717 = vmul.f32 %v6675, %v6701
        %v6718 = vmul.f32 %v6678, %v6702
        %v6719 = vmul.f32 %v6683, %v6703
        %v6720 = vmul.f32 %v6686, %v6704
        %v6721 = vpack.c.bf16 %v6706, %v6705
        %v6722 = vpack.c.bf16 %v6708, %v6707
        %v6723 = vpack.c.bf16 %v6710, %v6709
        %v6724 = vpack.c.bf16 %v6712, %v6711
        %v6725 = vpack.c.bf16 %v6714, %v6713
        %v6726 = vpack.c.bf16 %v6716, %v6715
        %v6727 = vpack.c.bf16 %v6718, %v6717
        %v6728 = vpack.c.bf16 %v6720, %v6719
        %v6729 = vpack.c.bf16 %v6101, %v6097
        %v6730 = vpack.c.bf16 %v6111, %v6107
        %v6731 = vpack.c.bf16 %v6121, %v6117
        %v6732 = vpack.c.bf16 %v6131, %v6127
        %v6733 = vpack.c.bf16 %v6141, %v6137
        %v6734 = vpack.c.bf16 %v6151, %v6147
        %v6735 = vpack.c.bf16 %v6161, %v6157
        %v6736 = vpack.c.bf16 %v6171, %v6167
        %v6737 = vpack.c.bf16 %v6212, %v6208
        %v6738 = vpack.c.bf16 %v6222, %v6218
        %v6739 = vpack.c.bf16 %v6232, %v6228
        %v6740 = vpack.c.bf16 %v6242, %v6238
        %v6741 = vpack.c.bf16 %v6252, %v6248
        %v6742 = vpack.c.bf16 %v6262, %v6258
        %v6743 = vpack.c.bf16 %v6272, %v6268
        %v6744 = vpack.c.bf16 %v6282, %v6278
        %6745 = vmatprep.subr.bf16.mxu0 0
        %6746 = vmatpush1.bf16.xpose.msra.mxu0 %v6737
        %6747 = vmatprep.subr.bf16.mxu0 0
        %6748 = vmatpush1.bf16.xpose.msra.mxu0 %v6738
        %6749 = vmatprep.subr.bf16.mxu0 0
        %6750 = vmatpush1.bf16.xpose.msra.mxu0 %v6739
        %6751 = vmatprep.subr.bf16.mxu0 0
        %6752 = vmatpush1.bf16.xpose.msra.mxu0 %v6740
        %6753 = vmatprep.subr.bf16.mxu0 0
        %6754 = vmatpush1.bf16.xpose.msra.mxu0 %v6741
        %6755 = vmatprep.subr.bf16.mxu0 0
        %6756 = vmatpush1.bf16.xpose.msra.mxu0 %v6742
        %6757 = vmatprep.subr.bf16.mxu0 0
        %6758 = vmatpush1.bf16.xpose.msra.mxu0 %v6743
        %6759 = vmatprep.subr.bf16.mxu0 0
        %6760 = vmatpush1.bf16.xpose.msra.mxu0 %v6744
        %6761 = vmatprep.subr.bf16.mxu0 0
        %6762 = vmatpush1.bf16.xpose.msra.mxu0 0
        %6763 = vmatprep.subr.bf16.mxu0 0
        %6764 = vmatpush1.bf16.xpose.msra.mxu0 0
        %6765 = vmatprep.subr.bf16.mxu0 0
        %6766 = vmatpush1.bf16.xpose.msra.mxu0 0
        %6767 = vmatprep.subr.bf16.mxu0 0
        %6768 = vmatpush1.bf16.xpose.msra.mxu0 0
        %6769 = vmatprep.subr.bf16.mxu0 0
        %6770 = vmatpush1.bf16.xpose.msra.mxu0 0
        %6771 = vmatprep.subr.bf16.mxu0 0
        %6772 = vmatpush1.bf16.xpose.msra.mxu0 0
        %6773 = vmatprep.subr.bf16.mxu0 0
        %6774 = vmatpush1.bf16.xpose.msra.mxu0 0
        %6775 = vmatprep.subr.bf16.mxu0 0
        %6776 = vmatpush1.bf16.xpose.msra.mxu0 0
        %6777 = vmatprep.mubr.bf16.mxu0 0
        %6778 = vmatmul.mubr.bf16.gmra.mrb[0].mxu0 %v6729
        %v6779 = vpop.f32.mrb[0].mxu0
        %v6780 = vadd.f32 0.0, %v6779
        %v6781 = vpop.f32.mrb[0].mxu0
        %v6782 = vpop.f32.mrb[0].mxu0
        %v6783 = vadd.f32 0.0, %v6782
        %v6784 = vpop.f32.mrb[0].mxu0
        %6785 = vmatprep.mubr.bf16.mxu0 0
        %6786 = vmatmul.mubr.bf16.gmra.mrb[0].mxu0 %v6730
        %v6787 = vpop.f32.mrb[0].mxu0
        %v6788 = vadd.f32 0.0, %v6787
        %v6789 = vpop.f32.mrb[0].mxu0
        %v6790 = vpop.f32.mrb[0].mxu0
        %v6791 = vadd.f32 0.0, %v6790
        %v6792 = vpop.f32.mrb[0].mxu0
        %6793 = vmatprep.mubr.bf16.mxu0 0
        %6794 = vmatmul.mubr.bf16.gmra.mrb[0].mxu0 %v6731
        %v6795 = vpop.f32.mrb[0].mxu0
        %v6796 = vadd.f32 0.0, %v6795
        %v6797 = vpop.f32.mrb[0].mxu0
        %v6798 = vpop.f32.mrb[0].mxu0
        %v6799 = vadd.f32 0.0, %v6798
        %v6800 = vpop.f32.mrb[0].mxu0
        %6801 = vmatprep.mubr.bf16.mxu0 0
        %6802 = vmatmul.mubr.bf16.gmra.mrb[0].mxu0 %v6732
        %v6803 = vpop.f32.mrb[0].mxu0
        %v6804 = vadd.f32 0.0, %v6803
        %v6805 = vpop.f32.mrb[0].mxu0
        %v6806 = vpop.f32.mrb[0].mxu0
        %v6807 = vadd.f32 0.0, %v6806
        %v6808 = vpop.f32.mrb[0].mxu0
        %6809 = vmatprep.mubr.bf16.mxu0 0
        %6810 = vmatmul.mubr.bf16.gmra.mrb[0].mxu0 %v6733
        %v6811 = vpop.f32.mrb[0].mxu0
        %v6812 = vadd.f32 0.0, %v6811
        %v6813 = vpop.f32.mrb[0].mxu0
        %v6814 = vpop.f32.mrb[0].mxu0
        %v6815 = vadd.f32 0.0, %v6814
        %v6816 = vpop.f32.mrb[0].mxu0
        %6817 = vmatprep.mubr.bf16.mxu0 0
        %6818 = vmatmul.mubr.bf16.gmra.mrb[0].mxu0 %v6734
        %v6819 = vpop.f32.mrb[0].mxu0
        %v6820 = vadd.f32 0.0, %v6819
        %v6821 = vpop.f32.mrb[0].mxu0
        %v6822 = vpop.f32.mrb[0].mxu0
        %v6823 = vadd.f32 0.0, %v6822
        %v6824 = vpop.f32.mrb[0].mxu0
        %6825 = vmatprep.mubr.bf16.mxu0 0
        %6826 = vmatmul.mubr.bf16.gmra.mrb[0].mxu0 %v6735
        %v6827 = vpop.f32.mrb[0].mxu0
        %v6828 = vadd.f32 0.0, %v6827
        %v6829 = vpop.f32.mrb[0].mxu0
        %v6830 = vpop.f32.mrb[0].mxu0
        %v6831 = vadd.f32 0.0, %v6830
        %v6832 = vpop.f32.mrb[0].mxu0
        %6833 = vmatprep.mubr.bf16.mxu0 0
        %6834 = vmatmul.mubr.bf16.gmra.mrb[0].mxu0 %v6736
        %v6835 = vpop.f32.mrb[0].mxu0
        %v6836 = vadd.f32 0.0, %v6835
        %v6837 = vpop.f32.mrb[0].mxu0
        %v6838 = vpop.f32.mrb[0].mxu0
        %v6839 = vadd.f32 0.0, %v6838
        %v6840 = vpop.f32.mrb[0].mxu0
        %6841 = vdwg.mxu0
        %v6842 = vmul.f32 %v6780, 0.125
        %v6843 = vmul.f32 %v6783, 0.125
        %v6844 = vmul.f32 %v6788, 0.125
        %v6845 = vmul.f32 %v6791, 0.125
        %v6846 = vmul.f32 %v6796, 0.125
        %v6847 = vmul.f32 %v6799, 0.125
        %v6848 = vmul.f32 %v6804, 0.125
        %v6849 = vmul.f32 %v6807, 0.125
        %v6850 = vmul.f32 %v6812, 0.125
        %v6851 = vmul.f32 %v6815, 0.125
        %v6852 = vmul.f32 %v6820, 0.125
        %v6853 = vmul.f32 %v6823, 0.125
        %v6854 = vmul.f32 %v6828, 0.125
        %v6855 = vmul.f32 %v6831, 0.125
        %v6856 = vmul.f32 %v6836, 0.125
        %v6857 = vmul.f32 %v6839, 0.125
        %v6858 = vadd.f32 %v6842, %v1794
        %v6859 = vadd.f32 %v6843, %v1794
        %v6860 = vadd.f32 %v6844, %v1794
        %v6861 = vadd.f32 %v6845, %v1794
        %v6862 = vadd.f32 %v6846, %v1794
        %v6863 = vadd.f32 %v6847, %v1794
        %v6864 = vadd.f32 %v6848, %v1794
        %v6865 = vadd.f32 %v6849, %v1794
        %v6866 = vadd.f32 %v6850, %v1794
        %v6867 = vadd.f32 %v6851, %v1794
        %v6868 = vadd.f32 %v6852, %v1794
        %v6869 = vadd.f32 %v6853, %v1794
        %v6870 = vadd.f32 %v6854, %v1794
        %v6871 = vadd.f32 %v6855, %v1794
        %v6872 = vadd.f32 %v6856, %v1794
        %v6873 = vadd.f32 %v6857, %v1794
        %6874 = vmax.xlane.f32.xlu0 %v6858
        %v6875 = vpop.xlane.xlu0 %6874
        %6876 = vmax.xlane.f32.xlu0 %v6859
        %v6877 = vpop.xlane.xlu0 %6876
        %6878 = vmax.xlane.f32.xlu0 %v6860
        %v6879 = vpop.xlane.xlu0 %6878
        %6880 = vmax.xlane.f32.xlu0 %v6861
        %v6881 = vpop.xlane.xlu0 %6880
        %6882 = vmax.xlane.f32.xlu0 %v6862
        %v6883 = vpop.xlane.xlu0 %6882
        %6884 = vmax.xlane.f32.xlu0 %v6863
        %v6885 = vpop.xlane.xlu0 %6884
        %6886 = vmax.xlane.f32.xlu0 %v6864
        %v6887 = vpop.xlane.xlu0 %6886
        %6888 = vmax.xlane.f32.xlu0 %v6865
        %v6889 = vpop.xlane.xlu0 %6888
        %6890 = vmax.xlane.f32.xlu0 %v6866
        %v6891 = vpop.xlane.xlu0 %6890
        %6892 = vmax.xlane.f32.xlu0 %v6867
        %v6893 = vpop.xlane.xlu0 %6892
        %6894 = vmax.xlane.f32.xlu0 %v6868
        %v6895 = vpop.xlane.xlu0 %6894
        %6896 = vmax.xlane.f32.xlu0 %v6869
        %v6897 = vpop.xlane.xlu0 %6896
        %6898 = vmax.xlane.f32.xlu0 %v6870
        %v6899 = vpop.xlane.xlu0 %6898
        %6900 = vmax.xlane.f32.xlu0 %v6871
        %v6901 = vpop.xlane.xlu0 %6900
        %6902 = vmax.xlane.f32.xlu0 %v6872
        %v6903 = vpop.xlane.xlu0 %6902
        %6904 = vmax.xlane.f32.xlu0 %v6873
        %v6905 = vpop.xlane.xlu0 %6904
        %v6906 = vsub.f32 %v6858, %v6875
        %v6907 = vsub.f32 %v6859, %v6877
        %v6908 = vsub.f32 %v6860, %v6879
        %v6909 = vsub.f32 %v6861, %v6881
        %v6910 = vsub.f32 %v6862, %v6883
        %v6911 = vsub.f32 %v6863, %v6885
        %v6912 = vsub.f32 %v6864, %v6887
        %v6913 = vsub.f32 %v6865, %v6889
        %v6914 = vsub.f32 %v6866, %v6891
        %v6915 = vsub.f32 %v6867, %v6893
        %v6916 = vsub.f32 %v6868, %v6895
        %v6917 = vsub.f32 %v6869, %v6897
        %v6918 = vsub.f32 %v6870, %v6899
        %v6919 = vsub.f32 %v6871, %v6901
        %v6920 = vsub.f32 %v6872, %v6903
        %v6921 = vsub.f32 %v6873, %v6905
        %v6922 = vmul.f32 %v6906, 1.442695
        %v6923 = vpow.pop %v6922
        %v6924 = vmul.f32 %v6907, 1.442695
        %v6925 = vpow.pop %v6924
        %v6926 = vmul.f32 %v6908, 1.442695
        %v6927 = vpow.pop %v6926
        %v6928 = vmul.f32 %v6909, 1.442695
        %v6929 = vpow.pop %v6928
        %v6930 = vmul.f32 %v6910, 1.442695
        %v6931 = vpow.pop %v6930
        %v6932 = vmul.f32 %v6911, 1.442695
        %v6933 = vpow.pop %v6932
        %v6934 = vmul.f32 %v6912, 1.442695
        %v6935 = vpow.pop %v6934
        %v6936 = vmul.f32 %v6913, 1.442695
        %v6937 = vpow.pop %v6936
        %v6938 = vmul.f32 %v6914, 1.442695
        %v6939 = vpow.pop %v6938
        %v6940 = vmul.f32 %v6915, 1.442695
        %v6941 = vpow.pop %v6940
        %v6942 = vmul.f32 %v6916, 1.442695
        %v6943 = vpow.pop %v6942
        %v6944 = vmul.f32 %v6917, 1.442695
        %v6945 = vpow.pop %v6944
        %v6946 = vmul.f32 %v6918, 1.442695
        %v6947 = vpow.pop %v6946
        %v6948 = vmul.f32 %v6919, 1.442695
        %v6949 = vpow.pop %v6948
        %v6950 = vmul.f32 %v6920, 1.442695
        %v6951 = vpow.pop %v6950
        %v6952 = vmul.f32 %v6921, 1.442695
        %v6953 = vpow.pop %v6952
        %6954 = vadd.xlane.f32.xlu0 %v6923
        %v6955 = vpop.xlane.xlu0 %6954
        %6956 = vadd.xlane.f32.xlu0 %v6925
        %v6957 = vpop.xlane.xlu0 %6956
        %6958 = vadd.xlane.f32.xlu0 %v6927
        %v6959 = vpop.xlane.xlu0 %6958
        %6960 = vadd.xlane.f32.xlu0 %v6929
        %v6961 = vpop.xlane.xlu0 %6960
        %6962 = vadd.xlane.f32.xlu0 %v6931
        %v6963 = vpop.xlane.xlu0 %6962
        %6964 = vadd.xlane.f32.xlu0 %v6933
        %v6965 = vpop.xlane.xlu0 %6964
        %6966 = vadd.xlane.f32.xlu0 %v6935
        %v6967 = vpop.xlane.xlu0 %6966
        %6968 = vadd.xlane.f32.xlu0 %v6937
        %v6969 = vpop.xlane.xlu0 %6968
        %6970 = vadd.xlane.f32.xlu0 %v6939
        %v6971 = vpop.xlane.xlu0 %6970
        %6972 = vadd.xlane.f32.xlu0 %v6941
        %v6973 = vpop.xlane.xlu0 %6972
        %6974 = vadd.xlane.f32.xlu0 %v6943
        %v6975 = vpop.xlane.xlu0 %6974
        %6976 = vadd.xlane.f32.xlu0 %v6945
        %v6977 = vpop.xlane.xlu0 %6976
        %6978 = vadd.xlane.f32.xlu0 %v6947
        %v6979 = vpop.xlane.xlu0 %6978
        %6980 = vadd.xlane.f32.xlu0 %v6949
        %v6981 = vpop.xlane.xlu0 %6980
        %6982 = vadd.xlane.f32.xlu0 %v6951
        %v6983 = vpop.xlane.xlu0 %6982
        %6984 = vadd.xlane.f32.xlu0 %v6953
        %v6985 = vpop.xlane.xlu0 %6984
        %v6986 = vpack.c.bf16 %v6925, %v6923
        %v6987 = vpack.c.bf16 %v6929, %v6927
        %v6988 = vpack.c.bf16 %v6933, %v6931
        %v6989 = vpack.c.bf16 %v6937, %v6935
        %v6990 = vpack.c.bf16 %v6941, %v6939
        %v6991 = vpack.c.bf16 %v6945, %v6943
        %v6992 = vpack.c.bf16 %v6949, %v6947
        %v6993 = vpack.c.bf16 %v6953, %v6951
        %v6994 = vpack.c.bf16 %v6214, %v6210
        %v6995 = vpack.c.bf16 %v6224, %v6220
        %v6996 = vpack.c.bf16 %v6234, %v6230
        %v6997 = vpack.c.bf16 %v6244, %v6240
        %v6998 = vpack.c.bf16 %v6254, %v6250
        %v6999 = vpack.c.bf16 %v6264, %v6260
        %v7000 = vpack.c.bf16 %v6274, %v6270
        %v7001 = vpack.c.bf16 %v6284, %v6280
        %7002 = vmatprep.subr.bf16.mxu0 0
        %7003 = vmatpush1.bf16.msra.mxu0 %v6994
        %7004 = vmatprep.subr.bf16.mxu0 0
        %7005 = vmatpush1.bf16.msra.mxu0 %v6995
        %7006 = vmatprep.subr.bf16.mxu0 0
        %7007 = vmatpush1.bf16.msra.mxu0 %v6996
        %7008 = vmatprep.subr.bf16.mxu0 0
        %7009 = vmatpush1.bf16.msra.mxu0 %v6997
        %7010 = vmatprep.subr.bf16.mxu0 0
        %7011 = vmatpush1.bf16.msra.mxu0 %v6998
        %7012 = vmatprep.subr.bf16.mxu0 0
        %7013 = vmatpush1.bf16.msra.mxu0 %v6999
        %7014 = vmatprep.subr.bf16.mxu0 0
        %7015 = vmatpush1.bf16.msra.mxu0 %v7000
        %7016 = vmatprep.subr.bf16.mxu0 0
        %7017 = vmatpush1.bf16.msra.mxu0 %v7001
        %7018 = vmatprep.subr.bf16.mxu0 0
        %7019 = vmatpush1.bf16.msra.mxu0 0
        %7020 = vmatprep.subr.bf16.mxu0 0
        %7021 = vmatpush1.bf16.msra.mxu0 0
        %7022 = vmatprep.subr.bf16.mxu0 0
        %7023 = vmatpush1.bf16.msra.mxu0 0
        %7024 = vmatprep.subr.bf16.mxu0 0
        %7025 = vmatpush1.bf16.msra.mxu0 0
        %7026 = vmatprep.subr.bf16.mxu0 0
        %7027 = vmatpush1.bf16.msra.mxu0 0
        %7028 = vmatprep.subr.bf16.mxu0 0
        %7029 = vmatpush1.bf16.msra.mxu0 0
        %7030 = vmatprep.subr.bf16.mxu0 0
        %7031 = vmatpush1.bf16.msra.mxu0 0
        %7032 = vmatprep.subr.bf16.mxu0 0
        %7033 = vmatpush1.bf16.msra.mxu0 0
        %7034 = vmatprep.mubr.bf16.mxu0 0
        %7035 = vmatmul.mubr.bf16.gmra.mrb[0].mxu0 %v6986
        %v7036 = vpop.f32.mrb[0].mxu0
        %v7037 = vadd.f32 0.0, %v7036
        %v7038 = vpop.f32.mrb[0].mxu0
        %v7039 = vpop.f32.mrb[0].mxu0
        %v7040 = vadd.f32 0.0, %v7039
        %v7041 = vpop.f32.mrb[0].mxu0
        %7042 = vmatprep.mubr.bf16.mxu0 0
        %7043 = vmatmul.mubr.bf16.gmra.mrb[0].mxu0 %v6987
        %v7044 = vpop.f32.mrb[0].mxu0
        %v7045 = vadd.f32 0.0, %v7044
        %v7046 = vpop.f32.mrb[0].mxu0
        %v7047 = vpop.f32.mrb[0].mxu0
        %v7048 = vadd.f32 0.0, %v7047
        %v7049 = vpop.f32.mrb[0].mxu0
        %7050 = vmatprep.mubr.bf16.mxu0 0
        %7051 = vmatmul.mubr.bf16.gmra.mrb[0].mxu0 %v6988
        %v7052 = vpop.f32.mrb[0].mxu0
        %v7053 = vadd.f32 0.0, %v7052
        %v7054 = vpop.f32.mrb[0].mxu0
        %v7055 = vpop.f32.mrb[0].mxu0
        %v7056 = vadd.f32 0.0, %v7055
        %v7057 = vpop.f32.mrb[0].mxu0
        %7058 = vmatprep.mubr.bf16.mxu0 0
        %7059 = vmatmul.mubr.bf16.gmra.mrb[0].mxu0 %v6989
        %v7060 = vpop.f32.mrb[0].mxu0
        %v7061 = vadd.f32 0.0, %v7060
        %v7062 = vpop.f32.mrb[0].mxu0
        %v7063 = vpop.f32.mrb[0].mxu0
        %v7064 = vadd.f32 0.0, %v7063
        %v7065 = vpop.f32.mrb[0].mxu0
        %7066 = vmatprep.mubr.bf16.mxu0 0
        %7067 = vmatmul.mubr.bf16.gmra.mrb[0].mxu0 %v6990
        %v7068 = vpop.f32.mrb[0].mxu0
        %v7069 = vadd.f32 0.0, %v7068
        %v7070 = vpop.f32.mrb[0].mxu0
        %v7071 = vpop.f32.mrb[0].mxu0
        %v7072 = vadd.f32 0.0, %v7071
        %v7073 = vpop.f32.mrb[0].mxu0
        %7074 = vmatprep.mubr.bf16.mxu0 0
        %7075 = vmatmul.mubr.bf16.gmra.mrb[0].mxu0 %v6991
        %v7076 = vpop.f32.mrb[0].mxu0
        %v7077 = vadd.f32 0.0, %v7076
        %v7078 = vpop.f32.mrb[0].mxu0
        %v7079 = vpop.f32.mrb[0].mxu0
        %v7080 = vadd.f32 0.0, %v7079
        %v7081 = vpop.f32.mrb[0].mxu0
        %7082 = vmatprep.mubr.bf16.mxu0 0
        %7083 = vmatmul.mubr.bf16.gmra.mrb[0].mxu0 %v6992
        %v7084 = vpop.f32.mrb[0].mxu0
        %v7085 = vadd.f32 0.0, %v7084
        %v7086 = vpop.f32.mrb[0].mxu0
        %v7087 = vpop.f32.mrb[0].mxu0
        %v7088 = vadd.f32 0.0, %v7087
        %v7089 = vpop.f32.mrb[0].mxu0
        %7090 = vmatprep.mubr.bf16.mxu0 0
        %7091 = vmatmul.mubr.bf16.gmra.mrb[0].mxu0 %v6993
        %v7092 = vpop.f32.mrb[0].mxu0
        %v7093 = vadd.f32 0.0, %v7092
        %v7094 = vpop.f32.mrb[0].mxu0
        %v7095 = vpop.f32.mrb[0].mxu0
        %v7096 = vadd.f32 0.0, %v7095
        %v7097 = vpop.f32.mrb[0].mxu0
        %7098 = vdwg.mxu0
        %v7099 = vrcp.pop %v6955
        %v7100 = vrcp.pop %v6957
        %v7101 = vrcp.pop %v6959
        %v7102 = vrcp.pop %v6961
        %v7103 = vrcp.pop %v6963
        %v7104 = vrcp.pop %v6965
        %v7105 = vrcp.pop %v6967
        %v7106 = vrcp.pop %v6969
        %v7107 = vrcp.pop %v6971
        %v7108 = vrcp.pop %v6973
        %v7109 = vrcp.pop %v6975
        %v7110 = vrcp.pop %v6977
        %v7111 = vrcp.pop %v6979
        %v7112 = vrcp.pop %v6981
        %v7113 = vrcp.pop %v6983
        %v7114 = vrcp.pop %v6985
        %v7115 = vmul.f32 %v7037, %v7099
        %v7116 = vmul.f32 %v7040, %v7100
        %v7117 = vmul.f32 %v7045, %v7101
        %v7118 = vmul.f32 %v7048, %v7102
        %v7119 = vmul.f32 %v7053, %v7103
        %v7120 = vmul.f32 %v7056, %v7104
        %v7121 = vmul.f32 %v7061, %v7105
        %v7122 = vmul.f32 %v7064, %v7106
        %v7123 = vmul.f32 %v7069, %v7107
        %v7124 = vmul.f32 %v7072, %v7108
        %v7125 = vmul.f32 %v7077, %v7109
        %v7126 = vmul.f32 %v7080, %v7110
        %v7127 = vmul.f32 %v7085, %v7111
        %v7128 = vmul.f32 %v7088, %v7112
        %v7129 = vmul.f32 %v7093, %v7113
        %v7130 = vmul.f32 %v7096, %v7114
        %v7131 = vpack.c.bf16 %v7116, %v7115
        %v7132 = vpack.c.bf16 %v7118, %v7117
        %v7133 = vpack.c.bf16 %v7120, %v7119
        %v7134 = vpack.c.bf16 %v7122, %v7121
        %v7135 = vpack.c.bf16 %v7124, %v7123
        %v7136 = vpack.c.bf16 %v7126, %v7125
        %v7137 = vpack.c.bf16 %v7128, %v7127
        %v7138 = vpack.c.bf16 %v7130, %v7129
        %v7155 = vunpack.c.l.b16 %v6303
        %v7156 = vunpack.c.l.b16 %v6304
        %v7157 = vunpack.c.l.b16 %v6305
        %v7158 = vunpack.c.l.b16 %v6306
        %v7159 = vunpack.c.l.b16 %v6307
        %v7160 = vunpack.c.l.b16 %v6308
        %v7161 = vunpack.c.l.b16 %v6309
        %v7162 = vunpack.c.l.b16 %v6310
        %v7163 = vunpack.c.l.b16 %v6311
        %v7164 = vunpack.c.l.b16 %v6312
        %v7165 = vunpack.c.l.b16 %v6313
        %v7166 = vunpack.c.l.b16 %v6314
        %v7167 = vunpack.c.l.b16 %v6315
        %v7168 = vunpack.c.l.b16 %v6316
        %v7169 = vunpack.c.l.b16 %v6317
        %v7170 = vunpack.c.l.b16 %v6318
        %v7171 = vpack.c.b16 %v7156, %v7155
        %v7172 = vpack.c.b16 %v7158, %v7157
        %v7173 = vpack.c.b16 %v7160, %v7159
        %v7174 = vpack.c.b16 %v7162, %v7161
        %v7175 = vpack.c.b16 %v7164, %v7163
        %v7176 = vpack.c.b16 %v7166, %v7165
        %v7177 = vpack.c.b16 %v7168, %v7167
        %v7178 = vpack.c.b16 %v7170, %v7169
        %7187 = vmatprep.subr.bf16.mxu0 0
        %7188 = vmatpush1.bf16.msra.mxu0 %v7171
        %7189 = vmatprep.subr.bf16.mxu0 0
        %7190 = vmatpush1.bf16.msra.mxu0 %v7172
        %7191 = vmatprep.subr.bf16.mxu0 0
        %7192 = vmatpush1.bf16.msra.mxu0 %v7173
        %7193 = vmatprep.subr.bf16.mxu0 0
        %7194 = vmatpush1.bf16.msra.mxu0 %v7174
        %7195 = vmatprep.subr.bf16.mxu0 0
        %7196 = vmatpush1.bf16.msra.mxu0 %v7175
        %7197 = vmatprep.subr.bf16.mxu0 0
        %7198 = vmatpush1.bf16.msra.mxu0 %v7176
        %7199 = vmatprep.subr.bf16.mxu0 0
        %7200 = vmatpush1.bf16.msra.mxu0 %v7177
        %7201 = vmatprep.subr.bf16.mxu0 0
        %7202 = vmatpush1.bf16.msra.mxu0 %v7178
        %7203 = vmatprep.subr.bf16.mxu0 0
        %7204 = vmatpush1.bf16.msra.mxu0 0
        %7205 = vmatprep.subr.bf16.mxu0 0
        %7206 = vmatpush1.bf16.msra.mxu0 0
        %7207 = vmatprep.subr.bf16.mxu0 0
        %7208 = vmatpush1.bf16.msra.mxu0 0
        %7209 = vmatprep.subr.bf16.mxu0 0
        %7210 = vmatpush1.bf16.msra.mxu0 0
        %7211 = vmatprep.subr.bf16.mxu0 0
        %7212 = vmatpush1.bf16.msra.mxu0 0
        %7213 = vmatprep.subr.bf16.mxu0 0
        %7214 = vmatpush1.bf16.msra.mxu0 0
        %7215 = vmatprep.subr.bf16.mxu0 0
        %7216 = vmatpush1.bf16.msra.mxu0 0
        %7217 = vmatprep.subr.bf16.mxu0 0
        %7218 = vmatpush1.bf16.msra.mxu0 0
        %7219 = vmatprep.mubr.bf16.mxu0 0
        %7220 = vmatmul.mubr.bf16.gmra.mrb[0].mxu0 %v7131
        %v7221 = vpop.f32.mrb[0].mxu0
        %v7222 = vadd.f32 0.0, %v7221
        %v7223 = vpop.f32.mrb[0].mxu0
        %v7224 = vpop.f32.mrb[0].mxu0
        %v7225 = vadd.f32 0.0, %v7224
        %v7226 = vpop.f32.mrb[0].mxu0
        %7227 = vmatprep.mubr.bf16.mxu0 0
        %7228 = vmatmul.mubr.bf16.gmra.mrb[0].mxu0 %v7132
        %v7229 = vpop.f32.mrb[0].mxu0
        %v7230 = vadd.f32 0.0, %v7229
        %v7231 = vpop.f32.mrb[0].mxu0
        %v7232 = vpop.f32.mrb[0].mxu0
        %v7233 = vadd.f32 0.0, %v7232
        %v7234 = vpop.f32.mrb[0].mxu0
        %7235 = vmatprep.mubr.bf16.mxu0 0
        %7236 = vmatmul.mubr.bf16.gmra.mrb[0].mxu0 %v7133
        %v7237 = vpop.f32.mrb[0].mxu0
        %v7238 = vadd.f32 0.0, %v7237
        %v7239 = vpop.f32.mrb[0].mxu0
        %v7240 = vpop.f32.mrb[0].mxu0
        %v7241 = vadd.f32 0.0, %v7240
        %v7242 = vpop.f32.mrb[0].mxu0
        %7243 = vmatprep.mubr.bf16.mxu0 0
        %7244 = vmatmul.mubr.bf16.gmra.mrb[0].mxu0 %v7134
        %v7245 = vpop.f32.mrb[0].mxu0
        %v7246 = vadd.f32 0.0, %v7245
        %v7247 = vpop.f32.mrb[0].mxu0
        %v7248 = vpop.f32.mrb[0].mxu0
        %v7249 = vadd.f32 0.0, %v7248
        %v7250 = vpop.f32.mrb[0].mxu0
        %7251 = vmatprep.mubr.bf16.mxu0 0
        %7252 = vmatmul.mubr.bf16.gmra.mrb[0].mxu0 %v7135
        %v7253 = vpop.f32.mrb[0].mxu0
        %v7254 = vadd.f32 0.0, %v7253
        %v7255 = vpop.f32.mrb[0].mxu0
        %v7256 = vpop.f32.mrb[0].mxu0
        %v7257 = vadd.f32 0.0, %v7256
        %v7258 = vpop.f32.mrb[0].mxu0
        %7259 = vmatprep.mubr.bf16.mxu0 0
        %7260 = vmatmul.mubr.bf16.gmra.mrb[0].mxu0 %v7136
        %v7261 = vpop.f32.mrb[0].mxu0
        %v7262 = vadd.f32 0.0, %v7261
        %v7263 = vpop.f32.mrb[0].mxu0
        %v7264 = vpop.f32.mrb[0].mxu0
        %v7265 = vadd.f32 0.0, %v7264
        %v7266 = vpop.f32.mrb[0].mxu0
        %7267 = vmatprep.mubr.bf16.mxu0 0
        %7268 = vmatmul.mubr.bf16.gmra.mrb[0].mxu0 %v7137
        %v7269 = vpop.f32.mrb[0].mxu0
        %v7270 = vadd.f32 0.0, %v7269
        %v7271 = vpop.f32.mrb[0].mxu0
        %v7272 = vpop.f32.mrb[0].mxu0
        %v7273 = vadd.f32 0.0, %v7272
        %v7274 = vpop.f32.mrb[0].mxu0
        %7275 = vmatprep.mubr.bf16.mxu0 0
        %7276 = vmatmul.mubr.bf16.gmra.mrb[0].mxu0 %v7138
        %v7277 = vpop.f32.mrb[0].mxu0
        %v7278 = vadd.f32 0.0, %v7277
        %v7279 = vpop.f32.mrb[0].mxu0
        %v7280 = vpop.f32.mrb[0].mxu0
        %v7281 = vadd.f32 0.0, %v7280
        %v7282 = vpop.f32.mrb[0].mxu0
        %7283 = vdwg.mxu0
        %v7300 = vunpack.c.l.b16 %v6287
        %v7301 = vunpack.c.l.b16 %v6288
        %v7302 = vunpack.c.l.b16 %v6289
        %v7303 = vunpack.c.l.b16 %v6290
        %v7304 = vunpack.c.l.b16 %v6291
        %v7305 = vunpack.c.l.b16 %v6292
        %v7306 = vunpack.c.l.b16 %v6293
        %v7307 = vunpack.c.l.b16 %v6294
        %v7308 = vunpack.c.l.b16 %v6295
        %v7309 = vunpack.c.l.b16 %v6296
        %v7310 = vunpack.c.l.b16 %v6297
        %v7311 = vunpack.c.l.b16 %v6298
        %v7312 = vunpack.c.l.b16 %v6299
        %v7313 = vunpack.c.l.b16 %v6300
        %v7314 = vunpack.c.l.b16 %v6301
        %v7315 = vunpack.c.l.b16 %v6302
        %v7316 = vpack.c.b16 %v7301, %v7300
        %v7317 = vpack.c.b16 %v7303, %v7302
        %v7318 = vpack.c.b16 %v7305, %v7304
        %v7319 = vpack.c.b16 %v7307, %v7306
        %v7320 = vpack.c.b16 %v7309, %v7308
        %v7321 = vpack.c.b16 %v7311, %v7310
        %v7322 = vpack.c.b16 %v7313, %v7312
        %v7323 = vpack.c.b16 %v7315, %v7314
        %7332 = vmatprep.subr.bf16.mxu0 0
        %7333 = vmatpush1.bf16.msra.mxu0 %v7316
        %7334 = vmatprep.subr.bf16.mxu0 0
        %7335 = vmatpush1.bf16.msra.mxu0 %v7317
        %7336 = vmatprep.subr.bf16.mxu0 0
        %7337 = vmatpush1.bf16.msra.mxu0 %v7318
        %7338 = vmatprep.subr.bf16.mxu0 0
        %7339 = vmatpush1.bf16.msra.mxu0 %v7319
        %7340 = vmatprep.subr.bf16.mxu0 0
        %7341 = vmatpush1.bf16.msra.mxu0 %v7320
        %7342 = vmatprep.subr.bf16.mxu0 0
        %7343 = vmatpush1.bf16.msra.mxu0 %v7321
        %7344 = vmatprep.subr.bf16.mxu0 0
        %7345 = vmatpush1.bf16.msra.mxu0 %v7322
        %7346 = vmatprep.subr.bf16.mxu0 0
        %7347 = vmatpush1.bf16.msra.mxu0 %v7323
        %7348 = vmatprep.subr.bf16.mxu0 0
        %7349 = vmatpush1.bf16.msra.mxu0 0
        %7350 = vmatprep.subr.bf16.mxu0 0
        %7351 = vmatpush1.bf16.msra.mxu0 0
        %7352 = vmatprep.subr.bf16.mxu0 0
        %7353 = vmatpush1.bf16.msra.mxu0 0
        %7354 = vmatprep.subr.bf16.mxu0 0
        %7355 = vmatpush1.bf16.msra.mxu0 0
        %7356 = vmatprep.subr.bf16.mxu0 0
        %7357 = vmatpush1.bf16.msra.mxu0 0
        %7358 = vmatprep.subr.bf16.mxu0 0
        %7359 = vmatpush1.bf16.msra.mxu0 0
        %7360 = vmatprep.subr.bf16.mxu0 0
        %7361 = vmatpush1.bf16.msra.mxu0 0
        %7362 = vmatprep.subr.bf16.mxu0 0
        %7363 = vmatpush1.bf16.msra.mxu0 0
        %7364 = vmatprep.mubr.bf16.mxu0 0
        %7365 = vmatmul.mubr.bf16.gmra.mrb[0].mxu0 %v6721
        %v7366 = vpop.f32.mrb[0].mxu0
        %v7367 = vadd.f32 %v7222, %v7366
        %v7368 = vpop.f32.mrb[0].mxu0
        %v7369 = vpop.f32.mrb[0].mxu0
        %v7370 = vadd.f32 %v7225, %v7369
        %v7371 = vpop.f32.mrb[0].mxu0
        %7372 = vmatprep.mubr.bf16.mxu0 0
        %7373 = vmatmul.mubr.bf16.gmra.mrb[0].mxu0 %v6722
        %v7374 = vpop.f32.mrb[0].mxu0
        %v7375 = vadd.f32 %v7230, %v7374
        %v7376 = vpop.f32.mrb[0].mxu0
        %v7377 = vpop.f32.mrb[0].mxu0
        %v7378 = vadd.f32 %v7233, %v7377
        %v7379 = vpop.f32.mrb[0].mxu0
        %7380 = vmatprep.mubr.bf16.mxu0 0
        %7381 = vmatmul.mubr.bf16.gmra.mrb[0].mxu0 %v6723
        %v7382 = vpop.f32.mrb[0].mxu0
        %v7383 = vadd.f32 %v7238, %v7382
        %v7384 = vpop.f32.mrb[0].mxu0
        %v7385 = vpop.f32.mrb[0].mxu0
        %v7386 = vadd.f32 %v7241, %v7385
        %v7387 = vpop.f32.mrb[0].mxu0
        %7388 = vmatprep.mubr.bf16.mxu0 0
        %7389 = vmatmul.mubr.bf16.gmra.mrb[0].mxu0 %v6724
        %v7390 = vpop.f32.mrb[0].mxu0
        %v7391 = vadd.f32 %v7246, %v7390
        %v7392 = vpop.f32.mrb[0].mxu0
        %v7393 = vpop.f32.mrb[0].mxu0
        %v7394 = vadd.f32 %v7249, %v7393
        %v7395 = vpop.f32.mrb[0].mxu0
        %7396 = vmatprep.mubr.bf16.mxu0 0
        %7397 = vmatmul.mubr.bf16.gmra.mrb[0].mxu0 %v6725
        %v7398 = vpop.f32.mrb[0].mxu0
        %v7399 = vadd.f32 %v7254, %v7398
        %v7400 = vpop.f32.mrb[0].mxu0
        %v7401 = vpop.f32.mrb[0].mxu0
        %v7402 = vadd.f32 %v7257, %v7401
        %v7403 = vpop.f32.mrb[0].mxu0
        %7404 = vmatprep.mubr.bf16.mxu0 0
        %7405 = vmatmul.mubr.bf16.gmra.mrb[0].mxu0 %v6726
        %v7406 = vpop.f32.mrb[0].mxu0
        %v7407 = vadd.f32 %v7262, %v7406
        %v7408 = vpop.f32.mrb[0].mxu0
        %v7409 = vpop.f32.mrb[0].mxu0
        %v7410 = vadd.f32 %v7265, %v7409
        %v7411 = vpop.f32.mrb[0].mxu0
        %7412 = vmatprep.mubr.bf16.mxu0 0
        %7413 = vmatmul.mubr.bf16.gmra.mrb[0].mxu0 %v6727
        %v7414 = vpop.f32.mrb[0].mxu0
        %v7415 = vadd.f32 %v7270, %v7414
        %v7416 = vpop.f32.mrb[0].mxu0
        %v7417 = vpop.f32.mrb[0].mxu0
        %v7418 = vadd.f32 %v7273, %v7417
        %v7419 = vpop.f32.mrb[0].mxu0
        %7420 = vmatprep.mubr.bf16.mxu0 0
        %7421 = vmatmul.mubr.bf16.gmra.mrb[0].mxu0 %v6728
        %v7422 = vpop.f32.mrb[0].mxu0
        %v7423 = vadd.f32 %v7278, %v7422
        %v7424 = vpop.f32.mrb[0].mxu0
        %v7425 = vpop.f32.mrb[0].mxu0
        %v7426 = vadd.f32 %v7281, %v7425
        %v7427 = vpop.f32.mrb[0].mxu0
        %7428 = vdwg.mxu0
        %s7429 = scalar_lea.vmem %s10, 1
        %v7430 = vld [vmem:[%s7429] sm:$0x1]
        %v7432 = vlaneseq
        %v7433 = vshrl.u32 %v7432, 7
        %v7434 = vsub.s32 0, %v7433
        %v7435 = vrot.slane %v7430, %v7434
        %v7437 = vadd.f32 %v7367, %v7435
        %v7438 = vadd.f32 %v7370, %v7435
        %v7439 = vadd.f32 %v7375, %v7435
        %v7440 = vadd.f32 %v7378, %v7435
        %v7441 = vadd.f32 %v7383, %v7435
        %v7442 = vadd.f32 %v7386, %v7435
        %v7443 = vadd.f32 %v7391, %v7435
        %v7444 = vadd.f32 %v7394, %v7435
        %v7445 = vadd.f32 %v7399, %v7435
        %v7446 = vadd.f32 %v7402, %v7435
        %v7447 = vadd.f32 %v7407, %v7435
        %v7448 = vadd.f32 %v7410, %v7435
        %v7449 = vadd.f32 %v7415, %v7435
        %v7450 = vadd.f32 %v7418, %v7435
        %v7451 = vadd.f32 %v7423, %v7435
        %v7452 = vadd.f32 %v7426, %v7435
        %v7453 = vadd.f32 %v7437, %v5601
        %v7454 = vadd.f32 %v7438, %v5602
        %v7455 = vadd.f32 %v7439, %v5603
        %v7456 = vadd.f32 %v7440, %v5604
        %v7457 = vadd.f32 %v7441, %v5605
        %v7458 = vadd.f32 %v7442, %v5606
        %v7459 = vadd.f32 %v7443, %v5607
        %v7460 = vadd.f32 %v7444, %v5608
        %v7461 = vadd.f32 %v7445, %v5609
        %v7462 = vadd.f32 %v7446, %v5610
        %v7463 = vadd.f32 %v7447, %v5611
        %v7464 = vadd.f32 %v7448, %v5612
        %v7465 = vadd.f32 %v7449, %v5613
        %v7466 = vadd.f32 %v7450, %v5614
        %v7467 = vadd.f32 %v7451, %v5615
        %v7468 = vadd.f32 %v7452, %v5616
        %s7469 = scalar_lea.vmem %s11, 1
        %v7470 = vld [vmem:[%s7469] sm:$0x1]
        %s7471 = scalar_lea.vmem [#allocation9], 1
        %v7472 = vld [vmem:[%s7471] sm:$0x1]
        %7473 = vadd.xlane.f32.xlu0 %v7453
        %v7474 = vpop.xlane.xlu0 %7473
        %7475 = vadd.xlane.f32.xlu0 %v7454
        %v7476 = vpop.xlane.xlu0 %7475
        %7477 = vadd.xlane.f32.xlu0 %v7455
        %v7478 = vpop.xlane.xlu0 %7477
        %7479 = vadd.xlane.f32.xlu0 %v7456
        %v7480 = vpop.xlane.xlu0 %7479
        %7481 = vadd.xlane.f32.xlu0 %v7457
        %v7482 = vpop.xlane.xlu0 %7481
        %7483 = vadd.xlane.f32.xlu0 %v7458
        %v7484 = vpop.xlane.xlu0 %7483
        %7485 = vadd.xlane.f32.xlu0 %v7459
        %v7486 = vpop.xlane.xlu0 %7485
        %7487 = vadd.xlane.f32.xlu0 %v7460
        %v7488 = vpop.xlane.xlu0 %7487
        %7489 = vadd.xlane.f32.xlu0 %v7461
        %v7490 = vpop.xlane.xlu0 %7489
        %7491 = vadd.xlane.f32.xlu0 %v7462
        %v7492 = vpop.xlane.xlu0 %7491
        %7493 = vadd.xlane.f32.xlu0 %v7463
        %v7494 = vpop.xlane.xlu0 %7493
        %7495 = vadd.xlane.f32.xlu0 %v7464
        %v7496 = vpop.xlane.xlu0 %7495
        %7497 = vadd.xlane.f32.xlu0 %v7465
        %v7498 = vpop.xlane.xlu0 %7497
        %7499 = vadd.xlane.f32.xlu0 %v7466
        %v7500 = vpop.xlane.xlu0 %7499
        %7501 = vadd.xlane.f32.xlu0 %v7467
        %v7502 = vpop.xlane.xlu0 %7501
        %7503 = vadd.xlane.f32.xlu0 %v7468
        %v7504 = vpop.xlane.xlu0 %7503
        %v7505 = vmul.f32 %v7474, %v1598
        %v7506 = vmul.f32 %v7476, %v1598
        %v7507 = vmul.f32 %v7478, %v1598
        %v7508 = vmul.f32 %v7480, %v1598
        %v7509 = vmul.f32 %v7482, %v1598
        %v7510 = vmul.f32 %v7484, %v1598
        %v7511 = vmul.f32 %v7486, %v1598
        %v7512 = vmul.f32 %v7488, %v1598
        %v7513 = vmul.f32 %v7490, %v1598
        %v7514 = vmul.f32 %v7492, %v1598
        %v7515 = vmul.f32 %v7494, %v1598
        %v7516 = vmul.f32 %v7496, %v1598
        %v7517 = vmul.f32 %v7498, %v1598
        %v7518 = vmul.f32 %v7500, %v1598
        %v7519 = vmul.f32 %v7502, %v1598
        %v7520 = vmul.f32 %v7504, %v1598
        %v7521 = vsub.f32 %v7453, %v7505
        %v7522 = vsub.f32 %v7454, %v7506
        %v7523 = vsub.f32 %v7455, %v7507
        %v7524 = vsub.f32 %v7456, %v7508
        %v7525 = vsub.f32 %v7457, %v7509
        %v7526 = vsub.f32 %v7458, %v7510
        %v7527 = vsub.f32 %v7459, %v7511
        %v7528 = vsub.f32 %v7460, %v7512
        %v7529 = vsub.f32 %v7461, %v7513
        %v7530 = vsub.f32 %v7462, %v7514
        %v7531 = vsub.f32 %v7463, %v7515
        %v7532 = vsub.f32 %v7464, %v7516
        %v7533 = vsub.f32 %v7465, %v7517
        %v7534 = vsub.f32 %v7466, %v7518
        %v7535 = vsub.f32 %v7467, %v7519
        %v7536 = vsub.f32 %v7468, %v7520
        %v7537 = vmul.f32 %v7521, %v7521
        %v7538 = vmul.f32 %v7522, %v7522
        %v7539 = vmul.f32 %v7523, %v7523
        %v7540 = vmul.f32 %v7524, %v7524
        %v7541 = vmul.f32 %v7525, %v7525
        %v7542 = vmul.f32 %v7526, %v7526
        %v7543 = vmul.f32 %v7527, %v7527
        %v7544 = vmul.f32 %v7528, %v7528
        %v7545 = vmul.f32 %v7529, %v7529
        %v7546 = vmul.f32 %v7530, %v7530
        %v7547 = vmul.f32 %v7531, %v7531
        %v7548 = vmul.f32 %v7532, %v7532
        %v7549 = vmul.f32 %v7533, %v7533
        %v7550 = vmul.f32 %v7534, %v7534
        %v7551 = vmul.f32 %v7535, %v7535
        %v7552 = vmul.f32 %v7536, %v7536
        %7553 = vadd.xlane.f32.xlu0 %v7537
        %v7554 = vpop.xlane.xlu0 %7553
        %7555 = vadd.xlane.f32.xlu0 %v7538
        %v7556 = vpop.xlane.xlu0 %7555
        %7557 = vadd.xlane.f32.xlu0 %v7539
        %v7558 = vpop.xlane.xlu0 %7557
        %7559 = vadd.xlane.f32.xlu0 %v7540
        %v7560 = vpop.xlane.xlu0 %7559
        %7561 = vadd.xlane.f32.xlu0 %v7541
        %v7562 = vpop.xlane.xlu0 %7561
        %7563 = vadd.xlane.f32.xlu0 %v7542
        %v7564 = vpop.xlane.xlu0 %7563
        %7565 = vadd.xlane.f32.xlu0 %v7543
        %v7566 = vpop.xlane.xlu0 %7565
        %7567 = vadd.xlane.f32.xlu0 %v7544
        %v7568 = vpop.xlane.xlu0 %7567
        %7569 = vadd.xlane.f32.xlu0 %v7545
        %v7570 = vpop.xlane.xlu0 %7569
        %7571 = vadd.xlane.f32.xlu0 %v7546
        %v7572 = vpop.xlane.xlu0 %7571
        %7573 = vadd.xlane.f32.xlu0 %v7547
        %v7574 = vpop.xlane.xlu0 %7573
        %7575 = vadd.xlane.f32.xlu0 %v7548
        %v7576 = vpop.xlane.xlu0 %7575
        %7577 = vadd.xlane.f32.xlu0 %v7549
        %v7578 = vpop.xlane.xlu0 %7577
        %7579 = vadd.xlane.f32.xlu0 %v7550
        %v7580 = vpop.xlane.xlu0 %7579
        %7581 = vadd.xlane.f32.xlu0 %v7551
        %v7582 = vpop.xlane.xlu0 %7581
        %7583 = vadd.xlane.f32.xlu0 %v7552
        %v7584 = vpop.xlane.xlu0 %7583
        %v7585 = vmul.f32 %v7554, %v1598
        %v7586 = vmul.f32 %v7556, %v1598
        %v7587 = vmul.f32 %v7558, %v1598
        %v7588 = vmul.f32 %v7560, %v1598
        %v7589 = vmul.f32 %v7562, %v1598
        %v7590 = vmul.f32 %v7564, %v1598
        %v7591 = vmul.f32 %v7566, %v1598
        %v7592 = vmul.f32 %v7568, %v1598
        %v7593 = vmul.f32 %v7570, %v1598
        %v7594 = vmul.f32 %v7572, %v1598
        %v7595 = vmul.f32 %v7574, %v1598
        %v7596 = vmul.f32 %v7576, %v1598
        %v7597 = vmul.f32 %v7578, %v1598
        %v7598 = vmul.f32 %v7580, %v1598
        %v7599 = vmul.f32 %v7582, %v1598
        %v7600 = vmul.f32 %v7584, %v1598
        %v7601 = vadd.f32 %v7585, 1e-12
        %v7602 = vadd.f32 %v7586, 1e-12
        %v7603 = vadd.f32 %v7587, 1e-12
        %v7604 = vadd.f32 %v7588, 1e-12
        %v7605 = vadd.f32 %v7589, 1e-12
        %v7606 = vadd.f32 %v7590, 1e-12
        %v7607 = vadd.f32 %v7591, 1e-12
        %v7608 = vadd.f32 %v7592, 1e-12
        %v7609 = vadd.f32 %v7593, 1e-12
        %v7610 = vadd.f32 %v7594, 1e-12
        %v7611 = vadd.f32 %v7595, 1e-12
        %v7612 = vadd.f32 %v7596, 1e-12
        %v7613 = vadd.f32 %v7597, 1e-12
        %v7614 = vadd.f32 %v7598, 1e-12
        %v7615 = vadd.f32 %v7599, 1e-12
        %v7616 = vadd.f32 %v7600, 1e-12
        %v7617 = vrsqrt.pop %v7601
        %v7618 = vrsqrt.pop %v7602
        %v7619 = vrsqrt.pop %v7603
        %v7620 = vrsqrt.pop %v7604
        %v7621 = vrsqrt.pop %v7605
        %v7622 = vrsqrt.pop %v7606
        %v7623 = vrsqrt.pop %v7607
        %v7624 = vrsqrt.pop %v7608
        %v7625 = vrsqrt.pop %v7609
        %v7626 = vrsqrt.pop %v7610
        %v7627 = vrsqrt.pop %v7611
        %v7628 = vrsqrt.pop %v7612
        %v7629 = vrsqrt.pop %v7613
        %v7630 = vrsqrt.pop %v7614
        %v7631 = vrsqrt.pop %v7615
        %v7632 = vrsqrt.pop %v7616
        %v7633 = vmul.f32 %v7521, %v7617
        %v7634 = vmul.f32 %v7522, %v7618
        %v7635 = vmul.f32 %v7523, %v7619
        %v7636 = vmul.f32 %v7524, %v7620
        %v7637 = vmul.f32 %v7525, %v7621
        %v7638 = vmul.f32 %v7526, %v7622
        %v7639 = vmul.f32 %v7527, %v7623
        %v7640 = vmul.f32 %v7528, %v7624
        %v7641 = vmul.f32 %v7529, %v7625
        %v7642 = vmul.f32 %v7530, %v7626
        %v7643 = vmul.f32 %v7531, %v7627
        %v7644 = vmul.f32 %v7532, %v7628
        %v7645 = vmul.f32 %v7533, %v7629
        %v7646 = vmul.f32 %v7534, %v7630
        %v7647 = vmul.f32 %v7535, %v7631
        %v7648 = vmul.f32 %v7536, %v7632
        %v7650 = vlaneseq
        %v7651 = vshrl.u32 %v7650, 7
        %v7652 = vsub.s32 0, %v7651
        %v7653 = vrot.slane %v7470, %v7652
        %v7655 = vmul.f32 %v7633, %v7653
        %v7656 = vmul.f32 %v7634, %v7653
        %v7657 = vmul.f32 %v7635, %v7653
        %v7658 = vmul.f32 %v7636, %v7653
        %v7659 = vmul.f32 %v7637, %v7653
        %v7660 = vmul.f32 %v7638, %v7653
        %v7661 = vmul.f32 %v7639, %v7653
        %v7662 = vmul.f32 %v7640, %v7653
        %v7663 = vmul.f32 %v7641, %v7653
        %v7664 = vmul.f32 %v7642, %v7653
        %v7665 = vmul.f32 %v7643, %v7653
        %v7666 = vmul.f32 %v7644, %v7653
        %v7667 = vmul.f32 %v7645, %v7653
        %v7668 = vmul.f32 %v7646, %v7653
        %v7669 = vmul.f32 %v7647, %v7653
        %v7670 = vmul.f32 %v7648, %v7653
        %v7672 = vlaneseq
        %v7673 = vshrl.u32 %v7672, 7
        %v7674 = vsub.s32 0, %v7673
        %v7675 = vrot.slane %v7472, %v7674
        %v7677 = vadd.f32 %v7655, %v7675
        %v7678 = vadd.f32 %v7656, %v7675
        %v7679 = vadd.f32 %v7657, %v7675
        %v7680 = vadd.f32 %v7658, %v7675
        %v7681 = vadd.f32 %v7659, %v7675
        %v7682 = vadd.f32 %v7660, %v7675
        %v7683 = vadd.f32 %v7661, %v7675
        %v7684 = vadd.f32 %v7662, %v7675
        %v7685 = vadd.f32 %v7663, %v7675
        %v7686 = vadd.f32 %v7664, %v7675
        %v7687 = vadd.f32 %v7665, %v7675
        %v7688 = vadd.f32 %v7666, %v7675
        %v7689 = vadd.f32 %v7667, %v7675
        %v7690 = vadd.f32 %v7668, %v7675
        %v7691 = vadd.f32 %v7669, %v7675
        %v7692 = vadd.f32 %v7670, %v7675
        %v7693 = vpack.c.bf16 %v7678, %v7677
        %v7694 = vpack.c.bf16 %v7680, %v7679
        %v7695 = vpack.c.bf16 %v7682, %v7681
        %v7696 = vpack.c.bf16 %v7684, %v7683
        %v7697 = vpack.c.bf16 %v7686, %v7685
        %v7698 = vpack.c.bf16 %v7688, %v7687
        %v7699 = vpack.c.bf16 %v7690, %v7689
        %v7700 = vpack.c.bf16 %v7692, %v7691
        %s7701 = scalar_lea.vmem [#allocation10], 256
        %v7702 = vld [vmem:[%s7701] sm:$0xff]
        %v7703 = vld [vmem:[%s7701 + $0x8] sm:$0xff]
        %v7704 = vld [vmem:[%s7701 + $0x10] sm:$0xff]
        %v7705 = vld [vmem:[%s7701 + $0x18] sm:$0xff]
        %v7706 = vld [vmem:[%s7701 + $0x20] sm:$0xff]
        %v7707 = vld [vmem:[%s7701 + $0x28] sm:$0xff]
        %v7708 = vld [vmem:[%s7701 + $0x30] sm:$0xff]
        %v7709 = vld [vmem:[%s7701 + $0x38] sm:$0xff]
        %v7710 = vld [vmem:[%s7701 + $0x40] sm:$0xff]
        %v7711 = vld [vmem:[%s7701 + $0x48] sm:$0xff]
        %v7712 = vld [vmem:[%s7701 + $0x50] sm:$0xff]
        %v7713 = vld [vmem:[%s7701 + $0x58] sm:$0xff]
        %v7714 = vld [vmem:[%s7701 + $0x60] sm:$0xff]
        %v7715 = vld [vmem:[%s7701 + $0x68] sm:$0xff]
        %v7716 = vld [vmem:[%s7701 + $0x70] sm:$0xff]
        %v7717 = vld [vmem:[%s7701 + $0x78] sm:$0xff]
        %v7718 = vld [vmem:[%s7701 + $0x80] sm:$0xff]
        %v7719 = vld [vmem:[%s7701 + $0x88] sm:$0xff]
        %v7720 = vld [vmem:[%s7701 + $0x90] sm:$0xff]
        %v7721 = vld [vmem:[%s7701 + $0x98] sm:$0xff]
        %v7722 = vld [vmem:[%s7701 + $0xa0] sm:$0xff]
        %v7723 = vld [vmem:[%s7701 + $0xa8] sm:$0xff]
        %v7724 = vld [vmem:[%s7701 + $0xb0] sm:$0xff]
        %v7725 = vld [vmem:[%s7701 + $0xb8] sm:$0xff]
        %v7726 = vld [vmem:[%s7701 + $0xc0] sm:$0xff]
        %v7727 = vld [vmem:[%s7701 + $0xc8] sm:$0xff]
        %v7728 = vld [vmem:[%s7701 + $0xd0] sm:$0xff]
        %v7729 = vld [vmem:[%s7701 + $0xd8] sm:$0xff]
        %v7730 = vld [vmem:[%s7701 + $0xe0] sm:$0xff]
        %v7731 = vld [vmem:[%s7701 + $0xe8] sm:$0xff]
        %v7732 = vld [vmem:[%s7701 + $0xf0] sm:$0xff]
        %v7733 = vld [vmem:[%s7701 + $0xf8] sm:$0xff]
        %s7734 = scalar_lea.vmem [#allocation12], 4
        %v7735 = vld [vmem:[%s7734] sm:$0xf]
        %v7737 = vlaneseq
        %v7738 = vshrl.u32 %v7737, 7
        %v7739 = vsub.s32 0, %v7738
        %v7740 = vrot.slane %v7735, %v7739
        %v7741 = vlaneseq
        %v7742 = vshrl.u32 %v7741, 7
        %v7743 = vsub.s32 1, %v7742
        %v7744 = vrot.slane %v7735, %v7743
        %v7745 = vlaneseq
        %v7746 = vshrl.u32 %v7745, 7
        %v7747 = vsub.s32 2, %v7746
        %v7748 = vrot.slane %v7735, %v7747
        %v7749 = vlaneseq
        %v7750 = vshrl.u32 %v7749, 7
        %v7751 = vsub.s32 3, %v7750
        %v7752 = vrot.slane %v7735, %v7751
        %v7789 = vunpack.c.l.b16 %v7702
        %v7790 = vunpack.c.h.b16 %v7702
        %v7791 = vunpack.c.l.b16 %v7703
        %v7792 = vunpack.c.h.b16 %v7703
        %v7793 = vunpack.c.l.b16 %v7704
        %v7794 = vunpack.c.h.b16 %v7704
        %v7795 = vunpack.c.l.b16 %v7705
        %v7796 = vunpack.c.h.b16 %v7705
        %v7797 = vunpack.c.l.b16 %v7706
        %v7798 = vunpack.c.h.b16 %v7706
        %v7799 = vunpack.c.l.b16 %v7707
        %v7800 = vunpack.c.h.b16 %v7707
        %v7801 = vunpack.c.l.b16 %v7708
        %v7802 = vunpack.c.h.b16 %v7708
        %v7803 = vunpack.c.l.b16 %v7709
        %v7804 = vunpack.c.h.b16 %v7709
        %v7805 = vunpack.c.l.b16 %v7710
        %v7806 = vunpack.c.h.b16 %v7710
        %v7807 = vunpack.c.l.b16 %v7711
        %v7808 = vunpack.c.h.b16 %v7711
        %v7809 = vunpack.c.l.b16 %v7712
        %v7810 = vunpack.c.h.b16 %v7712
        %v7811 = vunpack.c.l.b16 %v7713
        %v7812 = vunpack.c.h.b16 %v7713
        %v7813 = vunpack.c.l.b16 %v7714
        %v7814 = vunpack.c.h.b16 %v7714
        %v7815 = vunpack.c.l.b16 %v7715
        %v7816 = vunpack.c.h.b16 %v7715
        %v7817 = vunpack.c.l.b16 %v7716
        %v7818 = vunpack.c.h.b16 %v7716
        %v7819 = vunpack.c.l.b16 %v7717
        %v7820 = vunpack.c.h.b16 %v7717
        %v7821 = vunpack.c.l.b16 %v7718
        %v7822 = vunpack.c.h.b16 %v7718
        %v7823 = vunpack.c.l.b16 %v7719
        %v7824 = vunpack.c.h.b16 %v7719
        %v7825 = vunpack.c.l.b16 %v7720
        %v7826 = vunpack.c.h.b16 %v7720
        %v7827 = vunpack.c.l.b16 %v7721
        %v7828 = vunpack.c.h.b16 %v7721
        %v7829 = vunpack.c.l.b16 %v7722
        %v7830 = vunpack.c.h.b16 %v7722
        %v7831 = vunpack.c.l.b16 %v7723
        %v7832 = vunpack.c.h.b16 %v7723
        %v7833 = vunpack.c.l.b16 %v7724
        %v7834 = vunpack.c.h.b16 %v7724
        %v7835 = vunpack.c.l.b16 %v7725
        %v7836 = vunpack.c.h.b16 %v7725
        %v7837 = vunpack.c.l.b16 %v7726
        %v7838 = vunpack.c.h.b16 %v7726
        %v7839 = vunpack.c.l.b16 %v7727
        %v7840 = vunpack.c.h.b16 %v7727
        %v7841 = vunpack.c.l.b16 %v7728
        %v7842 = vunpack.c.h.b16 %v7728
        %v7843 = vunpack.c.l.b16 %v7729
        %v7844 = vunpack.c.h.b16 %v7729
        %v7845 = vunpack.c.l.b16 %v7730
        %v7846 = vunpack.c.h.b16 %v7730
        %v7847 = vunpack.c.l.b16 %v7731
        %v7848 = vunpack.c.h.b16 %v7731
        %v7849 = vunpack.c.l.b16 %v7732
        %v7850 = vunpack.c.h.b16 %v7732
        %v7851 = vunpack.c.l.b16 %v7733
        %v7852 = vunpack.c.h.b16 %v7733
        %v7853 = vpack.c.b16 %v7793, %v7789
        %v7854 = vpack.c.b16 %v7794, %v7790
        %v7855 = vpack.c.b16 %v7795, %v7791
        %v7856 = vpack.c.b16 %v7796, %v7792
        %v7857 = vpack.c.b16 %v7801, %v7797
        %v7858 = vpack.c.b16 %v7802, %v7798
        %v7859 = vpack.c.b16 %v7803, %v7799
        %v7860 = vpack.c.b16 %v7804, %v7800
        %v7861 = vpack.c.b16 %v7809, %v7805
        %v7862 = vpack.c.b16 %v7810, %v7806
        %v7863 = vpack.c.b16 %v7811, %v7807
        %v7864 = vpack.c.b16 %v7812, %v7808
        %v7865 = vpack.c.b16 %v7817, %v7813
        %v7866 = vpack.c.b16 %v7818, %v7814
        %v7867 = vpack.c.b16 %v7819, %v7815
        %v7868 = vpack.c.b16 %v7820, %v7816
        %v7869 = vpack.c.b16 %v7825, %v7821
        %v7870 = vpack.c.b16 %v7826, %v7822
        %v7871 = vpack.c.b16 %v7827, %v7823
        %v7872 = vpack.c.b16 %v7828, %v7824
        %v7873 = vpack.c.b16 %v7833, %v7829
        %v7874 = vpack.c.b16 %v7834, %v7830
        %v7875 = vpack.c.b16 %v7835, %v7831
        %v7876 = vpack.c.b16 %v7836, %v7832
        %v7877 = vpack.c.b16 %v7841, %v7837
        %v7878 = vpack.c.b16 %v7842, %v7838
        %v7879 = vpack.c.b16 %v7843, %v7839
        %v7880 = vpack.c.b16 %v7844, %v7840
        %v7881 = vpack.c.b16 %v7849, %v7845
        %v7882 = vpack.c.b16 %v7850, %v7846
        %v7883 = vpack.c.b16 %v7851, %v7847
        %v7884 = vpack.c.b16 %v7852, %v7848
        %7917 = vmatprep.subr.bf16.mxu0 %v7854
        %7918 = vmatpush1.bf16.msra.mxu0 %v7853
        %7919 = vmatprep.subr.bf16.mxu0 %v7858
        %7920 = vmatpush1.bf16.msra.mxu0 %v7857
        %7921 = vmatprep.subr.bf16.mxu0 %v7862
        %7922 = vmatpush1.bf16.msra.mxu0 %v7861
        %7923 = vmatprep.subr.bf16.mxu0 %v7866
        %7924 = vmatpush1.bf16.msra.mxu0 %v7865
        %7925 = vmatprep.subr.bf16.mxu0 %v7870
        %7926 = vmatpush1.bf16.msra.mxu0 %v7869
        %7927 = vmatprep.subr.bf16.mxu0 %v7874
        %7928 = vmatpush1.bf16.msra.mxu0 %v7873
        %7929 = vmatprep.subr.bf16.mxu0 %v7878
        %7930 = vmatpush1.bf16.msra.mxu0 %v7877
        %7931 = vmatprep.subr.bf16.mxu0 %v7882
        %7932 = vmatpush1.bf16.msra.mxu0 %v7881
        %7933 = vmatprep.subr.bf16.mxu0 0
        %7934 = vmatpush1.bf16.msra.mxu0 0
        %7935 = vmatprep.subr.bf16.mxu0 0
        %7936 = vmatpush1.bf16.msra.mxu0 0
        %7937 = vmatprep.subr.bf16.mxu0 0
        %7938 = vmatpush1.bf16.msra.mxu0 0
        %7939 = vmatprep.subr.bf16.mxu0 0
        %7940 = vmatpush1.bf16.msra.mxu0 0
        %7941 = vmatprep.subr.bf16.mxu0 0
        %7942 = vmatpush1.bf16.msra.mxu0 0
        %7943 = vmatprep.subr.bf16.mxu0 0
        %7944 = vmatpush1.bf16.msra.mxu0 0
        %7945 = vmatprep.subr.bf16.mxu0 0
        %7946 = vmatpush1.bf16.msra.mxu0 0
        %7947 = vmatprep.subr.bf16.mxu0 0
        %7948 = vmatpush1.bf16.msra.mxu0 0
        %7949 = vmatprep.mubr.bf16.mxu0 0
        %7950 = vmatmul.mubr.bf16.gmra.mrb[0].mxu0 %v7693
        %v7951 = vpop.f32.mrb[0].mxu0
        %v7952 = vadd.f32 %v7740, %v7951
        %v7953 = vpop.f32.mrb[0].mxu0
        %v7954 = vadd.f32 %v7744, %v7953
        %v7955 = vpop.f32.mrb[0].mxu0
        %v7956 = vadd.f32 %v7740, %v7955
        %v7957 = vpop.f32.mrb[0].mxu0
        %v7958 = vadd.f32 %v7744, %v7957
        %7959 = vmatprep.mubr.bf16.mxu0 0
        %7960 = vmatmul.mubr.bf16.gmra.mrb[0].mxu0 %v7694
        %v7961 = vpop.f32.mrb[0].mxu0
        %v7962 = vadd.f32 %v7740, %v7961
        %v7963 = vpop.f32.mrb[0].mxu0
        %v7964 = vadd.f32 %v7744, %v7963
        %v7965 = vpop.f32.mrb[0].mxu0
        %v7966 = vadd.f32 %v7740, %v7965
        %v7967 = vpop.f32.mrb[0].mxu0
        %v7968 = vadd.f32 %v7744, %v7967
        %7969 = vmatprep.mubr.bf16.mxu0 0
        %7970 = vmatmul.mubr.bf16.gmra.mrb[0].mxu0 %v7695
        %v7971 = vpop.f32.mrb[0].mxu0
        %v7972 = vadd.f32 %v7740, %v7971
        %v7973 = vpop.f32.mrb[0].mxu0
        %v7974 = vadd.f32 %v7744, %v7973
        %v7975 = vpop.f32.mrb[0].mxu0
        %v7976 = vadd.f32 %v7740, %v7975
        %v7977 = vpop.f32.mrb[0].mxu0
        %v7978 = vadd.f32 %v7744, %v7977
        %7979 = vmatprep.mubr.bf16.mxu0 0
        %7980 = vmatmul.mubr.bf16.gmra.mrb[0].mxu0 %v7696
        %v7981 = vpop.f32.mrb[0].mxu0
        %v7982 = vadd.f32 %v7740, %v7981
        %v7983 = vpop.f32.mrb[0].mxu0
        %v7984 = vadd.f32 %v7744, %v7983
        %v7985 = vpop.f32.mrb[0].mxu0
        %v7986 = vadd.f32 %v7740, %v7985
        %v7987 = vpop.f32.mrb[0].mxu0
        %v7988 = vadd.f32 %v7744, %v7987
        %7989 = vmatprep.mubr.bf16.mxu0 0
        %7990 = vmatmul.mubr.bf16.gmra.mrb[0].mxu0 %v7697
        %v7991 = vpop.f32.mrb[0].mxu0
        %v7992 = vadd.f32 %v7740, %v7991
        %v7993 = vpop.f32.mrb[0].mxu0
        %v7994 = vadd.f32 %v7744, %v7993
        %v7995 = vpop.f32.mrb[0].mxu0
        %v7996 = vadd.f32 %v7740, %v7995
        %v7997 = vpop.f32.mrb[0].mxu0
        %v7998 = vadd.f32 %v7744, %v7997
        %7999 = vmatprep.mubr.bf16.mxu0 0
        %8000 = vmatmul.mubr.bf16.gmra.mrb[0].mxu0 %v7698
        %v8001 = vpop.f32.mrb[0].mxu0
        %v8002 = vadd.f32 %v7740, %v8001
        %v8003 = vpop.f32.mrb[0].mxu0
        %v8004 = vadd.f32 %v7744, %v8003
        %v8005 = vpop.f32.mrb[0].mxu0
        %v8006 = vadd.f32 %v7740, %v8005
        %v8007 = vpop.f32.mrb[0].mxu0
        %v8008 = vadd.f32 %v7744, %v8007
        %8009 = vmatprep.mubr.bf16.mxu0 0
        %8010 = vmatmul.mubr.bf16.gmra.mrb[0].mxu0 %v7699
        %v8011 = vpop.f32.mrb[0].mxu0
        %v8012 = vadd.f32 %v7740, %v8011
        %v8013 = vpop.f32.mrb[0].mxu0
        %v8014 = vadd.f32 %v7744, %v8013
        %v8015 = vpop.f32.mrb[0].mxu0
        %v8016 = vadd.f32 %v7740, %v8015
        %v8017 = vpop.f32.mrb[0].mxu0
        %v8018 = vadd.f32 %v7744, %v8017
        %8019 = vmatprep.mubr.bf16.mxu0 0
        %8020 = vmatmul.mubr.bf16.gmra.mrb[0].mxu0 %v7700
        %v8021 = vpop.f32.mrb[0].mxu0
        %v8022 = vadd.f32 %v7740, %v8021
        %v8023 = vpop.f32.mrb[0].mxu0
        %v8024 = vadd.f32 %v7744, %v8023
        %v8025 = vpop.f32.mrb[0].mxu0
        %v8026 = vadd.f32 %v7740, %v8025
        %v8027 = vpop.f32.mrb[0].mxu0
        %v8028 = vadd.f32 %v7744, %v8027
        %8029 = vdwg.mxu0
        %8030 = vmatprep.subr.bf16.mxu0 %v7856
        %8031 = vmatpush1.bf16.msra.mxu0 %v7855
        %8032 = vmatprep.subr.bf16.mxu0 %v7860
        %8033 = vmatpush1.bf16.msra.mxu0 %v7859
        %8034 = vmatprep.subr.bf16.mxu0 %v7864
        %8035 = vmatpush1.bf16.msra.mxu0 %v7863
        %8036 = vmatprep.subr.bf16.mxu0 %v7868
        %8037 = vmatpush1.bf16.msra.mxu0 %v7867
        %8038 = vmatprep.subr.bf16.mxu0 %v7872
        %8039 = vmatpush1.bf16.msra.mxu0 %v7871
        %8040 = vmatprep.subr.bf16.mxu0 %v7876
        %8041 = vmatpush1.bf16.msra.mxu0 %v7875
        %8042 = vmatprep.subr.bf16.mxu0 %v7880
        %8043 = vmatpush1.bf16.msra.mxu0 %v7879
        %8044 = vmatprep.subr.bf16.mxu0 %v7884
        %8045 = vmatpush1.bf16.msra.mxu0 %v7883
        %8046 = vmatprep.subr.bf16.mxu0 0
        %8047 = vmatpush1.bf16.msra.mxu0 0
        %8048 = vmatprep.subr.bf16.mxu0 0
        %8049 = vmatpush1.bf16.msra.mxu0 0
        %8050 = vmatprep.subr.bf16.mxu0 0
        %8051 = vmatpush1.bf16.msra.mxu0 0
        %8052 = vmatprep.subr.bf16.mxu0 0
        %8053 = vmatpush1.bf16.msra.mxu0 0
        %8054 = vmatprep.subr.bf16.mxu0 0
        %8055 = vmatpush1.bf16.msra.mxu0 0
        %8056 = vmatprep.subr.bf16.mxu0 0
        %8057 = vmatpush1.bf16.msra.mxu0 0
        %8058 = vmatprep.subr.bf16.mxu0 0
        %8059 = vmatpush1.bf16.msra.mxu0 0
        %8060 = vmatprep.subr.bf16.mxu0 0
        %8061 = vmatpush1.bf16.msra.mxu0 0
        %8062 = vmatprep.mubr.bf16.mxu0 0
        %8063 = vmatmul.mubr.bf16.gmra.mrb[0].mxu0 %v7693
        %v8064 = vpop.f32.mrb[0].mxu0
        %v8065 = vadd.f32 %v7748, %v8064
        %v8066 = vpop.f32.mrb[0].mxu0
        %v8067 = vadd.f32 %v7752, %v8066
        %v8068 = vpop.f32.mrb[0].mxu0
        %v8069 = vadd.f32 %v7748, %v8068
        %v8070 = vpop.f32.mrb[0].mxu0
        %v8071 = vadd.f32 %v7752, %v8070
        %8072 = vmatprep.mubr.bf16.mxu0 0
        %8073 = vmatmul.mubr.bf16.gmra.mrb[0].mxu0 %v7694
        %v8074 = vpop.f32.mrb[0].mxu0
        %v8075 = vadd.f32 %v7748, %v8074
        %v8076 = vpop.f32.mrb[0].mxu0
        %v8077 = vadd.f32 %v7752, %v8076
        %v8078 = vpop.f32.mrb[0].mxu0
        %v8079 = vadd.f32 %v7748, %v8078
        %v8080 = vpop.f32.mrb[0].mxu0
        %v8081 = vadd.f32 %v7752, %v8080
        %8082 = vmatprep.mubr.bf16.mxu0 0
        %8083 = vmatmul.mubr.bf16.gmra.mrb[0].mxu0 %v7695
        %v8084 = vpop.f32.mrb[0].mxu0
        %v8085 = vadd.f32 %v7748, %v8084
        %v8086 = vpop.f32.mrb[0].mxu0
        %v8087 = vadd.f32 %v7752, %v8086
        %v8088 = vpop.f32.mrb[0].mxu0
        %v8089 = vadd.f32 %v7748, %v8088
        %v8090 = vpop.f32.mrb[0].mxu0
        %v8091 = vadd.f32 %v7752, %v8090
        %8092 = vmatprep.mubr.bf16.mxu0 0
        %8093 = vmatmul.mubr.bf16.gmra.mrb[0].mxu0 %v7696
        %v8094 = vpop.f32.mrb[0].mxu0
        %v8095 = vadd.f32 %v7748, %v8094
        %v8096 = vpop.f32.mrb[0].mxu0
        %v8097 = vadd.f32 %v7752, %v8096
        %v8098 = vpop.f32.mrb[0].mxu0
        %v8099 = vadd.f32 %v7748, %v8098
        %v8100 = vpop.f32.mrb[0].mxu0
        %v8101 = vadd.f32 %v7752, %v8100
        %8102 = vmatprep.mubr.bf16.mxu0 0
        %8103 = vmatmul.mubr.bf16.gmra.mrb[0].mxu0 %v7697
        %v8104 = vpop.f32.mrb[0].mxu0
        %v8105 = vadd.f32 %v7748, %v8104
        %v8106 = vpop.f32.mrb[0].mxu0
        %v8107 = vadd.f32 %v7752, %v8106
        %v8108 = vpop.f32.mrb[0].mxu0
        %v8109 = vadd.f32 %v7748, %v8108
        %v8110 = vpop.f32.mrb[0].mxu0
        %v8111 = vadd.f32 %v7752, %v8110
        %8112 = vmatprep.mubr.bf16.mxu0 0
        %8113 = vmatmul.mubr.bf16.gmra.mrb[0].mxu0 %v7698
        %v8114 = vpop.f32.mrb[0].mxu0
        %v8115 = vadd.f32 %v7748, %v8114
        %v8116 = vpop.f32.mrb[0].mxu0
        %v8117 = vadd.f32 %v7752, %v8116
        %v8118 = vpop.f32.mrb[0].mxu0
        %v8119 = vadd.f32 %v7748, %v8118
        %v8120 = vpop.f32.mrb[0].mxu0
        %v8121 = vadd.f32 %v7752, %v8120
        %8122 = vmatprep.mubr.bf16.mxu0 0
        %8123 = vmatmul.mubr.bf16.gmra.mrb[0].mxu0 %v7699
        %v8124 = vpop.f32.mrb[0].mxu0
        %v8125 = vadd.f32 %v7748, %v8124
        %v8126 = vpop.f32.mrb[0].mxu0
        %v8127 = vadd.f32 %v7752, %v8126
        %v8128 = vpop.f32.mrb[0].mxu0
        %v8129 = vadd.f32 %v7748, %v8128
        %v8130 = vpop.f32.mrb[0].mxu0
        %v8131 = vadd.f32 %v7752, %v8130
        %8132 = vmatprep.mubr.bf16.mxu0 0
        %8133 = vmatmul.mubr.bf16.gmra.mrb[0].mxu0 %v7700
        %v8134 = vpop.f32.mrb[0].mxu0
        %v8135 = vadd.f32 %v7748, %v8134
        %v8136 = vpop.f32.mrb[0].mxu0
        %v8137 = vadd.f32 %v7752, %v8136
        %v8138 = vpop.f32.mrb[0].mxu0
        %v8139 = vadd.f32 %v7748, %v8138
        %v8140 = vpop.f32.mrb[0].mxu0
        %v8141 = vadd.f32 %v7752, %v8140
        %8142 = vdwg.mxu0
        %v8143 = vmul.f32 %v7952, %v7952
        %v8144 = vmul.f32 %v7954, %v7954
        %v8145 = vmul.f32 %v8065, %v8065
        %v8146 = vmul.f32 %v8067, %v8067
        %v8147 = vmul.f32 %v7956, %v7956
        %v8148 = vmul.f32 %v7958, %v7958
        %v8149 = vmul.f32 %v8069, %v8069
        %v8150 = vmul.f32 %v8071, %v8071
        %v8151 = vmul.f32 %v7962, %v7962
        %v8152 = vmul.f32 %v7964, %v7964
        %v8153 = vmul.f32 %v8075, %v8075
        %v8154 = vmul.f32 %v8077, %v8077
        %v8155 = vmul.f32 %v7966, %v7966
        %v8156 = vmul.f32 %v7968, %v7968
        %v8157 = vmul.f32 %v8079, %v8079
        %v8158 = vmul.f32 %v8081, %v8081
        %v8159 = vmul.f32 %v7972, %v7972
        %v8160 = vmul.f32 %v7974, %v7974
        %v8161 = vmul.f32 %v8085, %v8085
        %v8162 = vmul.f32 %v8087, %v8087
        %v8163 = vmul.f32 %v7976, %v7976
        %v8164 = vmul.f32 %v7978, %v7978
        %v8165 = vmul.f32 %v8089, %v8089
        %v8166 = vmul.f32 %v8091, %v8091
        %v8167 = vmul.f32 %v7982, %v7982
        %v8168 = vmul.f32 %v7984, %v7984
        %v8169 = vmul.f32 %v8095, %v8095
        %v8170 = vmul.f32 %v8097, %v8097
        %v8171 = vmul.f32 %v7986, %v7986
        %v8172 = vmul.f32 %v7988, %v7988
        %v8173 = vmul.f32 %v8099, %v8099
        %v8174 = vmul.f32 %v8101, %v8101
        %v8175 = vmul.f32 %v7992, %v7992
        %v8176 = vmul.f32 %v7994, %v7994
        %v8177 = vmul.f32 %v8105, %v8105
        %v8178 = vmul.f32 %v8107, %v8107
        %v8179 = vmul.f32 %v7996, %v7996
        %v8180 = vmul.f32 %v7998, %v7998
        %v8181 = vmul.f32 %v8109, %v8109
        %v8182 = vmul.f32 %v8111, %v8111
        %v8183 = vmul.f32 %v8002, %v8002
        %v8184 = vmul.f32 %v8004, %v8004
        %v8185 = vmul.f32 %v8115, %v8115
        %v8186 = vmul.f32 %v8117, %v8117
        %v8187 = vmul.f32 %v8006, %v8006
        %v8188 = vmul.f32 %v8008, %v8008
        %v8189 = vmul.f32 %v8119, %v8119
        %v8190 = vmul.f32 %v8121, %v8121
        %v8191 = vmul.f32 %v8012, %v8012
        %v8192 = vmul.f32 %v8014, %v8014
        %v8193 = vmul.f32 %v8125, %v8125
        %v8194 = vmul.f32 %v8127, %v8127
        %v8195 = vmul.f32 %v8016, %v8016
        %v8196 = vmul.f32 %v8018, %v8018
        %v8197 = vmul.f32 %v8129, %v8129
        %v8198 = vmul.f32 %v8131, %v8131
        %v8199 = vmul.f32 %v8022, %v8022
        %v8200 = vmul.f32 %v8024, %v8024
        %v8201 = vmul.f32 %v8135, %v8135
        %v8202 = vmul.f32 %v8137, %v8137
        %v8203 = vmul.f32 %v8026, %v8026
        %v8204 = vmul.f32 %v8028, %v8028
        %v8205 = vmul.f32 %v8139, %v8139
        %v8206 = vmul.f32 %v8141, %v8141
        %v8207 = vmul.f32 %v7952, %v8143
        %v8208 = vmul.f32 %v7954, %v8144
        %v8209 = vmul.f32 %v8065, %v8145
        %v8210 = vmul.f32 %v8067, %v8146
        %v8211 = vmul.f32 %v7956, %v8147
        %v8212 = vmul.f32 %v7958, %v8148
        %v8213 = vmul.f32 %v8069, %v8149
        %v8214 = vmul.f32 %v8071, %v8150
        %v8215 = vmul.f32 %v7962, %v8151
        %v8216 = vmul.f32 %v7964, %v8152
        %v8217 = vmul.f32 %v8075, %v8153
        %v8218 = vmul.f32 %v8077, %v8154
        %v8219 = vmul.f32 %v7966, %v8155
        %v8220 = vmul.f32 %v7968, %v8156
        %v8221 = vmul.f32 %v8079, %v8157
        %v8222 = vmul.f32 %v8081, %v8158
        %v8223 = vmul.f32 %v7972, %v8159
        %v8224 = vmul.f32 %v7974, %v8160
        %v8225 = vmul.f32 %v8085, %v8161
        %v8226 = vmul.f32 %v8087, %v8162
        %v8227 = vmul.f32 %v7976, %v8163
        %v8228 = vmul.f32 %v7978, %v8164
        %v8229 = vmul.f32 %v8089, %v8165
        %v8230 = vmul.f32 %v8091, %v8166
        %v8231 = vmul.f32 %v7982, %v8167
        %v8232 = vmul.f32 %v7984, %v8168
        %v8233 = vmul.f32 %v8095, %v8169
        %v8234 = vmul.f32 %v8097, %v8170
        %v8235 = vmul.f32 %v7986, %v8171
        %v8236 = vmul.f32 %v7988, %v8172
        %v8237 = vmul.f32 %v8099, %v8173
        %v8238 = vmul.f32 %v8101, %v8174
        %v8239 = vmul.f32 %v7992, %v8175
        %v8240 = vmul.f32 %v7994, %v8176
        %v8241 = vmul.f32 %v8105, %v8177
        %v8242 = vmul.f32 %v8107, %v8178
        %v8243 = vmul.f32 %v7996, %v8179
        %v8244 = vmul.f32 %v7998, %v8180
        %v8245 = vmul.f32 %v8109, %v8181
        %v8246 = vmul.f32 %v8111, %v8182
        %v8247 = vmul.f32 %v8002, %v8183
        %v8248 = vmul.f32 %v8004, %v8184
        %v8249 = vmul.f32 %v8115, %v8185
        %v8250 = vmul.f32 %v8117, %v8186
        %v8251 = vmul.f32 %v8006, %v8187
        %v8252 = vmul.f32 %v8008, %v8188
        %v8253 = vmul.f32 %v8119, %v8189
        %v8254 = vmul.f32 %v8121, %v8190
        %v8255 = vmul.f32 %v8012, %v8191
        %v8256 = vmul.f32 %v8014, %v8192
        %v8257 = vmul.f32 %v8125, %v8193
        %v8258 = vmul.f32 %v8127, %v8194
        %v8259 = vmul.f32 %v8016, %v8195
        %v8260 = vmul.f32 %v8018, %v8196
        %v8261 = vmul.f32 %v8129, %v8197
        %v8262 = vmul.f32 %v8131, %v8198
        %v8263 = vmul.f32 %v8022, %v8199
        %v8264 = vmul.f32 %v8024, %v8200
        %v8265 = vmul.f32 %v8135, %v8201
        %v8266 = vmul.f32 %v8137, %v8202
        %v8267 = vmul.f32 %v8026, %v8203
        %v8268 = vmul.f32 %v8028, %v8204
        %v8269 = vmul.f32 %v8139, %v8205
        %v8270 = vmul.f32 %v8141, %v8206
        %v8271 = vmul.f32 %v8207, 0.044715
        %v8272 = vmul.f32 %v8208, 0.044715
        %v8273 = vmul.f32 %v8209, 0.044715
        %v8274 = vmul.f32 %v8210, 0.044715
        %v8275 = vmul.f32 %v8211, 0.044715
        %v8276 = vmul.f32 %v8212, 0.044715
        %v8277 = vmul.f32 %v8213, 0.044715
        %v8278 = vmul.f32 %v8214, 0.044715
        %v8279 = vmul.f32 %v8215, 0.044715
        %v8280 = vmul.f32 %v8216, 0.044715
        %v8281 = vmul.f32 %v8217, 0.044715
        %v8282 = vmul.f32 %v8218, 0.044715
        %v8283 = vmul.f32 %v8219, 0.044715
        %v8284 = vmul.f32 %v8220, 0.044715
        %v8285 = vmul.f32 %v8221, 0.044715
        %v8286 = vmul.f32 %v8222, 0.044715
        %v8287 = vmul.f32 %v8223, 0.044715
        %v8288 = vmul.f32 %v8224, 0.044715
        %v8289 = vmul.f32 %v8225, 0.044715
        %v8290 = vmul.f32 %v8226, 0.044715
        %v8291 = vmul.f32 %v8227, 0.044715
        %v8292 = vmul.f32 %v8228, 0.044715
        %v8293 = vmul.f32 %v8229, 0.044715
        %v8294 = vmul.f32 %v8230, 0.044715
        %v8295 = vmul.f32 %v8231, 0.044715
        %v8296 = vmul.f32 %v8232, 0.044715
        %v8297 = vmul.f32 %v8233, 0.044715
        %v8298 = vmul.f32 %v8234, 0.044715
        %v8299 = vmul.f32 %v8235, 0.044715
        %v8300 = vmul.f32 %v8236, 0.044715
        %v8301 = vmul.f32 %v8237, 0.044715
        %v8302 = vmul.f32 %v8238, 0.044715
        %v8303 = vmul.f32 %v8239, 0.044715
        %v8304 = vmul.f32 %v8240, 0.044715
        %v8305 = vmul.f32 %v8241, 0.044715
        %v8306 = vmul.f32 %v8242, 0.044715
        %v8307 = vmul.f32 %v8243, 0.044715
        %v8308 = vmul.f32 %v8244, 0.044715
        %v8309 = vmul.f32 %v8245, 0.044715
        %v8310 = vmul.f32 %v8246, 0.044715
        %v8311 = vmul.f32 %v8247, 0.044715
        %v8312 = vmul.f32 %v8248, 0.044715
        %v8313 = vmul.f32 %v8249, 0.044715
        %v8314 = vmul.f32 %v8250, 0.044715
        %v8315 = vmul.f32 %v8251, 0.044715
        %v8316 = vmul.f32 %v8252, 0.044715
        %v8317 = vmul.f32 %v8253, 0.044715
        %v8318 = vmul.f32 %v8254, 0.044715
        %v8319 = vmul.f32 %v8255, 0.044715
        %v8320 = vmul.f32 %v8256, 0.044715
        %v8321 = vmul.f32 %v8257, 0.044715
        %v8322 = vmul.f32 %v8258, 0.044715
        %v8323 = vmul.f32 %v8259, 0.044715
        %v8324 = vmul.f32 %v8260, 0.044715
        %v8325 = vmul.f32 %v8261, 0.044715
        %v8326 = vmul.f32 %v8262, 0.044715
        %v8327 = vmul.f32 %v8263, 0.044715
        %v8328 = vmul.f32 %v8264, 0.044715
        %v8329 = vmul.f32 %v8265, 0.044715
        %v8330 = vmul.f32 %v8266, 0.044715
        %v8331 = vmul.f32 %v8267, 0.044715
        %v8332 = vmul.f32 %v8268, 0.044715
        %v8333 = vmul.f32 %v8269, 0.044715
        %v8334 = vmul.f32 %v8270, 0.044715
        %v8335 = vadd.f32 %v7952, %v8271
        %v8336 = vadd.f32 %v7954, %v8272
        %v8337 = vadd.f32 %v8065, %v8273
        %v8338 = vadd.f32 %v8067, %v8274
        %v8339 = vadd.f32 %v7956, %v8275
        %v8340 = vadd.f32 %v7958, %v8276
        %v8341 = vadd.f32 %v8069, %v8277
        %v8342 = vadd.f32 %v8071, %v8278
        %v8343 = vadd.f32 %v7962, %v8279
        %v8344 = vadd.f32 %v7964, %v8280
        %v8345 = vadd.f32 %v8075, %v8281
        %v8346 = vadd.f32 %v8077, %v8282
        %v8347 = vadd.f32 %v7966, %v8283
        %v8348 = vadd.f32 %v7968, %v8284
        %v8349 = vadd.f32 %v8079, %v8285
        %v8350 = vadd.f32 %v8081, %v8286
        %v8351 = vadd.f32 %v7972, %v8287
        %v8352 = vadd.f32 %v7974, %v8288
        %v8353 = vadd.f32 %v8085, %v8289
        %v8354 = vadd.f32 %v8087, %v8290
        %v8355 = vadd.f32 %v7976, %v8291
        %v8356 = vadd.f32 %v7978, %v8292
        %v8357 = vadd.f32 %v8089, %v8293
        %v8358 = vadd.f32 %v8091, %v8294
        %v8359 = vadd.f32 %v7982, %v8295
        %v8360 = vadd.f32 %v7984, %v8296
        %v8361 = vadd.f32 %v8095, %v8297
        %v8362 = vadd.f32 %v8097, %v8298
        %v8363 = vadd.f32 %v7986, %v8299
        %v8364 = vadd.f32 %v7988, %v8300
        %v8365 = vadd.f32 %v8099, %v8301
        %v8366 = vadd.f32 %v8101, %v8302
        %v8367 = vadd.f32 %v7992, %v8303
        %v8368 = vadd.f32 %v7994, %v8304
        %v8369 = vadd.f32 %v8105, %v8305
        %v8370 = vadd.f32 %v8107, %v8306
        %v8371 = vadd.f32 %v7996, %v8307
        %v8372 = vadd.f32 %v7998, %v8308
        %v8373 = vadd.f32 %v8109, %v8309
        %v8374 = vadd.f32 %v8111, %v8310
        %v8375 = vadd.f32 %v8002, %v8311
        %v8376 = vadd.f32 %v8004, %v8312
        %v8377 = vadd.f32 %v8115, %v8313
        %v8378 = vadd.f32 %v8117, %v8314
        %v8379 = vadd.f32 %v8006, %v8315
        %v8380 = vadd.f32 %v8008, %v8316
        %v8381 = vadd.f32 %v8119, %v8317
        %v8382 = vadd.f32 %v8121, %v8318
        %v8383 = vadd.f32 %v8012, %v8319
        %v8384 = vadd.f32 %v8014, %v8320
        %v8385 = vadd.f32 %v8125, %v8321
        %v8386 = vadd.f32 %v8127, %v8322
        %v8387 = vadd.f32 %v8016, %v8323
        %v8388 = vadd.f32 %v8018, %v8324
        %v8389 = vadd.f32 %v8129, %v8325
        %v8390 = vadd.f32 %v8131, %v8326
        %v8391 = vadd.f32 %v8022, %v8327
        %v8392 = vadd.f32 %v8024, %v8328
        %v8393 = vadd.f32 %v8135, %v8329
        %v8394 = vadd.f32 %v8137, %v8330
        %v8395 = vadd.f32 %v8026, %v8331
        %v8396 = vadd.f32 %v8028, %v8332
        %v8397 = vadd.f32 %v8139, %v8333
        %v8398 = vadd.f32 %v8141, %v8334
        %v8399 = vmul.f32 %v8335, 0.7978846
        %v8400 = vmul.f32 %v8336, 0.7978846
        %v8401 = vmul.f32 %v8337, 0.7978846
        %v8402 = vmul.f32 %v8338, 0.7978846
        %v8403 = vmul.f32 %v8339, 0.7978846
        %v8404 = vmul.f32 %v8340, 0.7978846
        %v8405 = vmul.f32 %v8341, 0.7978846
        %v8406 = vmul.f32 %v8342, 0.7978846
        %v8407 = vmul.f32 %v8343, 0.7978846
        %v8408 = vmul.f32 %v8344, 0.7978846
        %v8409 = vmul.f32 %v8345, 0.7978846
        %v8410 = vmul.f32 %v8346, 0.7978846
        %v8411 = vmul.f32 %v8347, 0.7978846
        %v8412 = vmul.f32 %v8348, 0.7978846
        %v8413 = vmul.f32 %v8349, 0.7978846
        %v8414 = vmul.f32 %v8350, 0.7978846
        %v8415 = vmul.f32 %v8351, 0.7978846
        %v8416 = vmul.f32 %v8352, 0.7978846
        %v8417 = vmul.f32 %v8353, 0.7978846
        %v8418 = vmul.f32 %v8354, 0.7978846
        %v8419 = vmul.f32 %v8355, 0.7978846
        %v8420 = vmul.f32 %v8356, 0.7978846
        %v8421 = vmul.f32 %v8357, 0.7978846
        %v8422 = vmul.f32 %v8358, 0.7978846
        %v8423 = vmul.f32 %v8359, 0.7978846
        %v8424 = vmul.f32 %v8360, 0.7978846
        %v8425 = vmul.f32 %v8361, 0.7978846
        %v8426 = vmul.f32 %v8362, 0.7978846
        %v8427 = vmul.f32 %v8363, 0.7978846
        %v8428 = vmul.f32 %v8364, 0.7978846
        %v8429 = vmul.f32 %v8365, 0.7978846
        %v8430 = vmul.f32 %v8366, 0.7978846
        %v8431 = vmul.f32 %v8367, 0.7978846
        %v8432 = vmul.f32 %v8368, 0.7978846
        %v8433 = vmul.f32 %v8369, 0.7978846
        %v8434 = vmul.f32 %v8370, 0.7978846
        %v8435 = vmul.f32 %v8371, 0.7978846
        %v8436 = vmul.f32 %v8372, 0.7978846
        %v8437 = vmul.f32 %v8373, 0.7978846
        %v8438 = vmul.f32 %v8374, 0.7978846
        %v8439 = vmul.f32 %v8375, 0.7978846
        %v8440 = vmul.f32 %v8376, 0.7978846
        %v8441 = vmul.f32 %v8377, 0.7978846
        %v8442 = vmul.f32 %v8378, 0.7978846
        %v8443 = vmul.f32 %v8379, 0.7978846
        %v8444 = vmul.f32 %v8380, 0.7978846
        %v8445 = vmul.f32 %v8381, 0.7978846
        %v8446 = vmul.f32 %v8382, 0.7978846
        %v8447 = vmul.f32 %v8383, 0.7978846
        %v8448 = vmul.f32 %v8384, 0.7978846
        %v8449 = vmul.f32 %v8385, 0.7978846
        %v8450 = vmul.f32 %v8386, 0.7978846
        %v8451 = vmul.f32 %v8387, 0.7978846
        %v8452 = vmul.f32 %v8388, 0.7978846
        %v8453 = vmul.f32 %v8389, 0.7978846
        %v8454 = vmul.f32 %v8390, 0.7978846
        %v8455 = vmul.f32 %v8391, 0.7978846
        %v8456 = vmul.f32 %v8392, 0.7978846
        %v8457 = vmul.f32 %v8393, 0.7978846
        %v8458 = vmul.f32 %v8394, 0.7978846
        %v8459 = vmul.f32 %v8395, 0.7978846
        %v8460 = vmul.f32 %v8396, 0.7978846
        %v8461 = vmul.f32 %v8397, 0.7978846
        %v8462 = vmul.f32 %v8398, 0.7978846
        %v8463 = vtanh.pop %v8399
        %v8464 = vtanh.pop %v8400
        %v8465 = vtanh.pop %v8401
        %v8466 = vtanh.pop %v8402
        %v8467 = vtanh.pop %v8403
        %v8468 = vtanh.pop %v8404
        %v8469 = vtanh.pop %v8405
        %v8470 = vtanh.pop %v8406
        %v8471 = vtanh.pop %v8407
        %v8472 = vtanh.pop %v8408
        %v8473 = vtanh.pop %v8409
        %v8474 = vtanh.pop %v8410
        %v8475 = vtanh.pop %v8411
        %v8476 = vtanh.pop %v8412
        %v8477 = vtanh.pop %v8413
        %v8478 = vtanh.pop %v8414
        %v8479 = vtanh.pop %v8415
        %v8480 = vtanh.pop %v8416
        %v8481 = vtanh.pop %v8417
        %v8482 = vtanh.pop %v8418
        %v8483 = vtanh.pop %v8419
        %v8484 = vtanh.pop %v8420
        %v8485 = vtanh.pop %v8421
        %v8486 = vtanh.pop %v8422
        %v8487 = vtanh.pop %v8423
        %v8488 = vtanh.pop %v8424
        %v8489 = vtanh.pop %v8425
        %v8490 = vtanh.pop %v8426
        %v8491 = vtanh.pop %v8427
        %v8492 = vtanh.pop %v8428
        %v8493 = vtanh.pop %v8429
        %v8494 = vtanh.pop %v8430
        %v8495 = vtanh.pop %v8431
        %v8496 = vtanh.pop %v8432
        %v8497 = vtanh.pop %v8433
        %v8498 = vtanh.pop %v8434
        %v8499 = vtanh.pop %v8435
        %v8500 = vtanh.pop %v8436
        %v8501 = vtanh.pop %v8437
        %v8502 = vtanh.pop %v8438
        %v8503 = vtanh.pop %v8439
        %v8504 = vtanh.pop %v8440
        %v8505 = vtanh.pop %v8441
        %v8506 = vtanh.pop %v8442
        %v8507 = vtanh.pop %v8443
        %v8508 = vtanh.pop %v8444
        %v8509 = vtanh.pop %v8445
        %v8510 = vtanh.pop %v8446
        %v8511 = vtanh.pop %v8447
        %v8512 = vtanh.pop %v8448
        %v8513 = vtanh.pop %v8449
        %v8514 = vtanh.pop %v8450
        %v8515 = vtanh.pop %v8451
        %v8516 = vtanh.pop %v8452
        %v8517 = vtanh.pop %v8453
        %v8518 = vtanh.pop %v8454
        %v8519 = vtanh.pop %v8455
        %v8520 = vtanh.pop %v8456
        %v8521 = vtanh.pop %v8457
        %v8522 = vtanh.pop %v8458
        %v8523 = vtanh.pop %v8459
        %v8524 = vtanh.pop %v8460
        %v8525 = vtanh.pop %v8461
        %v8526 = vtanh.pop %v8462
        %v8527 = vadd.f32 %v8463, 1.0
        %v8528 = vadd.f32 %v8464, 1.0
        %v8529 = vadd.f32 %v8465, 1.0
        %v8530 = vadd.f32 %v8466, 1.0
        %v8531 = vadd.f32 %v8467, 1.0
        %v8532 = vadd.f32 %v8468, 1.0
        %v8533 = vadd.f32 %v8469, 1.0
        %v8534 = vadd.f32 %v8470, 1.0
        %v8535 = vadd.f32 %v8471, 1.0
        %v8536 = vadd.f32 %v8472, 1.0
        %v8537 = vadd.f32 %v8473, 1.0
        %v8538 = vadd.f32 %v8474, 1.0
        %v8539 = vadd.f32 %v8475, 1.0
        %v8540 = vadd.f32 %v8476, 1.0
        %v8541 = vadd.f32 %v8477, 1.0
        %v8542 = vadd.f32 %v8478, 1.0
        %v8543 = vadd.f32 %v8479, 1.0
        %v8544 = vadd.f32 %v8480, 1.0
        %v8545 = vadd.f32 %v8481, 1.0
        %v8546 = vadd.f32 %v8482, 1.0
        %v8547 = vadd.f32 %v8483, 1.0
        %v8548 = vadd.f32 %v8484, 1.0
        %v8549 = vadd.f32 %v8485, 1.0
        %v8550 = vadd.f32 %v8486, 1.0
        %v8551 = vadd.f32 %v8487, 1.0
        %v8552 = vadd.f32 %v8488, 1.0
        %v8553 = vadd.f32 %v8489, 1.0
        %v8554 = vadd.f32 %v8490, 1.0
        %v8555 = vadd.f32 %v8491, 1.0
        %v8556 = vadd.f32 %v8492, 1.0
        %v8557 = vadd.f32 %v8493, 1.0
        %v8558 = vadd.f32 %v8494, 1.0
        %v8559 = vadd.f32 %v8495, 1.0
        %v8560 = vadd.f32 %v8496, 1.0
        %v8561 = vadd.f32 %v8497, 1.0
        %v8562 = vadd.f32 %v8498, 1.0
        %v8563 = vadd.f32 %v8499, 1.0
        %v8564 = vadd.f32 %v8500, 1.0
        %v8565 = vadd.f32 %v8501, 1.0
        %v8566 = vadd.f32 %v8502, 1.0
        %v8567 = vadd.f32 %v8503, 1.0
        %v8568 = vadd.f32 %v8504, 1.0
        %v8569 = vadd.f32 %v8505, 1.0
        %v8570 = vadd.f32 %v8506, 1.0
        %v8571 = vadd.f32 %v8507, 1.0
        %v8572 = vadd.f32 %v8508, 1.0
        %v8573 = vadd.f32 %v8509, 1.0
        %v8574 = vadd.f32 %v8510, 1.0
        %v8575 = vadd.f32 %v8511, 1.0
        %v8576 = vadd.f32 %v8512, 1.0
        %v8577 = vadd.f32 %v8513, 1.0
        %v8578 = vadd.f32 %v8514, 1.0
        %v8579 = vadd.f32 %v8515, 1.0
        %v8580 = vadd.f32 %v8516, 1.0
        %v8581 = vadd.f32 %v8517, 1.0
        %v8582 = vadd.f32 %v8518, 1.0
        %v8583 = vadd.f32 %v8519, 1.0
        %v8584 = vadd.f32 %v8520, 1.0
        %v8585 = vadd.f32 %v8521, 1.0
        %v8586 = vadd.f32 %v8522, 1.0
        %v8587 = vadd.f32 %v8523, 1.0
        %v8588 = vadd.f32 %v8524, 1.0
        %v8589 = vadd.f32 %v8525, 1.0
        %v8590 = vadd.f32 %v8526, 1.0
        %v8591 = vmul.f32 %v8527, 0.5
        %v8592 = vmul.f32 %v8528, 0.5
        %v8593 = vmul.f32 %v8529, 0.5
        %v8594 = vmul.f32 %v8530, 0.5
        %v8595 = vmul.f32 %v8531, 0.5
        %v8596 = vmul.f32 %v8532, 0.5
        %v8597 = vmul.f32 %v8533, 0.5
        %v8598 = vmul.f32 %v8534, 0.5
        %v8599 = vmul.f32 %v8535, 0.5
        %v8600 = vmul.f32 %v8536, 0.5
        %v8601 = vmul.f32 %v8537, 0.5
        %v8602 = vmul.f32 %v8538, 0.5
        %v8603 = vmul.f32 %v8539, 0.5
        %v8604 = vmul.f32 %v8540, 0.5
        %v8605 = vmul.f32 %v8541, 0.5
        %v8606 = vmul.f32 %v8542, 0.5
        %v8607 = vmul.f32 %v8543, 0.5
        %v8608 = vmul.f32 %v8544, 0.5
        %v8609 = vmul.f32 %v8545, 0.5
        %v8610 = vmul.f32 %v8546, 0.5
        %v8611 = vmul.f32 %v8547, 0.5
        %v8612 = vmul.f32 %v8548, 0.5
        %v8613 = vmul.f32 %v8549, 0.5
        %v8614 = vmul.f32 %v8550, 0.5
        %v8615 = vmul.f32 %v8551, 0.5
        %v8616 = vmul.f32 %v8552, 0.5
        %v8617 = vmul.f32 %v8553, 0.5
        %v8618 = vmul.f32 %v8554, 0.5
        %v8619 = vmul.f32 %v8555, 0.5
        %v8620 = vmul.f32 %v8556, 0.5
        %v8621 = vmul.f32 %v8557, 0.5
        %v8622 = vmul.f32 %v8558, 0.5
        %v8623 = vmul.f32 %v8559, 0.5
        %v8624 = vmul.f32 %v8560, 0.5
        %v8625 = vmul.f32 %v8561, 0.5
        %v8626 = vmul.f32 %v8562, 0.5
        %v8627 = vmul.f32 %v8563, 0.5
        %v8628 = vmul.f32 %v8564, 0.5
        %v8629 = vmul.f32 %v8565, 0.5
        %v8630 = vmul.f32 %v8566, 0.5
        %v8631 = vmul.f32 %v8567, 0.5
        %v8632 = vmul.f32 %v8568, 0.5
        %v8633 = vmul.f32 %v8569, 0.5
        %v8634 = vmul.f32 %v8570, 0.5
        %v8635 = vmul.f32 %v8571, 0.5
        %v8636 = vmul.f32 %v8572, 0.5
        %v8637 = vmul.f32 %v8573, 0.5
        %v8638 = vmul.f32 %v8574, 0.5
        %v8639 = vmul.f32 %v8575, 0.5
        %v8640 = vmul.f32 %v8576, 0.5
        %v8641 = vmul.f32 %v8577, 0.5
        %v8642 = vmul.f32 %v8578, 0.5
        %v8643 = vmul.f32 %v8579, 0.5
        %v8644 = vmul.f32 %v8580, 0.5
        %v8645 = vmul.f32 %v8581, 0.5
        %v8646 = vmul.f32 %v8582, 0.5
        %v8647 = vmul.f32 %v8583, 0.5
        %v8648 = vmul.f32 %v8584, 0.5
        %v8649 = vmul.f32 %v8585, 0.5
        %v8650 = vmul.f32 %v8586, 0.5
        %v8651 = vmul.f32 %v8587, 0.5
        %v8652 = vmul.f32 %v8588, 0.5
        %v8653 = vmul.f32 %v8589, 0.5
        %v8654 = vmul.f32 %v8590, 0.5
        %v8655 = vmul.f32 %v7952, %v8591
        %v8656 = vmul.f32 %v7954, %v8592
        %v8657 = vmul.f32 %v8065, %v8593
        %v8658 = vmul.f32 %v8067, %v8594
        %v8659 = vmul.f32 %v7956, %v8595
        %v8660 = vmul.f32 %v7958, %v8596
        %v8661 = vmul.f32 %v8069, %v8597
        %v8662 = vmul.f32 %v8071, %v8598
        %v8663 = vmul.f32 %v7962, %v8599
        %v8664 = vmul.f32 %v7964, %v8600
        %v8665 = vmul.f32 %v8075, %v8601
        %v8666 = vmul.f32 %v8077, %v8602
        %v8667 = vmul.f32 %v7966, %v8603
        %v8668 = vmul.f32 %v7968, %v8604
        %v8669 = vmul.f32 %v8079, %v8605
        %v8670 = vmul.f32 %v8081, %v8606
        %v8671 = vmul.f32 %v7972, %v8607
        %v8672 = vmul.f32 %v7974, %v8608
        %v8673 = vmul.f32 %v8085, %v8609
        %v8674 = vmul.f32 %v8087, %v8610
        %v8675 = vmul.f32 %v7976, %v8611
        %v8676 = vmul.f32 %v7978, %v8612
        %v8677 = vmul.f32 %v8089, %v8613
        %v8678 = vmul.f32 %v8091, %v8614
        %v8679 = vmul.f32 %v7982, %v8615
        %v8680 = vmul.f32 %v7984, %v8616
        %v8681 = vmul.f32 %v8095, %v8617
        %v8682 = vmul.f32 %v8097, %v8618
        %v8683 = vmul.f32 %v7986, %v8619
        %v8684 = vmul.f32 %v7988, %v8620
        %v8685 = vmul.f32 %v8099, %v8621
        %v8686 = vmul.f32 %v8101, %v8622
        %v8687 = vmul.f32 %v7992, %v8623
        %v8688 = vmul.f32 %v7994, %v8624
        %v8689 = vmul.f32 %v8105, %v8625
        %v8690 = vmul.f32 %v8107, %v8626
        %v8691 = vmul.f32 %v7996, %v8627
        %v8692 = vmul.f32 %v7998, %v8628
        %v8693 = vmul.f32 %v8109, %v8629
        %v8694 = vmul.f32 %v8111, %v8630
        %v8695 = vmul.f32 %v8002, %v8631
        %v8696 = vmul.f32 %v8004, %v8632
        %v8697 = vmul.f32 %v8115, %v8633
        %v8698 = vmul.f32 %v8117, %v8634
        %v8699 = vmul.f32 %v8006, %v8635
        %v8700 = vmul.f32 %v8008, %v8636
        %v8701 = vmul.f32 %v8119, %v8637
        %v8702 = vmul.f32 %v8121, %v8638
        %v8703 = vmul.f32 %v8012, %v8639
        %v8704 = vmul.f32 %v8014, %v8640
        %v8705 = vmul.f32 %v8125, %v8641
        %v8706 = vmul.f32 %v8127, %v8642
        %v8707 = vmul.f32 %v8016, %v8643
        %v8708 = vmul.f32 %v8018, %v8644
        %v8709 = vmul.f32 %v8129, %v8645
        %v8710 = vmul.f32 %v8131, %v8646
        %v8711 = vmul.f32 %v8022, %v8647
        %v8712 = vmul.f32 %v8024, %v8648
        %v8713 = vmul.f32 %v8135, %v8649
        %v8714 = vmul.f32 %v8137, %v8650
        %v8715 = vmul.f32 %v8026, %v8651
        %v8716 = vmul.f32 %v8028, %v8652
        %v8717 = vmul.f32 %v8139, %v8653
        %v8718 = vmul.f32 %v8141, %v8654
        %v8719 = vpack.c.bf16 %v8659, %v8655
        %v8720 = vpack.c.bf16 %v8660, %v8656
        %v8721 = vpack.c.bf16 %v8661, %v8657
        %v8722 = vpack.c.bf16 %v8662, %v8658
        %v8723 = vpack.c.bf16 %v8667, %v8663
        %v8724 = vpack.c.bf16 %v8668, %v8664
        %v8725 = vpack.c.bf16 %v8669, %v8665
        %v8726 = vpack.c.bf16 %v8670, %v8666
        %v8727 = vpack.c.bf16 %v8675, %v8671
        %v8728 = vpack.c.bf16 %v8676, %v8672
        %v8729 = vpack.c.bf16 %v8677, %v8673
        %v8730 = vpack.c.bf16 %v8678, %v8674
        %v8731 = vpack.c.bf16 %v8683, %v8679
        %v8732 = vpack.c.bf16 %v8684, %v8680
        %v8733 = vpack.c.bf16 %v8685, %v8681
        %v8734 = vpack.c.bf16 %v8686, %v8682
        %v8735 = vpack.c.bf16 %v8691, %v8687
        %v8736 = vpack.c.bf16 %v8692, %v8688
        %v8737 = vpack.c.bf16 %v8693, %v8689
        %v8738 = vpack.c.bf16 %v8694, %v8690
        %v8739 = vpack.c.bf16 %v8699, %v8695
        %v8740 = vpack.c.bf16 %v8700, %v8696
        %v8741 = vpack.c.bf16 %v8701, %v8697
        %v8742 = vpack.c.bf16 %v8702, %v8698
        %v8743 = vpack.c.bf16 %v8707, %v8703
        %v8744 = vpack.c.bf16 %v8708, %v8704
        %v8745 = vpack.c.bf16 %v8709, %v8705
        %v8746 = vpack.c.bf16 %v8710, %v8706
        %v8747 = vpack.c.bf16 %v8715, %v8711
        %v8748 = vpack.c.bf16 %v8716, %v8712
        %v8749 = vpack.c.bf16 %v8717, %v8713
        %v8750 = vpack.c.bf16 %v8718, %v8714
        %s8751 = scalar_lea.vmem [#allocation13], 256
        %v8752 = vld [vmem:[%s8751] sm:$0xf]
        %v8753 = vld [vmem:[%s8751 + $0x4] sm:$0xf]
        %v8754 = vld [vmem:[%s8751 + $0x8] sm:$0xf]
        %v8755 = vld [vmem:[%s8751 + $0xc] sm:$0xf]
        %v8756 = vld [vmem:[%s8751 + $0x10] sm:$0xf]
        %v8757 = vld [vmem:[%s8751 + $0x14] sm:$0xf]
        %v8758 = vld [vmem:[%s8751 + $0x18] sm:$0xf]
        %v8759 = vld [vmem:[%s8751 + $0x1c] sm:$0xf]
        %v8760 = vld [vmem:[%s8751 + $0x20] sm:$0xf]
        %v8761 = vld [vmem:[%s8751 + $0x24] sm:$0xf]
        %v8762 = vld [vmem:[%s8751 + $0x28] sm:$0xf]
        %v8763 = vld [vmem:[%s8751 + $0x2c] sm:$0xf]
        %v8764 = vld [vmem:[%s8751 + $0x30] sm:$0xf]
        %v8765 = vld [vmem:[%s8751 + $0x34] sm:$0xf]
        %v8766 = vld [vmem:[%s8751 + $0x38] sm:$0xf]
        %v8767 = vld [vmem:[%s8751 + $0x3c] sm:$0xf]
        %v8768 = vld [vmem:[%s8751 + $0x40] sm:$0xf]
        %v8769 = vld [vmem:[%s8751 + $0x44] sm:$0xf]
        %v8770 = vld [vmem:[%s8751 + $0x48] sm:$0xf]
        %v8771 = vld [vmem:[%s8751 + $0x4c] sm:$0xf]
        %v8772 = vld [vmem:[%s8751 + $0x50] sm:$0xf]
        %v8773 = vld [vmem:[%s8751 + $0x54] sm:$0xf]
        %v8774 = vld [vmem:[%s8751 + $0x58] sm:$0xf]
        %v8775 = vld [vmem:[%s8751 + $0x5c] sm:$0xf]
        %v8776 = vld [vmem:[%s8751 + $0x60] sm:$0xf]
        %v8777 = vld [vmem:[%s8751 + $0x64] sm:$0xf]
        %v8778 = vld [vmem:[%s8751 + $0x68] sm:$0xf]
        %v8779 = vld [vmem:[%s8751 + $0x6c] sm:$0xf]
        %v8780 = vld [vmem:[%s8751 + $0x70] sm:$0xf]
        %v8781 = vld [vmem:[%s8751 + $0x74] sm:$0xf]
        %v8782 = vld [vmem:[%s8751 + $0x78] sm:$0xf]
        %v8783 = vld [vmem:[%s8751 + $0x7c] sm:$0xf]
        %v8784 = vld [vmem:[%s8751 + $0x80] sm:$0xf]
        %v8785 = vld [vmem:[%s8751 + $0x84] sm:$0xf]
        %v8786 = vld [vmem:[%s8751 + $0x88] sm:$0xf]
        %v8787 = vld [vmem:[%s8751 + $0x8c] sm:$0xf]
        %v8788 = vld [vmem:[%s8751 + $0x90] sm:$0xf]
        %v8789 = vld [vmem:[%s8751 + $0x94] sm:$0xf]
        %v8790 = vld [vmem:[%s8751 + $0x98] sm:$0xf]
        %v8791 = vld [vmem:[%s8751 + $0x9c] sm:$0xf]
        %v8792 = vld [vmem:[%s8751 + $0xa0] sm:$0xf]
        %v8793 = vld [vmem:[%s8751 + $0xa4] sm:$0xf]
        %v8794 = vld [vmem:[%s8751 + $0xa8] sm:$0xf]
        %v8795 = vld [vmem:[%s8751 + $0xac] sm:$0xf]
        %v8796 = vld [vmem:[%s8751 + $0xb0] sm:$0xf]
        %v8797 = vld [vmem:[%s8751 + $0xb4] sm:$0xf]
        %v8798 = vld [vmem:[%s8751 + $0xb8] sm:$0xf]
        %v8799 = vld [vmem:[%s8751 + $0xbc] sm:$0xf]
        %v8800 = vld [vmem:[%s8751 + $0xc0] sm:$0xf]
        %v8801 = vld [vmem:[%s8751 + $0xc4] sm:$0xf]
        %v8802 = vld [vmem:[%s8751 + $0xc8] sm:$0xf]
        %v8803 = vld [vmem:[%s8751 + $0xcc] sm:$0xf]
        %v8804 = vld [vmem:[%s8751 + $0xd0] sm:$0xf]
        %v8805 = vld [vmem:[%s8751 + $0xd4] sm:$0xf]
        %v8806 = vld [vmem:[%s8751 + $0xd8] sm:$0xf]
        %v8807 = vld [vmem:[%s8751 + $0xdc] sm:$0xf]
        %v8808 = vld [vmem:[%s8751 + $0xe0] sm:$0xf]
        %v8809 = vld [vmem:[%s8751 + $0xe4] sm:$0xf]
        %v8810 = vld [vmem:[%s8751 + $0xe8] sm:$0xf]
        %v8811 = vld [vmem:[%s8751 + $0xec] sm:$0xf]
        %v8812 = vld [vmem:[%s8751 + $0xf0] sm:$0xf]
        %v8813 = vld [vmem:[%s8751 + $0xf4] sm:$0xf]
        %v8814 = vld [vmem:[%s8751 + $0xf8] sm:$0xf]
        %v8815 = vld [vmem:[%s8751 + $0xfc] sm:$0xf]
        %s8816 = scalar_lea.vmem [#allocation15], 1
        %v8817 = vld [vmem:[%s8816] sm:$0x1]
        %v8819 = vlaneseq
        %v8820 = vshrl.u32 %v8819, 7
        %v8821 = vsub.s32 0, %v8820
        %v8822 = vrot.slane %v8817, %v8821
        %v8888 = vunpack.c.l.b16 %v8752
        %v8889 = vunpack.c.l.b16 %v8753
        %v8890 = vunpack.c.l.b16 %v8754
        %v8891 = vunpack.c.l.b16 %v8755
        %v8892 = vunpack.c.l.b16 %v8756
        %v8893 = vunpack.c.l.b16 %v8757
        %v8894 = vunpack.c.l.b16 %v8758
        %v8895 = vunpack.c.l.b16 %v8759
        %v8896 = vunpack.c.l.b16 %v8760
        %v8897 = vunpack.c.l.b16 %v8761
        %v8898 = vunpack.c.l.b16 %v8762
        %v8899 = vunpack.c.l.b16 %v8763
        %v8900 = vunpack.c.l.b16 %v8764
        %v8901 = vunpack.c.l.b16 %v8765
        %v8902 = vunpack.c.l.b16 %v8766
        %v8903 = vunpack.c.l.b16 %v8767
        %v8904 = vunpack.c.l.b16 %v8768
        %v8905 = vunpack.c.l.b16 %v8769
        %v8906 = vunpack.c.l.b16 %v8770
        %v8907 = vunpack.c.l.b16 %v8771
        %v8908 = vunpack.c.l.b16 %v8772
        %v8909 = vunpack.c.l.b16 %v8773
        %v8910 = vunpack.c.l.b16 %v8774
        %v8911 = vunpack.c.l.b16 %v8775
        %v8912 = vunpack.c.l.b16 %v8776
        %v8913 = vunpack.c.l.b16 %v8777
        %v8914 = vunpack.c.l.b16 %v8778
        %v8915 = vunpack.c.l.b16 %v8779
        %v8916 = vunpack.c.l.b16 %v8780
        %v8917 = vunpack.c.l.b16 %v8781
        %v8918 = vunpack.c.l.b16 %v8782
        %v8919 = vunpack.c.l.b16 %v8783
        %v8920 = vunpack.c.l.b16 %v8784
        %v8921 = vunpack.c.l.b16 %v8785
        %v8922 = vunpack.c.l.b16 %v8786
        %v8923 = vunpack.c.l.b16 %v8787
        %v8924 = vunpack.c.l.b16 %v8788
        %v8925 = vunpack.c.l.b16 %v8789
        %v8926 = vunpack.c.l.b16 %v8790
        %v8927 = vunpack.c.l.b16 %v8791
        %v8928 = vunpack.c.l.b16 %v8792
        %v8929 = vunpack.c.l.b16 %v8793
        %v8930 = vunpack.c.l.b16 %v8794
        %v8931 = vunpack.c.l.b16 %v8795
        %v8932 = vunpack.c.l.b16 %v8796
        %v8933 = vunpack.c.l.b16 %v8797
        %v8934 = vunpack.c.l.b16 %v8798
        %v8935 = vunpack.c.l.b16 %v8799
        %v8936 = vunpack.c.l.b16 %v8800
        %v8937 = vunpack.c.l.b16 %v8801
        %v8938 = vunpack.c.l.b16 %v8802
        %v8939 = vunpack.c.l.b16 %v8803
        %v8940 = vunpack.c.l.b16 %v8804
        %v8941 = vunpack.c.l.b16 %v8805
        %v8942 = vunpack.c.l.b16 %v8806
        %v8943 = vunpack.c.l.b16 %v8807
        %v8944 = vunpack.c.l.b16 %v8808
        %v8945 = vunpack.c.l.b16 %v8809
        %v8946 = vunpack.c.l.b16 %v8810
        %v8947 = vunpack.c.l.b16 %v8811
        %v8948 = vunpack.c.l.b16 %v8812
        %v8949 = vunpack.c.l.b16 %v8813
        %v8950 = vunpack.c.l.b16 %v8814
        %v8951 = vunpack.c.l.b16 %v8815
        %v8952 = vpack.c.b16 %v8889, %v8888
        %v8953 = vpack.c.b16 %v8891, %v8890
        %v8954 = vpack.c.b16 %v8893, %v8892
        %v8955 = vpack.c.b16 %v8895, %v8894
        %v8956 = vpack.c.b16 %v8897, %v8896
        %v8957 = vpack.c.b16 %v8899, %v8898
        %v8958 = vpack.c.b16 %v8901, %v8900
        %v8959 = vpack.c.b16 %v8903, %v8902
        %v8960 = vpack.c.b16 %v8905, %v8904
        %v8961 = vpack.c.b16 %v8907, %v8906
        %v8962 = vpack.c.b16 %v8909, %v8908
        %v8963 = vpack.c.b16 %v8911, %v8910
        %v8964 = vpack.c.b16 %v8913, %v8912
        %v8965 = vpack.c.b16 %v8915, %v8914
        %v8966 = vpack.c.b16 %v8917, %v8916
        %v8967 = vpack.c.b16 %v8919, %v8918
        %v8968 = vpack.c.b16 %v8921, %v8920
        %v8969 = vpack.c.b16 %v8923, %v8922
        %v8970 = vpack.c.b16 %v8925, %v8924
        %v8971 = vpack.c.b16 %v8927, %v8926
        %v8972 = vpack.c.b16 %v8929, %v8928
        %v8973 = vpack.c.b16 %v8931, %v8930
        %v8974 = vpack.c.b16 %v8933, %v8932
        %v8975 = vpack.c.b16 %v8935, %v8934
        %v8976 = vpack.c.b16 %v8937, %v8936
        %v8977 = vpack.c.b16 %v8939, %v8938
        %v8978 = vpack.c.b16 %v8941, %v8940
        %v8979 = vpack.c.b16 %v8943, %v8942
        %v8980 = vpack.c.b16 %v8945, %v8944
        %v8981 = vpack.c.b16 %v8947, %v8946
        %v8982 = vpack.c.b16 %v8949, %v8948
        %v8983 = vpack.c.b16 %v8951, %v8950
        %9016 = vmatprep.subr.bf16.mxu0 0
        %9017 = vmatpush1.bf16.msra.mxu0 %v8952
        %9018 = vmatprep.subr.bf16.mxu0 0
        %9019 = vmatpush1.bf16.msra.mxu0 %v8953
        %9020 = vmatprep.subr.bf16.mxu0 0
        %9021 = vmatpush1.bf16.msra.mxu0 %v8954
        %9022 = vmatprep.subr.bf16.mxu0 0
        %9023 = vmatpush1.bf16.msra.mxu0 %v8955
        %9024 = vmatprep.subr.bf16.mxu0 0
        %9025 = vmatpush1.bf16.msra.mxu0 %v8956
        %9026 = vmatprep.subr.bf16.mxu0 0
        %9027 = vmatpush1.bf16.msra.mxu0 %v8957
        %9028 = vmatprep.subr.bf16.mxu0 0
        %9029 = vmatpush1.bf16.msra.mxu0 %v8958
        %9030 = vmatprep.subr.bf16.mxu0 0
        %9031 = vmatpush1.bf16.msra.mxu0 %v8959
        %9032 = vmatprep.subr.bf16.mxu0 0
        %9033 = vmatpush1.bf16.msra.mxu0 %v8960
        %9034 = vmatprep.subr.bf16.mxu0 0
        %9035 = vmatpush1.bf16.msra.mxu0 %v8961
        %9036 = vmatprep.subr.bf16.mxu0 0
        %9037 = vmatpush1.bf16.msra.mxu0 %v8962
        %9038 = vmatprep.subr.bf16.mxu0 0
        %9039 = vmatpush1.bf16.msra.mxu0 %v8963
        %9040 = vmatprep.subr.bf16.mxu0 0
        %9041 = vmatpush1.bf16.msra.mxu0 %v8964
        %9042 = vmatprep.subr.bf16.mxu0 0
        %9043 = vmatpush1.bf16.msra.mxu0 %v8965
        %9044 = vmatprep.subr.bf16.mxu0 0
        %9045 = vmatpush1.bf16.msra.mxu0 %v8966
        %9046 = vmatprep.subr.bf16.mxu0 0
        %9047 = vmatpush1.bf16.msra.mxu0 %v8967
        %9048 = vmatprep.mubr.bf16.mxu0 %v8720
        %9049 = vmatmul.mubr.bf16.gmra.mrb[0].mxu0 %v8719
        %v9050 = vpop.f32.mrb[0].mxu0
        %v9051 = vadd.f32 %v8822, %v9050
        %v9052 = vpop.f32.mrb[0].mxu0
        %v9053 = vpop.f32.mrb[0].mxu0
        %v9054 = vadd.f32 %v8822, %v9053
        %v9055 = vpop.f32.mrb[0].mxu0
        %9056 = vmatprep.mubr.bf16.mxu0 %v8724
        %9057 = vmatmul.mubr.bf16.gmra.mrb[0].mxu0 %v8723
        %v9058 = vpop.f32.mrb[0].mxu0
        %v9059 = vadd.f32 %v8822, %v9058
        %v9060 = vpop.f32.mrb[0].mxu0
        %v9061 = vpop.f32.mrb[0].mxu0
        %v9062 = vadd.f32 %v8822, %v9061
        %v9063 = vpop.f32.mrb[0].mxu0
        %9064 = vmatprep.mubr.bf16.mxu0 %v8728
        %9065 = vmatmul.mubr.bf16.gmra.mrb[0].mxu0 %v8727
        %v9066 = vpop.f32.mrb[0].mxu0
        %v9067 = vadd.f32 %v8822, %v9066
        %v9068 = vpop.f32.mrb[0].mxu0
        %v9069 = vpop.f32.mrb[0].mxu0
        %v9070 = vadd.f32 %v8822, %v9069
        %v9071 = vpop.f32.mrb[0].mxu0
        %9072 = vmatprep.mubr.bf16.mxu0 %v8732
        %9073 = vmatmul.mubr.bf16.gmra.mrb[0].mxu0 %v8731
        %v9074 = vpop.f32.mrb[0].mxu0
        %v9075 = vadd.f32 %v8822, %v9074
        %v9076 = vpop.f32.mrb[0].mxu0
        %v9077 = vpop.f32.mrb[0].mxu0
        %v9078 = vadd.f32 %v8822, %v9077
        %v9079 = vpop.f32.mrb[0].mxu0
        %9080 = vmatprep.mubr.bf16.mxu0 %v8736
        %9081 = vmatmul.mubr.bf16.gmra.mrb[0].mxu0 %v8735
        %v9082 = vpop.f32.mrb[0].mxu0
        %v9083 = vadd.f32 %v8822, %v9082
        %v9084 = vpop.f32.mrb[0].mxu0
        %v9085 = vpop.f32.mrb[0].mxu0
        %v9086 = vadd.f32 %v8822, %v9085
        %v9087 = vpop.f32.mrb[0].mxu0
        %9088 = vmatprep.mubr.bf16.mxu0 %v8740
        %9089 = vmatmul.mubr.bf16.gmra.mrb[0].mxu0 %v8739
        %v9090 = vpop.f32.mrb[0].mxu0
        %v9091 = vadd.f32 %v8822, %v9090
        %v9092 = vpop.f32.mrb[0].mxu0
        %v9093 = vpop.f32.mrb[0].mxu0
        %v9094 = vadd.f32 %v8822, %v9093
        %v9095 = vpop.f32.mrb[0].mxu0
        %9096 = vmatprep.mubr.bf16.mxu0 %v8744
        %9097 = vmatmul.mubr.bf16.gmra.mrb[0].mxu0 %v8743
        %v9098 = vpop.f32.mrb[0].mxu0
        %v9099 = vadd.f32 %v8822, %v9098
        %v9100 = vpop.f32.mrb[0].mxu0
        %v9101 = vpop.f32.mrb[0].mxu0
        %v9102 = vadd.f32 %v8822, %v9101
        %v9103 = vpop.f32.mrb[0].mxu0
        %9104 = vmatprep.mubr.bf16.mxu0 %v8748
        %9105 = vmatmul.mubr.bf16.gmra.mrb[0].mxu0 %v8747
        %v9106 = vpop.f32.mrb[0].mxu0
        %v9107 = vadd.f32 %v8822, %v9106
        %v9108 = vpop.f32.mrb[0].mxu0
        %v9109 = vpop.f32.mrb[0].mxu0
        %v9110 = vadd.f32 %v8822, %v9109
        %v9111 = vpop.f32.mrb[0].mxu0
        %9112 = vdwg.mxu0
        %9113 = vmatprep.subr.bf16.mxu0 0
        %9114 = vmatpush1.bf16.msra.mxu0 %v8968
        %9115 = vmatprep.subr.bf16.mxu0 0
        %9116 = vmatpush1.bf16.msra.mxu0 %v8969
        %9117 = vmatprep.subr.bf16.mxu0 0
        %9118 = vmatpush1.bf16.msra.mxu0 %v8970
        %9119 = vmatprep.subr.bf16.mxu0 0
        %9120 = vmatpush1.bf16.msra.mxu0 %v8971
        %9121 = vmatprep.subr.bf16.mxu0 0
        %9122 = vmatpush1.bf16.msra.mxu0 %v8972
        %9123 = vmatprep.subr.bf16.mxu0 0
        %9124 = vmatpush1.bf16.msra.mxu0 %v8973
        %9125 = vmatprep.subr.bf16.mxu0 0
        %9126 = vmatpush1.bf16.msra.mxu0 %v8974
        %9127 = vmatprep.subr.bf16.mxu0 0
        %9128 = vmatpush1.bf16.msra.mxu0 %v8975
        %9129 = vmatprep.subr.bf16.mxu0 0
        %9130 = vmatpush1.bf16.msra.mxu0 %v8976
        %9131 = vmatprep.subr.bf16.mxu0 0
        %9132 = vmatpush1.bf16.msra.mxu0 %v8977
        %9133 = vmatprep.subr.bf16.mxu0 0
        %9134 = vmatpush1.bf16.msra.mxu0 %v8978
        %9135 = vmatprep.subr.bf16.mxu0 0
        %9136 = vmatpush1.bf16.msra.mxu0 %v8979
        %9137 = vmatprep.subr.bf16.mxu0 0
        %9138 = vmatpush1.bf16.msra.mxu0 %v8980
        %9139 = vmatprep.subr.bf16.mxu0 0
        %9140 = vmatpush1.bf16.msra.mxu0 %v8981
        %9141 = vmatprep.subr.bf16.mxu0 0
        %9142 = vmatpush1.bf16.msra.mxu0 %v8982
        %9143 = vmatprep.subr.bf16.mxu0 0
        %9144 = vmatpush1.bf16.msra.mxu0 %v8983
        %9145 = vmatprep.mubr.bf16.mxu0 %v8722
        %9146 = vmatmul.mubr.bf16.gmra.mrb[0].mxu0 %v8721
        %v9147 = vpop.f32.mrb[0].mxu0
        %v9148 = vadd.f32 %v9051, %v9147
        %v9149 = vpop.f32.mrb[0].mxu0
        %v9150 = vpop.f32.mrb[0].mxu0
        %v9151 = vadd.f32 %v9054, %v9150
        %v9152 = vpop.f32.mrb[0].mxu0
        %9153 = vmatprep.mubr.bf16.mxu0 %v8726
        %9154 = vmatmul.mubr.bf16.gmra.mrb[0].mxu0 %v8725
        %v9155 = vpop.f32.mrb[0].mxu0
        %v9156 = vadd.f32 %v9059, %v9155
        %v9157 = vpop.f32.mrb[0].mxu0
        %v9158 = vpop.f32.mrb[0].mxu0
        %v9159 = vadd.f32 %v9062, %v9158
        %v9160 = vpop.f32.mrb[0].mxu0
        %9161 = vmatprep.mubr.bf16.mxu0 %v8730
        %9162 = vmatmul.mubr.bf16.gmra.mrb[0].mxu0 %v8729
        %v9163 = vpop.f32.mrb[0].mxu0
        %v9164 = vadd.f32 %v9067, %v9163
        %v9165 = vpop.f32.mrb[0].mxu0
        %v9166 = vpop.f32.mrb[0].mxu0
        %v9167 = vadd.f32 %v9070, %v9166
        %v9168 = vpop.f32.mrb[0].mxu0
        %9169 = vmatprep.mubr.bf16.mxu0 %v8734
        %9170 = vmatmul.mubr.bf16.gmra.mrb[0].mxu0 %v8733
        %v9171 = vpop.f32.mrb[0].mxu0
        %v9172 = vadd.f32 %v9075, %v9171
        %v9173 = vpop.f32.mrb[0].mxu0
        %v9174 = vpop.f32.mrb[0].mxu0
        %v9175 = vadd.f32 %v9078, %v9174
        %v9176 = vpop.f32.mrb[0].mxu0
        %9177 = vmatprep.mubr.bf16.mxu0 %v8738
        %9178 = vmatmul.mubr.bf16.gmra.mrb[0].mxu0 %v8737
        %v9179 = vpop.f32.mrb[0].mxu0
        %v9180 = vadd.f32 %v9083, %v9179
        %v9181 = vpop.f32.mrb[0].mxu0
        %v9182 = vpop.f32.mrb[0].mxu0
        %v9183 = vadd.f32 %v9086, %v9182
        %v9184 = vpop.f32.mrb[0].mxu0
        %9185 = vmatprep.mubr.bf16.mxu0 %v8742
        %9186 = vmatmul.mubr.bf16.gmra.mrb[0].mxu0 %v8741
        %v9187 = vpop.f32.mrb[0].mxu0
        %v9188 = vadd.f32 %v9091, %v9187
        %v9189 = vpop.f32.mrb[0].mxu0
        %v9190 = vpop.f32.mrb[0].mxu0
        %v9191 = vadd.f32 %v9094, %v9190
        %v9192 = vpop.f32.mrb[0].mxu0
        %9193 = vmatprep.mubr.bf16.mxu0 %v8746
        %9194 = vmatmul.mubr.bf16.gmra.mrb[0].mxu0 %v8745
        %v9195 = vpop.f32.mrb[0].mxu0
        %v9196 = vadd.f32 %v9099, %v9195
        %v9197 = vpop.f32.mrb[0].mxu0
        %v9198 = vpop.f32.mrb[0].mxu0
        %v9199 = vadd.f32 %v9102, %v9198
        %v9200 = vpop.f32.mrb[0].mxu0
        %9201 = vmatprep.mubr.bf16.mxu0 %v8750
        %9202 = vmatmul.mubr.bf16.gmra.mrb[0].mxu0 %v8749
        %v9203 = vpop.f32.mrb[0].mxu0
        %v9204 = vadd.f32 %v9107, %v9203
        %v9205 = vpop.f32.mrb[0].mxu0
        %v9206 = vpop.f32.mrb[0].mxu0
        %v9207 = vadd.f32 %v9110, %v9206
        %v9208 = vpop.f32.mrb[0].mxu0
        %9209 = vdwg.mxu0
        %v9210 = vadd.f32 %v9148, %v7677
        %v9211 = vadd.f32 %v9151, %v7678
        %v9212 = vadd.f32 %v9156, %v7679
        %v9213 = vadd.f32 %v9159, %v7680
        %v9214 = vadd.f32 %v9164, %v7681
        %v9215 = vadd.f32 %v9167, %v7682
        %v9216 = vadd.f32 %v9172, %v7683
        %v9217 = vadd.f32 %v9175, %v7684
        %v9218 = vadd.f32 %v9180, %v7685
        %v9219 = vadd.f32 %v9183, %v7686
        %v9220 = vadd.f32 %v9188, %v7687
        %v9221 = vadd.f32 %v9191, %v7688
        %v9222 = vadd.f32 %v9196, %v7689
        %v9223 = vadd.f32 %v9199, %v7690
        %v9224 = vadd.f32 %v9204, %v7691
        %v9225 = vadd.f32 %v9207, %v7692
        %s9226 = scalar_lea.vmem [#allocation16], 1
        %v9227 = vld [vmem:[%s9226] sm:$0x1]
        %s9228 = scalar_lea.vmem [#allocation18], 1
        %v9229 = vld [vmem:[%s9228] sm:$0x1]
        %9230 = vadd.xlane.f32.xlu0 %v9210
        %v9231 = vpop.xlane.xlu0 %9230
        %9232 = vadd.xlane.f32.xlu0 %v9211
        %v9233 = vpop.xlane.xlu0 %9232
        %9234 = vadd.xlane.f32.xlu0 %v9212
        %v9235 = vpop.xlane.xlu0 %9234
        %9236 = vadd.xlane.f32.xlu0 %v9213
        %v9237 = vpop.xlane.xlu0 %9236
        %9238 = vadd.xlane.f32.xlu0 %v9214
        %v9239 = vpop.xlane.xlu0 %9238
        %9240 = vadd.xlane.f32.xlu0 %v9215
        %v9241 = vpop.xlane.xlu0 %9240
        %9242 = vadd.xlane.f32.xlu0 %v9216
        %v9243 = vpop.xlane.xlu0 %9242
        %9244 = vadd.xlane.f32.xlu0 %v9217
        %v9245 = vpop.xlane.xlu0 %9244
        %9246 = vadd.xlane.f32.xlu0 %v9218
        %v9247 = vpop.xlane.xlu0 %9246
        %9248 = vadd.xlane.f32.xlu0 %v9219
        %v9249 = vpop.xlane.xlu0 %9248
        %9250 = vadd.xlane.f32.xlu0 %v9220
        %v9251 = vpop.xlane.xlu0 %9250
        %9252 = vadd.xlane.f32.xlu0 %v9221
        %v9253 = vpop.xlane.xlu0 %9252
        %9254 = vadd.xlane.f32.xlu0 %v9222
        %v9255 = vpop.xlane.xlu0 %9254
        %9256 = vadd.xlane.f32.xlu0 %v9223
        %v9257 = vpop.xlane.xlu0 %9256
        %9258 = vadd.xlane.f32.xlu0 %v9224
        %v9259 = vpop.xlane.xlu0 %9258
        %9260 = vadd.xlane.f32.xlu0 %v9225
        %v9261 = vpop.xlane.xlu0 %9260
        %v9262 = vmul.f32 %v9231, %v1598
        %v9263 = vmul.f32 %v9233, %v1598
        %v9264 = vmul.f32 %v9235, %v1598
        %v9265 = vmul.f32 %v9237, %v1598
        %v9266 = vmul.f32 %v9239, %v1598
        %v9267 = vmul.f32 %v9241, %v1598
        %v9268 = vmul.f32 %v9243, %v1598
        %v9269 = vmul.f32 %v9245, %v1598
        %v9270 = vmul.f32 %v9247, %v1598
        %v9271 = vmul.f32 %v9249, %v1598
        %v9272 = vmul.f32 %v9251, %v1598
        %v9273 = vmul.f32 %v9253, %v1598
        %v9274 = vmul.f32 %v9255, %v1598
        %v9275 = vmul.f32 %v9257, %v1598
        %v9276 = vmul.f32 %v9259, %v1598
        %v9277 = vmul.f32 %v9261, %v1598
        %v9278 = vsub.f32 %v9210, %v9262
        %v9279 = vsub.f32 %v9211, %v9263
        %v9280 = vsub.f32 %v9212, %v9264
        %v9281 = vsub.f32 %v9213, %v9265
        %v9282 = vsub.f32 %v9214, %v9266
        %v9283 = vsub.f32 %v9215, %v9267
        %v9284 = vsub.f32 %v9216, %v9268
        %v9285 = vsub.f32 %v9217, %v9269
        %v9286 = vsub.f32 %v9218, %v9270
        %v9287 = vsub.f32 %v9219, %v9271
        %v9288 = vsub.f32 %v9220, %v9272
        %v9289 = vsub.f32 %v9221, %v9273
        %v9290 = vsub.f32 %v9222, %v9274
        %v9291 = vsub.f32 %v9223, %v9275
        %v9292 = vsub.f32 %v9224, %v9276
        %v9293 = vsub.f32 %v9225, %v9277
        %v9294 = vmul.f32 %v9278, %v9278
        %v9295 = vmul.f32 %v9279, %v9279
        %v9296 = vmul.f32 %v9280, %v9280
        %v9297 = vmul.f32 %v9281, %v9281
        %v9298 = vmul.f32 %v9282, %v9282
        %v9299 = vmul.f32 %v9283, %v9283
        %v9300 = vmul.f32 %v9284, %v9284
        %v9301 = vmul.f32 %v9285, %v9285
        %v9302 = vmul.f32 %v9286, %v9286
        %v9303 = vmul.f32 %v9287, %v9287
        %v9304 = vmul.f32 %v9288, %v9288
        %v9305 = vmul.f32 %v9289, %v9289
        %v9306 = vmul.f32 %v9290, %v9290
        %v9307 = vmul.f32 %v9291, %v9291
        %v9308 = vmul.f32 %v9292, %v9292
        %v9309 = vmul.f32 %v9293, %v9293
        %9310 = vadd.xlane.f32.xlu0 %v9294
        %v9311 = vpop.xlane.xlu0 %9310
        %9312 = vadd.xlane.f32.xlu0 %v9295
        %v9313 = vpop.xlane.xlu0 %9312
        %9314 = vadd.xlane.f32.xlu0 %v9296
        %v9315 = vpop.xlane.xlu0 %9314
        %9316 = vadd.xlane.f32.xlu0 %v9297
        %v9317 = vpop.xlane.xlu0 %9316
        %9318 = vadd.xlane.f32.xlu0 %v9298
        %v9319 = vpop.xlane.xlu0 %9318
        %9320 = vadd.xlane.f32.xlu0 %v9299
        %v9321 = vpop.xlane.xlu0 %9320
        %9322 = vadd.xlane.f32.xlu0 %v9300
        %v9323 = vpop.xlane.xlu0 %9322
        %9324 = vadd.xlane.f32.xlu0 %v9301
        %v9325 = vpop.xlane.xlu0 %9324
        %9326 = vadd.xlane.f32.xlu0 %v9302
        %v9327 = vpop.xlane.xlu0 %9326
        %9328 = vadd.xlane.f32.xlu0 %v9303
        %v9329 = vpop.xlane.xlu0 %9328
        %9330 = vadd.xlane.f32.xlu0 %v9304
        %v9331 = vpop.xlane.xlu0 %9330
        %9332 = vadd.xlane.f32.xlu0 %v9305
        %v9333 = vpop.xlane.xlu0 %9332
        %9334 = vadd.xlane.f32.xlu0 %v9306
        %v9335 = vpop.xlane.xlu0 %9334
        %9336 = vadd.xlane.f32.xlu0 %v9307
        %v9337 = vpop.xlane.xlu0 %9336
        %9338 = vadd.xlane.f32.xlu0 %v9308
        %v9339 = vpop.xlane.xlu0 %9338
        %9340 = vadd.xlane.f32.xlu0 %v9309
        %v9341 = vpop.xlane.xlu0 %9340
        %v9342 = vmul.f32 %v9311, %v1598
        %v9343 = vmul.f32 %v9313, %v1598
        %v9344 = vmul.f32 %v9315, %v1598
        %v9345 = vmul.f32 %v9317, %v1598
        %v9346 = vmul.f32 %v9319, %v1598
        %v9347 = vmul.f32 %v9321, %v1598
        %v9348 = vmul.f32 %v9323, %v1598
        %v9349 = vmul.f32 %v9325, %v1598
        %v9350 = vmul.f32 %v9327, %v1598
        %v9351 = vmul.f32 %v9329, %v1598
        %v9352 = vmul.f32 %v9331, %v1598
        %v9353 = vmul.f32 %v9333, %v1598
        %v9354 = vmul.f32 %v9335, %v1598
        %v9355 = vmul.f32 %v9337, %v1598
        %v9356 = vmul.f32 %v9339, %v1598
        %v9357 = vmul.f32 %v9341, %v1598
        %v9358 = vadd.f32 %v9342, 1e-12
        %v9359 = vadd.f32 %v9343, 1e-12
        %v9360 = vadd.f32 %v9344, 1e-12
        %v9361 = vadd.f32 %v9345, 1e-12
        %v9362 = vadd.f32 %v9346, 1e-12
        %v9363 = vadd.f32 %v9347, 1e-12
        %v9364 = vadd.f32 %v9348, 1e-12
        %v9365 = vadd.f32 %v9349, 1e-12
        %v9366 = vadd.f32 %v9350, 1e-12
        %v9367 = vadd.f32 %v9351, 1e-12
        %v9368 = vadd.f32 %v9352, 1e-12
        %v9369 = vadd.f32 %v9353, 1e-12
        %v9370 = vadd.f32 %v9354, 1e-12
        %v9371 = vadd.f32 %v9355, 1e-12
        %v9372 = vadd.f32 %v9356, 1e-12
        %v9373 = vadd.f32 %v9357, 1e-12
        %v9374 = vrsqrt.pop %v9358
        %v9375 = vrsqrt.pop %v9359
        %v9376 = vrsqrt.pop %v9360
        %v9377 = vrsqrt.pop %v9361
        %v9378 = vrsqrt.pop %v9362
        %v9379 = vrsqrt.pop %v9363
        %v9380 = vrsqrt.pop %v9364
        %v9381 = vrsqrt.pop %v9365
        %v9382 = vrsqrt.pop %v9366
        %v9383 = vrsqrt.pop %v9367
        %v9384 = vrsqrt.pop %v9368
        %v9385 = vrsqrt.pop %v9369
        %v9386 = vrsqrt.pop %v9370
        %v9387 = vrsqrt.pop %v9371
        %v9388 = vrsqrt.pop %v9372
        %v9389 = vrsqrt.pop %v9373
        %v9390 = vmul.f32 %v9278, %v9374
        %v9391 = vmul.f32 %v9279, %v9375
        %v9392 = vmul.f32 %v9280, %v9376
        %v9393 = vmul.f32 %v9281, %v9377
        %v9394 = vmul.f32 %v9282, %v9378
        %v9395 = vmul.f32 %v9283, %v9379
        %v9396 = vmul.f32 %v9284, %v9380
        %v9397 = vmul.f32 %v9285, %v9381
        %v9398 = vmul.f32 %v9286, %v9382
        %v9399 = vmul.f32 %v9287, %v9383
        %v9400 = vmul.f32 %v9288, %v9384
        %v9401 = vmul.f32 %v9289, %v9385
        %v9402 = vmul.f32 %v9290, %v9386
        %v9403 = vmul.f32 %v9291, %v9387
        %v9404 = vmul.f32 %v9292, %v9388
        %v9405 = vmul.f32 %v9293, %v9389
        %v9407 = vlaneseq
        %v9408 = vshrl.u32 %v9407, 7
        %v9409 = vsub.s32 0, %v9408
        %v9410 = vrot.slane %v9227, %v9409
        %v9412 = vmul.f32 %v9390, %v9410
        %v9413 = vmul.f32 %v9391, %v9410
        %v9414 = vmul.f32 %v9392, %v9410
        %v9415 = vmul.f32 %v9393, %v9410
        %v9416 = vmul.f32 %v9394, %v9410
        %v9417 = vmul.f32 %v9395, %v9410
        %v9418 = vmul.f32 %v9396, %v9410
        %v9419 = vmul.f32 %v9397, %v9410
        %v9420 = vmul.f32 %v9398, %v9410
        %v9421 = vmul.f32 %v9399, %v9410
        %v9422 = vmul.f32 %v9400, %v9410
        %v9423 = vmul.f32 %v9401, %v9410
        %v9424 = vmul.f32 %v9402, %v9410
        %v9425 = vmul.f32 %v9403, %v9410
        %v9426 = vmul.f32 %v9404, %v9410
        %v9427 = vmul.f32 %v9405, %v9410
        %v9429 = vlaneseq
        %v9430 = vshrl.u32 %v9429, 7
        %v9431 = vsub.s32 0, %v9430
        %v9432 = vrot.slane %v9229, %v9431
        %v9434 = vadd.f32 %v9412, %v9432
        %v9435 = vadd.f32 %v9413, %v9432
        %v9436 = vadd.f32 %v9414, %v9432
        %v9437 = vadd.f32 %v9415, %v9432
        %v9438 = vadd.f32 %v9416, %v9432
        %v9439 = vadd.f32 %v9417, %v9432
        %v9440 = vadd.f32 %v9418, %v9432
        %v9441 = vadd.f32 %v9419, %v9432
        %v9442 = vadd.f32 %v9420, %v9432
        %v9443 = vadd.f32 %v9421, %v9432
        %v9444 = vadd.f32 %v9422, %v9432
        %v9445 = vadd.f32 %v9423, %v9432
        %v9446 = vadd.f32 %v9424, %v9432
        %v9447 = vadd.f32 %v9425, %v9432
        %v9448 = vadd.f32 %v9426, %v9432
        %v9449 = vadd.f32 %v9427, %v9432
        %v9450 = vpack.c.bf16 %v9435, %v9434
        %v9451 = vpack.c.bf16 %v9437, %v9436
        %v9452 = vpack.c.bf16 %v9439, %v9438
        %v9453 = vpack.c.bf16 %v9441, %v9440
        %v9454 = vpack.c.bf16 %v9443, %v9442
        %v9455 = vpack.c.bf16 %v9445, %v9444
        %v9456 = vpack.c.bf16 %v9447, %v9446
        %v9457 = vpack.c.bf16 %v9449, %v9448
        %v9458 = vld [vmem:[%s19] sm:$0xf]
        %v9459 = vld [vmem:[%s19 + $0x4] sm:$0xf]
        %v9460 = vld [vmem:[%s19 + $0x8] sm:$0xf]
        %v9461 = vld [vmem:[%s19 + $0xc] sm:$0xf]
        %v9462 = vld [vmem:[%s19 + $0x10] sm:$0xf]
        %v9463 = vld [vmem:[%s19 + $0x14] sm:$0xf]
        %v9464 = vld [vmem:[%s19 + $0x18] sm:$0xf]
        %v9465 = vld [vmem:[%s19 + $0x1c] sm:$0xf]
        %v9466 = vld [vmem:[%s19 + $0x20] sm:$0xf]
        %v9467 = vld [vmem:[%s19 + $0x24] sm:$0xf]
        %v9468 = vld [vmem:[%s19 + $0x28] sm:$0xf]
        %v9469 = vld [vmem:[%s19 + $0x2c] sm:$0xf]
        %v9470 = vld [vmem:[%s19 + $0x30] sm:$0xf]
        %v9471 = vld [vmem:[%s19 + $0x34] sm:$0xf]
        %v9472 = vld [vmem:[%s19 + $0x38] sm:$0xf]
        %v9473 = vld [vmem:[%s19 + $0x3c] sm:$0xf]
        %v9474 = vld [vmem:[#allocation19] sm:$0x1]
        %v9476 = vlaneseq
        %v9477 = vshrl.u32 %v9476, 7
        %v9478 = vsub.s32 0, %v9477
        %v9479 = vrot.slane %v9474, %v9478
        %v9497 = vunpack.c.l.b16 %v9458
        %v9498 = vunpack.c.l.b16 %v9459
        %v9499 = vunpack.c.l.b16 %v9460
        %v9500 = vunpack.c.l.b16 %v9461
        %v9501 = vunpack.c.l.b16 %v9462
        %v9502 = vunpack.c.l.b16 %v9463
        %v9503 = vunpack.c.l.b16 %v9464
        %v9504 = vunpack.c.l.b16 %v9465
        %v9505 = vunpack.c.l.b16 %v9466
        %v9506 = vunpack.c.l.b16 %v9467
        %v9507 = vunpack.c.l.b16 %v9468
        %v9508 = vunpack.c.l.b16 %v9469
        %v9509 = vunpack.c.l.b16 %v9470
        %v9510 = vunpack.c.l.b16 %v9471
        %v9511 = vunpack.c.l.b16 %v9472
        %v9512 = vunpack.c.l.b16 %v9473
        %v9513 = vpack.c.b16 %v9498, %v9497
        %v9514 = vpack.c.b16 %v9500, %v9499
        %v9515 = vpack.c.b16 %v9502, %v9501
        %v9516 = vpack.c.b16 %v9504, %v9503
        %v9517 = vpack.c.b16 %v9506, %v9505
        %v9518 = vpack.c.b16 %v9508, %v9507
        %v9519 = vpack.c.b16 %v9510, %v9509
        %v9520 = vpack.c.b16 %v9512, %v9511
        %9529 = vmatprep.subr.bf16.mxu0 0
        %9530 = vmatpush1.bf16.msra.mxu0 %v9513
        %9531 = vmatprep.subr.bf16.mxu0 0
        %9532 = vmatpush1.bf16.msra.mxu0 %v9514
        %9533 = vmatprep.subr.bf16.mxu0 0
        %9534 = vmatpush1.bf16.msra.mxu0 %v9515
        %9535 = vmatprep.subr.bf16.mxu0 0
        %9536 = vmatpush1.bf16.msra.mxu0 %v9516
        %9537 = vmatprep.subr.bf16.mxu0 0
        %9538 = vmatpush1.bf16.msra.mxu0 %v9517
        %9539 = vmatprep.subr.bf16.mxu0 0
        %9540 = vmatpush1.bf16.msra.mxu0 %v9518
        %9541 = vmatprep.subr.bf16.mxu0 0
        %9542 = vmatpush1.bf16.msra.mxu0 %v9519
        %9543 = vmatprep.subr.bf16.mxu0 0
        %9544 = vmatpush1.bf16.msra.mxu0 %v9520
        %9545 = vmatprep.subr.bf16.mxu0 0
        %9546 = vmatpush1.bf16.msra.mxu0 0
        %9547 = vmatprep.subr.bf16.mxu0 0
        %9548 = vmatpush1.bf16.msra.mxu0 0
        %9549 = vmatprep.subr.bf16.mxu0 0
        %9550 = vmatpush1.bf16.msra.mxu0 0
        %9551 = vmatprep.subr.bf16.mxu0 0
        %9552 = vmatpush1.bf16.msra.mxu0 0
        %9553 = vmatprep.subr.bf16.mxu0 0
        %9554 = vmatpush1.bf16.msra.mxu0 0
        %9555 = vmatprep.subr.bf16.mxu0 0
        %9556 = vmatpush1.bf16.msra.mxu0 0
        %9557 = vmatprep.subr.bf16.mxu0 0
        %9558 = vmatpush1.bf16.msra.mxu0 0
        %9559 = vmatprep.subr.bf16.mxu0 0
        %9560 = vmatpush1.bf16.msra.mxu0 0
        %9561 = vmatprep.mubr.bf16.mxu0 0
        %9562 = vmatmul.mubr.bf16.gmra.mrb[0].mxu0 %v9450
        %v9563 = vpop.f32.mrb[0].mxu0
        %v9564 = vadd.f32 %v9479, %v9563
        %v9565 = vpop.f32.mrb[0].mxu0
        %v9566 = vpop.f32.mrb[0].mxu0
        %v9567 = vadd.f32 %v9479, %v9566
        %v9568 = vpop.f32.mrb[0].mxu0
        %9569 = vmatprep.mubr.bf16.mxu0 0
        %9570 = vmatmul.mubr.bf16.gmra.mrb[0].mxu0 %v9451
        %v9571 = vpop.f32.mrb[0].mxu0
        %v9572 = vadd.f32 %v9479, %v9571
        %v9573 = vpop.f32.mrb[0].mxu0
        %v9574 = vpop.f32.mrb[0].mxu0
        %v9575 = vadd.f32 %v9479, %v9574
        %v9576 = vpop.f32.mrb[0].mxu0
        %9577 = vmatprep.mubr.bf16.mxu0 0
        %9578 = vmatmul.mubr.bf16.gmra.mrb[0].mxu0 %v9452
        %v9579 = vpop.f32.mrb[0].mxu0
        %v9580 = vadd.f32 %v9479, %v9579
        %v9581 = vpop.f32.mrb[0].mxu0
        %v9582 = vpop.f32.mrb[0].mxu0
        %v9583 = vadd.f32 %v9479, %v9582
        %v9584 = vpop.f32.mrb[0].mxu0
        %9585 = vmatprep.mubr.bf16.mxu0 0
        %9586 = vmatmul.mubr.bf16.gmra.mrb[0].mxu0 %v9453
        %v9587 = vpop.f32.mrb[0].mxu0
        %v9588 = vadd.f32 %v9479, %v9587
        %v9589 = vpop.f32.mrb[0].mxu0
        %v9590 = vpop.f32.mrb[0].mxu0
        %v9591 = vadd.f32 %v9479, %v9590
        %v9592 = vpop.f32.mrb[0].mxu0
        %9593 = vmatprep.mubr.bf16.mxu0 0
        %9594 = vmatmul.mubr.bf16.gmra.mrb[0].mxu0 %v9454
        %v9595 = vpop.f32.mrb[0].mxu0
        %v9596 = vadd.f32 %v9479, %v9595
        %v9597 = vpop.f32.mrb[0].mxu0
        %v9598 = vpop.f32.mrb[0].mxu0
        %v9599 = vadd.f32 %v9479, %v9598
        %v9600 = vpop.f32.mrb[0].mxu0
        %9601 = vmatprep.mubr.bf16.mxu0 0
        %9602 = vmatmul.mubr.bf16.gmra.mrb[0].mxu0 %v9455
        %v9603 = vpop.f32.mrb[0].mxu0
        %v9604 = vadd.f32 %v9479, %v9603
        %v9605 = vpop.f32.mrb[0].mxu0
        %v9606 = vpop.f32.mrb[0].mxu0
        %v9607 = vadd.f32 %v9479, %v9606
        %v9608 = vpop.f32.mrb[0].mxu0
        %9609 = vmatprep.mubr.bf16.mxu0 0
        %9610 = vmatmul.mubr.bf16.gmra.mrb[0].mxu0 %v9456
        %v9611 = vpop.f32.mrb[0].mxu0
        %v9612 = vadd.f32 %v9479, %v9611
        %v9613 = vpop.f32.mrb[0].mxu0
        %v9614 = vpop.f32.mrb[0].mxu0
        %v9615 = vadd.f32 %v9479, %v9614
        %v9616 = vpop.f32.mrb[0].mxu0
        %9617 = vmatprep.mubr.bf16.mxu0 0
        %9618 = vmatmul.mubr.bf16.gmra.mrb[0].mxu0 %v9457
        %v9619 = vpop.f32.mrb[0].mxu0
        %v9620 = vadd.f32 %v9479, %v9619
        %v9621 = vpop.f32.mrb[0].mxu0
        %v9622 = vpop.f32.mrb[0].mxu0
        %v9623 = vadd.f32 %v9479, %v9622
        %v9624 = vpop.f32.mrb[0].mxu0
        %9625 = vdwg.mxu0
        %9626 = vst [vmem:[%s843] sm:$0xff] %v9564
        %9627 = vst [vmem:[%s843 + $0x8] sm:$0xff] %v9567
        %9628 = vst [vmem:[%s843 + $0x10] sm:$0xff] %v9572
        %9629 = vst [vmem:[%s843 + $0x18] sm:$0xff] %v9575
        %9630 = vst [vmem:[%s843 + $0x20] sm:$0xff] %v9580
        %9631 = vst [vmem:[%s843 + $0x28] sm:$0xff] %v9583
        %9632 = vst [vmem:[%s843 + $0x30] sm:$0xff] %v9588
        %9633 = vst [vmem:[%s843 + $0x38] sm:$0xff] %v9591
        %9634 = vst [vmem:[%s843 + $0x40] sm:$0xff] %v9596
        %9635 = vst [vmem:[%s843 + $0x48] sm:$0xff] %v9599
        %9636 = vst [vmem:[%s843 + $0x50] sm:$0xff] %v9604
        %9637 = vst [vmem:[%s843 + $0x58] sm:$0xff] %v9607
        %9638 = vst [vmem:[%s843 + $0x60] sm:$0xff] %v9612
        %9639 = vst [vmem:[%s843 + $0x68] sm:$0xff] %v9615
        %9640 = vst [vmem:[%s843 + $0x70] sm:$0xff] %v9620
        %9641 = vst [vmem:[%s843 + $0x78] sm:$0xff] %v9623
        %s9642 = smul.u32 16, %s39
        %p9643 = scmp.lt.s32.totalorder %s9642, 31
        %s9644 = scalar_select %p9643, %s9642, 31
        %s9645 = smul.addr %s9644, 8
        %s9646 = scalar_lea.vmem %s21, %s9645
        // Predicated region
        $region153: #{bert_iso_forward.1} parent=103 // pred_check
          %p9647 = pneg %p508
        $region154: #{bert_iso_forward.1} parent=103 // pred_check_branch
          %9649 = sbr.rel (%p9647) target = $region156
        $region155: #{bert_iso_forward.1} parent=103 // pred_region
          %s9650 = smul.u32 16, %s39
        $region156: #{bert_iso_forward.1} parent=103 // pred_fallthru
          _
      $region104: #{bert_iso_forward.1} parent=5 // pred_fallthru
        _
      %p9651 = scmp.le.s32.totalorder 2, %s34
      // Predicated region
      $region157: #{bert_iso_forward.1} parent=5 // pred_check
        %p9652 = pneg %p9651
      $region158: #{bert_iso_forward.1} parent=5 // pred_check_branch
        %9654 = sbr.rel (%p9652) target = $region160
      $region159: #{bert_iso_forward.1} parent=5 // pred_region
        %s9655 = ssub.s32 %s34, 2
        // Predicated region
        $region161: #{bert_iso_forward.1} parent=159 // pred_check
          %p9656 = pneg %p514
        $region162: #{bert_iso_forward.1} parent=159 // pred_check_branch
          %9658 = sbr.rel (%p9656) target = $region164
        $region163: #{bert_iso_forward.1} parent=159 // pred_region
          %s9659 = smul.u32 16, %s40
          %p9660 = scmp.lt.s32.totalorder %s9659, 31
          %s9661 = scalar_select %p9660, %s9659, 31
          %s9662 = smul.addr %s9661, 8
          %s9663 = scalar_lea.vmem %s21, %s9662
        $region164: #{bert_iso_forward.1} parent=159 // pred_fallthru
          _
      $region160: #{bert_iso_forward.1} parent=5 // pred_fallthru
        _
    $region6: #{bert_iso_forward.1} parent=1 // loop_footer
      %s38 = sadd.s32 1, %s34
    $region7: #{bert_iso_forward.1} parent=1 // loop_footer_branch
      %33 = sbr.rel target = $region3
    $region8: #{bert_iso_forward.1} parent=1 // loop_exit
      _
    %9664 = vsyncpa [#allocation3], 1
    %s9665 = scalar_lea.sflag [#allocation3], 1
    %9666 = vsyncpa %s9665, 1
    %9667 = vsyncpa [#allocation5], 1
    %9668 = vsyncpa [#allocation8], 1
    %9669 = vsyncpa [#allocation11], 1
    %9670 = vsyncpa [#allocation14], 1
    %9671 = vsyncpa [#allocation17], 1
    %9672 = vsyncpa [#allocation20], 1

</llo_original>
